<compile_context>
chip_gen: v7x
topology: tpu7x:2x2x1
jax: 0.10.0
libtpu: 0.0.40
codegen_flags: <defaults>
</compile_context>

<pallas_src>
import functools

import jax
import jax.numpy as jnp
from jax.experimental import pallas as pl
from jax.experimental.pallas import tpu as pltpu


def _round_up(v, m):
    return (v + m - 1) // m * m


# ---------------------------------------------------------------------------
# Kernel: one grid step == one chunk of T_CHUNK timesteps of one GRU layer.
# ---------------------------------------------------------------------------
def _gru_chunk_kernel(x_ref, wih_ref, whh_ref, bi_ref, bh_ref,
                      o_ref, h_scr, gi_scr):
    """Shapes (all padded):
      x_ref:   (T_CHUNK, B_pad, C_pad)    input slab for this chunk
      wih_ref: (C_pad, 3*H_pad)           gate-blocked W_ih^T (VMEM resident)
      whh_ref: (H_pad, 3*H_pad)           gate-blocked W_hh^T (VMEM resident)
      bi_ref:  (1, 3*H_pad)               b_ih (+ b_hh folded in for r,z gates)
      bh_ref:  (1, 3*H_pad)               b_hh, nonzero only in the n-gate block
      o_ref:   (T_CHUNK, B_pad, H_pad)    per-timestep hidden-state outputs
      h_scr:   (B_pad, H_pad)             hidden state carried across chunks
      gi_scr:  (T_CHUNK, B_pad, 3*H_pad)  hoisted input projection
    """
    c = pl.program_id(0)

    @pl.when(c == 0)
    def _():
        h_scr[...] = jnp.zeros_like(h_scr)

    t_chunk, b_pad, c_pad = x_ref.shape
    h_pad = whh_ref.shape[0]

    # Hoisted input projection: one big MXU matmul for the whole chunk.
    gi = jnp.dot(x_ref[...].reshape(t_chunk * b_pad, c_pad), wih_ref[...],
                 preferred_element_type=jnp.float32) + bi_ref[...]
    gi_scr[...] = gi.reshape(t_chunk, b_pad, 3 * h_pad)

    def step(t, h):
        # Only the recurrent matmul lives on the serial critical path.
        gh = jnp.dot(h, whh_ref[...],
                     preferred_element_type=jnp.float32) + bh_ref[...]
        gi_t = gi_scr[t]                                       # (B_pad, 3*H_pad)
        # Gate slices are lane-tile aligned (H_pad is a multiple of 128).
        r = jax.nn.sigmoid(gi_t[:, 0 * h_pad:1 * h_pad] + gh[:, 0 * h_pad:1 * h_pad])
        z = jax.nn.sigmoid(gi_t[:, 1 * h_pad:2 * h_pad] + gh[:, 1 * h_pad:2 * h_pad])
        n = jnp.tanh(gi_t[:, 2 * h_pad:3 * h_pad] + r * gh[:, 2 * h_pad:3 * h_pad])
        h_new = n + z * (h - n)                                # == (1-z)*n + z*h
        o_ref[t] = h_new.astype(o_ref.dtype)                   # lane-dense store
        return h_new

    h_scr[...] = jax.lax.fori_loop(0, t_chunk, step, h_scr[...], unroll=True)


def gru_layer_pallas(x_p, wih_p, whh_p, bi, bh, *, t_chunk):
    """x_p: (T_pad, B_pad, C_pad) padded activations; returns (T_pad, B_pad, H_pad)."""
    t_pad, b_pad, c_pad = x_p.shape
    h_pad = whh_p.shape[0]
    n_chunks = t_pad // t_chunk

    return pl.pallas_call(
        _gru_chunk_kernel,
        out_shape=jax.ShapeDtypeStruct((t_pad, b_pad, h_pad), jnp.float32),
        grid_spec=pltpu.PrefetchScalarGridSpec(
            num_scalar_prefetch=0,
            grid=(n_chunks,),
            in_specs=[
                pl.BlockSpec((t_chunk, b_pad, c_pad), lambda c: (c, 0, 0)),  # x slab
                pl.BlockSpec((c_pad, 3 * h_pad), lambda c: (0, 0)),          # W_ih^T
                pl.BlockSpec((h_pad, 3 * h_pad), lambda c: (0, 0)),          # W_hh^T
                pl.BlockSpec((1, 3 * h_pad), lambda c: (0, 0)),              # bias (input)
                pl.BlockSpec((1, 3 * h_pad), lambda c: (0, 0)),              # bias (hidden, n-gate)
            ],
            out_specs=pl.BlockSpec((t_chunk, b_pad, h_pad), lambda c: (c, 0, 0)),
            scratch_shapes=[
                pltpu.VMEM((b_pad, h_pad), jnp.float32),                 # hidden state carry
                pltpu.VMEM((t_chunk, b_pad, 3 * h_pad), jnp.float32),    # hoisted gi
            ],
        ),
        compiler_params=pltpu.CompilerParams(
            dimension_semantics=("arbitrary",),   # sequential recurrence over chunks
        ),
    )(x_p, wih_p, whh_p, bi, bh)


# ---------------------------------------------------------------------------
# Parameter preparation: transpose, pad to lane-aligned gate blocks, fold bias.
# ---------------------------------------------------------------------------
def _prep_gru_params(w_ih, w_hh, b_ih, b_hh, c_pad, h_pad):
    """w_ih: (3H, C_in), w_hh: (3H, H), b_*: (3H,)  ->  padded, gate-blocked."""
    c_in = w_ih.shape[1]
    h = w_hh.shape[1]

    def gate_pack_t(w, rows, rows_pad):
        out = jnp.zeros((rows_pad, 3 * h_pad), jnp.float32)
        for g in range(3):
            out = out.at[:rows, g * h_pad:g * h_pad + h].set(w[g * h:(g + 1) * h, :].T)
        return out

    wih_p = gate_pack_t(w_ih, c_in, c_pad)
    whh_p = gate_pack_t(w_hh, h, h_pad)

    bi = jnp.zeros((1, 3 * h_pad), jnp.float32)
    bh = jnp.zeros((1, 3 * h_pad), jnp.float32)
    # Fold the r/z hidden biases into the input bias; keep b_hn separate because
    # it sits inside the r*(...) term.
    bi = bi.at[0, 0 * h_pad:0 * h_pad + h].set(b_ih[0 * h:1 * h] + b_hh[0 * h:1 * h])
    bi = bi.at[0, 1 * h_pad:1 * h_pad + h].set(b_ih[1 * h:2 * h] + b_hh[1 * h:2 * h])
    bi = bi.at[0, 2 * h_pad:2 * h_pad + h].set(b_ih[2 * h:3 * h])
    bh = bh.at[0, 2 * h_pad:2 * h_pad + h].set(b_hh[2 * h:3 * h])
    return wih_p, whh_p, bi, bh


def prepare_deep_rnn_params(params):
    """Pad/transpose every layer's GRU weights for the Pallas kernels (done once)."""
    prepped = []
    for (w_ih, w_hh, b_ih, b_hh) in params:
        c_pad = _round_up(w_ih.shape[1], 128)
        h_pad = _round_up(w_hh.shape[1], 128)
        prepped.append(_prep_gru_params(w_ih, w_hh, b_ih, b_hh, c_pad, h_pad))
    return tuple(prepped)


# ---------------------------------------------------------------------------
# Forward pass of DeepRNNNet: sequential GRU layers, time-major input.
# ---------------------------------------------------------------------------
@functools.partial(jax.jit, static_argnames=("out_dim", "t_chunk"))
def deep_rnn_net_pallas(x, prepped_params, *, out_dim, t_chunk=32):
    t, b, c = x.shape
    b_pad = _round_up(b, 8)
    tc = min(t, t_chunk)
    t_pad = _round_up(t, tc)
    c_pad = prepped_params[0][0].shape[0]

    # Pad once; padded lanes/rows/steps are zero and stay zero layer-to-layer.
    y = jnp.zeros((t_pad, b_pad, c_pad), jnp.float32).at[:t, :b, :c].set(x)
    for (wih_p, whh_p, bi, bh) in prepped_params:
        y = gru_layer_pallas(y, wih_p, whh_p, bi, bh, t_chunk=tc)
    return y[:t, :b, :out_dim]


# ---------------------------------------------------------------------------
# Reference + init (pure JAX, unpadded)
# ---------------------------------------------------------------------------
def init_deep_rnn_params(key, layer_size):
    """Deterministic GRU params, PyTorch-style uniform(-1/sqrt(H), 1/sqrt(H))."""
    params = []
    for i in range(len(layer_size) - 1):
        c_in, h = layer_size[i], layer_size[i + 1]
        key, k1, k2, k3, k4 = jax.random.split(key, 5)
        bound = 1.0 / jnp.sqrt(jnp.float32(h))
        w_ih = jax.random.uniform(k1, (3 * h, c_in), jnp.float32, -bound, bound)
        w_hh = jax.random.uniform(k2, (3 * h, h), jnp.float32, -bound, bound)
        b_ih = jax.random.uniform(k3, (3 * h,), jnp.float32, -bound, bound)
        b_hh = jax.random.uniform(k4, (3 * h,), jnp.float32, -bound, bound)
        params.append((w_ih, w_hh, b_ih, b_hh))
    return params


def deep_rnn_net_ref(x, params):
    """Pure-JAX reference (lax.scan GRU) for correctness checking."""
    y = x
    for (w_ih, w_hh, b_ih, b_hh) in params:
        h_dim = w_hh.shape[1]

        def step(h, x_t, w_ih=w_ih, w_hh=w_hh, b_ih=b_ih, b_hh=b_hh, H=h_dim):
            gi = x_t @ w_ih.T + b_ih
            gh = h @ w_hh.T + b_hh
            r = jax.nn.sigmoid(gi[:, :H] + gh[:, :H])
            z = jax.nn.sigmoid(gi[:, H:2 * H] + gh[:, H:2 * H])
            n = jnp.tanh(gi[:, 2 * H:] + r * gh[:, 2 * H:])
            h_new = (1.0 - z) * n + z * h
            return h_new, h_new

        h0 = jnp.zeros((y.shape[1], h_dim), jnp.float32)
        _, ys = jax.lax.scan(step, h0, y)
        y = ys
    return y


if __name__ == "__main__":
    # layer_size = [input, hidden1, hidden2] -> 2 GRU layers.
    layer_size = [32, 32, 32]
    T, B = 64, 8          # small, but long enough to exercise time-chunking (2 chunks)

    key = jax.random.PRNGKey(0)
    key, kx = jax.random.split(key)
    x = jax.random.normal(kx, (T, B, layer_size[0]), jnp.float32)

    params = init_deep_rnn_params(key, layer_size)
    prepped = prepare_deep_rnn_params(params)

    y = deep_rnn_net_pallas(x, prepped, out_dim=layer_size[-1])
    y = jax.block_until_ready(y)

    y_ref = deep_rnn_net_ref(x, params)
    assert y.shape == (T, B, layer_size[-1])
    max_err = float(jnp.max(jnp.abs(y - y_ref)))
    assert jnp.allclose(y, y_ref, atol=2e-4, rtol=2e-4), f"mismatch vs reference GRU: {max_err}"

    print("KERNEL_OK")
</pallas_src>

<mosaic_0001>
module attributes {stable_mosaic.version = 11 : i64} {
  func.func @_gru_chunk_kernel(%arg0: i32, %arg1: memref<32x8x128xf32, #tpu.memory_space<vmem>>, %arg2: memref<128x384xf32, #tpu.memory_space<vmem>>, %arg3: memref<128x384xf32, #tpu.memory_space<vmem>>, %arg4: memref<1x384xf32, #tpu.memory_space<vmem>>, %arg5: memref<1x384xf32, #tpu.memory_space<vmem>>, %arg6: memref<32x8x128xf32, #tpu.memory_space<vmem>>, %arg7: memref<8x128xf32, #tpu.memory_space<vmem>>, %arg8: memref<32x8x384xf32, #tpu.memory_space<vmem>>) attributes {dimension_semantics = [#tpu.dimension_semantics<arbitrary>], iteration_bounds = array<i64: 2>, scalar_prefetch = 0 : i64, scratch_operands = 2 : i64, tpu.core_type = #tpu.core_type<tc>, window_params = [{transform_indices = @transform_0, window_bounds = array<i64: 32, 8, 128>}, {pipeline_mode = #tpu.pipeline_mode<synchronous>, transform_indices = @transform_1, window_bounds = array<i64: 128, 384>}, {pipeline_mode = #tpu.pipeline_mode<synchronous>, transform_indices = @transform_2, window_bounds = array<i64: 128, 384>}, {pipeline_mode = #tpu.pipeline_mode<synchronous>, transform_indices = @transform_3, window_bounds = array<i64: 1, 384>}, {pipeline_mode = #tpu.pipeline_mode<synchronous>, transform_indices = @transform_4, window_bounds = array<i64: 1, 384>}, {transform_indices = @transform_5, window_bounds = array<i64: 32, 8, 128>}]} {
    %c0_i32 = arith.constant 0 : i32
    %0 = arith.cmpi eq, %arg0, %c0_i32 : i32
    %1 = arith.extui %0 : i1 to i32
    %c0_i32_0 = arith.constant 0 : i32
    %2 = arith.cmpi ne, %1, %c0_i32_0 : i32
    scf.if %2 {
      %cst_367 = arith.constant 0.000000e+00 : f32
      %1166 = vector.broadcast %cst_367 : f32 to vector<8x128xf32>
      %c0_368 = arith.constant 0 : index
      %c0_369 = arith.constant 0 : index
      %1167 = vector.load %arg7[%c0_368, %c0_369] : memref<8x128xf32, #tpu.memory_space<vmem>>, vector<8x128xf32>
      tpu.vector_store %arg7[%c0_368, %c0_369], %1166 {strides = array<i32>} : memref<8x128xf32, #tpu.memory_space<vmem>>, vector<8x128xf32>,
    } else {
    }
    %c0 = arith.constant 0 : index
    %c0_1 = arith.constant 0 : index
    %c0_2 = arith.constant 0 : index
    %3 = vector.load %arg1[%c0, %c0_1, %c0_2] : memref<32x8x128xf32, #tpu.memory_space<vmem>>, vector<32x8x128xf32>
    %4 = vector.shape_cast %3 : vector<32x8x128xf32> to vector<256x128xf32>
    %c0_3 = arith.constant 0 : index
    %c0_4 = arith.constant 0 : index
    %5 = vector.load %arg2[%c0_3, %c0_4] : memref<128x384xf32, #tpu.memory_space<vmem>>, vector<128x384xf32>
    %cst = arith.constant dense<0.000000e+00> : vector<256x384xf32>
    %6 = tpu.matmul %4, %5, %cst {dimension_numbers = #tpu.dot_dimension_numbers<[1], [0], [0], [1], [0, 0, 1, 1], [], []>} : vector<256x128xf32>, vector<128x384xf32>, vector<256x384xf32> -> vector<256x384xf32>
    %c0_5 = arith.constant 0 : index
    %c0_6 = arith.constant 0 : index
    %7 = vector.load %arg4[%c0_5, %c0_6] : memref<1x384xf32, #tpu.memory_space<vmem>>, vector<1x384xf32>
    %8 = vector.broadcast %7 : vector<1x384xf32> to vector<256x384xf32>
    %9 = arith.addf %6, %8 : vector<256x384xf32>
    %10 = vector.shape_cast %9 : vector<256x384xf32> to vector<32x8x384xf32>
    %c0_7 = arith.constant 0 : index
    %c0_8 = arith.constant 0 : index
    %c0_9 = arith.constant 0 : index
    %11 = vector.load %arg8[%c0_7, %c0_8, %c0_9] : memref<32x8x384xf32, #tpu.memory_space<vmem>>, vector<32x8x384xf32>
    tpu.vector_store %arg8[%c0_7, %c0_8, %c0_9], %10 {strides = array<i32>} : memref<32x8x384xf32, #tpu.memory_space<vmem>>, vector<32x8x384xf32>,
    %c0_10 = arith.constant 0 : index
    %c0_11 = arith.constant 0 : index
    %12 = vector.load %arg7[%c0_10, %c0_11] : memref<8x128xf32, #tpu.memory_space<vmem>>, vector<8x128xf32>
    %c0_i32_12 = arith.constant 0 : i32
    %c0_13 = arith.constant 0 : index
    %c0_14 = arith.constant 0 : index
    %13 = vector.load %arg3[%c0_13, %c0_14] : memref<128x384xf32, #tpu.memory_space<vmem>>, vector<128x384xf32>
    %cst_15 = arith.constant dense<0.000000e+00> : vector<8x384xf32>
    %14 = tpu.matmul %12, %13, %cst_15 {dimension_numbers = #tpu.dot_dimension_numbers<[1], [0], [0], [1], [0, 0, 1, 1], [], []>} : vector<8x128xf32>, vector<128x384xf32>, vector<8x384xf32> -> vector<8x384xf32>
    %c0_16 = arith.constant 0 : index
    %c0_17 = arith.constant 0 : index
    %15 = vector.load %arg5[%c0_16, %c0_17] : memref<1x384xf32, #tpu.memory_space<vmem>>, vector<1x384xf32>
    %16 = vector.broadcast %15 : vector<1x384xf32> to vector<8x384xf32>
    %17 = arith.addf %14, %16 : vector<8x384xf32>
    %18 = arith.index_cast %c0_i32_12 : i32 to index
    %c0_18 = arith.constant 0 : index
    %c0_19 = arith.constant 0 : index
    %19 = vector.load %arg8[%18, %c0_18, %c0_19] : memref<32x8x384xf32, #tpu.memory_space<vmem>>, vector<1x8x384xf32>
    %20 = vector.shape_cast %19 : vector<1x8x384xf32> to vector<8x384xf32>
    %21 = vector.extract_strided_slice %20 {offsets = [0, 0], sizes = [8, 128], strides = [1, 1]} : vector<8x384xf32> to vector<8x128xf32>
    %22 = vector.extract_strided_slice %17 {offsets = [0, 0], sizes = [8, 128], strides = [1, 1]} : vector<8x384xf32> to vector<8x128xf32>
    %23 = arith.addf %21, %22 : vector<8x128xf32>
    %24 = arith.negf %23 : vector<8x128xf32>
    %25 = math.exp %24 : vector<8x128xf32>
    %cst_20 = arith.constant 1.000000e+00 : f32
    %26 = vector.broadcast %cst_20 : f32 to vector<8x128xf32>
    %27 = arith.addf %26, %25 : vector<8x128xf32>
    %28 = arith.divf %26, %27 : vector<8x128xf32>
    %29 = vector.extract_strided_slice %20 {offsets = [0, 128], sizes = [8, 128], strides = [1, 1]} : vector<8x384xf32> to vector<8x128xf32>
    %30 = vector.extract_strided_slice %17 {offsets = [0, 128], sizes = [8, 128], strides = [1, 1]} : vector<8x384xf32> to vector<8x128xf32>
    %31 = arith.addf %29, %30 : vector<8x128xf32>
    %32 = arith.negf %31 : vector<8x128xf32>
    %33 = math.exp %32 : vector<8x128xf32>
    %cst_21 = arith.constant 1.000000e+00 : f32
    %34 = vector.broadcast %cst_21 : f32 to vector<8x128xf32>
    %35 = arith.addf %34, %33 : vector<8x128xf32>
    %36 = arith.divf %34, %35 : vector<8x128xf32>
    %37 = vector.extract_strided_slice %20 {offsets = [0, 256], sizes = [8, 128], strides = [1, 1]} : vector<8x384xf32> to vector<8x128xf32>
    %38 = vector.extract_strided_slice %17 {offsets = [0, 256], sizes = [8, 128], strides = [1, 1]} : vector<8x384xf32> to vector<8x128xf32>
    %39 = arith.mulf %28, %38 : vector<8x128xf32>
    %40 = arith.addf %37, %39 : vector<8x128xf32>
    %41 = math.tanh %40 : vector<8x128xf32>
    %42 = arith.subf %12, %41 : vector<8x128xf32>
    %43 = arith.mulf %36, %42 : vector<8x128xf32>
    %44 = arith.addf %41, %43 : vector<8x128xf32>
    %45 = arith.index_cast %c0_i32_12 : i32 to index
    %c0_22 = arith.constant 0 : index
    %c0_23 = arith.constant 0 : index
    %46 = vector.load %arg6[%45, %c0_22, %c0_23] : memref<32x8x128xf32, #tpu.memory_space<vmem>>, vector<1x8x128xf32>
    %47 = vector.shape_cast %46 : vector<1x8x128xf32> to vector<8x128xf32>
    %48 = vector.shape_cast %44 : vector<8x128xf32> to vector<1x8x128xf32>
    tpu.vector_store %arg6[%45, %c0_22, %c0_23], %48 {strides = array<i32>} : memref<32x8x128xf32, #tpu.memory_space<vmem>>, vector<1x8x128xf32>,
    %c1_i32 = arith.constant 1 : i32
    %c0_24 = arith.constant 0 : index
    %c0_25 = arith.constant 0 : index
    %49 = vector.load %arg3[%c0_24, %c0_25] : memref<128x384xf32, #tpu.memory_space<vmem>>, vector<128x384xf32>
    %cst_26 = arith.constant dense<0.000000e+00> : vector<8x384xf32>
    %50 = tpu.matmul %44, %49, %cst_26 {dimension_numbers = #tpu.dot_dimension_numbers<[1], [0], [0], [1], [0, 0, 1, 1], [], []>} : vector<8x128xf32>, vector<128x384xf32>, vector<8x384xf32> -> vector<8x384xf32>
    %c0_27 = arith.constant 0 : index
    %c0_28 = arith.constant 0 : index
    %51 = vector.load %arg5[%c0_27, %c0_28] : memref<1x384xf32, #tpu.memory_space<vmem>>, vector<1x384xf32>
    %52 = vector.broadcast %51 : vector<1x384xf32> to vector<8x384xf32>
    %53 = arith.addf %50, %52 : vector<8x384xf32>
    %54 = arith.index_cast %c1_i32 : i32 to index
    %c0_29 = arith.constant 0 : index
    %c0_30 = arith.constant 0 : index
    %55 = vector.load %arg8[%54, %c0_29, %c0_30] : memref<32x8x384xf32, #tpu.memory_space<vmem>>, vector<1x8x384xf32>
    %56 = vector.shape_cast %55 : vector<1x8x384xf32> to vector<8x384xf32>
    %57 = vector.extract_strided_slice %56 {offsets = [0, 0], sizes = [8, 128], strides = [1, 1]} : vector<8x384xf32> to vector<8x128xf32>
    %58 = vector.extract_strided_slice %53 {offsets = [0, 0], sizes = [8, 128], strides = [1, 1]} : vector<8x384xf32> to vector<8x128xf32>
    %59 = arith.addf %57, %58 : vector<8x128xf32>
    %60 = arith.negf %59 : vector<8x128xf32>
    %61 = math.exp %60 : vector<8x128xf32>
    %cst_31 = arith.constant 1.000000e+00 : f32
    %62 = vector.broadcast %cst_31 : f32 to vector<8x128xf32>
    %63 = arith.addf %62, %61 : vector<8x128xf32>
    %64 = arith.divf %62, %63 : vector<8x128xf32>
    %65 = vector.extract_strided_slice %56 {offsets = [0, 128], sizes = [8, 128], strides = [1, 1]} : vector<8x384xf32> to vector<8x128xf32>
    %66 = vector.extract_strided_slice %53 {offsets = [0, 128], sizes = [8, 128], strides = [1, 1]} : vector<8x384xf32> to vector<8x128xf32>
    %67 = arith.addf %65, %66 : vector<8x128xf32>
    %68 = arith.negf %67 : vector<8x128xf32>
    %69 = math.exp %68 : vector<8x128xf32>
    %cst_32 = arith.constant 1.000000e+00 : f32
    %70 = vector.broadcast %cst_32 : f32 to vector<8x128xf32>
    %71 = arith.addf %70, %69 : vector<8x128xf32>
    %72 = arith.divf %70, %71 : vector<8x128xf32>
    %73 = vector.extract_strided_slice %56 {offsets = [0, 256], sizes = [8, 128], strides = [1, 1]} : vector<8x384xf32> to vector<8x128xf32>
    %74 = vector.extract_strided_slice %53 {offsets = [0, 256], sizes = [8, 128], strides = [1, 1]} : vector<8x384xf32> to vector<8x128xf32>
    %75 = arith.mulf %64, %74 : vector<8x128xf32>
    %76 = arith.addf %73, %75 : vector<8x128xf32>
    %77 = math.tanh %76 : vector<8x128xf32>
    %78 = arith.subf %44, %77 : vector<8x128xf32>
    %79 = arith.mulf %72, %78 : vector<8x128xf32>
    %80 = arith.addf %77, %79 : vector<8x128xf32>
    %81 = arith.index_cast %c1_i32 : i32 to index
    %c0_33 = arith.constant 0 : index
    %c0_34 = arith.constant 0 : index
    %82 = vector.load %arg6[%81, %c0_33, %c0_34] : memref<32x8x128xf32, #tpu.memory_space<vmem>>, vector<1x8x128xf32>
    %83 = vector.shape_cast %82 : vector<1x8x128xf32> to vector<8x128xf32>
    %84 = vector.shape_cast %80 : vector<8x128xf32> to vector<1x8x128xf32>
    tpu.vector_store %arg6[%81, %c0_33, %c0_34], %84 {strides = array<i32>} : memref<32x8x128xf32, #tpu.memory_space<vmem>>, vector<1x8x128xf32>,
    %c2_i32 = arith.constant 2 : i32
    %c0_35 = arith.constant 0 : index
    %c0_36 = arith.constant 0 : index
    %85 = vector.load %arg3[%c0_35, %c0_36] : memref<128x384xf32, #tpu.memory_space<vmem>>, vector<128x384xf32>
    %cst_37 = arith.constant dense<0.000000e+00> : vector<8x384xf32>
    %86 = tpu.matmul %80, %85, %cst_37 {dimension_numbers = #tpu.dot_dimension_numbers<[1], [0], [0], [1], [0, 0, 1, 1], [], []>} : vector<8x128xf32>, vector<128x384xf32>, vector<8x384xf32> -> vector<8x384xf32>
    %c0_38 = arith.constant 0 : index
    %c0_39 = arith.constant 0 : index
    %87 = vector.load %arg5[%c0_38, %c0_39] : memref<1x384xf32, #tpu.memory_space<vmem>>, vector<1x384xf32>
    %88 = vector.broadcast %87 : vector<1x384xf32> to vector<8x384xf32>
    %89 = arith.addf %86, %88 : vector<8x384xf32>
    %90 = arith.index_cast %c2_i32 : i32 to index
    %c0_40 = arith.constant 0 : index
    %c0_41 = arith.constant 0 : index
    %91 = vector.load %arg8[%90, %c0_40, %c0_41] : memref<32x8x384xf32, #tpu.memory_space<vmem>>, vector<1x8x384xf32>
    %92 = vector.shape_cast %91 : vector<1x8x384xf32> to vector<8x384xf32>
    %93 = vector.extract_strided_slice %92 {offsets = [0, 0], sizes = [8, 128], strides = [1, 1]} : vector<8x384xf32> to vector<8x128xf32>
    %94 = vector.extract_strided_slice %89 {offsets = [0, 0], sizes = [8, 128], strides = [1, 1]} : vector<8x384xf32> to vector<8x128xf32>
    %95 = arith.addf %93, %94 : vector<8x128xf32>
    %96 = arith.negf %95 : vector<8x128xf32>
    %97 = math.exp %96 : vector<8x128xf32>
    %cst_42 = arith.constant 1.000000e+00 : f32
    %98 = vector.broadcast %cst_42 : f32 to vector<8x128xf32>
    %99 = arith.addf %98, %97 : vector<8x128xf32>
    %100 = arith.divf %98, %99 : vector<8x128xf32>
    %101 = vector.extract_strided_slice %92 {offsets = [0, 128], sizes = [8, 128], strides = [1, 1]} : vector<8x384xf32> to vector<8x128xf32>
    %102 = vector.extract_strided_slice %89 {offsets = [0, 128], sizes = [8, 128], strides = [1, 1]} : vector<8x384xf32> to vector<8x128xf32>
    %103 = arith.addf %101, %102 : vector<8x128xf32>
    %104 = arith.negf %103 : vector<8x128xf32>
    %105 = math.exp %104 : vector<8x128xf32>
    %cst_43 = arith.constant 1.000000e+00 : f32
    %106 = vector.broadcast %cst_43 : f32 to vector<8x128xf32>
    %107 = arith.addf %106, %105 : vector<8x128xf32>
    %108 = arith.divf %106, %107 : vector<8x128xf32>
    %109 = vector.extract_strided_slice %92 {offsets = [0, 256], sizes = [8, 128], strides = [1, 1]} : vector<8x384xf32> to vector<8x128xf32>
    %110 = vector.extract_strided_slice %89 {offsets = [0, 256], sizes = [8, 128], strides = [1, 1]} : vector<8x384xf32> to vector<8x128xf32>
    %111 = arith.mulf %100, %110 : vector<8x128xf32>
    %112 = arith.addf %109, %111 : vector<8x128xf32>
    %113 = math.tanh %112 : vector<8x128xf32>
    %114 = arith.subf %80, %113 : vector<8x128xf32>
    %115 = arith.mulf %108, %114 : vector<8x128xf32>
    %116 = arith.addf %113, %115 : vector<8x128xf32>
    %117 = arith.index_cast %c2_i32 : i32 to index
    %c0_44 = arith.constant 0 : index
    %c0_45 = arith.constant 0 : index
    %118 = vector.load %arg6[%117, %c0_44, %c0_45] : memref<32x8x128xf32, #tpu.memory_space<vmem>>, vector<1x8x128xf32>
    %119 = vector.shape_cast %118 : vector<1x8x128xf32> to vector<8x128xf32>
    %120 = vector.shape_cast %116 : vector<8x128xf32> to vector<1x8x128xf32>
    tpu.vector_store %arg6[%117, %c0_44, %c0_45], %120 {strides = array<i32>} : memref<32x8x128xf32, #tpu.memory_space<vmem>>, vector<1x8x128xf32>,
    %c3_i32 = arith.constant 3 : i32
    %c0_46 = arith.constant 0 : index
    %c0_47 = arith.constant 0 : index
    %121 = vector.load %arg3[%c0_46, %c0_47] : memref<128x384xf32, #tpu.memory_space<vmem>>, vector<128x384xf32>
    %cst_48 = arith.constant dense<0.000000e+00> : vector<8x384xf32>
    %122 = tpu.matmul %116, %121, %cst_48 {dimension_numbers = #tpu.dot_dimension_numbers<[1], [0], [0], [1], [0, 0, 1, 1], [], []>} : vector<8x128xf32>, vector<128x384xf32>, vector<8x384xf32> -> vector<8x384xf32>
    %c0_49 = arith.constant 0 : index
    %c0_50 = arith.constant 0 : index
    %123 = vector.load %arg5[%c0_49, %c0_50] : memref<1x384xf32, #tpu.memory_space<vmem>>, vector<1x384xf32>
    %124 = vector.broadcast %123 : vector<1x384xf32> to vector<8x384xf32>
    %125 = arith.addf %122, %124 : vector<8x384xf32>
    %126 = arith.index_cast %c3_i32 : i32 to index
    %c0_51 = arith.constant 0 : index
    %c0_52 = arith.constant 0 : index
    %127 = vector.load %arg8[%126, %c0_51, %c0_52] : memref<32x8x384xf32, #tpu.memory_space<vmem>>, vector<1x8x384xf32>
    %128 = vector.shape_cast %127 : vector<1x8x384xf32> to vector<8x384xf32>
    %129 = vector.extract_strided_slice %128 {offsets = [0, 0], sizes = [8, 128], strides = [1, 1]} : vector<8x384xf32> to vector<8x128xf32>
    %130 = vector.extract_strided_slice %125 {offsets = [0, 0], sizes = [8, 128], strides = [1, 1]} : vector<8x384xf32> to vector<8x128xf32>
    %131 = arith.addf %129, %130 : vector<8x128xf32>
    %132 = arith.negf %131 : vector<8x128xf32>
    %133 = math.exp %132 : vector<8x128xf32>
    %cst_53 = arith.constant 1.000000e+00 : f32
    %134 = vector.broadcast %cst_53 : f32 to vector<8x128xf32>
    %135 = arith.addf %134, %133 : vector<8x128xf32>
    %136 = arith.divf %134, %135 : vector<8x128xf32>
    %137 = vector.extract_strided_slice %128 {offsets = [0, 128], sizes = [8, 128], strides = [1, 1]} : vector<8x384xf32> to vector<8x128xf32>
    %138 = vector.extract_strided_slice %125 {offsets = [0, 128], sizes = [8, 128], strides = [1, 1]} : vector<8x384xf32> to vector<8x128xf32>
    %139 = arith.addf %137, %138 : vector<8x128xf32>
    %140 = arith.negf %139 : vector<8x128xf32>
    %141 = math.exp %140 : vector<8x128xf32>
    %cst_54 = arith.constant 1.000000e+00 : f32
    %142 = vector.broadcast %cst_54 : f32 to vector<8x128xf32>
    %143 = arith.addf %142, %141 : vector<8x128xf32>
    %144 = arith.divf %142, %143 : vector<8x128xf32>
    %145 = vector.extract_strided_slice %128 {offsets = [0, 256], sizes = [8, 128], strides = [1, 1]} : vector<8x384xf32> to vector<8x128xf32>
    %146 = vector.extract_strided_slice %125 {offsets = [0, 256], sizes = [8, 128], strides = [1, 1]} : vector<8x384xf32> to vector<8x128xf32>
    %147 = arith.mulf %136, %146 : vector<8x128xf32>
    %148 = arith.addf %145, %147 : vector<8x128xf32>
    %149 = math.tanh %148 : vector<8x128xf32>
    %150 = arith.subf %116, %149 : vector<8x128xf32>
    %151 = arith.mulf %144, %150 : vector<8x128xf32>
    %152 = arith.addf %149, %151 : vector<8x128xf32>
    %153 = arith.index_cast %c3_i32 : i32 to index
    %c0_55 = arith.constant 0 : index
    %c0_56 = arith.constant 0 : index
    %154 = vector.load %arg6[%153, %c0_55, %c0_56] : memref<32x8x128xf32, #tpu.memory_space<vmem>>, vector<1x8x128xf32>
    %155 = vector.shape_cast %154 : vector<1x8x128xf32> to vector<8x128xf32>
    %156 = vector.shape_cast %152 : vector<8x128xf32> to vector<1x8x128xf32>
    tpu.vector_store %arg6[%153, %c0_55, %c0_56], %156 {strides = array<i32>} : memref<32x8x128xf32, #tpu.memory_space<vmem>>, vector<1x8x128xf32>,
    %c4_i32 = arith.constant 4 : i32
    %c0_57 = arith.constant 0 : index
    %c0_58 = arith.constant 0 : index
    %157 = vector.load %arg3[%c0_57, %c0_58] : memref<128x384xf32, #tpu.memory_space<vmem>>, vector<128x384xf32>
    %cst_59 = arith.constant dense<0.000000e+00> : vector<8x384xf32>
    %158 = tpu.matmul %152, %157, %cst_59 {dimension_numbers = #tpu.dot_dimension_numbers<[1], [0], [0], [1], [0, 0, 1, 1], [], []>} : vector<8x128xf32>, vector<128x384xf32>, vector<8x384xf32> -> vector<8x384xf32>
    %c0_60 = arith.constant 0 : index
    %c0_61 = arith.constant 0 : index
    %159 = vector.load %arg5[%c0_60, %c0_61] : memref<1x384xf32, #tpu.memory_space<vmem>>, vector<1x384xf32>
    %160 = vector.broadcast %159 : vector<1x384xf32> to vector<8x384xf32>
    %161 = arith.addf %158, %160 : vector<8x384xf32>
    %162 = arith.index_cast %c4_i32 : i32 to index
    %c0_62 = arith.constant 0 : index
    %c0_63 = arith.constant 0 : index
    %163 = vector.load %arg8[%162, %c0_62, %c0_63] : memref<32x8x384xf32, #tpu.memory_space<vmem>>, vector<1x8x384xf32>
    %164 = vector.shape_cast %163 : vector<1x8x384xf32> to vector<8x384xf32>
    %165 = vector.extract_strided_slice %164 {offsets = [0, 0], sizes = [8, 128], strides = [1, 1]} : vector<8x384xf32> to vector<8x128xf32>
    %166 = vector.extract_strided_slice %161 {offsets = [0, 0], sizes = [8, 128], strides = [1, 1]} : vector<8x384xf32> to vector<8x128xf32>
    %167 = arith.addf %165, %166 : vector<8x128xf32>
    %168 = arith.negf %167 : vector<8x128xf32>
    %169 = math.exp %168 : vector<8x128xf32>
    %cst_64 = arith.constant 1.000000e+00 : f32
    %170 = vector.broadcast %cst_64 : f32 to vector<8x128xf32>
    %171 = arith.addf %170, %169 : vector<8x128xf32>
    %172 = arith.divf %170, %171 : vector<8x128xf32>
    %173 = vector.extract_strided_slice %164 {offsets = [0, 128], sizes = [8, 128], strides = [1, 1]} : vector<8x384xf32> to vector<8x128xf32>
    %174 = vector.extract_strided_slice %161 {offsets = [0, 128], sizes = [8, 128], strides = [1, 1]} : vector<8x384xf32> to vector<8x128xf32>
    %175 = arith.addf %173, %174 : vector<8x128xf32>
    %176 = arith.negf %175 : vector<8x128xf32>
    %177 = math.exp %176 : vector<8x128xf32>
    %cst_65 = arith.constant 1.000000e+00 : f32
    %178 = vector.broadcast %cst_65 : f32 to vector<8x128xf32>
    %179 = arith.addf %178, %177 : vector<8x128xf32>
    %180 = arith.divf %178, %179 : vector<8x128xf32>
    %181 = vector.extract_strided_slice %164 {offsets = [0, 256], sizes = [8, 128], strides = [1, 1]} : vector<8x384xf32> to vector<8x128xf32>
    %182 = vector.extract_strided_slice %161 {offsets = [0, 256], sizes = [8, 128], strides = [1, 1]} : vector<8x384xf32> to vector<8x128xf32>
    %183 = arith.mulf %172, %182 : vector<8x128xf32>
    %184 = arith.addf %181, %183 : vector<8x128xf32>
    %185 = math.tanh %184 : vector<8x128xf32>
    %186 = arith.subf %152, %185 : vector<8x128xf32>
    %187 = arith.mulf %180, %186 : vector<8x128xf32>
    %188 = arith.addf %185, %187 : vector<8x128xf32>
    %189 = arith.index_cast %c4_i32 : i32 to index
    %c0_66 = arith.constant 0 : index
    %c0_67 = arith.constant 0 : index
    %190 = vector.load %arg6[%189, %c0_66, %c0_67] : memref<32x8x128xf32, #tpu.memory_space<vmem>>, vector<1x8x128xf32>
    %191 = vector.shape_cast %190 : vector<1x8x128xf32> to vector<8x128xf32>
    %192 = vector.shape_cast %188 : vector<8x128xf32> to vector<1x8x128xf32>
    tpu.vector_store %arg6[%189, %c0_66, %c0_67], %192 {strides = array<i32>} : memref<32x8x128xf32, #tpu.memory_space<vmem>>, vector<1x8x128xf32>,
    %c5_i32 = arith.constant 5 : i32
    %c0_68 = arith.constant 0 : index
    %c0_69 = arith.constant 0 : index
    %193 = vector.load %arg3[%c0_68, %c0_69] : memref<128x384xf32, #tpu.memory_space<vmem>>, vector<128x384xf32>
    %cst_70 = arith.constant dense<0.000000e+00> : vector<8x384xf32>
    %194 = tpu.matmul %188, %193, %cst_70 {dimension_numbers = #tpu.dot_dimension_numbers<[1], [0], [0], [1], [0, 0, 1, 1], [], []>} : vector<8x128xf32>, vector<128x384xf32>, vector<8x384xf32> -> vector<8x384xf32>
    %c0_71 = arith.constant 0 : index
    %c0_72 = arith.constant 0 : index
    %195 = vector.load %arg5[%c0_71, %c0_72] : memref<1x384xf32, #tpu.memory_space<vmem>>, vector<1x384xf32>
    %196 = vector.broadcast %195 : vector<1x384xf32> to vector<8x384xf32>
    %197 = arith.addf %194, %196 : vector<8x384xf32>
    %198 = arith.index_cast %c5_i32 : i32 to index
    %c0_73 = arith.constant 0 : index
    %c0_74 = arith.constant 0 : index
    %199 = vector.load %arg8[%198, %c0_73, %c0_74] : memref<32x8x384xf32, #tpu.memory_space<vmem>>, vector<1x8x384xf32>
    %200 = vector.shape_cast %199 : vector<1x8x384xf32> to vector<8x384xf32>
    %201 = vector.extract_strided_slice %200 {offsets = [0, 0], sizes = [8, 128], strides = [1, 1]} : vector<8x384xf32> to vector<8x128xf32>
    %202 = vector.extract_strided_slice %197 {offsets = [0, 0], sizes = [8, 128], strides = [1, 1]} : vector<8x384xf32> to vector<8x128xf32>
    %203 = arith.addf %201, %202 : vector<8x128xf32>
    %204 = arith.negf %203 : vector<8x128xf32>
    %205 = math.exp %204 : vector<8x128xf32>
    %cst_75 = arith.constant 1.000000e+00 : f32
    %206 = vector.broadcast %cst_75 : f32 to vector<8x128xf32>
    %207 = arith.addf %206, %205 : vector<8x128xf32>
    %208 = arith.divf %206, %207 : vector<8x128xf32>
    %209 = vector.extract_strided_slice %200 {offsets = [0, 128], sizes = [8, 128], strides = [1, 1]} : vector<8x384xf32> to vector<8x128xf32>
    %210 = vector.extract_strided_slice %197 {offsets = [0, 128], sizes = [8, 128], strides = [1, 1]} : vector<8x384xf32> to vector<8x128xf32>
    %211 = arith.addf %209, %210 : vector<8x128xf32>
    %212 = arith.negf %211 : vector<8x128xf32>
    %213 = math.exp %212 : vector<8x128xf32>
    %cst_76 = arith.constant 1.000000e+00 : f32
    %214 = vector.broadcast %cst_76 : f32 to vector<8x128xf32>
    %215 = arith.addf %214, %213 : vector<8x128xf32>
    %216 = arith.divf %214, %215 : vector<8x128xf32>
    %217 = vector.extract_strided_slice %200 {offsets = [0, 256], sizes = [8, 128], strides = [1, 1]} : vector<8x384xf32> to vector<8x128xf32>
    %218 = vector.extract_strided_slice %197 {offsets = [0, 256], sizes = [8, 128], strides = [1, 1]} : vector<8x384xf32> to vector<8x128xf32>
    %219 = arith.mulf %208, %218 : vector<8x128xf32>
    %220 = arith.addf %217, %219 : vector<8x128xf32>
    %221 = math.tanh %220 : vector<8x128xf32>
    %222 = arith.subf %188, %221 : vector<8x128xf32>
    %223 = arith.mulf %216, %222 : vector<8x128xf32>
    %224 = arith.addf %221, %223 : vector<8x128xf32>
    %225 = arith.index_cast %c5_i32 : i32 to index
    %c0_77 = arith.constant 0 : index
    %c0_78 = arith.constant 0 : index
    %226 = vector.load %arg6[%225, %c0_77, %c0_78] : memref<32x8x128xf32, #tpu.memory_space<vmem>>, vector<1x8x128xf32>
    %227 = vector.shape_cast %226 : vector<1x8x128xf32> to vector<8x128xf32>
    %228 = vector.shape_cast %224 : vector<8x128xf32> to vector<1x8x128xf32>
    tpu.vector_store %arg6[%225, %c0_77, %c0_78], %228 {strides = array<i32>} : memref<32x8x128xf32, #tpu.memory_space<vmem>>, vector<1x8x128xf32>,
    %c6_i32 = arith.constant 6 : i32
    %c0_79 = arith.constant 0 : index
    %c0_80 = arith.constant 0 : index
    %229 = vector.load %arg3[%c0_79, %c0_80] : memref<128x384xf32, #tpu.memory_space<vmem>>, vector<128x384xf32>
    %cst_81 = arith.constant dense<0.000000e+00> : vector<8x384xf32>
    %230 = tpu.matmul %224, %229, %cst_81 {dimension_numbers = #tpu.dot_dimension_numbers<[1], [0], [0], [1], [0, 0, 1, 1], [], []>} : vector<8x128xf32>, vector<128x384xf32>, vector<8x384xf32> -> vector<8x384xf32>
    %c0_82 = arith.constant 0 : index
    %c0_83 = arith.constant 0 : index
    %231 = vector.load %arg5[%c0_82, %c0_83] : memref<1x384xf32, #tpu.memory_space<vmem>>, vector<1x384xf32>
    %232 = vector.broadcast %231 : vector<1x384xf32> to vector<8x384xf32>
    %233 = arith.addf %230, %232 : vector<8x384xf32>
    %234 = arith.index_cast %c6_i32 : i32 to index
    %c0_84 = arith.constant 0 : index
    %c0_85 = arith.constant 0 : index
    %235 = vector.load %arg8[%234, %c0_84, %c0_85] : memref<32x8x384xf32, #tpu.memory_space<vmem>>, vector<1x8x384xf32>
    %236 = vector.shape_cast %235 : vector<1x8x384xf32> to vector<8x384xf32>
    %237 = vector.extract_strided_slice %236 {offsets = [0, 0], sizes = [8, 128], strides = [1, 1]} : vector<8x384xf32> to vector<8x128xf32>
    %238 = vector.extract_strided_slice %233 {offsets = [0, 0], sizes = [8, 128], strides = [1, 1]} : vector<8x384xf32> to vector<8x128xf32>
    %239 = arith.addf %237, %238 : vector<8x128xf32>
    %240 = arith.negf %239 : vector<8x128xf32>
    %241 = math.exp %240 : vector<8x128xf32>
    %cst_86 = arith.constant 1.000000e+00 : f32
    %242 = vector.broadcast %cst_86 : f32 to vector<8x128xf32>
    %243 = arith.addf %242, %241 : vector<8x128xf32>
    %244 = arith.divf %242, %243 : vector<8x128xf32>
    %245 = vector.extract_strided_slice %236 {offsets = [0, 128], sizes = [8, 128], strides = [1, 1]} : vector<8x384xf32> to vector<8x128xf32>
    %246 = vector.extract_strided_slice %233 {offsets = [0, 128], sizes = [8, 128], strides = [1, 1]} : vector<8x384xf32> to vector<8x128xf32>
    %247 = arith.addf %245, %246 : vector<8x128xf32>
    %248 = arith.negf %247 : vector<8x128xf32>
    %249 = math.exp %248 : vector<8x128xf32>
    %cst_87 = arith.constant 1.000000e+00 : f32
    %250 = vector.broadcast %cst_87 : f32 to vector<8x128xf32>
    %251 = arith.addf %250, %249 : vector<8x128xf32>
    %252 = arith.divf %250, %251 : vector<8x128xf32>
    %253 = vector.extract_strided_slice %236 {offsets = [0, 256], sizes = [8, 128], strides = [1, 1]} : vector<8x384xf32> to vector<8x128xf32>
    %254 = vector.extract_strided_slice %233 {offsets = [0, 256], sizes = [8, 128], strides = [1, 1]} : vector<8x384xf32> to vector<8x128xf32>
    %255 = arith.mulf %244, %254 : vector<8x128xf32>
    %256 = arith.addf %253, %255 : vector<8x128xf32>
    %257 = math.tanh %256 : vector<8x128xf32>
    %258 = arith.subf %224, %257 : vector<8x128xf32>
    %259 = arith.mulf %252, %258 : vector<8x128xf32>
    %260 = arith.addf %257, %259 : vector<8x128xf32>
    %261 = arith.index_cast %c6_i32 : i32 to index
    %c0_88 = arith.constant 0 : index
    %c0_89 = arith.constant 0 : index
    %262 = vector.load %arg6[%261, %c0_88, %c0_89] : memref<32x8x128xf32, #tpu.memory_space<vmem>>, vector<1x8x128xf32>
    %263 = vector.shape_cast %262 : vector<1x8x128xf32> to vector<8x128xf32>
    %264 = vector.shape_cast %260 : vector<8x128xf32> to vector<1x8x128xf32>
    tpu.vector_store %arg6[%261, %c0_88, %c0_89], %264 {strides = array<i32>} : memref<32x8x128xf32, #tpu.memory_space<vmem>>, vector<1x8x128xf32>,
    %c7_i32 = arith.constant 7 : i32
    %c0_90 = arith.constant 0 : index
    %c0_91 = arith.constant 0 : index
    %265 = vector.load %arg3[%c0_90, %c0_91] : memref<128x384xf32, #tpu.memory_space<vmem>>, vector<128x384xf32>
    %cst_92 = arith.constant dense<0.000000e+00> : vector<8x384xf32>
    %266 = tpu.matmul %260, %265, %cst_92 {dimension_numbers = #tpu.dot_dimension_numbers<[1], [0], [0], [1], [0, 0, 1, 1], [], []>} : vector<8x128xf32>, vector<128x384xf32>, vector<8x384xf32> -> vector<8x384xf32>
    %c0_93 = arith.constant 0 : index
    %c0_94 = arith.constant 0 : index
    %267 = vector.load %arg5[%c0_93, %c0_94] : memref<1x384xf32, #tpu.memory_space<vmem>>, vector<1x384xf32>
    %268 = vector.broadcast %267 : vector<1x384xf32> to vector<8x384xf32>
    %269 = arith.addf %266, %268 : vector<8x384xf32>
    %270 = arith.index_cast %c7_i32 : i32 to index
    %c0_95 = arith.constant 0 : index
    %c0_96 = arith.constant 0 : index
    %271 = vector.load %arg8[%270, %c0_95, %c0_96] : memref<32x8x384xf32, #tpu.memory_space<vmem>>, vector<1x8x384xf32>
    %272 = vector.shape_cast %271 : vector<1x8x384xf32> to vector<8x384xf32>
    %273 = vector.extract_strided_slice %272 {offsets = [0, 0], sizes = [8, 128], strides = [1, 1]} : vector<8x384xf32> to vector<8x128xf32>
    %274 = vector.extract_strided_slice %269 {offsets = [0, 0], sizes = [8, 128], strides = [1, 1]} : vector<8x384xf32> to vector<8x128xf32>
    %275 = arith.addf %273, %274 : vector<8x128xf32>
    %276 = arith.negf %275 : vector<8x128xf32>
    %277 = math.exp %276 : vector<8x128xf32>
    %cst_97 = arith.constant 1.000000e+00 : f32
    %278 = vector.broadcast %cst_97 : f32 to vector<8x128xf32>
    %279 = arith.addf %278, %277 : vector<8x128xf32>
    %280 = arith.divf %278, %279 : vector<8x128xf32>
    %281 = vector.extract_strided_slice %272 {offsets = [0, 128], sizes = [8, 128], strides = [1, 1]} : vector<8x384xf32> to vector<8x128xf32>
    %282 = vector.extract_strided_slice %269 {offsets = [0, 128], sizes = [8, 128], strides = [1, 1]} : vector<8x384xf32> to vector<8x128xf32>
    %283 = arith.addf %281, %282 : vector<8x128xf32>
    %284 = arith.negf %283 : vector<8x128xf32>
    %285 = math.exp %284 : vector<8x128xf32>
    %cst_98 = arith.constant 1.000000e+00 : f32
    %286 = vector.broadcast %cst_98 : f32 to vector<8x128xf32>
    %287 = arith.addf %286, %285 : vector<8x128xf32>
    %288 = arith.divf %286, %287 : vector<8x128xf32>
    %289 = vector.extract_strided_slice %272 {offsets = [0, 256], sizes = [8, 128], strides = [1, 1]} : vector<8x384xf32> to vector<8x128xf32>
    %290 = vector.extract_strided_slice %269 {offsets = [0, 256], sizes = [8, 128], strides = [1, 1]} : vector<8x384xf32> to vector<8x128xf32>
    %291 = arith.mulf %280, %290 : vector<8x128xf32>
    %292 = arith.addf %289, %291 : vector<8x128xf32>
    %293 = math.tanh %292 : vector<8x128xf32>
    %294 = arith.subf %260, %293 : vector<8x128xf32>
    %295 = arith.mulf %288, %294 : vector<8x128xf32>
    %296 = arith.addf %293, %295 : vector<8x128xf32>
    %297 = arith.index_cast %c7_i32 : i32 to index
    %c0_99 = arith.constant 0 : index
    %c0_100 = arith.constant 0 : index
    %298 = vector.load %arg6[%297, %c0_99, %c0_100] : memref<32x8x128xf32, #tpu.memory_space<vmem>>, vector<1x8x128xf32>
    %299 = vector.shape_cast %298 : vector<1x8x128xf32> to vector<8x128xf32>
    %300 = vector.shape_cast %296 : vector<8x128xf32> to vector<1x8x128xf32>
    tpu.vector_store %arg6[%297, %c0_99, %c0_100], %300 {strides = array<i32>} : memref<32x8x128xf32, #tpu.memory_space<vmem>>, vector<1x8x128xf32>,
    %c8_i32 = arith.constant 8 : i32
    %c0_101 = arith.constant 0 : index
    %c0_102 = arith.constant 0 : index
    %301 = vector.load %arg3[%c0_101, %c0_102] : memref<128x384xf32, #tpu.memory_space<vmem>>, vector<128x384xf32>
    %cst_103 = arith.constant dense<0.000000e+00> : vector<8x384xf32>
    %302 = tpu.matmul %296, %301, %cst_103 {dimension_numbers = #tpu.dot_dimension_numbers<[1], [0], [0], [1], [0, 0, 1, 1], [], []>} : vector<8x128xf32>, vector<128x384xf32>, vector<8x384xf32> -> vector<8x384xf32>
    %c0_104 = arith.constant 0 : index
    %c0_105 = arith.constant 0 : index
    %303 = vector.load %arg5[%c0_104, %c0_105] : memref<1x384xf32, #tpu.memory_space<vmem>>, vector<1x384xf32>
    %304 = vector.broadcast %303 : vector<1x384xf32> to vector<8x384xf32>
    %305 = arith.addf %302, %304 : vector<8x384xf32>
    %306 = arith.index_cast %c8_i32 : i32 to index
    %c0_106 = arith.constant 0 : index
    %c0_107 = arith.constant 0 : index
    %307 = vector.load %arg8[%306, %c0_106, %c0_107] : memref<32x8x384xf32, #tpu.memory_space<vmem>>, vector<1x8x384xf32>
    %308 = vector.shape_cast %307 : vector<1x8x384xf32> to vector<8x384xf32>
    %309 = vector.extract_strided_slice %308 {offsets = [0, 0], sizes = [8, 128], strides = [1, 1]} : vector<8x384xf32> to vector<8x128xf32>
    %310 = vector.extract_strided_slice %305 {offsets = [0, 0], sizes = [8, 128], strides = [1, 1]} : vector<8x384xf32> to vector<8x128xf32>
    %311 = arith.addf %309, %310 : vector<8x128xf32>
    %312 = arith.negf %311 : vector<8x128xf32>
    %313 = math.exp %312 : vector<8x128xf32>
    %cst_108 = arith.constant 1.000000e+00 : f32
    %314 = vector.broadcast %cst_108 : f32 to vector<8x128xf32>
    %315 = arith.addf %314, %313 : vector<8x128xf32>
    %316 = arith.divf %314, %315 : vector<8x128xf32>
    %317 = vector.extract_strided_slice %308 {offsets = [0, 128], sizes = [8, 128], strides = [1, 1]} : vector<8x384xf32> to vector<8x128xf32>
    %318 = vector.extract_strided_slice %305 {offsets = [0, 128], sizes = [8, 128], strides = [1, 1]} : vector<8x384xf32> to vector<8x128xf32>
    %319 = arith.addf %317, %318 : vector<8x128xf32>
    %320 = arith.negf %319 : vector<8x128xf32>
    %321 = math.exp %320 : vector<8x128xf32>
    %cst_109 = arith.constant 1.000000e+00 : f32
    %322 = vector.broadcast %cst_109 : f32 to vector<8x128xf32>
    %323 = arith.addf %322, %321 : vector<8x128xf32>
    %324 = arith.divf %322, %323 : vector<8x128xf32>
    %325 = vector.extract_strided_slice %308 {offsets = [0, 256], sizes = [8, 128], strides = [1, 1]} : vector<8x384xf32> to vector<8x128xf32>
    %326 = vector.extract_strided_slice %305 {offsets = [0, 256], sizes = [8, 128], strides = [1, 1]} : vector<8x384xf32> to vector<8x128xf32>
    %327 = arith.mulf %316, %326 : vector<8x128xf32>
    %328 = arith.addf %325, %327 : vector<8x128xf32>
    %329 = math.tanh %328 : vector<8x128xf32>
    %330 = arith.subf %296, %329 : vector<8x128xf32>
    %331 = arith.mulf %324, %330 : vector<8x128xf32>
    %332 = arith.addf %329, %331 : vector<8x128xf32>
    %333 = arith.index_cast %c8_i32 : i32 to index
    %c0_110 = arith.constant 0 : index
    %c0_111 = arith.constant 0 : index
    %334 = vector.load %arg6[%333, %c0_110, %c0_111] : memref<32x8x128xf32, #tpu.memory_space<vmem>>, vector<1x8x128xf32>
    %335 = vector.shape_cast %334 : vector<1x8x128xf32> to vector<8x128xf32>
    %336 = vector.shape_cast %332 : vector<8x128xf32> to vector<1x8x128xf32>
    tpu.vector_store %arg6[%333, %c0_110, %c0_111], %336 {strides = array<i32>} : memref<32x8x128xf32, #tpu.memory_space<vmem>>, vector<1x8x128xf32>,
    %c9_i32 = arith.constant 9 : i32
    %c0_112 = arith.constant 0 : index
    %c0_113 = arith.constant 0 : index
    %337 = vector.load %arg3[%c0_112, %c0_113] : memref<128x384xf32, #tpu.memory_space<vmem>>, vector<128x384xf32>
    %cst_114 = arith.constant dense<0.000000e+00> : vector<8x384xf32>
    %338 = tpu.matmul %332, %337, %cst_114 {dimension_numbers = #tpu.dot_dimension_numbers<[1], [0], [0], [1], [0, 0, 1, 1], [], []>} : vector<8x128xf32>, vector<128x384xf32>, vector<8x384xf32> -> vector<8x384xf32>
    %c0_115 = arith.constant 0 : index
    %c0_116 = arith.constant 0 : index
    %339 = vector.load %arg5[%c0_115, %c0_116] : memref<1x384xf32, #tpu.memory_space<vmem>>, vector<1x384xf32>
    %340 = vector.broadcast %339 : vector<1x384xf32> to vector<8x384xf32>
    %341 = arith.addf %338, %340 : vector<8x384xf32>
    %342 = arith.index_cast %c9_i32 : i32 to index
    %c0_117 = arith.constant 0 : index
    %c0_118 = arith.constant 0 : index
    %343 = vector.load %arg8[%342, %c0_117, %c0_118] : memref<32x8x384xf32, #tpu.memory_space<vmem>>, vector<1x8x384xf32>
    %344 = vector.shape_cast %343 : vector<1x8x384xf32> to vector<8x384xf32>
    %345 = vector.extract_strided_slice %344 {offsets = [0, 0], sizes = [8, 128], strides = [1, 1]} : vector<8x384xf32> to vector<8x128xf32>
    %346 = vector.extract_strided_slice %341 {offsets = [0, 0], sizes = [8, 128], strides = [1, 1]} : vector<8x384xf32> to vector<8x128xf32>
    %347 = arith.addf %345, %346 : vector<8x128xf32>
    %348 = arith.negf %347 : vector<8x128xf32>
    %349 = math.exp %348 : vector<8x128xf32>
    %cst_119 = arith.constant 1.000000e+00 : f32
    %350 = vector.broadcast %cst_119 : f32 to vector<8x128xf32>
    %351 = arith.addf %350, %349 : vector<8x128xf32>
    %352 = arith.divf %350, %351 : vector<8x128xf32>
    %353 = vector.extract_strided_slice %344 {offsets = [0, 128], sizes = [8, 128], strides = [1, 1]} : vector<8x384xf32> to vector<8x128xf32>
    %354 = vector.extract_strided_slice %341 {offsets = [0, 128], sizes = [8, 128], strides = [1, 1]} : vector<8x384xf32> to vector<8x128xf32>
    %355 = arith.addf %353, %354 : vector<8x128xf32>
    %356 = arith.negf %355 : vector<8x128xf32>
    %357 = math.exp %356 : vector<8x128xf32>
    %cst_120 = arith.constant 1.000000e+00 : f32
    %358 = vector.broadcast %cst_120 : f32 to vector<8x128xf32>
    %359 = arith.addf %358, %357 : vector<8x128xf32>
    %360 = arith.divf %358, %359 : vector<8x128xf32>
    %361 = vector.extract_strided_slice %344 {offsets = [0, 256], sizes = [8, 128], strides = [1, 1]} : vector<8x384xf32> to vector<8x128xf32>
    %362 = vector.extract_strided_slice %341 {offsets = [0, 256], sizes = [8, 128], strides = [1, 1]} : vector<8x384xf32> to vector<8x128xf32>
    %363 = arith.mulf %352, %362 : vector<8x128xf32>
    %364 = arith.addf %361, %363 : vector<8x128xf32>
    %365 = math.tanh %364 : vector<8x128xf32>
    %366 = arith.subf %332, %365 : vector<8x128xf32>
    %367 = arith.mulf %360, %366 : vector<8x128xf32>
    %368 = arith.addf %365, %367 : vector<8x128xf32>
    %369 = arith.index_cast %c9_i32 : i32 to index
    %c0_121 = arith.constant 0 : index
    %c0_122 = arith.constant 0 : index
    %370 = vector.load %arg6[%369, %c0_121, %c0_122] : memref<32x8x128xf32, #tpu.memory_space<vmem>>, vector<1x8x128xf32>
    %371 = vector.shape_cast %370 : vector<1x8x128xf32> to vector<8x128xf32>
    %372 = vector.shape_cast %368 : vector<8x128xf32> to vector<1x8x128xf32>
    tpu.vector_store %arg6[%369, %c0_121, %c0_122], %372 {strides = array<i32>} : memref<32x8x128xf32, #tpu.memory_space<vmem>>, vector<1x8x128xf32>,
    %c10_i32 = arith.constant 10 : i32
    %c0_123 = arith.constant 0 : index
    %c0_124 = arith.constant 0 : index
    %373 = vector.load %arg3[%c0_123, %c0_124] : memref<128x384xf32, #tpu.memory_space<vmem>>, vector<128x384xf32>
    %cst_125 = arith.constant dense<0.000000e+00> : vector<8x384xf32>
    %374 = tpu.matmul %368, %373, %cst_125 {dimension_numbers = #tpu.dot_dimension_numbers<[1], [0], [0], [1], [0, 0, 1, 1], [], []>} : vector<8x128xf32>, vector<128x384xf32>, vector<8x384xf32> -> vector<8x384xf32>
    %c0_126 = arith.constant 0 : index
    %c0_127 = arith.constant 0 : index
    %375 = vector.load %arg5[%c0_126, %c0_127] : memref<1x384xf32, #tpu.memory_space<vmem>>, vector<1x384xf32>
    %376 = vector.broadcast %375 : vector<1x384xf32> to vector<8x384xf32>
    %377 = arith.addf %374, %376 : vector<8x384xf32>
    %378 = arith.index_cast %c10_i32 : i32 to index
    %c0_128 = arith.constant 0 : index
    %c0_129 = arith.constant 0 : index
    %379 = vector.load %arg8[%378, %c0_128, %c0_129] : memref<32x8x384xf32, #tpu.memory_space<vmem>>, vector<1x8x384xf32>
    %380 = vector.shape_cast %379 : vector<1x8x384xf32> to vector<8x384xf32>
    %381 = vector.extract_strided_slice %380 {offsets = [0, 0], sizes = [8, 128], strides = [1, 1]} : vector<8x384xf32> to vector<8x128xf32>
    %382 = vector.extract_strided_slice %377 {offsets = [0, 0], sizes = [8, 128], strides = [1, 1]} : vector<8x384xf32> to vector<8x128xf32>
    %383 = arith.addf %381, %382 : vector<8x128xf32>
    %384 = arith.negf %383 : vector<8x128xf32>
    %385 = math.exp %384 : vector<8x128xf32>
    %cst_130 = arith.constant 1.000000e+00 : f32
    %386 = vector.broadcast %cst_130 : f32 to vector<8x128xf32>
    %387 = arith.addf %386, %385 : vector<8x128xf32>
    %388 = arith.divf %386, %387 : vector<8x128xf32>
    %389 = vector.extract_strided_slice %380 {offsets = [0, 128], sizes = [8, 128], strides = [1, 1]} : vector<8x384xf32> to vector<8x128xf32>
    %390 = vector.extract_strided_slice %377 {offsets = [0, 128], sizes = [8, 128], strides = [1, 1]} : vector<8x384xf32> to vector<8x128xf32>
    %391 = arith.addf %389, %390 : vector<8x128xf32>
    %392 = arith.negf %391 : vector<8x128xf32>
    %393 = math.exp %392 : vector<8x128xf32>
    %cst_131 = arith.constant 1.000000e+00 : f32
    %394 = vector.broadcast %cst_131 : f32 to vector<8x128xf32>
    %395 = arith.addf %394, %393 : vector<8x128xf32>
    %396 = arith.divf %394, %395 : vector<8x128xf32>
    %397 = vector.extract_strided_slice %380 {offsets = [0, 256], sizes = [8, 128], strides = [1, 1]} : vector<8x384xf32> to vector<8x128xf32>
    %398 = vector.extract_strided_slice %377 {offsets = [0, 256], sizes = [8, 128], strides = [1, 1]} : vector<8x384xf32> to vector<8x128xf32>
    %399 = arith.mulf %388, %398 : vector<8x128xf32>
    %400 = arith.addf %397, %399 : vector<8x128xf32>
    %401 = math.tanh %400 : vector<8x128xf32>
    %402 = arith.subf %368, %401 : vector<8x128xf32>
    %403 = arith.mulf %396, %402 : vector<8x128xf32>
    %404 = arith.addf %401, %403 : vector<8x128xf32>
    %405 = arith.index_cast %c10_i32 : i32 to index
    %c0_132 = arith.constant 0 : index
    %c0_133 = arith.constant 0 : index
    %406 = vector.load %arg6[%405, %c0_132, %c0_133] : memref<32x8x128xf32, #tpu.memory_space<vmem>>, vector<1x8x128xf32>
    %407 = vector.shape_cast %406 : vector<1x8x128xf32> to vector<8x128xf32>
    %408 = vector.shape_cast %404 : vector<8x128xf32> to vector<1x8x128xf32>
    tpu.vector_store %arg6[%405, %c0_132, %c0_133], %408 {strides = array<i32>} : memref<32x8x128xf32, #tpu.memory_space<vmem>>, vector<1x8x128xf32>,
    %c11_i32 = arith.constant 11 : i32
    %c0_134 = arith.constant 0 : index
    %c0_135 = arith.constant 0 : index
    %409 = vector.load %arg3[%c0_134, %c0_135] : memref<128x384xf32, #tpu.memory_space<vmem>>, vector<128x384xf32>
    %cst_136 = arith.constant dense<0.000000e+00> : vector<8x384xf32>
    %410 = tpu.matmul %404, %409, %cst_136 {dimension_numbers = #tpu.dot_dimension_numbers<[1], [0], [0], [1], [0, 0, 1, 1], [], []>} : vector<8x128xf32>, vector<128x384xf32>, vector<8x384xf32> -> vector<8x384xf32>
    %c0_137 = arith.constant 0 : index
    %c0_138 = arith.constant 0 : index
    %411 = vector.load %arg5[%c0_137, %c0_138] : memref<1x384xf32, #tpu.memory_space<vmem>>, vector<1x384xf32>
    %412 = vector.broadcast %411 : vector<1x384xf32> to vector<8x384xf32>
    %413 = arith.addf %410, %412 : vector<8x384xf32>
    %414 = arith.index_cast %c11_i32 : i32 to index
    %c0_139 = arith.constant 0 : index
    %c0_140 = arith.constant 0 : index
    %415 = vector.load %arg8[%414, %c0_139, %c0_140] : memref<32x8x384xf32, #tpu.memory_space<vmem>>, vector<1x8x384xf32>
    %416 = vector.shape_cast %415 : vector<1x8x384xf32> to vector<8x384xf32>
    %417 = vector.extract_strided_slice %416 {offsets = [0, 0], sizes = [8, 128], strides = [1, 1]} : vector<8x384xf32> to vector<8x128xf32>
    %418 = vector.extract_strided_slice %413 {offsets = [0, 0], sizes = [8, 128], strides = [1, 1]} : vector<8x384xf32> to vector<8x128xf32>
    %419 = arith.addf %417, %418 : vector<8x128xf32>
    %420 = arith.negf %419 : vector<8x128xf32>
    %421 = math.exp %420 : vector<8x128xf32>
    %cst_141 = arith.constant 1.000000e+00 : f32
    %422 = vector.broadcast %cst_141 : f32 to vector<8x128xf32>
    %423 = arith.addf %422, %421 : vector<8x128xf32>
    %424 = arith.divf %422, %423 : vector<8x128xf32>
    %425 = vector.extract_strided_slice %416 {offsets = [0, 128], sizes = [8, 128], strides = [1, 1]} : vector<8x384xf32> to vector<8x128xf32>
    %426 = vector.extract_strided_slice %413 {offsets = [0, 128], sizes = [8, 128], strides = [1, 1]} : vector<8x384xf32> to vector<8x128xf32>
    %427 = arith.addf %425, %426 : vector<8x128xf32>
    %428 = arith.negf %427 : vector<8x128xf32>
    %429 = math.exp %428 : vector<8x128xf32>
    %cst_142 = arith.constant 1.000000e+00 : f32
    %430 = vector.broadcast %cst_142 : f32 to vector<8x128xf32>
    %431 = arith.addf %430, %429 : vector<8x128xf32>
    %432 = arith.divf %430, %431 : vector<8x128xf32>
    %433 = vector.extract_strided_slice %416 {offsets = [0, 256], sizes = [8, 128], strides = [1, 1]} : vector<8x384xf32> to vector<8x128xf32>
    %434 = vector.extract_strided_slice %413 {offsets = [0, 256], sizes = [8, 128], strides = [1, 1]} : vector<8x384xf32> to vector<8x128xf32>
    %435 = arith.mulf %424, %434 : vector<8x128xf32>
    %436 = arith.addf %433, %435 : vector<8x128xf32>
    %437 = math.tanh %436 : vector<8x128xf32>
    %438 = arith.subf %404, %437 : vector<8x128xf32>
    %439 = arith.mulf %432, %438 : vector<8x128xf32>
    %440 = arith.addf %437, %439 : vector<8x128xf32>
    %441 = arith.index_cast %c11_i32 : i32 to index
    %c0_143 = arith.constant 0 : index
    %c0_144 = arith.constant 0 : index
    %442 = vector.load %arg6[%441, %c0_143, %c0_144] : memref<32x8x128xf32, #tpu.memory_space<vmem>>, vector<1x8x128xf32>
    %443 = vector.shape_cast %442 : vector<1x8x128xf32> to vector<8x128xf32>
    %444 = vector.shape_cast %440 : vector<8x128xf32> to vector<1x8x128xf32>
    tpu.vector_store %arg6[%441, %c0_143, %c0_144], %444 {strides = array<i32>} : memref<32x8x128xf32, #tpu.memory_space<vmem>>, vector<1x8x128xf32>,
    %c12_i32 = arith.constant 12 : i32
    %c0_145 = arith.constant 0 : index
    %c0_146 = arith.constant 0 : index
    %445 = vector.load %arg3[%c0_145, %c0_146] : memref<128x384xf32, #tpu.memory_space<vmem>>, vector<128x384xf32>
    %cst_147 = arith.constant dense<0.000000e+00> : vector<8x384xf32>
    %446 = tpu.matmul %440, %445, %cst_147 {dimension_numbers = #tpu.dot_dimension_numbers<[1], [0], [0], [1], [0, 0, 1, 1], [], []>} : vector<8x128xf32>, vector<128x384xf32>, vector<8x384xf32> -> vector<8x384xf32>
    %c0_148 = arith.constant 0 : index
    %c0_149 = arith.constant 0 : index
    %447 = vector.load %arg5[%c0_148, %c0_149] : memref<1x384xf32, #tpu.memory_space<vmem>>, vector<1x384xf32>
    %448 = vector.broadcast %447 : vector<1x384xf32> to vector<8x384xf32>
    %449 = arith.addf %446, %448 : vector<8x384xf32>
    %450 = arith.index_cast %c12_i32 : i32 to index
    %c0_150 = arith.constant 0 : index
    %c0_151 = arith.constant 0 : index
    %451 = vector.load %arg8[%450, %c0_150, %c0_151] : memref<32x8x384xf32, #tpu.memory_space<vmem>>, vector<1x8x384xf32>
    %452 = vector.shape_cast %451 : vector<1x8x384xf32> to vector<8x384xf32>
    %453 = vector.extract_strided_slice %452 {offsets = [0, 0], sizes = [8, 128], strides = [1, 1]} : vector<8x384xf32> to vector<8x128xf32>
    %454 = vector.extract_strided_slice %449 {offsets = [0, 0], sizes = [8, 128], strides = [1, 1]} : vector<8x384xf32> to vector<8x128xf32>
    %455 = arith.addf %453, %454 : vector<8x128xf32>
    %456 = arith.negf %455 : vector<8x128xf32>
    %457 = math.exp %456 : vector<8x128xf32>
    %cst_152 = arith.constant 1.000000e+00 : f32
    %458 = vector.broadcast %cst_152 : f32 to vector<8x128xf32>
    %459 = arith.addf %458, %457 : vector<8x128xf32>
    %460 = arith.divf %458, %459 : vector<8x128xf32>
    %461 = vector.extract_strided_slice %452 {offsets = [0, 128], sizes = [8, 128], strides = [1, 1]} : vector<8x384xf32> to vector<8x128xf32>
    %462 = vector.extract_strided_slice %449 {offsets = [0, 128], sizes = [8, 128], strides = [1, 1]} : vector<8x384xf32> to vector<8x128xf32>
    %463 = arith.addf %461, %462 : vector<8x128xf32>
    %464 = arith.negf %463 : vector<8x128xf32>
    %465 = math.exp %464 : vector<8x128xf32>
    %cst_153 = arith.constant 1.000000e+00 : f32
    %466 = vector.broadcast %cst_153 : f32 to vector<8x128xf32>
    %467 = arith.addf %466, %465 : vector<8x128xf32>
    %468 = arith.divf %466, %467 : vector<8x128xf32>
    %469 = vector.extract_strided_slice %452 {offsets = [0, 256], sizes = [8, 128], strides = [1, 1]} : vector<8x384xf32> to vector<8x128xf32>
    %470 = vector.extract_strided_slice %449 {offsets = [0, 256], sizes = [8, 128], strides = [1, 1]} : vector<8x384xf32> to vector<8x128xf32>
    %471 = arith.mulf %460, %470 : vector<8x128xf32>
    %472 = arith.addf %469, %471 : vector<8x128xf32>
    %473 = math.tanh %472 : vector<8x128xf32>
    %474 = arith.subf %440, %473 : vector<8x128xf32>
    %475 = arith.mulf %468, %474 : vector<8x128xf32>
    %476 = arith.addf %473, %475 : vector<8x128xf32>
    %477 = arith.index_cast %c12_i32 : i32 to index
    %c0_154 = arith.constant 0 : index
    %c0_155 = arith.constant 0 : index
    %478 = vector.load %arg6[%477, %c0_154, %c0_155] : memref<32x8x128xf32, #tpu.memory_space<vmem>>, vector<1x8x128xf32>
    %479 = vector.shape_cast %478 : vector<1x8x128xf32> to vector<8x128xf32>
    %480 = vector.shape_cast %476 : vector<8x128xf32> to vector<1x8x128xf32>
    tpu.vector_store %arg6[%477, %c0_154, %c0_155], %480 {strides = array<i32>} : memref<32x8x128xf32, #tpu.memory_space<vmem>>, vector<1x8x128xf32>,
    %c13_i32 = arith.constant 13 : i32
    %c0_156 = arith.constant 0 : index
    %c0_157 = arith.constant 0 : index
    %481 = vector.load %arg3[%c0_156, %c0_157] : memref<128x384xf32, #tpu.memory_space<vmem>>, vector<128x384xf32>
    %cst_158 = arith.constant dense<0.000000e+00> : vector<8x384xf32>
    %482 = tpu.matmul %476, %481, %cst_158 {dimension_numbers = #tpu.dot_dimension_numbers<[1], [0], [0], [1], [0, 0, 1, 1], [], []>} : vector<8x128xf32>, vector<128x384xf32>, vector<8x384xf32> -> vector<8x384xf32>
    %c0_159 = arith.constant 0 : index
    %c0_160 = arith.constant 0 : index
    %483 = vector.load %arg5[%c0_159, %c0_160] : memref<1x384xf32, #tpu.memory_space<vmem>>, vector<1x384xf32>
    %484 = vector.broadcast %483 : vector<1x384xf32> to vector<8x384xf32>
    %485 = arith.addf %482, %484 : vector<8x384xf32>
    %486 = arith.index_cast %c13_i32 : i32 to index
    %c0_161 = arith.constant 0 : index
    %c0_162 = arith.constant 0 : index
    %487 = vector.load %arg8[%486, %c0_161, %c0_162] : memref<32x8x384xf32, #tpu.memory_space<vmem>>, vector<1x8x384xf32>
    %488 = vector.shape_cast %487 : vector<1x8x384xf32> to vector<8x384xf32>
    %489 = vector.extract_strided_slice %488 {offsets = [0, 0], sizes = [8, 128], strides = [1, 1]} : vector<8x384xf32> to vector<8x128xf32>
    %490 = vector.extract_strided_slice %485 {offsets = [0, 0], sizes = [8, 128], strides = [1, 1]} : vector<8x384xf32> to vector<8x128xf32>
    %491 = arith.addf %489, %490 : vector<8x128xf32>
    %492 = arith.negf %491 : vector<8x128xf32>
    %493 = math.exp %492 : vector<8x128xf32>
    %cst_163 = arith.constant 1.000000e+00 : f32
    %494 = vector.broadcast %cst_163 : f32 to vector<8x128xf32>
    %495 = arith.addf %494, %493 : vector<8x128xf32>
    %496 = arith.divf %494, %495 : vector<8x128xf32>
    %497 = vector.extract_strided_slice %488 {offsets = [0, 128], sizes = [8, 128], strides = [1, 1]} : vector<8x384xf32> to vector<8x128xf32>
    %498 = vector.extract_strided_slice %485 {offsets = [0, 128], sizes = [8, 128], strides = [1, 1]} : vector<8x384xf32> to vector<8x128xf32>
    %499 = arith.addf %497, %498 : vector<8x128xf32>
    %500 = arith.negf %499 : vector<8x128xf32>
    %501 = math.exp %500 : vector<8x128xf32>
    %cst_164 = arith.constant 1.000000e+00 : f32
    %502 = vector.broadcast %cst_164 : f32 to vector<8x128xf32>
    %503 = arith.addf %502, %501 : vector<8x128xf32>
    %504 = arith.divf %502, %503 : vector<8x128xf32>
    %505 = vector.extract_strided_slice %488 {offsets = [0, 256], sizes = [8, 128], strides = [1, 1]} : vector<8x384xf32> to vector<8x128xf32>
    %506 = vector.extract_strided_slice %485 {offsets = [0, 256], sizes = [8, 128], strides = [1, 1]} : vector<8x384xf32> to vector<8x128xf32>
    %507 = arith.mulf %496, %506 : vector<8x128xf32>
    %508 = arith.addf %505, %507 : vector<8x128xf32>
    %509 = math.tanh %508 : vector<8x128xf32>
    %510 = arith.subf %476, %509 : vector<8x128xf32>
    %511 = arith.mulf %504, %510 : vector<8x128xf32>
    %512 = arith.addf %509, %511 : vector<8x128xf32>
    %513 = arith.index_cast %c13_i32 : i32 to index
    %c0_165 = arith.constant 0 : index
    %c0_166 = arith.constant 0 : index
    %514 = vector.load %arg6[%513, %c0_165, %c0_166] : memref<32x8x128xf32, #tpu.memory_space<vmem>>, vector<1x8x128xf32>
    %515 = vector.shape_cast %514 : vector<1x8x128xf32> to vector<8x128xf32>
    %516 = vector.shape_cast %512 : vector<8x128xf32> to vector<1x8x128xf32>
    tpu.vector_store %arg6[%513, %c0_165, %c0_166], %516 {strides = array<i32>} : memref<32x8x128xf32, #tpu.memory_space<vmem>>, vector<1x8x128xf32>,
    %c14_i32 = arith.constant 14 : i32
    %c0_167 = arith.constant 0 : index
    %c0_168 = arith.constant 0 : index
    %517 = vector.load %arg3[%c0_167, %c0_168] : memref<128x384xf32, #tpu.memory_space<vmem>>, vector<128x384xf32>
    %cst_169 = arith.constant dense<0.000000e+00> : vector<8x384xf32>
    %518 = tpu.matmul %512, %517, %cst_169 {dimension_numbers = #tpu.dot_dimension_numbers<[1], [0], [0], [1], [0, 0, 1, 1], [], []>} : vector<8x128xf32>, vector<128x384xf32>, vector<8x384xf32> -> vector<8x384xf32>
    %c0_170 = arith.constant 0 : index
    %c0_171 = arith.constant 0 : index
    %519 = vector.load %arg5[%c0_170, %c0_171] : memref<1x384xf32, #tpu.memory_space<vmem>>, vector<1x384xf32>
    %520 = vector.broadcast %519 : vector<1x384xf32> to vector<8x384xf32>
    %521 = arith.addf %518, %520 : vector<8x384xf32>
    %522 = arith.index_cast %c14_i32 : i32 to index
    %c0_172 = arith.constant 0 : index
    %c0_173 = arith.constant 0 : index
    %523 = vector.load %arg8[%522, %c0_172, %c0_173] : memref<32x8x384xf32, #tpu.memory_space<vmem>>, vector<1x8x384xf32>
    %524 = vector.shape_cast %523 : vector<1x8x384xf32> to vector<8x384xf32>
    %525 = vector.extract_strided_slice %524 {offsets = [0, 0], sizes = [8, 128], strides = [1, 1]} : vector<8x384xf32> to vector<8x128xf32>
    %526 = vector.extract_strided_slice %521 {offsets = [0, 0], sizes = [8, 128], strides = [1, 1]} : vector<8x384xf32> to vector<8x128xf32>
    %527 = arith.addf %525, %526 : vector<8x128xf32>
    %528 = arith.negf %527 : vector<8x128xf32>
    %529 = math.exp %528 : vector<8x128xf32>
    %cst_174 = arith.constant 1.000000e+00 : f32
    %530 = vector.broadcast %cst_174 : f32 to vector<8x128xf32>
    %531 = arith.addf %530, %529 : vector<8x128xf32>
    %532 = arith.divf %530, %531 : vector<8x128xf32>
    %533 = vector.extract_strided_slice %524 {offsets = [0, 128], sizes = [8, 128], strides = [1, 1]} : vector<8x384xf32> to vector<8x128xf32>
    %534 = vector.extract_strided_slice %521 {offsets = [0, 128], sizes = [8, 128], strides = [1, 1]} : vector<8x384xf32> to vector<8x128xf32>
    %535 = arith.addf %533, %534 : vector<8x128xf32>
    %536 = arith.negf %535 : vector<8x128xf32>
    %537 = math.exp %536 : vector<8x128xf32>
    %cst_175 = arith.constant 1.000000e+00 : f32
    %538 = vector.broadcast %cst_175 : f32 to vector<8x128xf32>
    %539 = arith.addf %538, %537 : vector<8x128xf32>
    %540 = arith.divf %538, %539 : vector<8x128xf32>
    %541 = vector.extract_strided_slice %524 {offsets = [0, 256], sizes = [8, 128], strides = [1, 1]} : vector<8x384xf32> to vector<8x128xf32>
    %542 = vector.extract_strided_slice %521 {offsets = [0, 256], sizes = [8, 128], strides = [1, 1]} : vector<8x384xf32> to vector<8x128xf32>
    %543 = arith.mulf %532, %542 : vector<8x128xf32>
    %544 = arith.addf %541, %543 : vector<8x128xf32>
    %545 = math.tanh %544 : vector<8x128xf32>
    %546 = arith.subf %512, %545 : vector<8x128xf32>
    %547 = arith.mulf %540, %546 : vector<8x128xf32>
    %548 = arith.addf %545, %547 : vector<8x128xf32>
    %549 = arith.index_cast %c14_i32 : i32 to index
    %c0_176 = arith.constant 0 : index
    %c0_177 = arith.constant 0 : index
    %550 = vector.load %arg6[%549, %c0_176, %c0_177] : memref<32x8x128xf32, #tpu.memory_space<vmem>>, vector<1x8x128xf32>
    %551 = vector.shape_cast %550 : vector<1x8x128xf32> to vector<8x128xf32>
    %552 = vector.shape_cast %548 : vector<8x128xf32> to vector<1x8x128xf32>
    tpu.vector_store %arg6[%549, %c0_176, %c0_177], %552 {strides = array<i32>} : memref<32x8x128xf32, #tpu.memory_space<vmem>>, vector<1x8x128xf32>,
    %c15_i32 = arith.constant 15 : i32
    %c0_178 = arith.constant 0 : index
    %c0_179 = arith.constant 0 : index
    %553 = vector.load %arg3[%c0_178, %c0_179] : memref<128x384xf32, #tpu.memory_space<vmem>>, vector<128x384xf32>
    %cst_180 = arith.constant dense<0.000000e+00> : vector<8x384xf32>
    %554 = tpu.matmul %548, %553, %cst_180 {dimension_numbers = #tpu.dot_dimension_numbers<[1], [0], [0], [1], [0, 0, 1, 1], [], []>} : vector<8x128xf32>, vector<128x384xf32>, vector<8x384xf32> -> vector<8x384xf32>
    %c0_181 = arith.constant 0 : index
    %c0_182 = arith.constant 0 : index
    %555 = vector.load %arg5[%c0_181, %c0_182] : memref<1x384xf32, #tpu.memory_space<vmem>>, vector<1x384xf32>
    %556 = vector.broadcast %555 : vector<1x384xf32> to vector<8x384xf32>
    %557 = arith.addf %554, %556 : vector<8x384xf32>
    %558 = arith.index_cast %c15_i32 : i32 to index
    %c0_183 = arith.constant 0 : index
    %c0_184 = arith.constant 0 : index
    %559 = vector.load %arg8[%558, %c0_183, %c0_184] : memref<32x8x384xf32, #tpu.memory_space<vmem>>, vector<1x8x384xf32>
    %560 = vector.shape_cast %559 : vector<1x8x384xf32> to vector<8x384xf32>
    %561 = vector.extract_strided_slice %560 {offsets = [0, 0], sizes = [8, 128], strides = [1, 1]} : vector<8x384xf32> to vector<8x128xf32>
    %562 = vector.extract_strided_slice %557 {offsets = [0, 0], sizes = [8, 128], strides = [1, 1]} : vector<8x384xf32> to vector<8x128xf32>
    %563 = arith.addf %561, %562 : vector<8x128xf32>
    %564 = arith.negf %563 : vector<8x128xf32>
    %565 = math.exp %564 : vector<8x128xf32>
    %cst_185 = arith.constant 1.000000e+00 : f32
    %566 = vector.broadcast %cst_185 : f32 to vector<8x128xf32>
    %567 = arith.addf %566, %565 : vector<8x128xf32>
    %568 = arith.divf %566, %567 : vector<8x128xf32>
    %569 = vector.extract_strided_slice %560 {offsets = [0, 128], sizes = [8, 128], strides = [1, 1]} : vector<8x384xf32> to vector<8x128xf32>
    %570 = vector.extract_strided_slice %557 {offsets = [0, 128], sizes = [8, 128], strides = [1, 1]} : vector<8x384xf32> to vector<8x128xf32>
    %571 = arith.addf %569, %570 : vector<8x128xf32>
    %572 = arith.negf %571 : vector<8x128xf32>
    %573 = math.exp %572 : vector<8x128xf32>
    %cst_186 = arith.constant 1.000000e+00 : f32
    %574 = vector.broadcast %cst_186 : f32 to vector<8x128xf32>
    %575 = arith.addf %574, %573 : vector<8x128xf32>
    %576 = arith.divf %574, %575 : vector<8x128xf32>
    %577 = vector.extract_strided_slice %560 {offsets = [0, 256], sizes = [8, 128], strides = [1, 1]} : vector<8x384xf32> to vector<8x128xf32>
    %578 = vector.extract_strided_slice %557 {offsets = [0, 256], sizes = [8, 128], strides = [1, 1]} : vector<8x384xf32> to vector<8x128xf32>
    %579 = arith.mulf %568, %578 : vector<8x128xf32>
    %580 = arith.addf %577, %579 : vector<8x128xf32>
    %581 = math.tanh %580 : vector<8x128xf32>
    %582 = arith.subf %548, %581 : vector<8x128xf32>
    %583 = arith.mulf %576, %582 : vector<8x128xf32>
    %584 = arith.addf %581, %583 : vector<8x128xf32>
    %585 = arith.index_cast %c15_i32 : i32 to index
    %c0_187 = arith.constant 0 : index
    %c0_188 = arith.constant 0 : index
    %586 = vector.load %arg6[%585, %c0_187, %c0_188] : memref<32x8x128xf32, #tpu.memory_space<vmem>>, vector<1x8x128xf32>
    %587 = vector.shape_cast %586 : vector<1x8x128xf32> to vector<8x128xf32>
    %588 = vector.shape_cast %584 : vector<8x128xf32> to vector<1x8x128xf32>
    tpu.vector_store %arg6[%585, %c0_187, %c0_188], %588 {strides = array<i32>} : memref<32x8x128xf32, #tpu.memory_space<vmem>>, vector<1x8x128xf32>,
    %c16_i32 = arith.constant 16 : i32
    %c0_189 = arith.constant 0 : index
    %c0_190 = arith.constant 0 : index
    %589 = vector.load %arg3[%c0_189, %c0_190] : memref<128x384xf32, #tpu.memory_space<vmem>>, vector<128x384xf32>
    %cst_191 = arith.constant dense<0.000000e+00> : vector<8x384xf32>
    %590 = tpu.matmul %584, %589, %cst_191 {dimension_numbers = #tpu.dot_dimension_numbers<[1], [0], [0], [1], [0, 0, 1, 1], [], []>} : vector<8x128xf32>, vector<128x384xf32>, vector<8x384xf32> -> vector<8x384xf32>
    %c0_192 = arith.constant 0 : index
    %c0_193 = arith.constant 0 : index
    %591 = vector.load %arg5[%c0_192, %c0_193] : memref<1x384xf32, #tpu.memory_space<vmem>>, vector<1x384xf32>
    %592 = vector.broadcast %591 : vector<1x384xf32> to vector<8x384xf32>
    %593 = arith.addf %590, %592 : vector<8x384xf32>
    %594 = arith.index_cast %c16_i32 : i32 to index
    %c0_194 = arith.constant 0 : index
    %c0_195 = arith.constant 0 : index
    %595 = vector.load %arg8[%594, %c0_194, %c0_195] : memref<32x8x384xf32, #tpu.memory_space<vmem>>, vector<1x8x384xf32>
    %596 = vector.shape_cast %595 : vector<1x8x384xf32> to vector<8x384xf32>
    %597 = vector.extract_strided_slice %596 {offsets = [0, 0], sizes = [8, 128], strides = [1, 1]} : vector<8x384xf32> to vector<8x128xf32>
    %598 = vector.extract_strided_slice %593 {offsets = [0, 0], sizes = [8, 128], strides = [1, 1]} : vector<8x384xf32> to vector<8x128xf32>
    %599 = arith.addf %597, %598 : vector<8x128xf32>
    %600 = arith.negf %599 : vector<8x128xf32>
    %601 = math.exp %600 : vector<8x128xf32>
    %cst_196 = arith.constant 1.000000e+00 : f32
    %602 = vector.broadcast %cst_196 : f32 to vector<8x128xf32>
    %603 = arith.addf %602, %601 : vector<8x128xf32>
    %604 = arith.divf %602, %603 : vector<8x128xf32>
    %605 = vector.extract_strided_slice %596 {offsets = [0, 128], sizes = [8, 128], strides = [1, 1]} : vector<8x384xf32> to vector<8x128xf32>
    %606 = vector.extract_strided_slice %593 {offsets = [0, 128], sizes = [8, 128], strides = [1, 1]} : vector<8x384xf32> to vector<8x128xf32>
    %607 = arith.addf %605, %606 : vector<8x128xf32>
    %608 = arith.negf %607 : vector<8x128xf32>
    %609 = math.exp %608 : vector<8x128xf32>
    %cst_197 = arith.constant 1.000000e+00 : f32
    %610 = vector.broadcast %cst_197 : f32 to vector<8x128xf32>
    %611 = arith.addf %610, %609 : vector<8x128xf32>
    %612 = arith.divf %610, %611 : vector<8x128xf32>
    %613 = vector.extract_strided_slice %596 {offsets = [0, 256], sizes = [8, 128], strides = [1, 1]} : vector<8x384xf32> to vector<8x128xf32>
    %614 = vector.extract_strided_slice %593 {offsets = [0, 256], sizes = [8, 128], strides = [1, 1]} : vector<8x384xf32> to vector<8x128xf32>
    %615 = arith.mulf %604, %614 : vector<8x128xf32>
    %616 = arith.addf %613, %615 : vector<8x128xf32>
    %617 = math.tanh %616 : vector<8x128xf32>
    %618 = arith.subf %584, %617 : vector<8x128xf32>
    %619 = arith.mulf %612, %618 : vector<8x128xf32>
    %620 = arith.addf %617, %619 : vector<8x128xf32>
    %621 = arith.index_cast %c16_i32 : i32 to index
    %c0_198 = arith.constant 0 : index
    %c0_199 = arith.constant 0 : index
    %622 = vector.load %arg6[%621, %c0_198, %c0_199] : memref<32x8x128xf32, #tpu.memory_space<vmem>>, vector<1x8x128xf32>
    %623 = vector.shape_cast %622 : vector<1x8x128xf32> to vector<8x128xf32>
    %624 = vector.shape_cast %620 : vector<8x128xf32> to vector<1x8x128xf32>
    tpu.vector_store %arg6[%621, %c0_198, %c0_199], %624 {strides = array<i32>} : memref<32x8x128xf32, #tpu.memory_space<vmem>>, vector<1x8x128xf32>,
    %c17_i32 = arith.constant 17 : i32
    %c0_200 = arith.constant 0 : index
    %c0_201 = arith.constant 0 : index
    %625 = vector.load %arg3[%c0_200, %c0_201] : memref<128x384xf32, #tpu.memory_space<vmem>>, vector<128x384xf32>
    %cst_202 = arith.constant dense<0.000000e+00> : vector<8x384xf32>
    %626 = tpu.matmul %620, %625, %cst_202 {dimension_numbers = #tpu.dot_dimension_numbers<[1], [0], [0], [1], [0, 0, 1, 1], [], []>} : vector<8x128xf32>, vector<128x384xf32>, vector<8x384xf32> -> vector<8x384xf32>
    %c0_203 = arith.constant 0 : index
    %c0_204 = arith.constant 0 : index
    %627 = vector.load %arg5[%c0_203, %c0_204] : memref<1x384xf32, #tpu.memory_space<vmem>>, vector<1x384xf32>
    %628 = vector.broadcast %627 : vector<1x384xf32> to vector<8x384xf32>
    %629 = arith.addf %626, %628 : vector<8x384xf32>
    %630 = arith.index_cast %c17_i32 : i32 to index
    %c0_205 = arith.constant 0 : index
    %c0_206 = arith.constant 0 : index
    %631 = vector.load %arg8[%630, %c0_205, %c0_206] : memref<32x8x384xf32, #tpu.memory_space<vmem>>, vector<1x8x384xf32>
    %632 = vector.shape_cast %631 : vector<1x8x384xf32> to vector<8x384xf32>
    %633 = vector.extract_strided_slice %632 {offsets = [0, 0], sizes = [8, 128], strides = [1, 1]} : vector<8x384xf32> to vector<8x128xf32>
    %634 = vector.extract_strided_slice %629 {offsets = [0, 0], sizes = [8, 128], strides = [1, 1]} : vector<8x384xf32> to vector<8x128xf32>
    %635 = arith.addf %633, %634 : vector<8x128xf32>
    %636 = arith.negf %635 : vector<8x128xf32>
    %637 = math.exp %636 : vector<8x128xf32>
    %cst_207 = arith.constant 1.000000e+00 : f32
    %638 = vector.broadcast %cst_207 : f32 to vector<8x128xf32>
    %639 = arith.addf %638, %637 : vector<8x128xf32>
    %640 = arith.divf %638, %639 : vector<8x128xf32>
    %641 = vector.extract_strided_slice %632 {offsets = [0, 128], sizes = [8, 128], strides = [1, 1]} : vector<8x384xf32> to vector<8x128xf32>
    %642 = vector.extract_strided_slice %629 {offsets = [0, 128], sizes = [8, 128], strides = [1, 1]} : vector<8x384xf32> to vector<8x128xf32>
    %643 = arith.addf %641, %642 : vector<8x128xf32>
    %644 = arith.negf %643 : vector<8x128xf32>
    %645 = math.exp %644 : vector<8x128xf32>
    %cst_208 = arith.constant 1.000000e+00 : f32
    %646 = vector.broadcast %cst_208 : f32 to vector<8x128xf32>
    %647 = arith.addf %646, %645 : vector<8x128xf32>
    %648 = arith.divf %646, %647 : vector<8x128xf32>
    %649 = vector.extract_strided_slice %632 {offsets = [0, 256], sizes = [8, 128], strides = [1, 1]} : vector<8x384xf32> to vector<8x128xf32>
    %650 = vector.extract_strided_slice %629 {offsets = [0, 256], sizes = [8, 128], strides = [1, 1]} : vector<8x384xf32> to vector<8x128xf32>
    %651 = arith.mulf %640, %650 : vector<8x128xf32>
    %652 = arith.addf %649, %651 : vector<8x128xf32>
    %653 = math.tanh %652 : vector<8x128xf32>
    %654 = arith.subf %620, %653 : vector<8x128xf32>
    %655 = arith.mulf %648, %654 : vector<8x128xf32>
    %656 = arith.addf %653, %655 : vector<8x128xf32>
    %657 = arith.index_cast %c17_i32 : i32 to index
    %c0_209 = arith.constant 0 : index
    %c0_210 = arith.constant 0 : index
    %658 = vector.load %arg6[%657, %c0_209, %c0_210] : memref<32x8x128xf32, #tpu.memory_space<vmem>>, vector<1x8x128xf32>
    %659 = vector.shape_cast %658 : vector<1x8x128xf32> to vector<8x128xf32>
    %660 = vector.shape_cast %656 : vector<8x128xf32> to vector<1x8x128xf32>
    tpu.vector_store %arg6[%657, %c0_209, %c0_210], %660 {strides = array<i32>} : memref<32x8x128xf32, #tpu.memory_space<vmem>>, vector<1x8x128xf32>,
    %c18_i32 = arith.constant 18 : i32
    %c0_211 = arith.constant 0 : index
    %c0_212 = arith.constant 0 : index
    %661 = vector.load %arg3[%c0_211, %c0_212] : memref<128x384xf32, #tpu.memory_space<vmem>>, vector<128x384xf32>
    %cst_213 = arith.constant dense<0.000000e+00> : vector<8x384xf32>
    %662 = tpu.matmul %656, %661, %cst_213 {dimension_numbers = #tpu.dot_dimension_numbers<[1], [0], [0], [1], [0, 0, 1, 1], [], []>} : vector<8x128xf32>, vector<128x384xf32>, vector<8x384xf32> -> vector<8x384xf32>
    %c0_214 = arith.constant 0 : index
    %c0_215 = arith.constant 0 : index
    %663 = vector.load %arg5[%c0_214, %c0_215] : memref<1x384xf32, #tpu.memory_space<vmem>>, vector<1x384xf32>
    %664 = vector.broadcast %663 : vector<1x384xf32> to vector<8x384xf32>
    %665 = arith.addf %662, %664 : vector<8x384xf32>
    %666 = arith.index_cast %c18_i32 : i32 to index
    %c0_216 = arith.constant 0 : index
    %c0_217 = arith.constant 0 : index
    %667 = vector.load %arg8[%666, %c0_216, %c0_217] : memref<32x8x384xf32, #tpu.memory_space<vmem>>, vector<1x8x384xf32>
    %668 = vector.shape_cast %667 : vector<1x8x384xf32> to vector<8x384xf32>
    %669 = vector.extract_strided_slice %668 {offsets = [0, 0], sizes = [8, 128], strides = [1, 1]} : vector<8x384xf32> to vector<8x128xf32>
    %670 = vector.extract_strided_slice %665 {offsets = [0, 0], sizes = [8, 128], strides = [1, 1]} : vector<8x384xf32> to vector<8x128xf32>
    %671 = arith.addf %669, %670 : vector<8x128xf32>
    %672 = arith.negf %671 : vector<8x128xf32>
    %673 = math.exp %672 : vector<8x128xf32>
    %cst_218 = arith.constant 1.000000e+00 : f32
    %674 = vector.broadcast %cst_218 : f32 to vector<8x128xf32>
    %675 = arith.addf %674, %673 : vector<8x128xf32>
    %676 = arith.divf %674, %675 : vector<8x128xf32>
    %677 = vector.extract_strided_slice %668 {offsets = [0, 128], sizes = [8, 128], strides = [1, 1]} : vector<8x384xf32> to vector<8x128xf32>
    %678 = vector.extract_strided_slice %665 {offsets = [0, 128], sizes = [8, 128], strides = [1, 1]} : vector<8x384xf32> to vector<8x128xf32>
    %679 = arith.addf %677, %678 : vector<8x128xf32>
    %680 = arith.negf %679 : vector<8x128xf32>
    %681 = math.exp %680 : vector<8x128xf32>
    %cst_219 = arith.constant 1.000000e+00 : f32
    %682 = vector.broadcast %cst_219 : f32 to vector<8x128xf32>
    %683 = arith.addf %682, %681 : vector<8x128xf32>
    %684 = arith.divf %682, %683 : vector<8x128xf32>
    %685 = vector.extract_strided_slice %668 {offsets = [0, 256], sizes = [8, 128], strides = [1, 1]} : vector<8x384xf32> to vector<8x128xf32>
    %686 = vector.extract_strided_slice %665 {offsets = [0, 256], sizes = [8, 128], strides = [1, 1]} : vector<8x384xf32> to vector<8x128xf32>
    %687 = arith.mulf %676, %686 : vector<8x128xf32>
    %688 = arith.addf %685, %687 : vector<8x128xf32>
    %689 = math.tanh %688 : vector<8x128xf32>
    %690 = arith.subf %656, %689 : vector<8x128xf32>
    %691 = arith.mulf %684, %690 : vector<8x128xf32>
    %692 = arith.addf %689, %691 : vector<8x128xf32>
    %693 = arith.index_cast %c18_i32 : i32 to index
    %c0_220 = arith.constant 0 : index
    %c0_221 = arith.constant 0 : index
    %694 = vector.load %arg6[%693, %c0_220, %c0_221] : memref<32x8x128xf32, #tpu.memory_space<vmem>>, vector<1x8x128xf32>
    %695 = vector.shape_cast %694 : vector<1x8x128xf32> to vector<8x128xf32>
    %696 = vector.shape_cast %692 : vector<8x128xf32> to vector<1x8x128xf32>
    tpu.vector_store %arg6[%693, %c0_220, %c0_221], %696 {strides = array<i32>} : memref<32x8x128xf32, #tpu.memory_space<vmem>>, vector<1x8x128xf32>,
    %c19_i32 = arith.constant 19 : i32
    %c0_222 = arith.constant 0 : index
    %c0_223 = arith.constant 0 : index
    %697 = vector.load %arg3[%c0_222, %c0_223] : memref<128x384xf32, #tpu.memory_space<vmem>>, vector<128x384xf32>
    %cst_224 = arith.constant dense<0.000000e+00> : vector<8x384xf32>
    %698 = tpu.matmul %692, %697, %cst_224 {dimension_numbers = #tpu.dot_dimension_numbers<[1], [0], [0], [1], [0, 0, 1, 1], [], []>} : vector<8x128xf32>, vector<128x384xf32>, vector<8x384xf32> -> vector<8x384xf32>
    %c0_225 = arith.constant 0 : index
    %c0_226 = arith.constant 0 : index
    %699 = vector.load %arg5[%c0_225, %c0_226] : memref<1x384xf32, #tpu.memory_space<vmem>>, vector<1x384xf32>
    %700 = vector.broadcast %699 : vector<1x384xf32> to vector<8x384xf32>
    %701 = arith.addf %698, %700 : vector<8x384xf32>
    %702 = arith.index_cast %c19_i32 : i32 to index
    %c0_227 = arith.constant 0 : index
    %c0_228 = arith.constant 0 : index
    %703 = vector.load %arg8[%702, %c0_227, %c0_228] : memref<32x8x384xf32, #tpu.memory_space<vmem>>, vector<1x8x384xf32>
    %704 = vector.shape_cast %703 : vector<1x8x384xf32> to vector<8x384xf32>
    %705 = vector.extract_strided_slice %704 {offsets = [0, 0], sizes = [8, 128], strides = [1, 1]} : vector<8x384xf32> to vector<8x128xf32>
    %706 = vector.extract_strided_slice %701 {offsets = [0, 0], sizes = [8, 128], strides = [1, 1]} : vector<8x384xf32> to vector<8x128xf32>
    %707 = arith.addf %705, %706 : vector<8x128xf32>
    %708 = arith.negf %707 : vector<8x128xf32>
    %709 = math.exp %708 : vector<8x128xf32>
    %cst_229 = arith.constant 1.000000e+00 : f32
    %710 = vector.broadcast %cst_229 : f32 to vector<8x128xf32>
    %711 = arith.addf %710, %709 : vector<8x128xf32>
    %712 = arith.divf %710, %711 : vector<8x128xf32>
    %713 = vector.extract_strided_slice %704 {offsets = [0, 128], sizes = [8, 128], strides = [1, 1]} : vector<8x384xf32> to vector<8x128xf32>
    %714 = vector.extract_strided_slice %701 {offsets = [0, 128], sizes = [8, 128], strides = [1, 1]} : vector<8x384xf32> to vector<8x128xf32>
    %715 = arith.addf %713, %714 : vector<8x128xf32>
    %716 = arith.negf %715 : vector<8x128xf32>
    %717 = math.exp %716 : vector<8x128xf32>
    %cst_230 = arith.constant 1.000000e+00 : f32
    %718 = vector.broadcast %cst_230 : f32 to vector<8x128xf32>
    %719 = arith.addf %718, %717 : vector<8x128xf32>
    %720 = arith.divf %718, %719 : vector<8x128xf32>
    %721 = vector.extract_strided_slice %704 {offsets = [0, 256], sizes = [8, 128], strides = [1, 1]} : vector<8x384xf32> to vector<8x128xf32>
    %722 = vector.extract_strided_slice %701 {offsets = [0, 256], sizes = [8, 128], strides = [1, 1]} : vector<8x384xf32> to vector<8x128xf32>
    %723 = arith.mulf %712, %722 : vector<8x128xf32>
    %724 = arith.addf %721, %723 : vector<8x128xf32>
    %725 = math.tanh %724 : vector<8x128xf32>
    %726 = arith.subf %692, %725 : vector<8x128xf32>
    %727 = arith.mulf %720, %726 : vector<8x128xf32>
    %728 = arith.addf %725, %727 : vector<8x128xf32>
    %729 = arith.index_cast %c19_i32 : i32 to index
    %c0_231 = arith.constant 0 : index
    %c0_232 = arith.constant 0 : index
    %730 = vector.load %arg6[%729, %c0_231, %c0_232] : memref<32x8x128xf32, #tpu.memory_space<vmem>>, vector<1x8x128xf32>
    %731 = vector.shape_cast %730 : vector<1x8x128xf32> to vector<8x128xf32>
    %732 = vector.shape_cast %728 : vector<8x128xf32> to vector<1x8x128xf32>
    tpu.vector_store %arg6[%729, %c0_231, %c0_232], %732 {strides = array<i32>} : memref<32x8x128xf32, #tpu.memory_space<vmem>>, vector<1x8x128xf32>,
    %c20_i32 = arith.constant 20 : i32
    %c0_233 = arith.constant 0 : index
    %c0_234 = arith.constant 0 : index
    %733 = vector.load %arg3[%c0_233, %c0_234] : memref<128x384xf32, #tpu.memory_space<vmem>>, vector<128x384xf32>
    %cst_235 = arith.constant dense<0.000000e+00> : vector<8x384xf32>
    %734 = tpu.matmul %728, %733, %cst_235 {dimension_numbers = #tpu.dot_dimension_numbers<[1], [0], [0], [1], [0, 0, 1, 1], [], []>} : vector<8x128xf32>, vector<128x384xf32>, vector<8x384xf32> -> vector<8x384xf32>
    %c0_236 = arith.constant 0 : index
    %c0_237 = arith.constant 0 : index
    %735 = vector.load %arg5[%c0_236, %c0_237] : memref<1x384xf32, #tpu.memory_space<vmem>>, vector<1x384xf32>
    %736 = vector.broadcast %735 : vector<1x384xf32> to vector<8x384xf32>
    %737 = arith.addf %734, %736 : vector<8x384xf32>
    %738 = arith.index_cast %c20_i32 : i32 to index
    %c0_238 = arith.constant 0 : index
    %c0_239 = arith.constant 0 : index
    %739 = vector.load %arg8[%738, %c0_238, %c0_239] : memref<32x8x384xf32, #tpu.memory_space<vmem>>, vector<1x8x384xf32>
    %740 = vector.shape_cast %739 : vector<1x8x384xf32> to vector<8x384xf32>
    %741 = vector.extract_strided_slice %740 {offsets = [0, 0], sizes = [8, 128], strides = [1, 1]} : vector<8x384xf32> to vector<8x128xf32>
    %742 = vector.extract_strided_slice %737 {offsets = [0, 0], sizes = [8, 128], strides = [1, 1]} : vector<8x384xf32> to vector<8x128xf32>
    %743 = arith.addf %741, %742 : vector<8x128xf32>
    %744 = arith.negf %743 : vector<8x128xf32>
    %745 = math.exp %744 : vector<8x128xf32>
    %cst_240 = arith.constant 1.000000e+00 : f32
    %746 = vector.broadcast %cst_240 : f32 to vector<8x128xf32>
    %747 = arith.addf %746, %745 : vector<8x128xf32>
    %748 = arith.divf %746, %747 : vector<8x128xf32>
    %749 = vector.extract_strided_slice %740 {offsets = [0, 128], sizes = [8, 128], strides = [1, 1]} : vector<8x384xf32> to vector<8x128xf32>
    %750 = vector.extract_strided_slice %737 {offsets = [0, 128], sizes = [8, 128], strides = [1, 1]} : vector<8x384xf32> to vector<8x128xf32>
    %751 = arith.addf %749, %750 : vector<8x128xf32>
    %752 = arith.negf %751 : vector<8x128xf32>
    %753 = math.exp %752 : vector<8x128xf32>
    %cst_241 = arith.constant 1.000000e+00 : f32
    %754 = vector.broadcast %cst_241 : f32 to vector<8x128xf32>
    %755 = arith.addf %754, %753 : vector<8x128xf32>
    %756 = arith.divf %754, %755 : vector<8x128xf32>
    %757 = vector.extract_strided_slice %740 {offsets = [0, 256], sizes = [8, 128], strides = [1, 1]} : vector<8x384xf32> to vector<8x128xf32>
    %758 = vector.extract_strided_slice %737 {offsets = [0, 256], sizes = [8, 128], strides = [1, 1]} : vector<8x384xf32> to vector<8x128xf32>
    %759 = arith.mulf %748, %758 : vector<8x128xf32>
    %760 = arith.addf %757, %759 : vector<8x128xf32>
    %761 = math.tanh %760 : vector<8x128xf32>
    %762 = arith.subf %728, %761 : vector<8x128xf32>
    %763 = arith.mulf %756, %762 : vector<8x128xf32>
    %764 = arith.addf %761, %763 : vector<8x128xf32>
    %765 = arith.index_cast %c20_i32 : i32 to index
    %c0_242 = arith.constant 0 : index
    %c0_243 = arith.constant 0 : index
    %766 = vector.load %arg6[%765, %c0_242, %c0_243] : memref<32x8x128xf32, #tpu.memory_space<vmem>>, vector<1x8x128xf32>
    %767 = vector.shape_cast %766 : vector<1x8x128xf32> to vector<8x128xf32>
    %768 = vector.shape_cast %764 : vector<8x128xf32> to vector<1x8x128xf32>
    tpu.vector_store %arg6[%765, %c0_242, %c0_243], %768 {strides = array<i32>} : memref<32x8x128xf32, #tpu.memory_space<vmem>>, vector<1x8x128xf32>,
    %c21_i32 = arith.constant 21 : i32
    %c0_244 = arith.constant 0 : index
    %c0_245 = arith.constant 0 : index
    %769 = vector.load %arg3[%c0_244, %c0_245] : memref<128x384xf32, #tpu.memory_space<vmem>>, vector<128x384xf32>
    %cst_246 = arith.constant dense<0.000000e+00> : vector<8x384xf32>
    %770 = tpu.matmul %764, %769, %cst_246 {dimension_numbers = #tpu.dot_dimension_numbers<[1], [0], [0], [1], [0, 0, 1, 1], [], []>} : vector<8x128xf32>, vector<128x384xf32>, vector<8x384xf32> -> vector<8x384xf32>
    %c0_247 = arith.constant 0 : index
    %c0_248 = arith.constant 0 : index
    %771 = vector.load %arg5[%c0_247, %c0_248] : memref<1x384xf32, #tpu.memory_space<vmem>>, vector<1x384xf32>
    %772 = vector.broadcast %771 : vector<1x384xf32> to vector<8x384xf32>
    %773 = arith.addf %770, %772 : vector<8x384xf32>
    %774 = arith.index_cast %c21_i32 : i32 to index
    %c0_249 = arith.constant 0 : index
    %c0_250 = arith.constant 0 : index
    %775 = vector.load %arg8[%774, %c0_249, %c0_250] : memref<32x8x384xf32, #tpu.memory_space<vmem>>, vector<1x8x384xf32>
    %776 = vector.shape_cast %775 : vector<1x8x384xf32> to vector<8x384xf32>
    %777 = vector.extract_strided_slice %776 {offsets = [0, 0], sizes = [8, 128], strides = [1, 1]} : vector<8x384xf32> to vector<8x128xf32>
    %778 = vector.extract_strided_slice %773 {offsets = [0, 0], sizes = [8, 128], strides = [1, 1]} : vector<8x384xf32> to vector<8x128xf32>
    %779 = arith.addf %777, %778 : vector<8x128xf32>
    %780 = arith.negf %779 : vector<8x128xf32>
    %781 = math.exp %780 : vector<8x128xf32>
    %cst_251 = arith.constant 1.000000e+00 : f32
    %782 = vector.broadcast %cst_251 : f32 to vector<8x128xf32>
    %783 = arith.addf %782, %781 : vector<8x128xf32>
    %784 = arith.divf %782, %783 : vector<8x128xf32>
    %785 = vector.extract_strided_slice %776 {offsets = [0, 128], sizes = [8, 128], strides = [1, 1]} : vector<8x384xf32> to vector<8x128xf32>
    %786 = vector.extract_strided_slice %773 {offsets = [0, 128], sizes = [8, 128], strides = [1, 1]} : vector<8x384xf32> to vector<8x128xf32>
    %787 = arith.addf %785, %786 : vector<8x128xf32>
    %788 = arith.negf %787 : vector<8x128xf32>
    %789 = math.exp %788 : vector<8x128xf32>
    %cst_252 = arith.constant 1.000000e+00 : f32
    %790 = vector.broadcast %cst_252 : f32 to vector<8x128xf32>
    %791 = arith.addf %790, %789 : vector<8x128xf32>
    %792 = arith.divf %790, %791 : vector<8x128xf32>
    %793 = vector.extract_strided_slice %776 {offsets = [0, 256], sizes = [8, 128], strides = [1, 1]} : vector<8x384xf32> to vector<8x128xf32>
    %794 = vector.extract_strided_slice %773 {offsets = [0, 256], sizes = [8, 128], strides = [1, 1]} : vector<8x384xf32> to vector<8x128xf32>
    %795 = arith.mulf %784, %794 : vector<8x128xf32>
    %796 = arith.addf %793, %795 : vector<8x128xf32>
    %797 = math.tanh %796 : vector<8x128xf32>
    %798 = arith.subf %764, %797 : vector<8x128xf32>
    %799 = arith.mulf %792, %798 : vector<8x128xf32>
    %800 = arith.addf %797, %799 : vector<8x128xf32>
    %801 = arith.index_cast %c21_i32 : i32 to index
    %c0_253 = arith.constant 0 : index
    %c0_254 = arith.constant 0 : index
    %802 = vector.load %arg6[%801, %c0_253, %c0_254] : memref<32x8x128xf32, #tpu.memory_space<vmem>>, vector<1x8x128xf32>
    %803 = vector.shape_cast %802 : vector<1x8x128xf32> to vector<8x128xf32>
    %804 = vector.shape_cast %800 : vector<8x128xf32> to vector<1x8x128xf32>
    tpu.vector_store %arg6[%801, %c0_253, %c0_254], %804 {strides = array<i32>} : memref<32x8x128xf32, #tpu.memory_space<vmem>>, vector<1x8x128xf32>,
    %c22_i32 = arith.constant 22 : i32
    %c0_255 = arith.constant 0 : index
    %c0_256 = arith.constant 0 : index
    %805 = vector.load %arg3[%c0_255, %c0_256] : memref<128x384xf32, #tpu.memory_space<vmem>>, vector<128x384xf32>
    %cst_257 = arith.constant dense<0.000000e+00> : vector<8x384xf32>
    %806 = tpu.matmul %800, %805, %cst_257 {dimension_numbers = #tpu.dot_dimension_numbers<[1], [0], [0], [1], [0, 0, 1, 1], [], []>} : vector<8x128xf32>, vector<128x384xf32>, vector<8x384xf32> -> vector<8x384xf32>
    %c0_258 = arith.constant 0 : index
    %c0_259 = arith.constant 0 : index
    %807 = vector.load %arg5[%c0_258, %c0_259] : memref<1x384xf32, #tpu.memory_space<vmem>>, vector<1x384xf32>
    %808 = vector.broadcast %807 : vector<1x384xf32> to vector<8x384xf32>
    %809 = arith.addf %806, %808 : vector<8x384xf32>
    %810 = arith.index_cast %c22_i32 : i32 to index
    %c0_260 = arith.constant 0 : index
    %c0_261 = arith.constant 0 : index
    %811 = vector.load %arg8[%810, %c0_260, %c0_261] : memref<32x8x384xf32, #tpu.memory_space<vmem>>, vector<1x8x384xf32>
    %812 = vector.shape_cast %811 : vector<1x8x384xf32> to vector<8x384xf32>
    %813 = vector.extract_strided_slice %812 {offsets = [0, 0], sizes = [8, 128], strides = [1, 1]} : vector<8x384xf32> to vector<8x128xf32>
    %814 = vector.extract_strided_slice %809 {offsets = [0, 0], sizes = [8, 128], strides = [1, 1]} : vector<8x384xf32> to vector<8x128xf32>
    %815 = arith.addf %813, %814 : vector<8x128xf32>
    %816 = arith.negf %815 : vector<8x128xf32>
    %817 = math.exp %816 : vector<8x128xf32>
    %cst_262 = arith.constant 1.000000e+00 : f32
    %818 = vector.broadcast %cst_262 : f32 to vector<8x128xf32>
    %819 = arith.addf %818, %817 : vector<8x128xf32>
    %820 = arith.divf %818, %819 : vector<8x128xf32>
    %821 = vector.extract_strided_slice %812 {offsets = [0, 128], sizes = [8, 128], strides = [1, 1]} : vector<8x384xf32> to vector<8x128xf32>
    %822 = vector.extract_strided_slice %809 {offsets = [0, 128], sizes = [8, 128], strides = [1, 1]} : vector<8x384xf32> to vector<8x128xf32>
    %823 = arith.addf %821, %822 : vector<8x128xf32>
    %824 = arith.negf %823 : vector<8x128xf32>
    %825 = math.exp %824 : vector<8x128xf32>
    %cst_263 = arith.constant 1.000000e+00 : f32
    %826 = vector.broadcast %cst_263 : f32 to vector<8x128xf32>
    %827 = arith.addf %826, %825 : vector<8x128xf32>
    %828 = arith.divf %826, %827 : vector<8x128xf32>
    %829 = vector.extract_strided_slice %812 {offsets = [0, 256], sizes = [8, 128], strides = [1, 1]} : vector<8x384xf32> to vector<8x128xf32>
    %830 = vector.extract_strided_slice %809 {offsets = [0, 256], sizes = [8, 128], strides = [1, 1]} : vector<8x384xf32> to vector<8x128xf32>
    %831 = arith.mulf %820, %830 : vector<8x128xf32>
    %832 = arith.addf %829, %831 : vector<8x128xf32>
    %833 = math.tanh %832 : vector<8x128xf32>
    %834 = arith.subf %800, %833 : vector<8x128xf32>
    %835 = arith.mulf %828, %834 : vector<8x128xf32>
    %836 = arith.addf %833, %835 : vector<8x128xf32>
    %837 = arith.index_cast %c22_i32 : i32 to index
    %c0_264 = arith.constant 0 : index
    %c0_265 = arith.constant 0 : index
    %838 = vector.load %arg6[%837, %c0_264, %c0_265] : memref<32x8x128xf32, #tpu.memory_space<vmem>>, vector<1x8x128xf32>
    %839 = vector.shape_cast %838 : vector<1x8x128xf32> to vector<8x128xf32>
    %840 = vector.shape_cast %836 : vector<8x128xf32> to vector<1x8x128xf32>
    tpu.vector_store %arg6[%837, %c0_264, %c0_265], %840 {strides = array<i32>} : memref<32x8x128xf32, #tpu.memory_space<vmem>>, vector<1x8x128xf32>,
    %c23_i32 = arith.constant 23 : i32
    %c0_266 = arith.constant 0 : index
    %c0_267 = arith.constant 0 : index
    %841 = vector.load %arg3[%c0_266, %c0_267] : memref<128x384xf32, #tpu.memory_space<vmem>>, vector<128x384xf32>
    %cst_268 = arith.constant dense<0.000000e+00> : vector<8x384xf32>
    %842 = tpu.matmul %836, %841, %cst_268 {dimension_numbers = #tpu.dot_dimension_numbers<[1], [0], [0], [1], [0, 0, 1, 1], [], []>} : vector<8x128xf32>, vector<128x384xf32>, vector<8x384xf32> -> vector<8x384xf32>
    %c0_269 = arith.constant 0 : index
    %c0_270 = arith.constant 0 : index
    %843 = vector.load %arg5[%c0_269, %c0_270] : memref<1x384xf32, #tpu.memory_space<vmem>>, vector<1x384xf32>
    %844 = vector.broadcast %843 : vector<1x384xf32> to vector<8x384xf32>
    %845 = arith.addf %842, %844 : vector<8x384xf32>
    %846 = arith.index_cast %c23_i32 : i32 to index
    %c0_271 = arith.constant 0 : index
    %c0_272 = arith.constant 0 : index
    %847 = vector.load %arg8[%846, %c0_271, %c0_272] : memref<32x8x384xf32, #tpu.memory_space<vmem>>, vector<1x8x384xf32>
    %848 = vector.shape_cast %847 : vector<1x8x384xf32> to vector<8x384xf32>
    %849 = vector.extract_strided_slice %848 {offsets = [0, 0], sizes = [8, 128], strides = [1, 1]} : vector<8x384xf32> to vector<8x128xf32>
    %850 = vector.extract_strided_slice %845 {offsets = [0, 0], sizes = [8, 128], strides = [1, 1]} : vector<8x384xf32> to vector<8x128xf32>
    %851 = arith.addf %849, %850 : vector<8x128xf32>
    %852 = arith.negf %851 : vector<8x128xf32>
    %853 = math.exp %852 : vector<8x128xf32>
    %cst_273 = arith.constant 1.000000e+00 : f32
    %854 = vector.broadcast %cst_273 : f32 to vector<8x128xf32>
    %855 = arith.addf %854, %853 : vector<8x128xf32>
    %856 = arith.divf %854, %855 : vector<8x128xf32>
    %857 = vector.extract_strided_slice %848 {offsets = [0, 128], sizes = [8, 128], strides = [1, 1]} : vector<8x384xf32> to vector<8x128xf32>
    %858 = vector.extract_strided_slice %845 {offsets = [0, 128], sizes = [8, 128], strides = [1, 1]} : vector<8x384xf32> to vector<8x128xf32>
    %859 = arith.addf %857, %858 : vector<8x128xf32>
    %860 = arith.negf %859 : vector<8x128xf32>
    %861 = math.exp %860 : vector<8x128xf32>
    %cst_274 = arith.constant 1.000000e+00 : f32
    %862 = vector.broadcast %cst_274 : f32 to vector<8x128xf32>
    %863 = arith.addf %862, %861 : vector<8x128xf32>
    %864 = arith.divf %862, %863 : vector<8x128xf32>
    %865 = vector.extract_strided_slice %848 {offsets = [0, 256], sizes = [8, 128], strides = [1, 1]} : vector<8x384xf32> to vector<8x128xf32>
    %866 = vector.extract_strided_slice %845 {offsets = [0, 256], sizes = [8, 128], strides = [1, 1]} : vector<8x384xf32> to vector<8x128xf32>
    %867 = arith.mulf %856, %866 : vector<8x128xf32>
    %868 = arith.addf %865, %867 : vector<8x128xf32>
    %869 = math.tanh %868 : vector<8x128xf32>
    %870 = arith.subf %836, %869 : vector<8x128xf32>
    %871 = arith.mulf %864, %870 : vector<8x128xf32>
    %872 = arith.addf %869, %871 : vector<8x128xf32>
    %873 = arith.index_cast %c23_i32 : i32 to index
    %c0_275 = arith.constant 0 : index
    %c0_276 = arith.constant 0 : index
    %874 = vector.load %arg6[%873, %c0_275, %c0_276] : memref<32x8x128xf32, #tpu.memory_space<vmem>>, vector<1x8x128xf32>
    %875 = vector.shape_cast %874 : vector<1x8x128xf32> to vector<8x128xf32>
    %876 = vector.shape_cast %872 : vector<8x128xf32> to vector<1x8x128xf32>
    tpu.vector_store %arg6[%873, %c0_275, %c0_276], %876 {strides = array<i32>} : memref<32x8x128xf32, #tpu.memory_space<vmem>>, vector<1x8x128xf32>,
    %c24_i32 = arith.constant 24 : i32
    %c0_277 = arith.constant 0 : index
    %c0_278 = arith.constant 0 : index
    %877 = vector.load %arg3[%c0_277, %c0_278] : memref<128x384xf32, #tpu.memory_space<vmem>>, vector<128x384xf32>
    %cst_279 = arith.constant dense<0.000000e+00> : vector<8x384xf32>
    %878 = tpu.matmul %872, %877, %cst_279 {dimension_numbers = #tpu.dot_dimension_numbers<[1], [0], [0], [1], [0, 0, 1, 1], [], []>} : vector<8x128xf32>, vector<128x384xf32>, vector<8x384xf32> -> vector<8x384xf32>
    %c0_280 = arith.constant 0 : index
    %c0_281 = arith.constant 0 : index
    %879 = vector.load %arg5[%c0_280, %c0_281] : memref<1x384xf32, #tpu.memory_space<vmem>>, vector<1x384xf32>
    %880 = vector.broadcast %879 : vector<1x384xf32> to vector<8x384xf32>
    %881 = arith.addf %878, %880 : vector<8x384xf32>
    %882 = arith.index_cast %c24_i32 : i32 to index
    %c0_282 = arith.constant 0 : index
    %c0_283 = arith.constant 0 : index
    %883 = vector.load %arg8[%882, %c0_282, %c0_283] : memref<32x8x384xf32, #tpu.memory_space<vmem>>, vector<1x8x384xf32>
    %884 = vector.shape_cast %883 : vector<1x8x384xf32> to vector<8x384xf32>
    %885 = vector.extract_strided_slice %884 {offsets = [0, 0], sizes = [8, 128], strides = [1, 1]} : vector<8x384xf32> to vector<8x128xf32>
    %886 = vector.extract_strided_slice %881 {offsets = [0, 0], sizes = [8, 128], strides = [1, 1]} : vector<8x384xf32> to vector<8x128xf32>
    %887 = arith.addf %885, %886 : vector<8x128xf32>
    %888 = arith.negf %887 : vector<8x128xf32>
    %889 = math.exp %888 : vector<8x128xf32>
    %cst_284 = arith.constant 1.000000e+00 : f32
    %890 = vector.broadcast %cst_284 : f32 to vector<8x128xf32>
    %891 = arith.addf %890, %889 : vector<8x128xf32>
    %892 = arith.divf %890, %891 : vector<8x128xf32>
    %893 = vector.extract_strided_slice %884 {offsets = [0, 128], sizes = [8, 128], strides = [1, 1]} : vector<8x384xf32> to vector<8x128xf32>
    %894 = vector.extract_strided_slice %881 {offsets = [0, 128], sizes = [8, 128], strides = [1, 1]} : vector<8x384xf32> to vector<8x128xf32>
    %895 = arith.addf %893, %894 : vector<8x128xf32>
    %896 = arith.negf %895 : vector<8x128xf32>
    %897 = math.exp %896 : vector<8x128xf32>
    %cst_285 = arith.constant 1.000000e+00 : f32
    %898 = vector.broadcast %cst_285 : f32 to vector<8x128xf32>
    %899 = arith.addf %898, %897 : vector<8x128xf32>
    %900 = arith.divf %898, %899 : vector<8x128xf32>
    %901 = vector.extract_strided_slice %884 {offsets = [0, 256], sizes = [8, 128], strides = [1, 1]} : vector<8x384xf32> to vector<8x128xf32>
    %902 = vector.extract_strided_slice %881 {offsets = [0, 256], sizes = [8, 128], strides = [1, 1]} : vector<8x384xf32> to vector<8x128xf32>
    %903 = arith.mulf %892, %902 : vector<8x128xf32>
    %904 = arith.addf %901, %903 : vector<8x128xf32>
    %905 = math.tanh %904 : vector<8x128xf32>
    %906 = arith.subf %872, %905 : vector<8x128xf32>
    %907 = arith.mulf %900, %906 : vector<8x128xf32>
    %908 = arith.addf %905, %907 : vector<8x128xf32>
    %909 = arith.index_cast %c24_i32 : i32 to index
    %c0_286 = arith.constant 0 : index
    %c0_287 = arith.constant 0 : index
    %910 = vector.load %arg6[%909, %c0_286, %c0_287] : memref<32x8x128xf32, #tpu.memory_space<vmem>>, vector<1x8x128xf32>
    %911 = vector.shape_cast %910 : vector<1x8x128xf32> to vector<8x128xf32>
    %912 = vector.shape_cast %908 : vector<8x128xf32> to vector<1x8x128xf32>
    tpu.vector_store %arg6[%909, %c0_286, %c0_287], %912 {strides = array<i32>} : memref<32x8x128xf32, #tpu.memory_space<vmem>>, vector<1x8x128xf32>,
    %c25_i32 = arith.constant 25 : i32
    %c0_288 = arith.constant 0 : index
    %c0_289 = arith.constant 0 : index
    %913 = vector.load %arg3[%c0_288, %c0_289] : memref<128x384xf32, #tpu.memory_space<vmem>>, vector<128x384xf32>
    %cst_290 = arith.constant dense<0.000000e+00> : vector<8x384xf32>
    %914 = tpu.matmul %908, %913, %cst_290 {dimension_numbers = #tpu.dot_dimension_numbers<[1], [0], [0], [1], [0, 0, 1, 1], [], []>} : vector<8x128xf32>, vector<128x384xf32>, vector<8x384xf32> -> vector<8x384xf32>
    %c0_291 = arith.constant 0 : index
    %c0_292 = arith.constant 0 : index
    %915 = vector.load %arg5[%c0_291, %c0_292] : memref<1x384xf32, #tpu.memory_space<vmem>>, vector<1x384xf32>
    %916 = vector.broadcast %915 : vector<1x384xf32> to vector<8x384xf32>
    %917 = arith.addf %914, %916 : vector<8x384xf32>
    %918 = arith.index_cast %c25_i32 : i32 to index
    %c0_293 = arith.constant 0 : index
    %c0_294 = arith.constant 0 : index
    %919 = vector.load %arg8[%918, %c0_293, %c0_294] : memref<32x8x384xf32, #tpu.memory_space<vmem>>, vector<1x8x384xf32>
    %920 = vector.shape_cast %919 : vector<1x8x384xf32> to vector<8x384xf32>
    %921 = vector.extract_strided_slice %920 {offsets = [0, 0], sizes = [8, 128], strides = [1, 1]} : vector<8x384xf32> to vector<8x128xf32>
    %922 = vector.extract_strided_slice %917 {offsets = [0, 0], sizes = [8, 128], strides = [1, 1]} : vector<8x384xf32> to vector<8x128xf32>
    %923 = arith.addf %921, %922 : vector<8x128xf32>
    %924 = arith.negf %923 : vector<8x128xf32>
    %925 = math.exp %924 : vector<8x128xf32>
    %cst_295 = arith.constant 1.000000e+00 : f32
    %926 = vector.broadcast %cst_295 : f32 to vector<8x128xf32>
    %927 = arith.addf %926, %925 : vector<8x128xf32>
    %928 = arith.divf %926, %927 : vector<8x128xf32>
    %929 = vector.extract_strided_slice %920 {offsets = [0, 128], sizes = [8, 128], strides = [1, 1]} : vector<8x384xf32> to vector<8x128xf32>
    %930 = vector.extract_strided_slice %917 {offsets = [0, 128], sizes = [8, 128], strides = [1, 1]} : vector<8x384xf32> to vector<8x128xf32>
    %931 = arith.addf %929, %930 : vector<8x128xf32>
    %932 = arith.negf %931 : vector<8x128xf32>
    %933 = math.exp %932 : vector<8x128xf32>
    %cst_296 = arith.constant 1.000000e+00 : f32
    %934 = vector.broadcast %cst_296 : f32 to vector<8x128xf32>
    %935 = arith.addf %934, %933 : vector<8x128xf32>
    %936 = arith.divf %934, %935 : vector<8x128xf32>
    %937 = vector.extract_strided_slice %920 {offsets = [0, 256], sizes = [8, 128], strides = [1, 1]} : vector<8x384xf32> to vector<8x128xf32>
    %938 = vector.extract_strided_slice %917 {offsets = [0, 256], sizes = [8, 128], strides = [1, 1]} : vector<8x384xf32> to vector<8x128xf32>
    %939 = arith.mulf %928, %938 : vector<8x128xf32>
    %940 = arith.addf %937, %939 : vector<8x128xf32>
    %941 = math.tanh %940 : vector<8x128xf32>
    %942 = arith.subf %908, %941 : vector<8x128xf32>
    %943 = arith.mulf %936, %942 : vector<8x128xf32>
    %944 = arith.addf %941, %943 : vector<8x128xf32>
    %945 = arith.index_cast %c25_i32 : i32 to index
    %c0_297 = arith.constant 0 : index
    %c0_298 = arith.constant 0 : index
    %946 = vector.load %arg6[%945, %c0_297, %c0_298] : memref<32x8x128xf32, #tpu.memory_space<vmem>>, vector<1x8x128xf32>
    %947 = vector.shape_cast %946 : vector<1x8x128xf32> to vector<8x128xf32>
    %948 = vector.shape_cast %944 : vector<8x128xf32> to vector<1x8x128xf32>
    tpu.vector_store %arg6[%945, %c0_297, %c0_298], %948 {strides = array<i32>} : memref<32x8x128xf32, #tpu.memory_space<vmem>>, vector<1x8x128xf32>,
    %c26_i32 = arith.constant 26 : i32
    %c0_299 = arith.constant 0 : index
    %c0_300 = arith.constant 0 : index
    %949 = vector.load %arg3[%c0_299, %c0_300] : memref<128x384xf32, #tpu.memory_space<vmem>>, vector<128x384xf32>
    %cst_301 = arith.constant dense<0.000000e+00> : vector<8x384xf32>
    %950 = tpu.matmul %944, %949, %cst_301 {dimension_numbers = #tpu.dot_dimension_numbers<[1], [0], [0], [1], [0, 0, 1, 1], [], []>} : vector<8x128xf32>, vector<128x384xf32>, vector<8x384xf32> -> vector<8x384xf32>
    %c0_302 = arith.constant 0 : index
    %c0_303 = arith.constant 0 : index
    %951 = vector.load %arg5[%c0_302, %c0_303] : memref<1x384xf32, #tpu.memory_space<vmem>>, vector<1x384xf32>
    %952 = vector.broadcast %951 : vector<1x384xf32> to vector<8x384xf32>
    %953 = arith.addf %950, %952 : vector<8x384xf32>
    %954 = arith.index_cast %c26_i32 : i32 to index
    %c0_304 = arith.constant 0 : index
    %c0_305 = arith.constant 0 : index
    %955 = vector.load %arg8[%954, %c0_304, %c0_305] : memref<32x8x384xf32, #tpu.memory_space<vmem>>, vector<1x8x384xf32>
    %956 = vector.shape_cast %955 : vector<1x8x384xf32> to vector<8x384xf32>
    %957 = vector.extract_strided_slice %956 {offsets = [0, 0], sizes = [8, 128], strides = [1, 1]} : vector<8x384xf32> to vector<8x128xf32>
    %958 = vector.extract_strided_slice %953 {offsets = [0, 0], sizes = [8, 128], strides = [1, 1]} : vector<8x384xf32> to vector<8x128xf32>
    %959 = arith.addf %957, %958 : vector<8x128xf32>
    %960 = arith.negf %959 : vector<8x128xf32>
    %961 = math.exp %960 : vector<8x128xf32>
    %cst_306 = arith.constant 1.000000e+00 : f32
    %962 = vector.broadcast %cst_306 : f32 to vector<8x128xf32>
    %963 = arith.addf %962, %961 : vector<8x128xf32>
    %964 = arith.divf %962, %963 : vector<8x128xf32>
    %965 = vector.extract_strided_slice %956 {offsets = [0, 128], sizes = [8, 128], strides = [1, 1]} : vector<8x384xf32> to vector<8x128xf32>
    %966 = vector.extract_strided_slice %953 {offsets = [0, 128], sizes = [8, 128], strides = [1, 1]} : vector<8x384xf32> to vector<8x128xf32>
    %967 = arith.addf %965, %966 : vector<8x128xf32>
    %968 = arith.negf %967 : vector<8x128xf32>
    %969 = math.exp %968 : vector<8x128xf32>
    %cst_307 = arith.constant 1.000000e+00 : f32
    %970 = vector.broadcast %cst_307 : f32 to vector<8x128xf32>
    %971 = arith.addf %970, %969 : vector<8x128xf32>
    %972 = arith.divf %970, %971 : vector<8x128xf32>
    %973 = vector.extract_strided_slice %956 {offsets = [0, 256], sizes = [8, 128], strides = [1, 1]} : vector<8x384xf32> to vector<8x128xf32>
    %974 = vector.extract_strided_slice %953 {offsets = [0, 256], sizes = [8, 128], strides = [1, 1]} : vector<8x384xf32> to vector<8x128xf32>
    %975 = arith.mulf %964, %974 : vector<8x128xf32>
    %976 = arith.addf %973, %975 : vector<8x128xf32>
    %977 = math.tanh %976 : vector<8x128xf32>
    %978 = arith.subf %944, %977 : vector<8x128xf32>
    %979 = arith.mulf %972, %978 : vector<8x128xf32>
    %980 = arith.addf %977, %979 : vector<8x128xf32>
    %981 = arith.index_cast %c26_i32 : i32 to index
    %c0_308 = arith.constant 0 : index
    %c0_309 = arith.constant 0 : index
    %982 = vector.load %arg6[%981, %c0_308, %c0_309] : memref<32x8x128xf32, #tpu.memory_space<vmem>>, vector<1x8x128xf32>
    %983 = vector.shape_cast %982 : vector<1x8x128xf32> to vector<8x128xf32>
    %984 = vector.shape_cast %980 : vector<8x128xf32> to vector<1x8x128xf32>
    tpu.vector_store %arg6[%981, %c0_308, %c0_309], %984 {strides = array<i32>} : memref<32x8x128xf32, #tpu.memory_space<vmem>>, vector<1x8x128xf32>,
    %c27_i32 = arith.constant 27 : i32
    %c0_310 = arith.constant 0 : index
    %c0_311 = arith.constant 0 : index
    %985 = vector.load %arg3[%c0_310, %c0_311] : memref<128x384xf32, #tpu.memory_space<vmem>>, vector<128x384xf32>
    %cst_312 = arith.constant dense<0.000000e+00> : vector<8x384xf32>
    %986 = tpu.matmul %980, %985, %cst_312 {dimension_numbers = #tpu.dot_dimension_numbers<[1], [0], [0], [1], [0, 0, 1, 1], [], []>} : vector<8x128xf32>, vector<128x384xf32>, vector<8x384xf32> -> vector<8x384xf32>
    %c0_313 = arith.constant 0 : index
    %c0_314 = arith.constant 0 : index
    %987 = vector.load %arg5[%c0_313, %c0_314] : memref<1x384xf32, #tpu.memory_space<vmem>>, vector<1x384xf32>
    %988 = vector.broadcast %987 : vector<1x384xf32> to vector<8x384xf32>
    %989 = arith.addf %986, %988 : vector<8x384xf32>
    %990 = arith.index_cast %c27_i32 : i32 to index
    %c0_315 = arith.constant 0 : index
    %c0_316 = arith.constant 0 : index
    %991 = vector.load %arg8[%990, %c0_315, %c0_316] : memref<32x8x384xf32, #tpu.memory_space<vmem>>, vector<1x8x384xf32>
    %992 = vector.shape_cast %991 : vector<1x8x384xf32> to vector<8x384xf32>
    %993 = vector.extract_strided_slice %992 {offsets = [0, 0], sizes = [8, 128], strides = [1, 1]} : vector<8x384xf32> to vector<8x128xf32>
    %994 = vector.extract_strided_slice %989 {offsets = [0, 0], sizes = [8, 128], strides = [1, 1]} : vector<8x384xf32> to vector<8x128xf32>
    %995 = arith.addf %993, %994 : vector<8x128xf32>
    %996 = arith.negf %995 : vector<8x128xf32>
    %997 = math.exp %996 : vector<8x128xf32>
    %cst_317 = arith.constant 1.000000e+00 : f32
    %998 = vector.broadcast %cst_317 : f32 to vector<8x128xf32>
    %999 = arith.addf %998, %997 : vector<8x128xf32>
    %1000 = arith.divf %998, %999 : vector<8x128xf32>
    %1001 = vector.extract_strided_slice %992 {offsets = [0, 128], sizes = [8, 128], strides = [1, 1]} : vector<8x384xf32> to vector<8x128xf32>
    %1002 = vector.extract_strided_slice %989 {offsets = [0, 128], sizes = [8, 128], strides = [1, 1]} : vector<8x384xf32> to vector<8x128xf32>
    %1003 = arith.addf %1001, %1002 : vector<8x128xf32>
    %1004 = arith.negf %1003 : vector<8x128xf32>
    %1005 = math.exp %1004 : vector<8x128xf32>
    %cst_318 = arith.constant 1.000000e+00 : f32
    %1006 = vector.broadcast %cst_318 : f32 to vector<8x128xf32>
    %1007 = arith.addf %1006, %1005 : vector<8x128xf32>
    %1008 = arith.divf %1006, %1007 : vector<8x128xf32>
    %1009 = vector.extract_strided_slice %992 {offsets = [0, 256], sizes = [8, 128], strides = [1, 1]} : vector<8x384xf32> to vector<8x128xf32>
    %1010 = vector.extract_strided_slice %989 {offsets = [0, 256], sizes = [8, 128], strides = [1, 1]} : vector<8x384xf32> to vector<8x128xf32>
    %1011 = arith.mulf %1000, %1010 : vector<8x128xf32>
    %1012 = arith.addf %1009, %1011 : vector<8x128xf32>
    %1013 = math.tanh %1012 : vector<8x128xf32>
    %1014 = arith.subf %980, %1013 : vector<8x128xf32>
    %1015 = arith.mulf %1008, %1014 : vector<8x128xf32>
    %1016 = arith.addf %1013, %1015 : vector<8x128xf32>
    %1017 = arith.index_cast %c27_i32 : i32 to index
    %c0_319 = arith.constant 0 : index
    %c0_320 = arith.constant 0 : index
    %1018 = vector.load %arg6[%1017, %c0_319, %c0_320] : memref<32x8x128xf32, #tpu.memory_space<vmem>>, vector<1x8x128xf32>
    %1019 = vector.shape_cast %1018 : vector<1x8x128xf32> to vector<8x128xf32>
    %1020 = vector.shape_cast %1016 : vector<8x128xf32> to vector<1x8x128xf32>
    tpu.vector_store %arg6[%1017, %c0_319, %c0_320], %1020 {strides = array<i32>} : memref<32x8x128xf32, #tpu.memory_space<vmem>>, vector<1x8x128xf32>,
    %c28_i32 = arith.constant 28 : i32
    %c0_321 = arith.constant 0 : index
    %c0_322 = arith.constant 0 : index
    %1021 = vector.load %arg3[%c0_321, %c0_322] : memref<128x384xf32, #tpu.memory_space<vmem>>, vector<128x384xf32>
    %cst_323 = arith.constant dense<0.000000e+00> : vector<8x384xf32>
    %1022 = tpu.matmul %1016, %1021, %cst_323 {dimension_numbers = #tpu.dot_dimension_numbers<[1], [0], [0], [1], [0, 0, 1, 1], [], []>} : vector<8x128xf32>, vector<128x384xf32>, vector<8x384xf32> -> vector<8x384xf32>
    %c0_324 = arith.constant 0 : index
    %c0_325 = arith.constant 0 : index
    %1023 = vector.load %arg5[%c0_324, %c0_325] : memref<1x384xf32, #tpu.memory_space<vmem>>, vector<1x384xf32>
    %1024 = vector.broadcast %1023 : vector<1x384xf32> to vector<8x384xf32>
    %1025 = arith.addf %1022, %1024 : vector<8x384xf32>
    %1026 = arith.index_cast %c28_i32 : i32 to index
    %c0_326 = arith.constant 0 : index
    %c0_327 = arith.constant 0 : index
    %1027 = vector.load %arg8[%1026, %c0_326, %c0_327] : memref<32x8x384xf32, #tpu.memory_space<vmem>>, vector<1x8x384xf32>
    %1028 = vector.shape_cast %1027 : vector<1x8x384xf32> to vector<8x384xf32>
    %1029 = vector.extract_strided_slice %1028 {offsets = [0, 0], sizes = [8, 128], strides = [1, 1]} : vector<8x384xf32> to vector<8x128xf32>
    %1030 = vector.extract_strided_slice %1025 {offsets = [0, 0], sizes = [8, 128], strides = [1, 1]} : vector<8x384xf32> to vector<8x128xf32>
    %1031 = arith.addf %1029, %1030 : vector<8x128xf32>
    %1032 = arith.negf %1031 : vector<8x128xf32>
    %1033 = math.exp %1032 : vector<8x128xf32>
    %cst_328 = arith.constant 1.000000e+00 : f32
    %1034 = vector.broadcast %cst_328 : f32 to vector<8x128xf32>
    %1035 = arith.addf %1034, %1033 : vector<8x128xf32>
    %1036 = arith.divf %1034, %1035 : vector<8x128xf32>
    %1037 = vector.extract_strided_slice %1028 {offsets = [0, 128], sizes = [8, 128], strides = [1, 1]} : vector<8x384xf32> to vector<8x128xf32>
    %1038 = vector.extract_strided_slice %1025 {offsets = [0, 128], sizes = [8, 128], strides = [1, 1]} : vector<8x384xf32> to vector<8x128xf32>
    %1039 = arith.addf %1037, %1038 : vector<8x128xf32>
    %1040 = arith.negf %1039 : vector<8x128xf32>
    %1041 = math.exp %1040 : vector<8x128xf32>
    %cst_329 = arith.constant 1.000000e+00 : f32
    %1042 = vector.broadcast %cst_329 : f32 to vector<8x128xf32>
    %1043 = arith.addf %1042, %1041 : vector<8x128xf32>
    %1044 = arith.divf %1042, %1043 : vector<8x128xf32>
    %1045 = vector.extract_strided_slice %1028 {offsets = [0, 256], sizes = [8, 128], strides = [1, 1]} : vector<8x384xf32> to vector<8x128xf32>
    %1046 = vector.extract_strided_slice %1025 {offsets = [0, 256], sizes = [8, 128], strides = [1, 1]} : vector<8x384xf32> to vector<8x128xf32>
    %1047 = arith.mulf %1036, %1046 : vector<8x128xf32>
    %1048 = arith.addf %1045, %1047 : vector<8x128xf32>
    %1049 = math.tanh %1048 : vector<8x128xf32>
    %1050 = arith.subf %1016, %1049 : vector<8x128xf32>
    %1051 = arith.mulf %1044, %1050 : vector<8x128xf32>
    %1052 = arith.addf %1049, %1051 : vector<8x128xf32>
    %1053 = arith.index_cast %c28_i32 : i32 to index
    %c0_330 = arith.constant 0 : index
    %c0_331 = arith.constant 0 : index
    %1054 = vector.load %arg6[%1053, %c0_330, %c0_331] : memref<32x8x128xf32, #tpu.memory_space<vmem>>, vector<1x8x128xf32>
    %1055 = vector.shape_cast %1054 : vector<1x8x128xf32> to vector<8x128xf32>
    %1056 = vector.shape_cast %1052 : vector<8x128xf32> to vector<1x8x128xf32>
    tpu.vector_store %arg6[%1053, %c0_330, %c0_331], %1056 {strides = array<i32>} : memref<32x8x128xf32, #tpu.memory_space<vmem>>, vector<1x8x128xf32>,
    %c29_i32 = arith.constant 29 : i32
    %c0_332 = arith.constant 0 : index
    %c0_333 = arith.constant 0 : index
    %1057 = vector.load %arg3[%c0_332, %c0_333] : memref<128x384xf32, #tpu.memory_space<vmem>>, vector<128x384xf32>
    %cst_334 = arith.constant dense<0.000000e+00> : vector<8x384xf32>
    %1058 = tpu.matmul %1052, %1057, %cst_334 {dimension_numbers = #tpu.dot_dimension_numbers<[1], [0], [0], [1], [0, 0, 1, 1], [], []>} : vector<8x128xf32>, vector<128x384xf32>, vector<8x384xf32> -> vector<8x384xf32>
    %c0_335 = arith.constant 0 : index
    %c0_336 = arith.constant 0 : index
    %1059 = vector.load %arg5[%c0_335, %c0_336] : memref<1x384xf32, #tpu.memory_space<vmem>>, vector<1x384xf32>
    %1060 = vector.broadcast %1059 : vector<1x384xf32> to vector<8x384xf32>
    %1061 = arith.addf %1058, %1060 : vector<8x384xf32>
    %1062 = arith.index_cast %c29_i32 : i32 to index
    %c0_337 = arith.constant 0 : index
    %c0_338 = arith.constant 0 : index
    %1063 = vector.load %arg8[%1062, %c0_337, %c0_338] : memref<32x8x384xf32, #tpu.memory_space<vmem>>, vector<1x8x384xf32>
    %1064 = vector.shape_cast %1063 : vector<1x8x384xf32> to vector<8x384xf32>
    %1065 = vector.extract_strided_slice %1064 {offsets = [0, 0], sizes = [8, 128], strides = [1, 1]} : vector<8x384xf32> to vector<8x128xf32>
    %1066 = vector.extract_strided_slice %1061 {offsets = [0, 0], sizes = [8, 128], strides = [1, 1]} : vector<8x384xf32> to vector<8x128xf32>
    %1067 = arith.addf %1065, %1066 : vector<8x128xf32>
    %1068 = arith.negf %1067 : vector<8x128xf32>
    %1069 = math.exp %1068 : vector<8x128xf32>
    %cst_339 = arith.constant 1.000000e+00 : f32
    %1070 = vector.broadcast %cst_339 : f32 to vector<8x128xf32>
    %1071 = arith.addf %1070, %1069 : vector<8x128xf32>
    %1072 = arith.divf %1070, %1071 : vector<8x128xf32>
    %1073 = vector.extract_strided_slice %1064 {offsets = [0, 128], sizes = [8, 128], strides = [1, 1]} : vector<8x384xf32> to vector<8x128xf32>
    %1074 = vector.extract_strided_slice %1061 {offsets = [0, 128], sizes = [8, 128], strides = [1, 1]} : vector<8x384xf32> to vector<8x128xf32>
    %1075 = arith.addf %1073, %1074 : vector<8x128xf32>
    %1076 = arith.negf %1075 : vector<8x128xf32>
    %1077 = math.exp %1076 : vector<8x128xf32>
    %cst_340 = arith.constant 1.000000e+00 : f32
    %1078 = vector.broadcast %cst_340 : f32 to vector<8x128xf32>
    %1079 = arith.addf %1078, %1077 : vector<8x128xf32>
    %1080 = arith.divf %1078, %1079 : vector<8x128xf32>
    %1081 = vector.extract_strided_slice %1064 {offsets = [0, 256], sizes = [8, 128], strides = [1, 1]} : vector<8x384xf32> to vector<8x128xf32>
    %1082 = vector.extract_strided_slice %1061 {offsets = [0, 256], sizes = [8, 128], strides = [1, 1]} : vector<8x384xf32> to vector<8x128xf32>
    %1083 = arith.mulf %1072, %1082 : vector<8x128xf32>
    %1084 = arith.addf %1081, %1083 : vector<8x128xf32>
    %1085 = math.tanh %1084 : vector<8x128xf32>
    %1086 = arith.subf %1052, %1085 : vector<8x128xf32>
    %1087 = arith.mulf %1080, %1086 : vector<8x128xf32>
    %1088 = arith.addf %1085, %1087 : vector<8x128xf32>
    %1089 = arith.index_cast %c29_i32 : i32 to index
    %c0_341 = arith.constant 0 : index
    %c0_342 = arith.constant 0 : index
    %1090 = vector.load %arg6[%1089, %c0_341, %c0_342] : memref<32x8x128xf32, #tpu.memory_space<vmem>>, vector<1x8x128xf32>
    %1091 = vector.shape_cast %1090 : vector<1x8x128xf32> to vector<8x128xf32>
    %1092 = vector.shape_cast %1088 : vector<8x128xf32> to vector<1x8x128xf32>
    tpu.vector_store %arg6[%1089, %c0_341, %c0_342], %1092 {strides = array<i32>} : memref<32x8x128xf32, #tpu.memory_space<vmem>>, vector<1x8x128xf32>,
    %c30_i32 = arith.constant 30 : i32
    %c0_343 = arith.constant 0 : index
    %c0_344 = arith.constant 0 : index
    %1093 = vector.load %arg3[%c0_343, %c0_344] : memref<128x384xf32, #tpu.memory_space<vmem>>, vector<128x384xf32>
    %cst_345 = arith.constant dense<0.000000e+00> : vector<8x384xf32>
    %1094 = tpu.matmul %1088, %1093, %cst_345 {dimension_numbers = #tpu.dot_dimension_numbers<[1], [0], [0], [1], [0, 0, 1, 1], [], []>} : vector<8x128xf32>, vector<128x384xf32>, vector<8x384xf32> -> vector<8x384xf32>
    %c0_346 = arith.constant 0 : index
    %c0_347 = arith.constant 0 : index
    %1095 = vector.load %arg5[%c0_346, %c0_347] : memref<1x384xf32, #tpu.memory_space<vmem>>, vector<1x384xf32>
    %1096 = vector.broadcast %1095 : vector<1x384xf32> to vector<8x384xf32>
    %1097 = arith.addf %1094, %1096 : vector<8x384xf32>
    %1098 = arith.index_cast %c30_i32 : i32 to index
    %c0_348 = arith.constant 0 : index
    %c0_349 = arith.constant 0 : index
    %1099 = vector.load %arg8[%1098, %c0_348, %c0_349] : memref<32x8x384xf32, #tpu.memory_space<vmem>>, vector<1x8x384xf32>
    %1100 = vector.shape_cast %1099 : vector<1x8x384xf32> to vector<8x384xf32>
    %1101 = vector.extract_strided_slice %1100 {offsets = [0, 0], sizes = [8, 128], strides = [1, 1]} : vector<8x384xf32> to vector<8x128xf32>
    %1102 = vector.extract_strided_slice %1097 {offsets = [0, 0], sizes = [8, 128], strides = [1, 1]} : vector<8x384xf32> to vector<8x128xf32>
    %1103 = arith.addf %1101, %1102 : vector<8x128xf32>
    %1104 = arith.negf %1103 : vector<8x128xf32>
    %1105 = math.exp %1104 : vector<8x128xf32>
    %cst_350 = arith.constant 1.000000e+00 : f32
    %1106 = vector.broadcast %cst_350 : f32 to vector<8x128xf32>
    %1107 = arith.addf %1106, %1105 : vector<8x128xf32>
    %1108 = arith.divf %1106, %1107 : vector<8x128xf32>
    %1109 = vector.extract_strided_slice %1100 {offsets = [0, 128], sizes = [8, 128], strides = [1, 1]} : vector<8x384xf32> to vector<8x128xf32>
    %1110 = vector.extract_strided_slice %1097 {offsets = [0, 128], sizes = [8, 128], strides = [1, 1]} : vector<8x384xf32> to vector<8x128xf32>
    %1111 = arith.addf %1109, %1110 : vector<8x128xf32>
    %1112 = arith.negf %1111 : vector<8x128xf32>
    %1113 = math.exp %1112 : vector<8x128xf32>
    %cst_351 = arith.constant 1.000000e+00 : f32
    %1114 = vector.broadcast %cst_351 : f32 to vector<8x128xf32>
    %1115 = arith.addf %1114, %1113 : vector<8x128xf32>
    %1116 = arith.divf %1114, %1115 : vector<8x128xf32>
    %1117 = vector.extract_strided_slice %1100 {offsets = [0, 256], sizes = [8, 128], strides = [1, 1]} : vector<8x384xf32> to vector<8x128xf32>
    %1118 = vector.extract_strided_slice %1097 {offsets = [0, 256], sizes = [8, 128], strides = [1, 1]} : vector<8x384xf32> to vector<8x128xf32>
    %1119 = arith.mulf %1108, %1118 : vector<8x128xf32>
    %1120 = arith.addf %1117, %1119 : vector<8x128xf32>
    %1121 = math.tanh %1120 : vector<8x128xf32>
    %1122 = arith.subf %1088, %1121 : vector<8x128xf32>
    %1123 = arith.mulf %1116, %1122 : vector<8x128xf32>
    %1124 = arith.addf %1121, %1123 : vector<8x128xf32>
    %1125 = arith.index_cast %c30_i32 : i32 to index
    %c0_352 = arith.constant 0 : index
    %c0_353 = arith.constant 0 : index
    %1126 = vector.load %arg6[%1125, %c0_352, %c0_353] : memref<32x8x128xf32, #tpu.memory_space<vmem>>, vector<1x8x128xf32>
    %1127 = vector.shape_cast %1126 : vector<1x8x128xf32> to vector<8x128xf32>
    %1128 = vector.shape_cast %1124 : vector<8x128xf32> to vector<1x8x128xf32>
    tpu.vector_store %arg6[%1125, %c0_352, %c0_353], %1128 {strides = array<i32>} : memref<32x8x128xf32, #tpu.memory_space<vmem>>, vector<1x8x128xf32>,
    %c31_i32 = arith.constant 31 : i32
    %c0_354 = arith.constant 0 : index
    %c0_355 = arith.constant 0 : index
    %1129 = vector.load %arg3[%c0_354, %c0_355] : memref<128x384xf32, #tpu.memory_space<vmem>>, vector<128x384xf32>
    %cst_356 = arith.constant dense<0.000000e+00> : vector<8x384xf32>
    %1130 = tpu.matmul %1124, %1129, %cst_356 {dimension_numbers = #tpu.dot_dimension_numbers<[1], [0], [0], [1], [0, 0, 1, 1], [], []>} : vector<8x128xf32>, vector<128x384xf32>, vector<8x384xf32> -> vector<8x384xf32>
    %c0_357 = arith.constant 0 : index
    %c0_358 = arith.constant 0 : index
    %1131 = vector.load %arg5[%c0_357, %c0_358] : memref<1x384xf32, #tpu.memory_space<vmem>>, vector<1x384xf32>
    %1132 = vector.broadcast %1131 : vector<1x384xf32> to vector<8x384xf32>
    %1133 = arith.addf %1130, %1132 : vector<8x384xf32>
    %1134 = arith.index_cast %c31_i32 : i32 to index
    %c0_359 = arith.constant 0 : index
    %c0_360 = arith.constant 0 : index
    %1135 = vector.load %arg8[%1134, %c0_359, %c0_360] : memref<32x8x384xf32, #tpu.memory_space<vmem>>, vector<1x8x384xf32>
    %1136 = vector.shape_cast %1135 : vector<1x8x384xf32> to vector<8x384xf32>
    %1137 = vector.extract_strided_slice %1136 {offsets = [0, 0], sizes = [8, 128], strides = [1, 1]} : vector<8x384xf32> to vector<8x128xf32>
    %1138 = vector.extract_strided_slice %1133 {offsets = [0, 0], sizes = [8, 128], strides = [1, 1]} : vector<8x384xf32> to vector<8x128xf32>
    %1139 = arith.addf %1137, %1138 : vector<8x128xf32>
    %1140 = arith.negf %1139 : vector<8x128xf32>
    %1141 = math.exp %1140 : vector<8x128xf32>
    %cst_361 = arith.constant 1.000000e+00 : f32
    %1142 = vector.broadcast %cst_361 : f32 to vector<8x128xf32>
    %1143 = arith.addf %1142, %1141 : vector<8x128xf32>
    %1144 = arith.divf %1142, %1143 : vector<8x128xf32>
    %1145 = vector.extract_strided_slice %1136 {offsets = [0, 128], sizes = [8, 128], strides = [1, 1]} : vector<8x384xf32> to vector<8x128xf32>
    %1146 = vector.extract_strided_slice %1133 {offsets = [0, 128], sizes = [8, 128], strides = [1, 1]} : vector<8x384xf32> to vector<8x128xf32>
    %1147 = arith.addf %1145, %1146 : vector<8x128xf32>
    %1148 = arith.negf %1147 : vector<8x128xf32>
    %1149 = math.exp %1148 : vector<8x128xf32>
    %cst_362 = arith.constant 1.000000e+00 : f32
    %1150 = vector.broadcast %cst_362 : f32 to vector<8x128xf32>
    %1151 = arith.addf %1150, %1149 : vector<8x128xf32>
    %1152 = arith.divf %1150, %1151 : vector<8x128xf32>
    %1153 = vector.extract_strided_slice %1136 {offsets = [0, 256], sizes = [8, 128], strides = [1, 1]} : vector<8x384xf32> to vector<8x128xf32>
    %1154 = vector.extract_strided_slice %1133 {offsets = [0, 256], sizes = [8, 128], strides = [1, 1]} : vector<8x384xf32> to vector<8x128xf32>
    %1155 = arith.mulf %1144, %1154 : vector<8x128xf32>
    %1156 = arith.addf %1153, %1155 : vector<8x128xf32>
    %1157 = math.tanh %1156 : vector<8x128xf32>
    %1158 = arith.subf %1124, %1157 : vector<8x128xf32>
    %1159 = arith.mulf %1152, %1158 : vector<8x128xf32>
    %1160 = arith.addf %1157, %1159 : vector<8x128xf32>
    %1161 = arith.index_cast %c31_i32 : i32 to index
    %c0_363 = arith.constant 0 : index
    %c0_364 = arith.constant 0 : index
    %1162 = vector.load %arg6[%1161, %c0_363, %c0_364] : memref<32x8x128xf32, #tpu.memory_space<vmem>>, vector<1x8x128xf32>
    %1163 = vector.shape_cast %1162 : vector<1x8x128xf32> to vector<8x128xf32>
    %1164 = vector.shape_cast %1160 : vector<8x128xf32> to vector<1x8x128xf32>
    tpu.vector_store %arg6[%1161, %c0_363, %c0_364], %1164 {strides = array<i32>} : memref<32x8x128xf32, #tpu.memory_space<vmem>>, vector<1x8x128xf32>,
    %c32_i32 = arith.constant 32 : i32
    %c0_365 = arith.constant 0 : index
    %c0_366 = arith.constant 0 : index
    %1165 = vector.load %arg7[%c0_365, %c0_366] : memref<8x128xf32, #tpu.memory_space<vmem>>, vector<8x128xf32>
    tpu.vector_store %arg7[%c0_365, %c0_366], %1160 {strides = array<i32>} : memref<8x128xf32, #tpu.memory_space<vmem>>, vector<8x128xf32>,
    return
  }
  func.func @transform_0(%arg0: i32) -> (i32, i32, i32) {
    %c0_i32 = arith.constant 0 : i32
    %c0_i32_0 = arith.constant 0 : i32
    %c0_i32_1 = arith.constant 0 : i32
    return %arg0, %c0_i32, %c0_i32_0 : i32, i32, i32
  }
  func.func @transform_1(%arg0: i32) -> (i32, i32) {
    %c0_i32 = arith.constant 0 : i32
    %c0_i32_0 = arith.constant 0 : i32
    %c0_i32_1 = arith.constant 0 : i32
    return %c0_i32, %c0_i32_0 : i32, i32
  }
  func.func @transform_2(%arg0: i32) -> (i32, i32) {
    %c0_i32 = arith.constant 0 : i32
    %c0_i32_0 = arith.constant 0 : i32
    %c0_i32_1 = arith.constant 0 : i32
    return %c0_i32, %c0_i32_0 : i32, i32
  }
  func.func @transform_3(%arg0: i32) -> (i32, i32) {
    %c0_i32 = arith.constant 0 : i32
    %c0_i32_0 = arith.constant 0 : i32
    %c0_i32_1 = arith.constant 0 : i32
    return %c0_i32, %c0_i32_0 : i32, i32
  }
  func.func @transform_4(%arg0: i32) -> (i32, i32) {
    %c0_i32 = arith.constant 0 : i32
    %c0_i32_0 = arith.constant 0 : i32
    %c0_i32_1 = arith.constant 0 : i32
    return %c0_i32, %c0_i32_0 : i32, i32
  }
  func.func @transform_5(%arg0: i32) -> (i32, i32, i32) {
    %c0_i32 = arith.constant 0 : i32
    %c0_i32_0 = arith.constant 0 : i32
    %c0_i32_1 = arith.constant 0 : i32
    return %arg0, %c0_i32, %c0_i32_0 : i32, i32, i32
  }
}

</mosaic_0001>

<llo_original>
// kernel: deep_rnn_net_pallas.2
$region0: #{deep_rnn_net_pallas.2}
  #allocation0 [shape = 'u32[]', space=smem, size = 0x4, offset = 0x4, fixed_abs, tag = 'smem constant byte address 0x4 - core index']
  #allocation1 [shape = 'u32[144,128]{1,0:T(1,128)}', space=vmem, size = 0x12000, scoped, tag = 'internal scratch']
  #allocation2 [shape = 'f32[8,128]{1,0:T(8,128)}', space=vmem, size = 0x1000, scoped, tag = 'scratch operand']
  #allocation3 [shape = 'f32[32,8,384]{2,1,0:T(8,128)}', space=vmem, size = 0x60000, scoped, tag = 'scratch operand']
  %s0 = inlined_call_operand.vmem [shape: f32[64,8,128], index: 0, kind: input, shape index: {}]
  %s1 = inlined_call_operand.vmem [shape: f32[128,384], index: 1, kind: input, shape index: {}]
  %s2 = inlined_call_operand.vmem [shape: f32[128,384], index: 2, kind: input, shape index: {}]
  %s3 = inlined_call_operand.vmem [shape: f32[1,384], index: 3, kind: input, shape index: {}]
  %s4 = inlined_call_operand.vmem [shape: f32[1,384], index: 4, kind: input, shape index: {}]
  %s5 = inlined_call_operand.vmem [shape: f32[64,8,128], index: 5, kind: output, shape index: {}]
  %s6 = sld [smem:[#allocation0]]
  $region57: #{deep_rnn_net_pallas.2} parent=0
    _
  %s8 = ssub.s32 1, %s6
  %s9 = scalar_select 0, %s8, %s6
  loop: start=0, step=1, limit=4
  $region2: #{deep_rnn_net_pallas.2} parent=0 // loop_pre_header
    _
  $region3: #{deep_rnn_net_pallas.2} parent=0 // loop_header
    %s11 = sphi 0, %s15
    %p12 = scmp.ge.s32.totalorder %s11, 4
    %s21 = sphi 0, %s23
    %s24 = sphi 0, %s21
    %s25 = sphi 0, %s24
    %s41 = sphi 0, %s25
    %s45 = sphi 0, %s45
    %s47 = sphi 0, %s45
    %s48 = sphi 0, %s47
    %s62 = sphi 0, %s48
    %s66 = sphi 0, %s66
    %s68 = sphi 0, %s66
    %s69 = sphi 0, %s68
    %s83 = sphi 0, %s69
    %s87 = sphi 0, %s87
    %s89 = sphi 0, %s87
    %s90 = sphi 0, %s89
    %s104 = sphi 0, %s90
    %s108 = sphi 0, %s108
    %s110 = sphi 0, %s108
    %s111 = sphi 0, %s110
    %s125 = sphi 0, %s111
    %s131 = sphi 0, %s133
    %s134 = sphi 0, %s131
    %s135 = sphi 0, %s134
    %s151 = sphi 0, %s135
  $region4: #{deep_rnn_net_pallas.2} parent=0 // loop_header_branch
    %14 = sbr.rel (%p12) target = $region8
  $region5: #{deep_rnn_net_pallas.2} parent=0 // loop_body
    %s16 = ssub.s32 %s11, 1
    %s17 = ssub.s32 %s11, 2
    %s18 = sadd.s32 %s11, 1
    %s19 = ssub.s32 %s11, %s18
    %p20 = scmp.eq.s32.totalorder %s19, 0
    %s22 = sadd.s32 %s21, 1
    %s23 = scalar_select %p20, %s21, %s22
    %p26 = pneg %p20
    %p27 = scmp.eq.s32.totalorder %s11, 1
    %p28 = por %p26, %p27
    %p29 = scmp.ne.s32.totalorder %s21, %s24
    %p30 = scmp.eq.s32.totalorder %s11, 0
    %p31 = por %p29, %p30
    %p32 = scmp.ne.s32.totalorder %s21, %s24
    %p33 = scmp.eq.s32.totalorder %s16, 1
    %p34 = por %p32, %p33
    %p35 = scmp.ne.s32.totalorder %s24, %s25
    %p36 = scmp.eq.s32.totalorder %s16, 0
    %p37 = por %p35, %p36
    %p38 = scmp.ne.s32.totalorder %s24, %s25
    %p39 = scmp.eq.s32.totalorder %s17, 1
    %p40 = por %p38, %p39
    %p42 = scmp.ne.s32.totalorder %s25, %s41
    %p43 = scmp.eq.s32.totalorder %s17, 0
    %p44 = por %p42, %p43
    %s46 = sadd.s32 %s45, 1
    %p49 = scmp.eq.s32.totalorder %s11, 1
    %p50 = scmp.ne.s32.totalorder %s45, %s47
    %p51 = scmp.eq.s32.totalorder %s11, 0
    %p52 = por %p50, %p51
    %p53 = scmp.ne.s32.totalorder %s45, %s47
    %p54 = scmp.eq.s32.totalorder %s16, 1
    %p55 = por %p53, %p54
    %p56 = scmp.ne.s32.totalorder %s47, %s48
    %p57 = scmp.eq.s32.totalorder %s16, 0
    %p58 = por %p56, %p57
    %p59 = scmp.ne.s32.totalorder %s47, %s48
    %p60 = scmp.eq.s32.totalorder %s17, 1
    %p61 = por %p59, %p60
    %p63 = scmp.ne.s32.totalorder %s48, %s62
    %p64 = scmp.eq.s32.totalorder %s17, 0
    %p65 = por %p63, %p64
    %s67 = sadd.s32 %s66, 1
    %p70 = scmp.eq.s32.totalorder %s11, 1
    %p71 = scmp.ne.s32.totalorder %s66, %s68
    %p72 = scmp.eq.s32.totalorder %s11, 0
    %p73 = por %p71, %p72
    %p74 = scmp.ne.s32.totalorder %s66, %s68
    %p75 = scmp.eq.s32.totalorder %s16, 1
    %p76 = por %p74, %p75
    %p77 = scmp.ne.s32.totalorder %s68, %s69
    %p78 = scmp.eq.s32.totalorder %s16, 0
    %p79 = por %p77, %p78
    %p80 = scmp.ne.s32.totalorder %s68, %s69
    %p81 = scmp.eq.s32.totalorder %s17, 1
    %p82 = por %p80, %p81
    %p84 = scmp.ne.s32.totalorder %s69, %s83
    %p85 = scmp.eq.s32.totalorder %s17, 0
    %p86 = por %p84, %p85
    %s88 = sadd.s32 %s87, 1
    %p91 = scmp.eq.s32.totalorder %s11, 1
    %p92 = scmp.ne.s32.totalorder %s87, %s89
    %p93 = scmp.eq.s32.totalorder %s11, 0
    %p94 = por %p92, %p93
    %p95 = scmp.ne.s32.totalorder %s87, %s89
    %p96 = scmp.eq.s32.totalorder %s16, 1
    %p97 = por %p95, %p96
    %p98 = scmp.ne.s32.totalorder %s89, %s90
    %p99 = scmp.eq.s32.totalorder %s16, 0
    %p100 = por %p98, %p99
    %p101 = scmp.ne.s32.totalorder %s89, %s90
    %p102 = scmp.eq.s32.totalorder %s17, 1
    %p103 = por %p101, %p102
    %p105 = scmp.ne.s32.totalorder %s90, %s104
    %p106 = scmp.eq.s32.totalorder %s17, 0
    %p107 = por %p105, %p106
    %s109 = sadd.s32 %s108, 1
    %p112 = scmp.eq.s32.totalorder %s11, 1
    %p113 = scmp.ne.s32.totalorder %s108, %s110
    %p114 = scmp.eq.s32.totalorder %s11, 0
    %p115 = por %p113, %p114
    %p116 = scmp.ne.s32.totalorder %s108, %s110
    %p117 = scmp.eq.s32.totalorder %s16, 1
    %p118 = por %p116, %p117
    %p119 = scmp.ne.s32.totalorder %s110, %s111
    %p120 = scmp.eq.s32.totalorder %s16, 0
    %p121 = por %p119, %p120
    %p122 = scmp.ne.s32.totalorder %s110, %s111
    %p123 = scmp.eq.s32.totalorder %s17, 1
    %p124 = por %p122, %p123
    %p126 = scmp.ne.s32.totalorder %s111, %s125
    %p127 = scmp.eq.s32.totalorder %s17, 0
    %p128 = por %p126, %p127
    %s129 = ssub.s32 %s11, %s18
    %p130 = scmp.eq.s32.totalorder %s129, 0
    %s132 = sadd.s32 %s131, 1
    %s133 = scalar_select %p130, %s131, %s132
    %p136 = pneg %p130
    %p137 = scmp.eq.s32.totalorder %s11, 1
    %p138 = por %p136, %p137
    %p139 = scmp.ne.s32.totalorder %s131, %s134
    %p140 = scmp.eq.s32.totalorder %s11, 0
    %p141 = por %p139, %p140
    %p142 = scmp.ne.s32.totalorder %s131, %s134
    %p143 = scmp.eq.s32.totalorder %s16, 1
    %p144 = por %p142, %p143
    %p145 = scmp.ne.s32.totalorder %s134, %s135
    %p146 = scmp.eq.s32.totalorder %s16, 0
    %p147 = por %p145, %p146
    %p148 = scmp.ne.s32.totalorder %s134, %s135
    %p149 = scmp.eq.s32.totalorder %s17, 1
    %p150 = por %p148, %p149
    %p152 = scmp.ne.s32.totalorder %s135, %s151
    %p153 = scmp.eq.s32.totalorder %s17, 0
    %p154 = por %p152, %p153
    %p155 = scmp.le.s32.totalorder 1, %s11
    %p156 = scmp.lt.s32.totalorder %s11, 3
    %p157 = pnand %p155, %p156
    %p158 = pneg %p157
    // Predicated region
    $region9: #{deep_rnn_net_pallas.2} parent=5 // pred_check
      _
    $region10: #{deep_rnn_net_pallas.2} parent=5 // pred_check_branch
      %160 = sbr.rel (%p157) target = $region12
    $region11: #{deep_rnn_net_pallas.2} parent=5 // pred_region
      %s161 = ssub.s32 %s11, 1
      // Predicated region
      $region13: #{deep_rnn_net_pallas.2} parent=11 // pred_check
        %p162 = pneg %p58
      $region14: #{deep_rnn_net_pallas.2} parent=11 // pred_check_branch
        %164 = sbr.rel (%p162) target = $region16
      $region15: #{deep_rnn_net_pallas.2} parent=11 // pred_region
        _
      $region16: #{deep_rnn_net_pallas.2} parent=11 // pred_fallthru
        _
      // Predicated region
      $region17: #{deep_rnn_net_pallas.2} parent=11 // pred_check
        %p165 = pneg %p79
      $region18: #{deep_rnn_net_pallas.2} parent=11 // pred_check_branch
        %167 = sbr.rel (%p165) target = $region20
      $region19: #{deep_rnn_net_pallas.2} parent=11 // pred_region
        _
      $region20: #{deep_rnn_net_pallas.2} parent=11 // pred_fallthru
        _
      // Predicated region
      $region21: #{deep_rnn_net_pallas.2} parent=11 // pred_check
        %p168 = pneg %p100
      $region22: #{deep_rnn_net_pallas.2} parent=11 // pred_check_branch
        %170 = sbr.rel (%p168) target = $region24
      $region23: #{deep_rnn_net_pallas.2} parent=11 // pred_region
        _
      $region24: #{deep_rnn_net_pallas.2} parent=11 // pred_fallthru
        _
      // Predicated region
      $region25: #{deep_rnn_net_pallas.2} parent=11 // pred_check
        %p171 = pneg %p121
      $region26: #{deep_rnn_net_pallas.2} parent=11 // pred_check_branch
        %173 = sbr.rel (%p171) target = $region28
      $region27: #{deep_rnn_net_pallas.2} parent=11 // pred_region
        _
      $region28: #{deep_rnn_net_pallas.2} parent=11 // pred_fallthru
        _
    $region12: #{deep_rnn_net_pallas.2} parent=5 // pred_fallthru
      _
    %p174 = scmp.lt.s32.totalorder %s11, 2
    // Predicated region
    $region29: #{deep_rnn_net_pallas.2} parent=5 // pred_check
      %p175 = pneg %p174
    $region30: #{deep_rnn_net_pallas.2} parent=5 // pred_check_branch
      %177 = sbr.rel (%p175) target = $region32
    $region31: #{deep_rnn_net_pallas.2} parent=5 // pred_region
      // Predicated region
      $region33: #{deep_rnn_net_pallas.2} parent=31 // pred_check
        %p178 = pneg %p31
      $region34: #{deep_rnn_net_pallas.2} parent=31 // pred_check_branch
        %180 = sbr.rel (%p178) target = $region36
      $region35: #{deep_rnn_net_pallas.2} parent=31 // pred_region
        %s181 = smul.u32 32, %s11
        %p182 = scmp.lt.s32.totalorder %s181, 63
        %s183 = scalar_select %p182, %s181, 63
        %s184 = smul.addr %s183, 8
        %s185 = scalar_lea.vmem %s0, %s184
        %s186 = smul.u32 32, %s11
      $region36: #{deep_rnn_net_pallas.2} parent=31 // pred_fallthru
        _
    $region32: #{deep_rnn_net_pallas.2} parent=5 // pred_fallthru
      _
    %p187 = scmp.le.s32.totalorder 1, %s11
    %p188 = scmp.lt.s32.totalorder %s11, 3
    %p189 = pnand %p187, %p188
    %p190 = pneg %p189
    // Predicated region
    $region37: #{deep_rnn_net_pallas.2} parent=5 // pred_check
      _
    $region38: #{deep_rnn_net_pallas.2} parent=5 // pred_check_branch
      %192 = sbr.rel (%p189) target = $region40
    $region39: #{deep_rnn_net_pallas.2} parent=5 // pred_region
      %s193 = ssub.s32 %s11, 1
      %s194 = smul.u32 32, %s16
      %p195 = scmp.lt.s32.totalorder %s194, 63
      %s196 = scalar_select %p195, %s194, 63
      %s197 = smul.addr %s196, 8
      %s198 = scalar_lea.vmem %s0, %s197
      %p199 = pneg %p37
      %p200 = pneg %p34
      %p201 = pneg %p58
      %p202 = pneg %p55
      %p203 = pneg %p79
      %p204 = pneg %p76
      %p205 = pneg %p100
      %p206 = pneg %p97
      %p207 = pneg %p121
      %p208 = pneg %p118
      %p209 = pneg %p147
      %p210 = pneg %p144
      %s211 = smul.u32 32, %s16
      %p212 = scmp.lt.s32.totalorder %s211, 63
      %s213 = scalar_select %p212, %s211, 63
      %s214 = smul.addr %s213, 8
      %s215 = scalar_lea.vmem %s5, %s214
      %s216 = smul.u32 32, %s16
      %p217 = scmp.lt.s32.totalorder %s216, 63
      %s218 = scalar_select %p217, %s216, 63
      %s219 = smul.addr %s218, 8
      %s220 = scalar_lea.vmem %s0, %s219
      %s221 = smul.u32 32, %s16
      %s222 = smul.u32 32, %s16
      %p223 = scmp.lt.s32.totalorder %s222, 63
      %s224 = scalar_select %p223, %s222, 63
      %s225 = smul.addr %s224, 8
      %s226 = scalar_lea.vmem %s5, %s225
      %s227 = smul.u32 32, %s16
      %p228 = scmp.eq.s32.totalorder %s16, 0
      // Predicated region
      $region41: #{deep_rnn_net_pallas.2} parent=39 // pred_check
        %p229 = pneg %p228
      $region42: #{deep_rnn_net_pallas.2} parent=39 // pred_check_branch
        %231 = sbr.rel (%p229) target = $region44
      $region43: #{deep_rnn_net_pallas.2} parent=39 // pred_region
        %232 = vst [vmem:[#allocation2] sm:$0xff] 0.0
      $region44: #{deep_rnn_net_pallas.2} parent=39 // pred_fallthru
        _
      %v233 = vld [vmem:[%s220] sm:$0xff]
      %v234 = vld [vmem:[%s220 + $0x8] sm:$0xff]
      %v235 = vld [vmem:[%s220 + $0x10] sm:$0xff]
      %v236 = vld [vmem:[%s220 + $0x18] sm:$0xff]
      %v237 = vld [vmem:[%s220 + $0x20] sm:$0xff]
      %v238 = vld [vmem:[%s220 + $0x28] sm:$0xff]
      %v239 = vld [vmem:[%s220 + $0x30] sm:$0xff]
      %v240 = vld [vmem:[%s220 + $0x38] sm:$0xff]
      %v241 = vld [vmem:[%s220 + $0x40] sm:$0xff]
      %v242 = vld [vmem:[%s220 + $0x48] sm:$0xff]
      %v243 = vld [vmem:[%s220 + $0x50] sm:$0xff]
      %v244 = vld [vmem:[%s220 + $0x58] sm:$0xff]
      %v245 = vld [vmem:[%s220 + $0x60] sm:$0xff]
      %v246 = vld [vmem:[%s220 + $0x68] sm:$0xff]
      %v247 = vld [vmem:[%s220 + $0x70] sm:$0xff]
      %v248 = vld [vmem:[%s220 + $0x78] sm:$0xff]
      %v249 = vld [vmem:[%s220 + $0x80] sm:$0xff]
      %v250 = vld [vmem:[%s220 + $0x88] sm:$0xff]
      %v251 = vld [vmem:[%s220 + $0x90] sm:$0xff]
      %v252 = vld [vmem:[%s220 + $0x98] sm:$0xff]
      %v253 = vld [vmem:[%s220 + $0xa0] sm:$0xff]
      %v254 = vld [vmem:[%s220 + $0xa8] sm:$0xff]
      %v255 = vld [vmem:[%s220 + $0xb0] sm:$0xff]
      %v256 = vld [vmem:[%s220 + $0xb8] sm:$0xff]
      %v257 = vld [vmem:[%s220 + $0xc0] sm:$0xff]
      %v258 = vld [vmem:[%s220 + $0xc8] sm:$0xff]
      %v259 = vld [vmem:[%s220 + $0xd0] sm:$0xff]
      %v260 = vld [vmem:[%s220 + $0xd8] sm:$0xff]
      %v261 = vld [vmem:[%s220 + $0xe0] sm:$0xff]
      %v262 = vld [vmem:[%s220 + $0xe8] sm:$0xff]
      %v263 = vld [vmem:[%s220 + $0xf0] sm:$0xff]
      %v264 = vld [vmem:[%s220 + $0xf8] sm:$0xff]
      %v265 = vld [vmem:[%s1] sm:$0xff]
      %v266 = vld [vmem:[%s1 + $0x8] sm:$0xff]
      %v267 = vld [vmem:[%s1 + $0x10] sm:$0xff]
      %v268 = vld [vmem:[%s1 + $0x18] sm:$0xff]
      %v269 = vld [vmem:[%s1 + $0x20] sm:$0xff]
      %v270 = vld [vmem:[%s1 + $0x28] sm:$0xff]
      %v271 = vld [vmem:[%s1 + $0x30] sm:$0xff]
      %v272 = vld [vmem:[%s1 + $0x38] sm:$0xff]
      %v273 = vld [vmem:[%s1 + $0x40] sm:$0xff]
      %v274 = vld [vmem:[%s1 + $0x48] sm:$0xff]
      %v275 = vld [vmem:[%s1 + $0x50] sm:$0xff]
      %v276 = vld [vmem:[%s1 + $0x58] sm:$0xff]
      %v277 = vld [vmem:[%s1 + $0x60] sm:$0xff]
      %v278 = vld [vmem:[%s1 + $0x68] sm:$0xff]
      %v279 = vld [vmem:[%s1 + $0x70] sm:$0xff]
      %v280 = vld [vmem:[%s1 + $0x78] sm:$0xff]
      %v281 = vld [vmem:[%s1 + $0x80] sm:$0xff]
      %v282 = vld [vmem:[%s1 + $0x88] sm:$0xff]
      %v283 = vld [vmem:[%s1 + $0x90] sm:$0xff]
      %v284 = vld [vmem:[%s1 + $0x98] sm:$0xff]
      %v285 = vld [vmem:[%s1 + $0xa0] sm:$0xff]
      %v286 = vld [vmem:[%s1 + $0xa8] sm:$0xff]
      %v287 = vld [vmem:[%s1 + $0xb0] sm:$0xff]
      %v288 = vld [vmem:[%s1 + $0xb8] sm:$0xff]
      %v289 = vld [vmem:[%s1 + $0xc0] sm:$0xff]
      %v290 = vld [vmem:[%s1 + $0xc8] sm:$0xff]
      %v291 = vld [vmem:[%s1 + $0xd0] sm:$0xff]
      %v292 = vld [vmem:[%s1 + $0xd8] sm:$0xff]
      %v293 = vld [vmem:[%s1 + $0xe0] sm:$0xff]
      %v294 = vld [vmem:[%s1 + $0xe8] sm:$0xff]
      %v295 = vld [vmem:[%s1 + $0xf0] sm:$0xff]
      %v296 = vld [vmem:[%s1 + $0xf8] sm:$0xff]
      %v297 = vld [vmem:[%s1 + $0x100] sm:$0xff]
      %v298 = vld [vmem:[%s1 + $0x108] sm:$0xff]
      %v299 = vld [vmem:[%s1 + $0x110] sm:$0xff]
      %v300 = vld [vmem:[%s1 + $0x118] sm:$0xff]
      %v301 = vld [vmem:[%s1 + $0x120] sm:$0xff]
      %v302 = vld [vmem:[%s1 + $0x128] sm:$0xff]
      %v303 = vld [vmem:[%s1 + $0x130] sm:$0xff]
      %v304 = vld [vmem:[%s1 + $0x138] sm:$0xff]
      %v305 = vld [vmem:[%s1 + $0x140] sm:$0xff]
      %v306 = vld [vmem:[%s1 + $0x148] sm:$0xff]
      %v307 = vld [vmem:[%s1 + $0x150] sm:$0xff]
      %v308 = vld [vmem:[%s1 + $0x158] sm:$0xff]
      %v309 = vld [vmem:[%s1 + $0x160] sm:$0xff]
      %v310 = vld [vmem:[%s1 + $0x168] sm:$0xff]
      %v311 = vld [vmem:[%s1 + $0x170] sm:$0xff]
      %v312 = vld [vmem:[%s1 + $0x178] sm:$0xff]
      %v313 = vld [vmem:[%s3] sm:$0x7]
      %v315 = vlaneseq
      %v316 = vshrl.u32 %v315, 7
      %v317 = vsub.s32 0, %v316
      %v318 = vrot.slane %v313, %v317
      %v319 = vlaneseq
      %v320 = vshrl.u32 %v319, 7
      %v321 = vsub.s32 1, %v320
      %v322 = vrot.slane %v313, %v321
      %v323 = vlaneseq
      %v324 = vshrl.u32 %v323, 7
      %v325 = vsub.s32 2, %v324
      %v326 = vrot.slane %v313, %v325
      %330 = vmatprep.subr.mxu0 %v266
      %331 = vmatpush1.msra.mxu0 %v265
      %332 = vmatprep.subr.mxu0 %v269
      %333 = vmatpush1.msra.mxu0 %v268
      %334 = vmatprep.subr.mxu0 %v272
      %335 = vmatpush1.msra.mxu0 %v271
      %336 = vmatprep.subr.mxu0 %v275
      %337 = vmatpush1.msra.mxu0 %v274
      %338 = vmatprep.subr.mxu0 %v278
      %339 = vmatpush1.msra.mxu0 %v277
      %340 = vmatprep.subr.mxu0 %v281
      %341 = vmatpush1.msra.mxu0 %v280
      %342 = vmatprep.subr.mxu0 %v284
      %343 = vmatpush1.msra.mxu0 %v283
      %344 = vmatprep.subr.mxu0 %v287
      %345 = vmatpush1.msra.mxu0 %v286
      %346 = vmatprep.subr.mxu0 %v290
      %347 = vmatpush1.msra.mxu0 %v289
      %348 = vmatprep.subr.mxu0 %v293
      %349 = vmatpush1.msra.mxu0 %v292
      %350 = vmatprep.subr.mxu0 %v296
      %351 = vmatpush1.msra.mxu0 %v295
      %352 = vmatprep.subr.mxu0 %v299
      %353 = vmatpush1.msra.mxu0 %v298
      %354 = vmatprep.subr.mxu0 %v302
      %355 = vmatpush1.msra.mxu0 %v301
      %356 = vmatprep.subr.mxu0 %v305
      %357 = vmatpush1.msra.mxu0 %v304
      %358 = vmatprep.subr.mxu0 %v308
      %359 = vmatpush1.msra.mxu0 %v307
      %360 = vmatprep.subr.mxu0 %v311
      %361 = vmatpush1.msra.mxu0 %v310
      %362 = vmatprep.subr.mxu0 0.0
      %363 = vmatpush1.msra.mxu0 0.0
      %364 = vmatprep.subr.mxu0 0.0
      %365 = vmatpush1.msra.mxu0 0.0
      %366 = vmatprep.subr.mxu0 0.0
      %367 = vmatpush1.msra.mxu0 0.0
      %368 = vmatprep.subr.mxu0 0.0
      %369 = vmatpush1.msra.mxu0 0.0
      %370 = vmatprep.subr.mxu0 0.0
      %371 = vmatpush1.msra.mxu0 0.0
      %372 = vmatprep.subr.mxu0 0.0
      %373 = vmatpush1.msra.mxu0 0.0
      %374 = vmatprep.subr.mxu0 0.0
      %375 = vmatpush1.msra.mxu0 0.0
      %376 = vmatprep.subr.mxu0 0.0
      %377 = vmatpush1.msra.mxu0 0.0
      %378 = vmatprep.subr.mxu0 0.0
      %379 = vmatpush1.msra.mxu0 0.0
      %380 = vmatprep.subr.mxu0 0.0
      %381 = vmatpush1.msra.mxu0 0.0
      %382 = vmatprep.subr.mxu0 0.0
      %383 = vmatpush1.msra.mxu0 0.0
      %384 = vmatprep.subr.mxu0 0.0
      %385 = vmatpush1.msra.mxu0 0.0
      %386 = vmatprep.subr.mxu0 0.0
      %387 = vmatpush1.msra.mxu0 0.0
      %388 = vmatprep.subr.mxu0 0.0
      %389 = vmatpush1.msra.mxu0 0.0
      %390 = vmatprep.subr.mxu0 0.0
      %391 = vmatpush1.msra.mxu0 0.0
      %392 = vmatprep.subr.mxu0 0.0
      %393 = vmatpush1.msra.mxu0 0.0
      %394 = vmatprep.mubr.f32.mxu0 0.0
      %395 = vmatmul.mubr.f32.gmra.mrb[0].mxu0 %v233
      %v396 = vpop.f32.mrb[0].mxu0
      %v397 = vadd.f32 %v318, %v396
      %v398 = vpop.f32.mrb[0].mxu0
      %v399 = vadd.f32 %v322, %v398
      %400 = vmatprep.mubr.f32.mxu0 0.0
      %401 = vmatmul.mubr.f32.gmra.mrb[0].mxu0 %v234
      %v402 = vpop.f32.mrb[0].mxu0
      %v403 = vadd.f32 %v318, %v402
      %v404 = vpop.f32.mrb[0].mxu0
      %v405 = vadd.f32 %v322, %v404
      %406 = vmatprep.mubr.f32.mxu0 0.0
      %407 = vmatmul.mubr.f32.gmra.mrb[0].mxu0 %v235
      %v408 = vpop.f32.mrb[0].mxu0
      %v409 = vadd.f32 %v318, %v408
      %v410 = vpop.f32.mrb[0].mxu0
      %v411 = vadd.f32 %v322, %v410
      %412 = vmatprep.mubr.f32.mxu0 0.0
      %413 = vmatmul.mubr.f32.gmra.mrb[0].mxu0 %v236
      %v414 = vpop.f32.mrb[0].mxu0
      %v415 = vadd.f32 %v318, %v414
      %v416 = vpop.f32.mrb[0].mxu0
      %v417 = vadd.f32 %v322, %v416
      %418 = vmatprep.mubr.f32.mxu0 0.0
      %419 = vmatmul.mubr.f32.gmra.mrb[0].mxu0 %v237
      %v420 = vpop.f32.mrb[0].mxu0
      %v421 = vadd.f32 %v318, %v420
      %v422 = vpop.f32.mrb[0].mxu0
      %v423 = vadd.f32 %v322, %v422
      %424 = vmatprep.mubr.f32.mxu0 0.0
      %425 = vmatmul.mubr.f32.gmra.mrb[0].mxu0 %v238
      %v426 = vpop.f32.mrb[0].mxu0
      %v427 = vadd.f32 %v318, %v426
      %v428 = vpop.f32.mrb[0].mxu0
      %v429 = vadd.f32 %v322, %v428
      %430 = vmatprep.mubr.f32.mxu0 0.0
      %431 = vmatmul.mubr.f32.gmra.mrb[0].mxu0 %v239
      %v432 = vpop.f32.mrb[0].mxu0
      %v433 = vadd.f32 %v318, %v432
      %v434 = vpop.f32.mrb[0].mxu0
      %v435 = vadd.f32 %v322, %v434
      %436 = vmatprep.mubr.f32.mxu0 0.0
      %437 = vmatmul.mubr.f32.gmra.mrb[0].mxu0 %v240
      %v438 = vpop.f32.mrb[0].mxu0
      %v439 = vadd.f32 %v318, %v438
      %v440 = vpop.f32.mrb[0].mxu0
      %v441 = vadd.f32 %v322, %v440
      %442 = vmatprep.mubr.f32.mxu0 0.0
      %443 = vmatmul.mubr.f32.gmra.mrb[0].mxu0 %v241
      %v444 = vpop.f32.mrb[0].mxu0
      %v445 = vadd.f32 %v318, %v444
      %v446 = vpop.f32.mrb[0].mxu0
      %v447 = vadd.f32 %v322, %v446
      %448 = vmatprep.mubr.f32.mxu0 0.0
      %449 = vmatmul.mubr.f32.gmra.mrb[0].mxu0 %v242
      %v450 = vpop.f32.mrb[0].mxu0
      %v451 = vadd.f32 %v318, %v450
      %v452 = vpop.f32.mrb[0].mxu0
      %v453 = vadd.f32 %v322, %v452
      %454 = vmatprep.mubr.f32.mxu0 0.0
      %455 = vmatmul.mubr.f32.gmra.mrb[0].mxu0 %v243
      %v456 = vpop.f32.mrb[0].mxu0
      %v457 = vadd.f32 %v318, %v456
      %v458 = vpop.f32.mrb[0].mxu0
      %v459 = vadd.f32 %v322, %v458
      %460 = vmatprep.mubr.f32.mxu0 0.0
      %461 = vmatmul.mubr.f32.gmra.mrb[0].mxu0 %v244
      %v462 = vpop.f32.mrb[0].mxu0
      %v463 = vadd.f32 %v318, %v462
      %v464 = vpop.f32.mrb[0].mxu0
      %v465 = vadd.f32 %v322, %v464
      %466 = vmatprep.mubr.f32.mxu0 0.0
      %467 = vmatmul.mubr.f32.gmra.mrb[0].mxu0 %v245
      %v468 = vpop.f32.mrb[0].mxu0
      %v469 = vadd.f32 %v318, %v468
      %v470 = vpop.f32.mrb[0].mxu0
      %v471 = vadd.f32 %v322, %v470
      %472 = vmatprep.mubr.f32.mxu0 0.0
      %473 = vmatmul.mubr.f32.gmra.mrb[0].mxu0 %v246
      %v474 = vpop.f32.mrb[0].mxu0
      %v475 = vadd.f32 %v318, %v474
      %v476 = vpop.f32.mrb[0].mxu0
      %v477 = vadd.f32 %v322, %v476
      %478 = vmatprep.mubr.f32.mxu0 0.0
      %479 = vmatmul.mubr.f32.gmra.mrb[0].mxu0 %v247
      %v480 = vpop.f32.mrb[0].mxu0
      %v481 = vadd.f32 %v318, %v480
      %v482 = vpop.f32.mrb[0].mxu0
      %v483 = vadd.f32 %v322, %v482
      %484 = vmatprep.mubr.f32.mxu0 0.0
      %485 = vmatmul.mubr.f32.gmra.mrb[0].mxu0 %v248
      %v486 = vpop.f32.mrb[0].mxu0
      %v487 = vadd.f32 %v318, %v486
      %v488 = vpop.f32.mrb[0].mxu0
      %v489 = vadd.f32 %v322, %v488
      %490 = vmatprep.mubr.f32.mxu0 0.0
      %491 = vmatmul.mubr.f32.gmra.mrb[0].mxu0 %v249
      %v492 = vpop.f32.mrb[0].mxu0
      %v493 = vadd.f32 %v318, %v492
      %v494 = vpop.f32.mrb[0].mxu0
      %v495 = vadd.f32 %v322, %v494
      %496 = vmatprep.mubr.f32.mxu0 0.0
      %497 = vmatmul.mubr.f32.gmra.mrb[0].mxu0 %v250
      %v498 = vpop.f32.mrb[0].mxu0
      %v499 = vadd.f32 %v318, %v498
      %v500 = vpop.f32.mrb[0].mxu0
      %v501 = vadd.f32 %v322, %v500
      %502 = vmatprep.mubr.f32.mxu0 0.0
      %503 = vmatmul.mubr.f32.gmra.mrb[0].mxu0 %v251
      %v504 = vpop.f32.mrb[0].mxu0
      %v505 = vadd.f32 %v318, %v504
      %v506 = vpop.f32.mrb[0].mxu0
      %v507 = vadd.f32 %v322, %v506
      %508 = vmatprep.mubr.f32.mxu0 0.0
      %509 = vmatmul.mubr.f32.gmra.mrb[0].mxu0 %v252
      %v510 = vpop.f32.mrb[0].mxu0
      %v511 = vadd.f32 %v318, %v510
      %v512 = vpop.f32.mrb[0].mxu0
      %v513 = vadd.f32 %v322, %v512
      %514 = vmatprep.mubr.f32.mxu0 0.0
      %515 = vmatmul.mubr.f32.gmra.mrb[0].mxu0 %v253
      %v516 = vpop.f32.mrb[0].mxu0
      %v517 = vadd.f32 %v318, %v516
      %v518 = vpop.f32.mrb[0].mxu0
      %v519 = vadd.f32 %v322, %v518
      %520 = vmatprep.mubr.f32.mxu0 0.0
      %521 = vmatmul.mubr.f32.gmra.mrb[0].mxu0 %v254
      %v522 = vpop.f32.mrb[0].mxu0
      %v523 = vadd.f32 %v318, %v522
      %v524 = vpop.f32.mrb[0].mxu0
      %v525 = vadd.f32 %v322, %v524
      %526 = vmatprep.mubr.f32.mxu0 0.0
      %527 = vmatmul.mubr.f32.gmra.mrb[0].mxu0 %v255
      %v528 = vpop.f32.mrb[0].mxu0
      %v529 = vadd.f32 %v318, %v528
      %v530 = vpop.f32.mrb[0].mxu0
      %v531 = vadd.f32 %v322, %v530
      %532 = vmatprep.mubr.f32.mxu0 0.0
      %533 = vmatmul.mubr.f32.gmra.mrb[0].mxu0 %v256
      %v534 = vpop.f32.mrb[0].mxu0
      %v535 = vadd.f32 %v318, %v534
      %v536 = vpop.f32.mrb[0].mxu0
      %v537 = vadd.f32 %v322, %v536
      %538 = vmatprep.mubr.f32.mxu0 0.0
      %539 = vmatmul.mubr.f32.gmra.mrb[0].mxu0 %v257
      %v540 = vpop.f32.mrb[0].mxu0
      %v541 = vadd.f32 %v318, %v540
      %v542 = vpop.f32.mrb[0].mxu0
      %v543 = vadd.f32 %v322, %v542
      %544 = vmatprep.mubr.f32.mxu0 0.0
      %545 = vmatmul.mubr.f32.gmra.mrb[0].mxu0 %v258
      %v546 = vpop.f32.mrb[0].mxu0
      %v547 = vadd.f32 %v318, %v546
      %v548 = vpop.f32.mrb[0].mxu0
      %v549 = vadd.f32 %v322, %v548
      %550 = vmatprep.mubr.f32.mxu0 0.0
      %551 = vmatmul.mubr.f32.gmra.mrb[0].mxu0 %v259
      %v552 = vpop.f32.mrb[0].mxu0
      %v553 = vadd.f32 %v318, %v552
      %v554 = vpop.f32.mrb[0].mxu0
      %v555 = vadd.f32 %v322, %v554
      %556 = vmatprep.mubr.f32.mxu0 0.0
      %557 = vmatmul.mubr.f32.gmra.mrb[0].mxu0 %v260
      %v558 = vpop.f32.mrb[0].mxu0
      %v559 = vadd.f32 %v318, %v558
      %v560 = vpop.f32.mrb[0].mxu0
      %v561 = vadd.f32 %v322, %v560
      %562 = vmatprep.mubr.f32.mxu0 0.0
      %563 = vmatmul.mubr.f32.gmra.mrb[0].mxu0 %v261
      %v564 = vpop.f32.mrb[0].mxu0
      %v565 = vadd.f32 %v318, %v564
      %v566 = vpop.f32.mrb[0].mxu0
      %v567 = vadd.f32 %v322, %v566
      %568 = vmatprep.mubr.f32.mxu0 0.0
      %569 = vmatmul.mubr.f32.gmra.mrb[0].mxu0 %v262
      %v570 = vpop.f32.mrb[0].mxu0
      %v571 = vadd.f32 %v318, %v570
      %v572 = vpop.f32.mrb[0].mxu0
      %v573 = vadd.f32 %v322, %v572
      %574 = vmatprep.mubr.f32.mxu0 0.0
      %575 = vmatmul.mubr.f32.gmra.mrb[0].mxu0 %v263
      %v576 = vpop.f32.mrb[0].mxu0
      %v577 = vadd.f32 %v318, %v576
      %v578 = vpop.f32.mrb[0].mxu0
      %v579 = vadd.f32 %v322, %v578
      %580 = vmatprep.mubr.f32.mxu0 0.0
      %581 = vmatmul.mubr.f32.gmra.mrb[0].mxu0 %v264
      %v582 = vpop.f32.mrb[0].mxu0
      %v583 = vadd.f32 %v318, %v582
      %v584 = vpop.f32.mrb[0].mxu0
      %v585 = vadd.f32 %v322, %v584
      %586 = vdwg.mxu0
      %587 = vmatprep.subr.mxu0 0.0
      %588 = vmatpush1.msra.mxu0 %v267
      %589 = vmatprep.subr.mxu0 0.0
      %590 = vmatpush1.msra.mxu0 %v270
      %591 = vmatprep.subr.mxu0 0.0
      %592 = vmatpush1.msra.mxu0 %v273
      %593 = vmatprep.subr.mxu0 0.0
      %594 = vmatpush1.msra.mxu0 %v276
      %595 = vmatprep.subr.mxu0 0.0
      %596 = vmatpush1.msra.mxu0 %v279
      %597 = vmatprep.subr.mxu0 0.0
      %598 = vmatpush1.msra.mxu0 %v282
      %599 = vmatprep.subr.mxu0 0.0
      %600 = vmatpush1.msra.mxu0 %v285
      %601 = vmatprep.subr.mxu0 0.0
      %602 = vmatpush1.msra.mxu0 %v288
      %603 = vmatprep.subr.mxu0 0.0
      %604 = vmatpush1.msra.mxu0 %v291
      %605 = vmatprep.subr.mxu0 0.0
      %606 = vmatpush1.msra.mxu0 %v294
      %607 = vmatprep.subr.mxu0 0.0
      %608 = vmatpush1.msra.mxu0 %v297
      %609 = vmatprep.subr.mxu0 0.0
      %610 = vmatpush1.msra.mxu0 %v300
      %611 = vmatprep.subr.mxu0 0.0
      %612 = vmatpush1.msra.mxu0 %v303
      %613 = vmatprep.subr.mxu0 0.0
      %614 = vmatpush1.msra.mxu0 %v306
      %615 = vmatprep.subr.mxu0 0.0
      %616 = vmatpush1.msra.mxu0 %v309
      %617 = vmatprep.subr.mxu0 0.0
      %618 = vmatpush1.msra.mxu0 %v312
      %619 = vmatprep.subr.mxu0 0.0
      %620 = vmatpush1.msra.mxu0 0.0
      %621 = vmatprep.subr.mxu0 0.0
      %622 = vmatpush1.msra.mxu0 0.0
      %623 = vmatprep.subr.mxu0 0.0
      %624 = vmatpush1.msra.mxu0 0.0
      %625 = vmatprep.subr.mxu0 0.0
      %626 = vmatpush1.msra.mxu0 0.0
      %627 = vmatprep.subr.mxu0 0.0
      %628 = vmatpush1.msra.mxu0 0.0
      %629 = vmatprep.subr.mxu0 0.0
      %630 = vmatpush1.msra.mxu0 0.0
      %631 = vmatprep.subr.mxu0 0.0
      %632 = vmatpush1.msra.mxu0 0.0
      %633 = vmatprep.subr.mxu0 0.0
      %634 = vmatpush1.msra.mxu0 0.0
      %635 = vmatprep.subr.mxu0 0.0
      %636 = vmatpush1.msra.mxu0 0.0
      %637 = vmatprep.subr.mxu0 0.0
      %638 = vmatpush1.msra.mxu0 0.0
      %639 = vmatprep.subr.mxu0 0.0
      %640 = vmatpush1.msra.mxu0 0.0
      %641 = vmatprep.subr.mxu0 0.0
      %642 = vmatpush1.msra.mxu0 0.0
      %643 = vmatprep.subr.mxu0 0.0
      %644 = vmatpush1.msra.mxu0 0.0
      %645 = vmatprep.subr.mxu0 0.0
      %646 = vmatpush1.msra.mxu0 0.0
      %647 = vmatprep.subr.mxu0 0.0
      %648 = vmatpush1.msra.mxu0 0.0
      %649 = vmatprep.subr.mxu0 0.0
      %650 = vmatpush1.msra.mxu0 0.0
      %651 = vmatprep.mubr.f32.mxu0 0.0
      %652 = vmatmul.mubr.f32.gmra.mrb[0].mxu0 %v233
      %v653 = vpop.f32.mrb[0].mxu0
      %v654 = vadd.f32 %v326, %v653
      %v655 = vpop.f32.mrb[0].mxu0
      %656 = vmatprep.mubr.f32.mxu0 0.0
      %657 = vmatmul.mubr.f32.gmra.mrb[0].mxu0 %v234
      %v658 = vpop.f32.mrb[0].mxu0
      %v659 = vadd.f32 %v326, %v658
      %v660 = vpop.f32.mrb[0].mxu0
      %661 = vmatprep.mubr.f32.mxu0 0.0
      %662 = vmatmul.mubr.f32.gmra.mrb[0].mxu0 %v235
      %v663 = vpop.f32.mrb[0].mxu0
      %v664 = vadd.f32 %v326, %v663
      %v665 = vpop.f32.mrb[0].mxu0
      %666 = vmatprep.mubr.f32.mxu0 0.0
      %667 = vmatmul.mubr.f32.gmra.mrb[0].mxu0 %v236
      %v668 = vpop.f32.mrb[0].mxu0
      %v669 = vadd.f32 %v326, %v668
      %v670 = vpop.f32.mrb[0].mxu0
      %671 = vmatprep.mubr.f32.mxu0 0.0
      %672 = vmatmul.mubr.f32.gmra.mrb[0].mxu0 %v237
      %v673 = vpop.f32.mrb[0].mxu0
      %v674 = vadd.f32 %v326, %v673
      %v675 = vpop.f32.mrb[0].mxu0
      %676 = vmatprep.mubr.f32.mxu0 0.0
      %677 = vmatmul.mubr.f32.gmra.mrb[0].mxu0 %v238
      %v678 = vpop.f32.mrb[0].mxu0
      %v679 = vadd.f32 %v326, %v678
      %v680 = vpop.f32.mrb[0].mxu0
      %681 = vmatprep.mubr.f32.mxu0 0.0
      %682 = vmatmul.mubr.f32.gmra.mrb[0].mxu0 %v239
      %v683 = vpop.f32.mrb[0].mxu0
      %v684 = vadd.f32 %v326, %v683
      %v685 = vpop.f32.mrb[0].mxu0
      %686 = vmatprep.mubr.f32.mxu0 0.0
      %687 = vmatmul.mubr.f32.gmra.mrb[0].mxu0 %v240
      %v688 = vpop.f32.mrb[0].mxu0
      %v689 = vadd.f32 %v326, %v688
      %v690 = vpop.f32.mrb[0].mxu0
      %691 = vmatprep.mubr.f32.mxu0 0.0
      %692 = vmatmul.mubr.f32.gmra.mrb[0].mxu0 %v241
      %v693 = vpop.f32.mrb[0].mxu0
      %v694 = vadd.f32 %v326, %v693
      %v695 = vpop.f32.mrb[0].mxu0
      %696 = vmatprep.mubr.f32.mxu0 0.0
      %697 = vmatmul.mubr.f32.gmra.mrb[0].mxu0 %v242
      %v698 = vpop.f32.mrb[0].mxu0
      %v699 = vadd.f32 %v326, %v698
      %v700 = vpop.f32.mrb[0].mxu0
      %701 = vmatprep.mubr.f32.mxu0 0.0
      %702 = vmatmul.mubr.f32.gmra.mrb[0].mxu0 %v243
      %v703 = vpop.f32.mrb[0].mxu0
      %v704 = vadd.f32 %v326, %v703
      %v705 = vpop.f32.mrb[0].mxu0
      %706 = vmatprep.mubr.f32.mxu0 0.0
      %707 = vmatmul.mubr.f32.gmra.mrb[0].mxu0 %v244
      %v708 = vpop.f32.mrb[0].mxu0
      %v709 = vadd.f32 %v326, %v708
      %v710 = vpop.f32.mrb[0].mxu0
      %711 = vmatprep.mubr.f32.mxu0 0.0
      %712 = vmatmul.mubr.f32.gmra.mrb[0].mxu0 %v245
      %v713 = vpop.f32.mrb[0].mxu0
      %v714 = vadd.f32 %v326, %v713
      %v715 = vpop.f32.mrb[0].mxu0
      %716 = vmatprep.mubr.f32.mxu0 0.0
      %717 = vmatmul.mubr.f32.gmra.mrb[0].mxu0 %v246
      %v718 = vpop.f32.mrb[0].mxu0
      %v719 = vadd.f32 %v326, %v718
      %v720 = vpop.f32.mrb[0].mxu0
      %721 = vmatprep.mubr.f32.mxu0 0.0
      %722 = vmatmul.mubr.f32.gmra.mrb[0].mxu0 %v247
      %v723 = vpop.f32.mrb[0].mxu0
      %v724 = vadd.f32 %v326, %v723
      %v725 = vpop.f32.mrb[0].mxu0
      %726 = vmatprep.mubr.f32.mxu0 0.0
      %727 = vmatmul.mubr.f32.gmra.mrb[0].mxu0 %v248
      %v728 = vpop.f32.mrb[0].mxu0
      %v729 = vadd.f32 %v326, %v728
      %v730 = vpop.f32.mrb[0].mxu0
      %731 = vmatprep.mubr.f32.mxu0 0.0
      %732 = vmatmul.mubr.f32.gmra.mrb[0].mxu0 %v249
      %v733 = vpop.f32.mrb[0].mxu0
      %v734 = vadd.f32 %v326, %v733
      %v735 = vpop.f32.mrb[0].mxu0
      %736 = vmatprep.mubr.f32.mxu0 0.0
      %737 = vmatmul.mubr.f32.gmra.mrb[0].mxu0 %v250
      %v738 = vpop.f32.mrb[0].mxu0
      %v739 = vadd.f32 %v326, %v738
      %v740 = vpop.f32.mrb[0].mxu0
      %741 = vmatprep.mubr.f32.mxu0 0.0
      %742 = vmatmul.mubr.f32.gmra.mrb[0].mxu0 %v251
      %v743 = vpop.f32.mrb[0].mxu0
      %v744 = vadd.f32 %v326, %v743
      %v745 = vpop.f32.mrb[0].mxu0
      %746 = vmatprep.mubr.f32.mxu0 0.0
      %747 = vmatmul.mubr.f32.gmra.mrb[0].mxu0 %v252
      %v748 = vpop.f32.mrb[0].mxu0
      %v749 = vadd.f32 %v326, %v748
      %v750 = vpop.f32.mrb[0].mxu0
      %751 = vmatprep.mubr.f32.mxu0 0.0
      %752 = vmatmul.mubr.f32.gmra.mrb[0].mxu0 %v253
      %v753 = vpop.f32.mrb[0].mxu0
      %v754 = vadd.f32 %v326, %v753
      %v755 = vpop.f32.mrb[0].mxu0
      %756 = vmatprep.mubr.f32.mxu0 0.0
      %757 = vmatmul.mubr.f32.gmra.mrb[0].mxu0 %v254
      %v758 = vpop.f32.mrb[0].mxu0
      %v759 = vadd.f32 %v326, %v758
      %v760 = vpop.f32.mrb[0].mxu0
      %761 = vmatprep.mubr.f32.mxu0 0.0
      %762 = vmatmul.mubr.f32.gmra.mrb[0].mxu0 %v255
      %v763 = vpop.f32.mrb[0].mxu0
      %v764 = vadd.f32 %v326, %v763
      %v765 = vpop.f32.mrb[0].mxu0
      %766 = vmatprep.mubr.f32.mxu0 0.0
      %767 = vmatmul.mubr.f32.gmra.mrb[0].mxu0 %v256
      %v768 = vpop.f32.mrb[0].mxu0
      %v769 = vadd.f32 %v326, %v768
      %v770 = vpop.f32.mrb[0].mxu0
      %771 = vmatprep.mubr.f32.mxu0 0.0
      %772 = vmatmul.mubr.f32.gmra.mrb[0].mxu0 %v257
      %v773 = vpop.f32.mrb[0].mxu0
      %v774 = vadd.f32 %v326, %v773
      %v775 = vpop.f32.mrb[0].mxu0
      %776 = vmatprep.mubr.f32.mxu0 0.0
      %777 = vmatmul.mubr.f32.gmra.mrb[0].mxu0 %v258
      %v778 = vpop.f32.mrb[0].mxu0
      %v779 = vadd.f32 %v326, %v778
      %v780 = vpop.f32.mrb[0].mxu0
      %781 = vmatprep.mubr.f32.mxu0 0.0
      %782 = vmatmul.mubr.f32.gmra.mrb[0].mxu0 %v259
      %v783 = vpop.f32.mrb[0].mxu0
      %v784 = vadd.f32 %v326, %v783
      %v785 = vpop.f32.mrb[0].mxu0
      %786 = vmatprep.mubr.f32.mxu0 0.0
      %787 = vmatmul.mubr.f32.gmra.mrb[0].mxu0 %v260
      %v788 = vpop.f32.mrb[0].mxu0
      %v789 = vadd.f32 %v326, %v788
      %v790 = vpop.f32.mrb[0].mxu0
      %791 = vmatprep.mubr.f32.mxu0 0.0
      %792 = vmatmul.mubr.f32.gmra.mrb[0].mxu0 %v261
      %v793 = vpop.f32.mrb[0].mxu0
      %v794 = vadd.f32 %v326, %v793
      %v795 = vpop.f32.mrb[0].mxu0
      %796 = vmatprep.mubr.f32.mxu0 0.0
      %797 = vmatmul.mubr.f32.gmra.mrb[0].mxu0 %v262
      %v798 = vpop.f32.mrb[0].mxu0
      %v799 = vadd.f32 %v326, %v798
      %v800 = vpop.f32.mrb[0].mxu0
      %801 = vmatprep.mubr.f32.mxu0 0.0
      %802 = vmatmul.mubr.f32.gmra.mrb[0].mxu0 %v263
      %v803 = vpop.f32.mrb[0].mxu0
      %v804 = vadd.f32 %v326, %v803
      %v805 = vpop.f32.mrb[0].mxu0
      %806 = vmatprep.mubr.f32.mxu0 0.0
      %807 = vmatmul.mubr.f32.gmra.mrb[0].mxu0 %v264
      %v808 = vpop.f32.mrb[0].mxu0
      %v809 = vadd.f32 %v326, %v808
      %v810 = vpop.f32.mrb[0].mxu0
      %811 = vdwg.mxu0
      %812 = vst [vmem:[#allocation3] sm:$0xff] %v397
      %813 = vst [vmem:[#allocation3 + $0x8] sm:$0xff] %v399
      %814 = vst [vmem:[#allocation3 + $0x10] sm:$0xff] %v654
      %815 = vst [vmem:[#allocation3 + $0x18] sm:$0xff] %v403
      %816 = vst [vmem:[#allocation3 + $0x20] sm:$0xff] %v405
      %817 = vst [vmem:[#allocation3 + $0x28] sm:$0xff] %v659
      %818 = vst [vmem:[#allocation3 + $0x30] sm:$0xff] %v409
      %819 = vst [vmem:[#allocation3 + $0x38] sm:$0xff] %v411
      %820 = vst [vmem:[#allocation3 + $0x40] sm:$0xff] %v664
      %821 = vst [vmem:[#allocation3 + $0x48] sm:$0xff] %v415
      %822 = vst [vmem:[#allocation3 + $0x50] sm:$0xff] %v417
      %823 = vst [vmem:[#allocation3 + $0x58] sm:$0xff] %v669
      %824 = vst [vmem:[#allocation3 + $0x60] sm:$0xff] %v421
      %825 = vst [vmem:[#allocation3 + $0x68] sm:$0xff] %v423
      %826 = vst [vmem:[#allocation3 + $0x70] sm:$0xff] %v674
      %827 = vst [vmem:[#allocation3 + $0x78] sm:$0xff] %v427
      %828 = vst [vmem:[#allocation3 + $0x80] sm:$0xff] %v429
      %829 = vst [vmem:[#allocation3 + $0x88] sm:$0xff] %v679
      %830 = vst [vmem:[#allocation3 + $0x90] sm:$0xff] %v433
      %831 = vst [vmem:[#allocation3 + $0x98] sm:$0xff] %v435
      %832 = vst [vmem:[#allocation3 + $0xa0] sm:$0xff] %v684
      %833 = vst [vmem:[#allocation3 + $0xa8] sm:$0xff] %v439
      %834 = vst [vmem:[#allocation3 + $0xb0] sm:$0xff] %v441
      %835 = vst [vmem:[#allocation3 + $0xb8] sm:$0xff] %v689
      %836 = vst [vmem:[#allocation3 + $0xc0] sm:$0xff] %v445
      %837 = vst [vmem:[#allocation3 + $0xc8] sm:$0xff] %v447
      %838 = vst [vmem:[#allocation3 + $0xd0] sm:$0xff] %v694
      %839 = vst [vmem:[#allocation3 + $0xd8] sm:$0xff] %v451
      %840 = vst [vmem:[#allocation3 + $0xe0] sm:$0xff] %v453
      %841 = vst [vmem:[#allocation3 + $0xe8] sm:$0xff] %v699
      %842 = vst [vmem:[#allocation3 + $0xf0] sm:$0xff] %v457
      %843 = vst [vmem:[#allocation3 + $0xf8] sm:$0xff] %v459
      %844 = vst [vmem:[#allocation3 + $0x100] sm:$0xff] %v704
      %845 = vst [vmem:[#allocation3 + $0x108] sm:$0xff] %v463
      %846 = vst [vmem:[#allocation3 + $0x110] sm:$0xff] %v465
      %847 = vst [vmem:[#allocation3 + $0x118] sm:$0xff] %v709
      %848 = vst [vmem:[#allocation3 + $0x120] sm:$0xff] %v469
      %849 = vst [vmem:[#allocation3 + $0x128] sm:$0xff] %v471
      %850 = vst [vmem:[#allocation3 + $0x130] sm:$0xff] %v714
      %851 = vst [vmem:[#allocation3 + $0x138] sm:$0xff] %v475
      %852 = vst [vmem:[#allocation3 + $0x140] sm:$0xff] %v477
      %853 = vst [vmem:[#allocation3 + $0x148] sm:$0xff] %v719
      %854 = vst [vmem:[#allocation3 + $0x150] sm:$0xff] %v481
      %855 = vst [vmem:[#allocation3 + $0x158] sm:$0xff] %v483
      %856 = vst [vmem:[#allocation3 + $0x160] sm:$0xff] %v724
      %857 = vst [vmem:[#allocation3 + $0x168] sm:$0xff] %v487
      %858 = vst [vmem:[#allocation3 + $0x170] sm:$0xff] %v489
      %859 = vst [vmem:[#allocation3 + $0x178] sm:$0xff] %v729
      %860 = vst [vmem:[#allocation3 + $0x180] sm:$0xff] %v493
      %861 = vst [vmem:[#allocation3 + $0x188] sm:$0xff] %v495
      %862 = vst [vmem:[#allocation3 + $0x190] sm:$0xff] %v734
      %863 = vst [vmem:[#allocation3 + $0x198] sm:$0xff] %v499
      %864 = vst [vmem:[#allocation3 + $0x1a0] sm:$0xff] %v501
      %865 = vst [vmem:[#allocation3 + $0x1a8] sm:$0xff] %v739
      %866 = vst [vmem:[#allocation3 + $0x1b0] sm:$0xff] %v505
      %867 = vst [vmem:[#allocation3 + $0x1b8] sm:$0xff] %v507
      %868 = vst [vmem:[#allocation3 + $0x1c0] sm:$0xff] %v744
      %869 = vst [vmem:[#allocation3 + $0x1c8] sm:$0xff] %v511
      %870 = vst [vmem:[#allocation3 + $0x1d0] sm:$0xff] %v513
      %871 = vst [vmem:[#allocation3 + $0x1d8] sm:$0xff] %v749
      %872 = vst [vmem:[#allocation3 + $0x1e0] sm:$0xff] %v517
      %873 = vst [vmem:[#allocation3 + $0x1e8] sm:$0xff] %v519
      %874 = vst [vmem:[#allocation3 + $0x1f0] sm:$0xff] %v754
      %875 = vst [vmem:[#allocation3 + $0x1f8] sm:$0xff] %v523
      %876 = vst [vmem:[#allocation3 + $0x200] sm:$0xff] %v525
      %877 = vst [vmem:[#allocation3 + $0x208] sm:$0xff] %v759
      %878 = vst [vmem:[#allocation3 + $0x210] sm:$0xff] %v529
      %879 = vst [vmem:[#allocation3 + $0x218] sm:$0xff] %v531
      %880 = vst [vmem:[#allocation3 + $0x220] sm:$0xff] %v764
      %881 = vst [vmem:[#allocation3 + $0x228] sm:$0xff] %v535
      %882 = vst [vmem:[#allocation3 + $0x230] sm:$0xff] %v537
      %883 = vst [vmem:[#allocation3 + $0x238] sm:$0xff] %v769
      %884 = vst [vmem:[#allocation3 + $0x240] sm:$0xff] %v541
      %885 = vst [vmem:[#allocation3 + $0x248] sm:$0xff] %v543
      %886 = vst [vmem:[#allocation3 + $0x250] sm:$0xff] %v774
      %887 = vst [vmem:[#allocation3 + $0x258] sm:$0xff] %v547
      %888 = vst [vmem:[#allocation3 + $0x260] sm:$0xff] %v549
      %889 = vst [vmem:[#allocation3 + $0x268] sm:$0xff] %v779
      %890 = vst [vmem:[#allocation3 + $0x270] sm:$0xff] %v553
      %891 = vst [vmem:[#allocation3 + $0x278] sm:$0xff] %v555
      %892 = vst [vmem:[#allocation3 + $0x280] sm:$0xff] %v784
      %893 = vst [vmem:[#allocation3 + $0x288] sm:$0xff] %v559
      %894 = vst [vmem:[#allocation3 + $0x290] sm:$0xff] %v561
      %895 = vst [vmem:[#allocation3 + $0x298] sm:$0xff] %v789
      %896 = vst [vmem:[#allocation3 + $0x2a0] sm:$0xff] %v565
      %897 = vst [vmem:[#allocation3 + $0x2a8] sm:$0xff] %v567
      %898 = vst [vmem:[#allocation3 + $0x2b0] sm:$0xff] %v794
      %899 = vst [vmem:[#allocation3 + $0x2b8] sm:$0xff] %v571
      %900 = vst [vmem:[#allocation3 + $0x2c0] sm:$0xff] %v573
      %901 = vst [vmem:[#allocation3 + $0x2c8] sm:$0xff] %v799
      %902 = vst [vmem:[#allocation3 + $0x2d0] sm:$0xff] %v577
      %903 = vst [vmem:[#allocation3 + $0x2d8] sm:$0xff] %v579
      %904 = vst [vmem:[#allocation3 + $0x2e0] sm:$0xff] %v804
      %905 = vst [vmem:[#allocation3 + $0x2e8] sm:$0xff] %v583
      %906 = vst [vmem:[#allocation3 + $0x2f0] sm:$0xff] %v585
      %907 = vst [vmem:[#allocation3 + $0x2f8] sm:$0xff] %v809
      %v908 = vld [vmem:[#allocation2] sm:$0xff]
      %v909 = vld [vmem:[%s2] sm:$0xff]
      %v910 = vld [vmem:[%s2 + $0x8] sm:$0xff]
      %v911 = vld [vmem:[%s2 + $0x10] sm:$0xff]
      %v912 = vld [vmem:[%s2 + $0x18] sm:$0xff]
      %v913 = vld [vmem:[%s2 + $0x20] sm:$0xff]
      %v914 = vld [vmem:[%s2 + $0x28] sm:$0xff]
      %v915 = vld [vmem:[%s2 + $0x30] sm:$0xff]
      %v916 = vld [vmem:[%s2 + $0x38] sm:$0xff]
      %v917 = vld [vmem:[%s2 + $0x40] sm:$0xff]
      %v918 = vld [vmem:[%s2 + $0x48] sm:$0xff]
      %v919 = vld [vmem:[%s2 + $0x50] sm:$0xff]
      %v920 = vld [vmem:[%s2 + $0x58] sm:$0xff]
      %v921 = vld [vmem:[%s2 + $0x60] sm:$0xff]
      %v922 = vld [vmem:[%s2 + $0x68] sm:$0xff]
      %v923 = vld [vmem:[%s2 + $0x70] sm:$0xff]
      %v924 = vld [vmem:[%s2 + $0x78] sm:$0xff]
      %v925 = vld [vmem:[%s2 + $0x80] sm:$0xff]
      %v926 = vld [vmem:[%s2 + $0x88] sm:$0xff]
      %v927 = vld [vmem:[%s2 + $0x90] sm:$0xff]
      %v928 = vld [vmem:[%s2 + $0x98] sm:$0xff]
      %v929 = vld [vmem:[%s2 + $0xa0] sm:$0xff]
      %v930 = vld [vmem:[%s2 + $0xa8] sm:$0xff]
      %v931 = vld [vmem:[%s2 + $0xb0] sm:$0xff]
      %v932 = vld [vmem:[%s2 + $0xb8] sm:$0xff]
      %v933 = vld [vmem:[%s2 + $0xc0] sm:$0xff]
      %v934 = vld [vmem:[%s2 + $0xc8] sm:$0xff]
      %v935 = vld [vmem:[%s2 + $0xd0] sm:$0xff]
      %v936 = vld [vmem:[%s2 + $0xd8] sm:$0xff]
      %v937 = vld [vmem:[%s2 + $0xe0] sm:$0xff]
      %v938 = vld [vmem:[%s2 + $0xe8] sm:$0xff]
      %v939 = vld [vmem:[%s2 + $0xf0] sm:$0xff]
      %v940 = vld [vmem:[%s2 + $0xf8] sm:$0xff]
      %v941 = vld [vmem:[%s2 + $0x100] sm:$0xff]
      %v942 = vld [vmem:[%s2 + $0x108] sm:$0xff]
      %v943 = vld [vmem:[%s2 + $0x110] sm:$0xff]
      %v944 = vld [vmem:[%s2 + $0x118] sm:$0xff]
      %v945 = vld [vmem:[%s2 + $0x120] sm:$0xff]
      %v946 = vld [vmem:[%s2 + $0x128] sm:$0xff]
      %v947 = vld [vmem:[%s2 + $0x130] sm:$0xff]
      %v948 = vld [vmem:[%s2 + $0x138] sm:$0xff]
      %v949 = vld [vmem:[%s2 + $0x140] sm:$0xff]
      %v950 = vld [vmem:[%s2 + $0x148] sm:$0xff]
      %v951 = vld [vmem:[%s2 + $0x150] sm:$0xff]
      %v952 = vld [vmem:[%s2 + $0x158] sm:$0xff]
      %v953 = vld [vmem:[%s2 + $0x160] sm:$0xff]
      %v954 = vld [vmem:[%s2 + $0x168] sm:$0xff]
      %v955 = vld [vmem:[%s2 + $0x170] sm:$0xff]
      %v956 = vld [vmem:[%s2 + $0x178] sm:$0xff]
      %v957 = vld [vmem:[%s4] sm:$0x7]
      %v959 = vlaneseq
      %v960 = vshrl.u32 %v959, 7
      %v961 = vsub.s32 0, %v960
      %v962 = vrot.slane %v957, %v961
      %v963 = vlaneseq
      %v964 = vshrl.u32 %v963, 7
      %v965 = vsub.s32 1, %v964
      %v966 = vrot.slane %v957, %v965
      %v967 = vlaneseq
      %v968 = vshrl.u32 %v967, 7
      %v969 = vsub.s32 2, %v968
      %v970 = vrot.slane %v957, %v969
      %974 = vmatprep.subr.mxu0 %v910
      %975 = vmatpush1.msra.mxu0 %v909
      %976 = vmatprep.subr.mxu0 %v913
      %977 = vmatpush1.msra.mxu0 %v912
      %978 = vmatprep.subr.mxu0 %v916
      %979 = vmatpush1.msra.mxu0 %v915
      %980 = vmatprep.subr.mxu0 %v919
      %981 = vmatpush1.msra.mxu0 %v918
      %982 = vmatprep.subr.mxu0 %v922
      %983 = vmatpush1.msra.mxu0 %v921
      %984 = vmatprep.subr.mxu0 %v925
      %985 = vmatpush1.msra.mxu0 %v924
      %986 = vmatprep.subr.mxu0 %v928
      %987 = vmatpush1.msra.mxu0 %v927
      %988 = vmatprep.subr.mxu0 %v931
      %989 = vmatpush1.msra.mxu0 %v930
      %990 = vmatprep.subr.mxu0 %v934
      %991 = vmatpush1.msra.mxu0 %v933
      %992 = vmatprep.subr.mxu0 %v937
      %993 = vmatpush1.msra.mxu0 %v936
      %994 = vmatprep.subr.mxu0 %v940
      %995 = vmatpush1.msra.mxu0 %v939
      %996 = vmatprep.subr.mxu0 %v943
      %997 = vmatpush1.msra.mxu0 %v942
      %998 = vmatprep.subr.mxu0 %v946
      %999 = vmatpush1.msra.mxu0 %v945
      %1000 = vmatprep.subr.mxu0 %v949
      %1001 = vmatpush1.msra.mxu0 %v948
      %1002 = vmatprep.subr.mxu0 %v952
      %1003 = vmatpush1.msra.mxu0 %v951
      %1004 = vmatprep.subr.mxu0 %v955
      %1005 = vmatpush1.msra.mxu0 %v954
      %1006 = vmatprep.subr.mxu0 0.0
      %1007 = vmatpush1.msra.mxu0 0.0
      %1008 = vmatprep.subr.mxu0 0.0
      %1009 = vmatpush1.msra.mxu0 0.0
      %1010 = vmatprep.subr.mxu0 0.0
      %1011 = vmatpush1.msra.mxu0 0.0
      %1012 = vmatprep.subr.mxu0 0.0
      %1013 = vmatpush1.msra.mxu0 0.0
      %1014 = vmatprep.subr.mxu0 0.0
      %1015 = vmatpush1.msra.mxu0 0.0
      %1016 = vmatprep.subr.mxu0 0.0
      %1017 = vmatpush1.msra.mxu0 0.0
      %1018 = vmatprep.subr.mxu0 0.0
      %1019 = vmatpush1.msra.mxu0 0.0
      %1020 = vmatprep.subr.mxu0 0.0
      %1021 = vmatpush1.msra.mxu0 0.0
      %1022 = vmatprep.subr.mxu0 0.0
      %1023 = vmatpush1.msra.mxu0 0.0
      %1024 = vmatprep.subr.mxu0 0.0
      %1025 = vmatpush1.msra.mxu0 0.0
      %1026 = vmatprep.subr.mxu0 0.0
      %1027 = vmatpush1.msra.mxu0 0.0
      %1028 = vmatprep.subr.mxu0 0.0
      %1029 = vmatpush1.msra.mxu0 0.0
      %1030 = vmatprep.subr.mxu0 0.0
      %1031 = vmatpush1.msra.mxu0 0.0
      %1032 = vmatprep.subr.mxu0 0.0
      %1033 = vmatpush1.msra.mxu0 0.0
      %1034 = vmatprep.subr.mxu0 0.0
      %1035 = vmatpush1.msra.mxu0 0.0
      %1036 = vmatprep.subr.mxu0 0.0
      %1037 = vmatpush1.msra.mxu0 0.0
      %1038 = vmatprep.mubr.f32.mxu0 0.0
      %1039 = vmatmul.mubr.f32.gmra.mrb[0].mxu0 %v908
      %v1040 = vpop.f32.mrb[0].mxu0
      %v1041 = vadd.f32 %v962, %v1040
      %v1042 = vpop.f32.mrb[0].mxu0
      %v1043 = vadd.f32 %v966, %v1042
      %1044 = vdwg.mxu0
      %1045 = vmatprep.subr.mxu0 0.0
      %1046 = vmatpush1.msra.mxu0 %v911
      %1047 = vmatprep.subr.mxu0 0.0
      %1048 = vmatpush1.msra.mxu0 %v914
      %1049 = vmatprep.subr.mxu0 0.0
      %1050 = vmatpush1.msra.mxu0 %v917
      %1051 = vmatprep.subr.mxu0 0.0
      %1052 = vmatpush1.msra.mxu0 %v920
      %1053 = vmatprep.subr.mxu0 0.0
      %1054 = vmatpush1.msra.mxu0 %v923
      %1055 = vmatprep.subr.mxu0 0.0
      %1056 = vmatpush1.msra.mxu0 %v926
      %1057 = vmatprep.subr.mxu0 0.0
      %1058 = vmatpush1.msra.mxu0 %v929
      %1059 = vmatprep.subr.mxu0 0.0
      %1060 = vmatpush1.msra.mxu0 %v932
      %1061 = vmatprep.subr.mxu0 0.0
      %1062 = vmatpush1.msra.mxu0 %v935
      %1063 = vmatprep.subr.mxu0 0.0
      %1064 = vmatpush1.msra.mxu0 %v938
      %1065 = vmatprep.subr.mxu0 0.0
      %1066 = vmatpush1.msra.mxu0 %v941
      %1067 = vmatprep.subr.mxu0 0.0
      %1068 = vmatpush1.msra.mxu0 %v944
      %1069 = vmatprep.subr.mxu0 0.0
      %1070 = vmatpush1.msra.mxu0 %v947
      %1071 = vmatprep.subr.mxu0 0.0
      %1072 = vmatpush1.msra.mxu0 %v950
      %1073 = vmatprep.subr.mxu0 0.0
      %1074 = vmatpush1.msra.mxu0 %v953
      %1075 = vmatprep.subr.mxu0 0.0
      %1076 = vmatpush1.msra.mxu0 %v956
      %1077 = vmatprep.subr.mxu0 0.0
      %1078 = vmatpush1.msra.mxu0 0.0
      %1079 = vmatprep.subr.mxu0 0.0
      %1080 = vmatpush1.msra.mxu0 0.0
      %1081 = vmatprep.subr.mxu0 0.0
      %1082 = vmatpush1.msra.mxu0 0.0
      %1083 = vmatprep.subr.mxu0 0.0
      %1084 = vmatpush1.msra.mxu0 0.0
      %1085 = vmatprep.subr.mxu0 0.0
      %1086 = vmatpush1.msra.mxu0 0.0
      %1087 = vmatprep.subr.mxu0 0.0
      %1088 = vmatpush1.msra.mxu0 0.0
      %1089 = vmatprep.subr.mxu0 0.0
      %1090 = vmatpush1.msra.mxu0 0.0
      %1091 = vmatprep.subr.mxu0 0.0
      %1092 = vmatpush1.msra.mxu0 0.0
      %1093 = vmatprep.subr.mxu0 0.0
      %1094 = vmatpush1.msra.mxu0 0.0
      %1095 = vmatprep.subr.mxu0 0.0
      %1096 = vmatpush1.msra.mxu0 0.0
      %1097 = vmatprep.subr.mxu0 0.0
      %1098 = vmatpush1.msra.mxu0 0.0
      %1099 = vmatprep.subr.mxu0 0.0
      %1100 = vmatpush1.msra.mxu0 0.0
      %1101 = vmatprep.subr.mxu0 0.0
      %1102 = vmatpush1.msra.mxu0 0.0
      %1103 = vmatprep.subr.mxu0 0.0
      %1104 = vmatpush1.msra.mxu0 0.0
      %1105 = vmatprep.subr.mxu0 0.0
      %1106 = vmatpush1.msra.mxu0 0.0
      %1107 = vmatprep.subr.mxu0 0.0
      %1108 = vmatpush1.msra.mxu0 0.0
      %1109 = vmatprep.mubr.f32.mxu0 0.0
      %1110 = vmatmul.mubr.f32.gmra.mrb[0].mxu0 %v908
      %v1111 = vpop.f32.mrb[0].mxu0
      %v1112 = vadd.f32 %v970, %v1111
      %v1113 = vpop.f32.mrb[0].mxu0
      %1114 = vdwg.mxu0
      %v1115 = vld [vmem:[#allocation3] sm:$0xff]
      %v1116 = vld [vmem:[#allocation3 + $0x8] sm:$0xff]
      %v1117 = vld [vmem:[#allocation3 + $0x10] sm:$0xff]
      %v1118 = vadd.f32 %v1115, %v1041
      %v1119 = vxor.u32 %v1118, 2147483648
      %v1120 = vmul.f32 %v1119, 1.442695
      %v1121 = vpow.pop %v1120
      %v1122 = vadd.f32 %v1121, 1.0
      %v1123 = vrcp.pop %v1122
      %v1124 = vmul.f32 1.0, %v1123
      %v1125 = vadd.f32 %v1116, %v1043
      %v1126 = vxor.u32 %v1125, 2147483648
      %v1127 = vmul.f32 %v1126, 1.442695
      %v1128 = vpow.pop %v1127
      %v1129 = vadd.f32 %v1128, 1.0
      %v1130 = vrcp.pop %v1129
      %v1131 = vmul.f32 1.0, %v1130
      %v1132 = vmul.f32 %v1124, %v1112
      %v1133 = vadd.f32 %v1117, %v1132
      %v1134 = vtanh.pop %v1133
      %v1135 = vsub.f32 %v908, %v1134
      %v1136 = vmul.f32 %v1131, %v1135
      %v1137 = vadd.f32 %v1134, %v1136
      %1138 = vst [vmem:[%s226] sm:$0xff] %v1137
      %v1139 = vld [vmem:[%s2] sm:$0xff]
      %v1140 = vld [vmem:[%s2 + $0x8] sm:$0xff]
      %v1141 = vld [vmem:[%s2 + $0x10] sm:$0xff]
      %v1142 = vld [vmem:[%s2 + $0x18] sm:$0xff]
      %v1143 = vld [vmem:[%s2 + $0x20] sm:$0xff]
      %v1144 = vld [vmem:[%s2 + $0x28] sm:$0xff]
      %v1145 = vld [vmem:[%s2 + $0x30] sm:$0xff]
      %v1146 = vld [vmem:[%s2 + $0x38] sm:$0xff]
      %v1147 = vld [vmem:[%s2 + $0x40] sm:$0xff]
      %v1148 = vld [vmem:[%s2 + $0x48] sm:$0xff]
      %v1149 = vld [vmem:[%s2 + $0x50] sm:$0xff]
      %v1150 = vld [vmem:[%s2 + $0x58] sm:$0xff]
      %v1151 = vld [vmem:[%s2 + $0x60] sm:$0xff]
      %v1152 = vld [vmem:[%s2 + $0x68] sm:$0xff]
      %v1153 = vld [vmem:[%s2 + $0x70] sm:$0xff]
      %v1154 = vld [vmem:[%s2 + $0x78] sm:$0xff]
      %v1155 = vld [vmem:[%s2 + $0x80] sm:$0xff]
      %v1156 = vld [vmem:[%s2 + $0x88] sm:$0xff]
      %v1157 = vld [vmem:[%s2 + $0x90] sm:$0xff]
      %v1158 = vld [vmem:[%s2 + $0x98] sm:$0xff]
      %v1159 = vld [vmem:[%s2 + $0xa0] sm:$0xff]
      %v1160 = vld [vmem:[%s2 + $0xa8] sm:$0xff]
      %v1161 = vld [vmem:[%s2 + $0xb0] sm:$0xff]
      %v1162 = vld [vmem:[%s2 + $0xb8] sm:$0xff]
      %v1163 = vld [vmem:[%s2 + $0xc0] sm:$0xff]
      %v1164 = vld [vmem:[%s2 + $0xc8] sm:$0xff]
      %v1165 = vld [vmem:[%s2 + $0xd0] sm:$0xff]
      %v1166 = vld [vmem:[%s2 + $0xd8] sm:$0xff]
      %v1167 = vld [vmem:[%s2 + $0xe0] sm:$0xff]
      %v1168 = vld [vmem:[%s2 + $0xe8] sm:$0xff]
      %v1169 = vld [vmem:[%s2 + $0xf0] sm:$0xff]
      %v1170 = vld [vmem:[%s2 + $0xf8] sm:$0xff]
      %v1171 = vld [vmem:[%s2 + $0x100] sm:$0xff]
      %v1172 = vld [vmem:[%s2 + $0x108] sm:$0xff]
      %v1173 = vld [vmem:[%s2 + $0x110] sm:$0xff]
      %v1174 = vld [vmem:[%s2 + $0x118] sm:$0xff]
      %v1175 = vld [vmem:[%s2 + $0x120] sm:$0xff]
      %v1176 = vld [vmem:[%s2 + $0x128] sm:$0xff]
      %v1177 = vld [vmem:[%s2 + $0x130] sm:$0xff]
      %v1178 = vld [vmem:[%s2 + $0x138] sm:$0xff]
      %v1179 = vld [vmem:[%s2 + $0x140] sm:$0xff]
      %v1180 = vld [vmem:[%s2 + $0x148] sm:$0xff]
      %v1181 = vld [vmem:[%s2 + $0x150] sm:$0xff]
      %v1182 = vld [vmem:[%s2 + $0x158] sm:$0xff]
      %v1183 = vld [vmem:[%s2 + $0x160] sm:$0xff]
      %v1184 = vld [vmem:[%s2 + $0x168] sm:$0xff]
      %v1185 = vld [vmem:[%s2 + $0x170] sm:$0xff]
      %v1186 = vld [vmem:[%s2 + $0x178] sm:$0xff]
      %v1187 = vld [vmem:[%s4] sm:$0x7]
      %v1189 = vlaneseq
      %v1190 = vshrl.u32 %v1189, 7
      %v1191 = vsub.s32 0, %v1190
      %v1192 = vrot.slane %v1187, %v1191
      %v1193 = vlaneseq
      %v1194 = vshrl.u32 %v1193, 7
      %v1195 = vsub.s32 1, %v1194
      %v1196 = vrot.slane %v1187, %v1195
      %v1197 = vlaneseq
      %v1198 = vshrl.u32 %v1197, 7
      %v1199 = vsub.s32 2, %v1198
      %v1200 = vrot.slane %v1187, %v1199
      %1204 = vmatprep.subr.mxu0 %v1140
      %1205 = vmatpush1.msra.mxu0 %v1139
      %1206 = vmatprep.subr.mxu0 %v1143
      %1207 = vmatpush1.msra.mxu0 %v1142
      %1208 = vmatprep.subr.mxu0 %v1146
      %1209 = vmatpush1.msra.mxu0 %v1145
      %1210 = vmatprep.subr.mxu0 %v1149
      %1211 = vmatpush1.msra.mxu0 %v1148
      %1212 = vmatprep.subr.mxu0 %v1152
      %1213 = vmatpush1.msra.mxu0 %v1151
      %1214 = vmatprep.subr.mxu0 %v1155
      %1215 = vmatpush1.msra.mxu0 %v1154
      %1216 = vmatprep.subr.mxu0 %v1158
      %1217 = vmatpush1.msra.mxu0 %v1157
      %1218 = vmatprep.subr.mxu0 %v1161
      %1219 = vmatpush1.msra.mxu0 %v1160
      %1220 = vmatprep.subr.mxu0 %v1164
      %1221 = vmatpush1.msra.mxu0 %v1163
      %1222 = vmatprep.subr.mxu0 %v1167
      %1223 = vmatpush1.msra.mxu0 %v1166
      %1224 = vmatprep.subr.mxu0 %v1170
      %1225 = vmatpush1.msra.mxu0 %v1169
      %1226 = vmatprep.subr.mxu0 %v1173
      %1227 = vmatpush1.msra.mxu0 %v1172
      %1228 = vmatprep.subr.mxu0 %v1176
      %1229 = vmatpush1.msra.mxu0 %v1175
      %1230 = vmatprep.subr.mxu0 %v1179
      %1231 = vmatpush1.msra.mxu0 %v1178
      %1232 = vmatprep.subr.mxu0 %v1182
      %1233 = vmatpush1.msra.mxu0 %v1181
      %1234 = vmatprep.subr.mxu0 %v1185
      %1235 = vmatpush1.msra.mxu0 %v1184
      %1236 = vmatprep.subr.mxu0 0.0
      %1237 = vmatpush1.msra.mxu0 0.0
      %1238 = vmatprep.subr.mxu0 0.0
      %1239 = vmatpush1.msra.mxu0 0.0
      %1240 = vmatprep.subr.mxu0 0.0
      %1241 = vmatpush1.msra.mxu0 0.0
      %1242 = vmatprep.subr.mxu0 0.0
      %1243 = vmatpush1.msra.mxu0 0.0
      %1244 = vmatprep.subr.mxu0 0.0
      %1245 = vmatpush1.msra.mxu0 0.0
      %1246 = vmatprep.subr.mxu0 0.0
      %1247 = vmatpush1.msra.mxu0 0.0
      %1248 = vmatprep.subr.mxu0 0.0
      %1249 = vmatpush1.msra.mxu0 0.0
      %1250 = vmatprep.subr.mxu0 0.0
      %1251 = vmatpush1.msra.mxu0 0.0
      %1252 = vmatprep.subr.mxu0 0.0
      %1253 = vmatpush1.msra.mxu0 0.0
      %1254 = vmatprep.subr.mxu0 0.0
      %1255 = vmatpush1.msra.mxu0 0.0
      %1256 = vmatprep.subr.mxu0 0.0
      %1257 = vmatpush1.msra.mxu0 0.0
      %1258 = vmatprep.subr.mxu0 0.0
      %1259 = vmatpush1.msra.mxu0 0.0
      %1260 = vmatprep.subr.mxu0 0.0
      %1261 = vmatpush1.msra.mxu0 0.0
      %1262 = vmatprep.subr.mxu0 0.0
      %1263 = vmatpush1.msra.mxu0 0.0
      %1264 = vmatprep.subr.mxu0 0.0
      %1265 = vmatpush1.msra.mxu0 0.0
      %1266 = vmatprep.subr.mxu0 0.0
      %1267 = vmatpush1.msra.mxu0 0.0
      %1268 = vmatprep.mubr.f32.mxu0 0.0
      %1269 = vmatmul.mubr.f32.gmra.mrb[0].mxu0 %v1137
      %v1270 = vpop.f32.mrb[0].mxu0
      %v1271 = vadd.f32 %v1192, %v1270
      %v1272 = vpop.f32.mrb[0].mxu0
      %v1273 = vadd.f32 %v1196, %v1272
      %1274 = vdwg.mxu0
      %1275 = vmatprep.subr.mxu0 0.0
      %1276 = vmatpush1.msra.mxu0 %v1141
      %1277 = vmatprep.subr.mxu0 0.0
      %1278 = vmatpush1.msra.mxu0 %v1144
      %1279 = vmatprep.subr.mxu0 0.0
      %1280 = vmatpush1.msra.mxu0 %v1147
      %1281 = vmatprep.subr.mxu0 0.0
      %1282 = vmatpush1.msra.mxu0 %v1150
      %1283 = vmatprep.subr.mxu0 0.0
      %1284 = vmatpush1.msra.mxu0 %v1153
      %1285 = vmatprep.subr.mxu0 0.0
      %1286 = vmatpush1.msra.mxu0 %v1156
      %1287 = vmatprep.subr.mxu0 0.0
      %1288 = vmatpush1.msra.mxu0 %v1159
      %1289 = vmatprep.subr.mxu0 0.0
      %1290 = vmatpush1.msra.mxu0 %v1162
      %1291 = vmatprep.subr.mxu0 0.0
      %1292 = vmatpush1.msra.mxu0 %v1165
      %1293 = vmatprep.subr.mxu0 0.0
      %1294 = vmatpush1.msra.mxu0 %v1168
      %1295 = vmatprep.subr.mxu0 0.0
      %1296 = vmatpush1.msra.mxu0 %v1171
      %1297 = vmatprep.subr.mxu0 0.0
      %1298 = vmatpush1.msra.mxu0 %v1174
      %1299 = vmatprep.subr.mxu0 0.0
      %1300 = vmatpush1.msra.mxu0 %v1177
      %1301 = vmatprep.subr.mxu0 0.0
      %1302 = vmatpush1.msra.mxu0 %v1180
      %1303 = vmatprep.subr.mxu0 0.0
      %1304 = vmatpush1.msra.mxu0 %v1183
      %1305 = vmatprep.subr.mxu0 0.0
      %1306 = vmatpush1.msra.mxu0 %v1186
      %1307 = vmatprep.subr.mxu0 0.0
      %1308 = vmatpush1.msra.mxu0 0.0
      %1309 = vmatprep.subr.mxu0 0.0
      %1310 = vmatpush1.msra.mxu0 0.0
      %1311 = vmatprep.subr.mxu0 0.0
      %1312 = vmatpush1.msra.mxu0 0.0
      %1313 = vmatprep.subr.mxu0 0.0
      %1314 = vmatpush1.msra.mxu0 0.0
      %1315 = vmatprep.subr.mxu0 0.0
      %1316 = vmatpush1.msra.mxu0 0.0
      %1317 = vmatprep.subr.mxu0 0.0
      %1318 = vmatpush1.msra.mxu0 0.0
      %1319 = vmatprep.subr.mxu0 0.0
      %1320 = vmatpush1.msra.mxu0 0.0
      %1321 = vmatprep.subr.mxu0 0.0
      %1322 = vmatpush1.msra.mxu0 0.0
      %1323 = vmatprep.subr.mxu0 0.0
      %1324 = vmatpush1.msra.mxu0 0.0
      %1325 = vmatprep.subr.mxu0 0.0
      %1326 = vmatpush1.msra.mxu0 0.0
      %1327 = vmatprep.subr.mxu0 0.0
      %1328 = vmatpush1.msra.mxu0 0.0
      %1329 = vmatprep.subr.mxu0 0.0
      %1330 = vmatpush1.msra.mxu0 0.0
      %1331 = vmatprep.subr.mxu0 0.0
      %1332 = vmatpush1.msra.mxu0 0.0
      %1333 = vmatprep.subr.mxu0 0.0
      %1334 = vmatpush1.msra.mxu0 0.0
      %1335 = vmatprep.subr.mxu0 0.0
      %1336 = vmatpush1.msra.mxu0 0.0
      %1337 = vmatprep.subr.mxu0 0.0
      %1338 = vmatpush1.msra.mxu0 0.0
      %1339 = vmatprep.mubr.f32.mxu0 0.0
      %1340 = vmatmul.mubr.f32.gmra.mrb[0].mxu0 %v1137
      %v1341 = vpop.f32.mrb[0].mxu0
      %v1342 = vadd.f32 %v1200, %v1341
      %v1343 = vpop.f32.mrb[0].mxu0
      %1344 = vdwg.mxu0
      %s1345 = scalar_lea.vmem [#allocation3], 24
      %v1346 = vld [vmem:[%s1345] sm:$0xff]
      %v1347 = vld [vmem:[%s1345 + $0x8] sm:$0xff]
      %v1348 = vld [vmem:[%s1345 + $0x10] sm:$0xff]
      %v1349 = vadd.f32 %v1346, %v1271
      %v1350 = vxor.u32 %v1349, 2147483648
      %v1351 = vmul.f32 %v1350, 1.442695
      %v1352 = vpow.pop %v1351
      %v1353 = vadd.f32 %v1352, 1.0
      %v1354 = vrcp.pop %v1353
      %v1355 = vmul.f32 1.0, %v1354
      %v1356 = vadd.f32 %v1347, %v1273
      %v1357 = vxor.u32 %v1356, 2147483648
      %v1358 = vmul.f32 %v1357, 1.442695
      %v1359 = vpow.pop %v1358
      %v1360 = vadd.f32 %v1359, 1.0
      %v1361 = vrcp.pop %v1360
      %v1362 = vmul.f32 1.0, %v1361
      %v1363 = vmul.f32 %v1355, %v1342
      %v1364 = vadd.f32 %v1348, %v1363
      %v1365 = vtanh.pop %v1364
      %v1366 = vsub.f32 %v1137, %v1365
      %v1367 = vmul.f32 %v1362, %v1366
      %v1368 = vadd.f32 %v1365, %v1367
      %s1369 = scalar_lea.vmem %s226, 8
      %1370 = vst [vmem:[%s1369] sm:$0xff] %v1368
      %v1371 = vld [vmem:[%s2] sm:$0xff]
      %v1372 = vld [vmem:[%s2 + $0x8] sm:$0xff]
      %v1373 = vld [vmem:[%s2 + $0x10] sm:$0xff]
      %v1374 = vld [vmem:[%s2 + $0x18] sm:$0xff]
      %v1375 = vld [vmem:[%s2 + $0x20] sm:$0xff]
      %v1376 = vld [vmem:[%s2 + $0x28] sm:$0xff]
      %v1377 = vld [vmem:[%s2 + $0x30] sm:$0xff]
      %v1378 = vld [vmem:[%s2 + $0x38] sm:$0xff]
      %v1379 = vld [vmem:[%s2 + $0x40] sm:$0xff]
      %v1380 = vld [vmem:[%s2 + $0x48] sm:$0xff]
      %v1381 = vld [vmem:[%s2 + $0x50] sm:$0xff]
      %v1382 = vld [vmem:[%s2 + $0x58] sm:$0xff]
      %v1383 = vld [vmem:[%s2 + $0x60] sm:$0xff]
      %v1384 = vld [vmem:[%s2 + $0x68] sm:$0xff]
      %v1385 = vld [vmem:[%s2 + $0x70] sm:$0xff]
      %v1386 = vld [vmem:[%s2 + $0x78] sm:$0xff]
      %v1387 = vld [vmem:[%s2 + $0x80] sm:$0xff]
      %v1388 = vld [vmem:[%s2 + $0x88] sm:$0xff]
      %v1389 = vld [vmem:[%s2 + $0x90] sm:$0xff]
      %v1390 = vld [vmem:[%s2 + $0x98] sm:$0xff]
      %v1391 = vld [vmem:[%s2 + $0xa0] sm:$0xff]
      %v1392 = vld [vmem:[%s2 + $0xa8] sm:$0xff]
      %v1393 = vld [vmem:[%s2 + $0xb0] sm:$0xff]
      %v1394 = vld [vmem:[%s2 + $0xb8] sm:$0xff]
      %v1395 = vld [vmem:[%s2 + $0xc0] sm:$0xff]
      %v1396 = vld [vmem:[%s2 + $0xc8] sm:$0xff]
      %v1397 = vld [vmem:[%s2 + $0xd0] sm:$0xff]
      %v1398 = vld [vmem:[%s2 + $0xd8] sm:$0xff]
      %v1399 = vld [vmem:[%s2 + $0xe0] sm:$0xff]
      %v1400 = vld [vmem:[%s2 + $0xe8] sm:$0xff]
      %v1401 = vld [vmem:[%s2 + $0xf0] sm:$0xff]
      %v1402 = vld [vmem:[%s2 + $0xf8] sm:$0xff]
      %v1403 = vld [vmem:[%s2 + $0x100] sm:$0xff]
      %v1404 = vld [vmem:[%s2 + $0x108] sm:$0xff]
      %v1405 = vld [vmem:[%s2 + $0x110] sm:$0xff]
      %v1406 = vld [vmem:[%s2 + $0x118] sm:$0xff]
      %v1407 = vld [vmem:[%s2 + $0x120] sm:$0xff]
      %v1408 = vld [vmem:[%s2 + $0x128] sm:$0xff]
      %v1409 = vld [vmem:[%s2 + $0x130] sm:$0xff]
      %v1410 = vld [vmem:[%s2 + $0x138] sm:$0xff]
      %v1411 = vld [vmem:[%s2 + $0x140] sm:$0xff]
      %v1412 = vld [vmem:[%s2 + $0x148] sm:$0xff]
      %v1413 = vld [vmem:[%s2 + $0x150] sm:$0xff]
      %v1414 = vld [vmem:[%s2 + $0x158] sm:$0xff]
      %v1415 = vld [vmem:[%s2 + $0x160] sm:$0xff]
      %v1416 = vld [vmem:[%s2 + $0x168] sm:$0xff]
      %v1417 = vld [vmem:[%s2 + $0x170] sm:$0xff]
      %v1418 = vld [vmem:[%s2 + $0x178] sm:$0xff]
      %v1419 = vld [vmem:[%s4] sm:$0x7]
      %v1421 = vlaneseq
      %v1422 = vshrl.u32 %v1421, 7
      %v1423 = vsub.s32 0, %v1422
      %v1424 = vrot.slane %v1419, %v1423
      %v1425 = vlaneseq
      %v1426 = vshrl.u32 %v1425, 7
      %v1427 = vsub.s32 1, %v1426
      %v1428 = vrot.slane %v1419, %v1427
      %v1429 = vlaneseq
      %v1430 = vshrl.u32 %v1429, 7
      %v1431 = vsub.s32 2, %v1430
      %v1432 = vrot.slane %v1419, %v1431
      %1436 = vmatprep.subr.mxu0 %v1372
      %1437 = vmatpush1.msra.mxu0 %v1371
      %1438 = vmatprep.subr.mxu0 %v1375
      %1439 = vmatpush1.msra.mxu0 %v1374
      %1440 = vmatprep.subr.mxu0 %v1378
      %1441 = vmatpush1.msra.mxu0 %v1377
      %1442 = vmatprep.subr.mxu0 %v1381
      %1443 = vmatpush1.msra.mxu0 %v1380
      %1444 = vmatprep.subr.mxu0 %v1384
      %1445 = vmatpush1.msra.mxu0 %v1383
      %1446 = vmatprep.subr.mxu0 %v1387
      %1447 = vmatpush1.msra.mxu0 %v1386
      %1448 = vmatprep.subr.mxu0 %v1390
      %1449 = vmatpush1.msra.mxu0 %v1389
      %1450 = vmatprep.subr.mxu0 %v1393
      %1451 = vmatpush1.msra.mxu0 %v1392
      %1452 = vmatprep.subr.mxu0 %v1396
      %1453 = vmatpush1.msra.mxu0 %v1395
      %1454 = vmatprep.subr.mxu0 %v1399
      %1455 = vmatpush1.msra.mxu0 %v1398
      %1456 = vmatprep.subr.mxu0 %v1402
      %1457 = vmatpush1.msra.mxu0 %v1401
      %1458 = vmatprep.subr.mxu0 %v1405
      %1459 = vmatpush1.msra.mxu0 %v1404
      %1460 = vmatprep.subr.mxu0 %v1408
      %1461 = vmatpush1.msra.mxu0 %v1407
      %1462 = vmatprep.subr.mxu0 %v1411
      %1463 = vmatpush1.msra.mxu0 %v1410
      %1464 = vmatprep.subr.mxu0 %v1414
      %1465 = vmatpush1.msra.mxu0 %v1413
      %1466 = vmatprep.subr.mxu0 %v1417
      %1467 = vmatpush1.msra.mxu0 %v1416
      %1468 = vmatprep.subr.mxu0 0.0
      %1469 = vmatpush1.msra.mxu0 0.0
      %1470 = vmatprep.subr.mxu0 0.0
      %1471 = vmatpush1.msra.mxu0 0.0
      %1472 = vmatprep.subr.mxu0 0.0
      %1473 = vmatpush1.msra.mxu0 0.0
      %1474 = vmatprep.subr.mxu0 0.0
      %1475 = vmatpush1.msra.mxu0 0.0
      %1476 = vmatprep.subr.mxu0 0.0
      %1477 = vmatpush1.msra.mxu0 0.0
      %1478 = vmatprep.subr.mxu0 0.0
      %1479 = vmatpush1.msra.mxu0 0.0
      %1480 = vmatprep.subr.mxu0 0.0
      %1481 = vmatpush1.msra.mxu0 0.0
      %1482 = vmatprep.subr.mxu0 0.0
      %1483 = vmatpush1.msra.mxu0 0.0
      %1484 = vmatprep.subr.mxu0 0.0
      %1485 = vmatpush1.msra.mxu0 0.0
      %1486 = vmatprep.subr.mxu0 0.0
      %1487 = vmatpush1.msra.mxu0 0.0
      %1488 = vmatprep.subr.mxu0 0.0
      %1489 = vmatpush1.msra.mxu0 0.0
      %1490 = vmatprep.subr.mxu0 0.0
      %1491 = vmatpush1.msra.mxu0 0.0
      %1492 = vmatprep.subr.mxu0 0.0
      %1493 = vmatpush1.msra.mxu0 0.0
      %1494 = vmatprep.subr.mxu0 0.0
      %1495 = vmatpush1.msra.mxu0 0.0
      %1496 = vmatprep.subr.mxu0 0.0
      %1497 = vmatpush1.msra.mxu0 0.0
      %1498 = vmatprep.subr.mxu0 0.0
      %1499 = vmatpush1.msra.mxu0 0.0
      %1500 = vmatprep.mubr.f32.mxu0 0.0
      %1501 = vmatmul.mubr.f32.gmra.mrb[0].mxu0 %v1368
      %v1502 = vpop.f32.mrb[0].mxu0
      %v1503 = vadd.f32 %v1424, %v1502
      %v1504 = vpop.f32.mrb[0].mxu0
      %v1505 = vadd.f32 %v1428, %v1504
      %1506 = vdwg.mxu0
      %1507 = vmatprep.subr.mxu0 0.0
      %1508 = vmatpush1.msra.mxu0 %v1373
      %1509 = vmatprep.subr.mxu0 0.0
      %1510 = vmatpush1.msra.mxu0 %v1376
      %1511 = vmatprep.subr.mxu0 0.0
      %1512 = vmatpush1.msra.mxu0 %v1379
      %1513 = vmatprep.subr.mxu0 0.0
      %1514 = vmatpush1.msra.mxu0 %v1382
      %1515 = vmatprep.subr.mxu0 0.0
      %1516 = vmatpush1.msra.mxu0 %v1385
      %1517 = vmatprep.subr.mxu0 0.0
      %1518 = vmatpush1.msra.mxu0 %v1388
      %1519 = vmatprep.subr.mxu0 0.0
      %1520 = vmatpush1.msra.mxu0 %v1391
      %1521 = vmatprep.subr.mxu0 0.0
      %1522 = vmatpush1.msra.mxu0 %v1394
      %1523 = vmatprep.subr.mxu0 0.0
      %1524 = vmatpush1.msra.mxu0 %v1397
      %1525 = vmatprep.subr.mxu0 0.0
      %1526 = vmatpush1.msra.mxu0 %v1400
      %1527 = vmatprep.subr.mxu0 0.0
      %1528 = vmatpush1.msra.mxu0 %v1403
      %1529 = vmatprep.subr.mxu0 0.0
      %1530 = vmatpush1.msra.mxu0 %v1406
      %1531 = vmatprep.subr.mxu0 0.0
      %1532 = vmatpush1.msra.mxu0 %v1409
      %1533 = vmatprep.subr.mxu0 0.0
      %1534 = vmatpush1.msra.mxu0 %v1412
      %1535 = vmatprep.subr.mxu0 0.0
      %1536 = vmatpush1.msra.mxu0 %v1415
      %1537 = vmatprep.subr.mxu0 0.0
      %1538 = vmatpush1.msra.mxu0 %v1418
      %1539 = vmatprep.subr.mxu0 0.0
      %1540 = vmatpush1.msra.mxu0 0.0
      %1541 = vmatprep.subr.mxu0 0.0
      %1542 = vmatpush1.msra.mxu0 0.0
      %1543 = vmatprep.subr.mxu0 0.0
      %1544 = vmatpush1.msra.mxu0 0.0
      %1545 = vmatprep.subr.mxu0 0.0
      %1546 = vmatpush1.msra.mxu0 0.0
      %1547 = vmatprep.subr.mxu0 0.0
      %1548 = vmatpush1.msra.mxu0 0.0
      %1549 = vmatprep.subr.mxu0 0.0
      %1550 = vmatpush1.msra.mxu0 0.0
      %1551 = vmatprep.subr.mxu0 0.0
      %1552 = vmatpush1.msra.mxu0 0.0
      %1553 = vmatprep.subr.mxu0 0.0
      %1554 = vmatpush1.msra.mxu0 0.0
      %1555 = vmatprep.subr.mxu0 0.0
      %1556 = vmatpush1.msra.mxu0 0.0
      %1557 = vmatprep.subr.mxu0 0.0
      %1558 = vmatpush1.msra.mxu0 0.0
      %1559 = vmatprep.subr.mxu0 0.0
      %1560 = vmatpush1.msra.mxu0 0.0
      %1561 = vmatprep.subr.mxu0 0.0
      %1562 = vmatpush1.msra.mxu0 0.0
      %1563 = vmatprep.subr.mxu0 0.0
      %1564 = vmatpush1.msra.mxu0 0.0
      %1565 = vmatprep.subr.mxu0 0.0
      %1566 = vmatpush1.msra.mxu0 0.0
      %1567 = vmatprep.subr.mxu0 0.0
      %1568 = vmatpush1.msra.mxu0 0.0
      %1569 = vmatprep.subr.mxu0 0.0
      %1570 = vmatpush1.msra.mxu0 0.0
      %1571 = vmatprep.mubr.f32.mxu0 0.0
      %1572 = vmatmul.mubr.f32.gmra.mrb[0].mxu0 %v1368
      %v1573 = vpop.f32.mrb[0].mxu0
      %v1574 = vadd.f32 %v1432, %v1573
      %v1575 = vpop.f32.mrb[0].mxu0
      %1576 = vdwg.mxu0
      %s1577 = scalar_lea.vmem [#allocation3], 48
      %v1578 = vld [vmem:[%s1577] sm:$0xff]
      %v1579 = vld [vmem:[%s1577 + $0x8] sm:$0xff]
      %v1580 = vld [vmem:[%s1577 + $0x10] sm:$0xff]
      %v1581 = vadd.f32 %v1578, %v1503
      %v1582 = vxor.u32 %v1581, 2147483648
      %v1583 = vmul.f32 %v1582, 1.442695
      %v1584 = vpow.pop %v1583
      %v1585 = vadd.f32 %v1584, 1.0
      %v1586 = vrcp.pop %v1585
      %v1587 = vmul.f32 1.0, %v1586
      %v1588 = vadd.f32 %v1579, %v1505
      %v1589 = vxor.u32 %v1588, 2147483648
      %v1590 = vmul.f32 %v1589, 1.442695
      %v1591 = vpow.pop %v1590
      %v1592 = vadd.f32 %v1591, 1.0
      %v1593 = vrcp.pop %v1592
      %v1594 = vmul.f32 1.0, %v1593
      %v1595 = vmul.f32 %v1587, %v1574
      %v1596 = vadd.f32 %v1580, %v1595
      %v1597 = vtanh.pop %v1596
      %v1598 = vsub.f32 %v1368, %v1597
      %v1599 = vmul.f32 %v1594, %v1598
      %v1600 = vadd.f32 %v1597, %v1599
      %s1601 = scalar_lea.vmem %s226, 16
      %1602 = vst [vmem:[%s1601] sm:$0xff] %v1600
      %v1603 = vld [vmem:[%s2] sm:$0xff]
      %v1604 = vld [vmem:[%s2 + $0x8] sm:$0xff]
      %v1605 = vld [vmem:[%s2 + $0x10] sm:$0xff]
      %v1606 = vld [vmem:[%s2 + $0x18] sm:$0xff]
      %v1607 = vld [vmem:[%s2 + $0x20] sm:$0xff]
      %v1608 = vld [vmem:[%s2 + $0x28] sm:$0xff]
      %v1609 = vld [vmem:[%s2 + $0x30] sm:$0xff]
      %v1610 = vld [vmem:[%s2 + $0x38] sm:$0xff]
      %v1611 = vld [vmem:[%s2 + $0x40] sm:$0xff]
      %v1612 = vld [vmem:[%s2 + $0x48] sm:$0xff]
      %v1613 = vld [vmem:[%s2 + $0x50] sm:$0xff]
      %v1614 = vld [vmem:[%s2 + $0x58] sm:$0xff]
      %v1615 = vld [vmem:[%s2 + $0x60] sm:$0xff]
      %v1616 = vld [vmem:[%s2 + $0x68] sm:$0xff]
      %v1617 = vld [vmem:[%s2 + $0x70] sm:$0xff]
      %v1618 = vld [vmem:[%s2 + $0x78] sm:$0xff]
      %v1619 = vld [vmem:[%s2 + $0x80] sm:$0xff]
      %v1620 = vld [vmem:[%s2 + $0x88] sm:$0xff]
      %v1621 = vld [vmem:[%s2 + $0x90] sm:$0xff]
      %v1622 = vld [vmem:[%s2 + $0x98] sm:$0xff]
      %v1623 = vld [vmem:[%s2 + $0xa0] sm:$0xff]
      %v1624 = vld [vmem:[%s2 + $0xa8] sm:$0xff]
      %v1625 = vld [vmem:[%s2 + $0xb0] sm:$0xff]
      %v1626 = vld [vmem:[%s2 + $0xb8] sm:$0xff]
      %v1627 = vld [vmem:[%s2 + $0xc0] sm:$0xff]
      %v1628 = vld [vmem:[%s2 + $0xc8] sm:$0xff]
      %v1629 = vld [vmem:[%s2 + $0xd0] sm:$0xff]
      %v1630 = vld [vmem:[%s2 + $0xd8] sm:$0xff]
      %v1631 = vld [vmem:[%s2 + $0xe0] sm:$0xff]
      %v1632 = vld [vmem:[%s2 + $0xe8] sm:$0xff]
      %v1633 = vld [vmem:[%s2 + $0xf0] sm:$0xff]
      %v1634 = vld [vmem:[%s2 + $0xf8] sm:$0xff]
      %v1635 = vld [vmem:[%s2 + $0x100] sm:$0xff]
      %v1636 = vld [vmem:[%s2 + $0x108] sm:$0xff]
      %v1637 = vld [vmem:[%s2 + $0x110] sm:$0xff]
      %v1638 = vld [vmem:[%s2 + $0x118] sm:$0xff]
      %v1639 = vld [vmem:[%s2 + $0x120] sm:$0xff]
      %v1640 = vld [vmem:[%s2 + $0x128] sm:$0xff]
      %v1641 = vld [vmem:[%s2 + $0x130] sm:$0xff]
      %v1642 = vld [vmem:[%s2 + $0x138] sm:$0xff]
      %v1643 = vld [vmem:[%s2 + $0x140] sm:$0xff]
      %v1644 = vld [vmem:[%s2 + $0x148] sm:$0xff]
      %v1645 = vld [vmem:[%s2 + $0x150] sm:$0xff]
      %v1646 = vld [vmem:[%s2 + $0x158] sm:$0xff]
      %v1647 = vld [vmem:[%s2 + $0x160] sm:$0xff]
      %v1648 = vld [vmem:[%s2 + $0x168] sm:$0xff]
      %v1649 = vld [vmem:[%s2 + $0x170] sm:$0xff]
      %v1650 = vld [vmem:[%s2 + $0x178] sm:$0xff]
      %v1651 = vld [vmem:[%s4] sm:$0x7]
      %v1653 = vlaneseq
      %v1654 = vshrl.u32 %v1653, 7
      %v1655 = vsub.s32 0, %v1654
      %v1656 = vrot.slane %v1651, %v1655
      %v1657 = vlaneseq
      %v1658 = vshrl.u32 %v1657, 7
      %v1659 = vsub.s32 1, %v1658
      %v1660 = vrot.slane %v1651, %v1659
      %v1661 = vlaneseq
      %v1662 = vshrl.u32 %v1661, 7
      %v1663 = vsub.s32 2, %v1662
      %v1664 = vrot.slane %v1651, %v1663
      %1668 = vmatprep.subr.mxu0 %v1604
      %1669 = vmatpush1.msra.mxu0 %v1603
      %1670 = vmatprep.subr.mxu0 %v1607
      %1671 = vmatpush1.msra.mxu0 %v1606
      %1672 = vmatprep.subr.mxu0 %v1610
      %1673 = vmatpush1.msra.mxu0 %v1609
      %1674 = vmatprep.subr.mxu0 %v1613
      %1675 = vmatpush1.msra.mxu0 %v1612
      %1676 = vmatprep.subr.mxu0 %v1616
      %1677 = vmatpush1.msra.mxu0 %v1615
      %1678 = vmatprep.subr.mxu0 %v1619
      %1679 = vmatpush1.msra.mxu0 %v1618
      %1680 = vmatprep.subr.mxu0 %v1622
      %1681 = vmatpush1.msra.mxu0 %v1621
      %1682 = vmatprep.subr.mxu0 %v1625
      %1683 = vmatpush1.msra.mxu0 %v1624
      %1684 = vmatprep.subr.mxu0 %v1628
      %1685 = vmatpush1.msra.mxu0 %v1627
      %1686 = vmatprep.subr.mxu0 %v1631
      %1687 = vmatpush1.msra.mxu0 %v1630
      %1688 = vmatprep.subr.mxu0 %v1634
      %1689 = vmatpush1.msra.mxu0 %v1633
      %1690 = vmatprep.subr.mxu0 %v1637
      %1691 = vmatpush1.msra.mxu0 %v1636
      %1692 = vmatprep.subr.mxu0 %v1640
      %1693 = vmatpush1.msra.mxu0 %v1639
      %1694 = vmatprep.subr.mxu0 %v1643
      %1695 = vmatpush1.msra.mxu0 %v1642
      %1696 = vmatprep.subr.mxu0 %v1646
      %1697 = vmatpush1.msra.mxu0 %v1645
      %1698 = vmatprep.subr.mxu0 %v1649
      %1699 = vmatpush1.msra.mxu0 %v1648
      %1700 = vmatprep.subr.mxu0 0.0
      %1701 = vmatpush1.msra.mxu0 0.0
      %1702 = vmatprep.subr.mxu0 0.0
      %1703 = vmatpush1.msra.mxu0 0.0
      %1704 = vmatprep.subr.mxu0 0.0
      %1705 = vmatpush1.msra.mxu0 0.0
      %1706 = vmatprep.subr.mxu0 0.0
      %1707 = vmatpush1.msra.mxu0 0.0
      %1708 = vmatprep.subr.mxu0 0.0
      %1709 = vmatpush1.msra.mxu0 0.0
      %1710 = vmatprep.subr.mxu0 0.0
      %1711 = vmatpush1.msra.mxu0 0.0
      %1712 = vmatprep.subr.mxu0 0.0
      %1713 = vmatpush1.msra.mxu0 0.0
      %1714 = vmatprep.subr.mxu0 0.0
      %1715 = vmatpush1.msra.mxu0 0.0
      %1716 = vmatprep.subr.mxu0 0.0
      %1717 = vmatpush1.msra.mxu0 0.0
      %1718 = vmatprep.subr.mxu0 0.0
      %1719 = vmatpush1.msra.mxu0 0.0
      %1720 = vmatprep.subr.mxu0 0.0
      %1721 = vmatpush1.msra.mxu0 0.0
      %1722 = vmatprep.subr.mxu0 0.0
      %1723 = vmatpush1.msra.mxu0 0.0
      %1724 = vmatprep.subr.mxu0 0.0
      %1725 = vmatpush1.msra.mxu0 0.0
      %1726 = vmatprep.subr.mxu0 0.0
      %1727 = vmatpush1.msra.mxu0 0.0
      %1728 = vmatprep.subr.mxu0 0.0
      %1729 = vmatpush1.msra.mxu0 0.0
      %1730 = vmatprep.subr.mxu0 0.0
      %1731 = vmatpush1.msra.mxu0 0.0
      %1732 = vmatprep.mubr.f32.mxu0 0.0
      %1733 = vmatmul.mubr.f32.gmra.mrb[0].mxu0 %v1600
      %v1734 = vpop.f32.mrb[0].mxu0
      %v1735 = vadd.f32 %v1656, %v1734
      %v1736 = vpop.f32.mrb[0].mxu0
      %v1737 = vadd.f32 %v1660, %v1736
      %1738 = vdwg.mxu0
      %1739 = vmatprep.subr.mxu0 0.0
      %1740 = vmatpush1.msra.mxu0 %v1605
      %1741 = vmatprep.subr.mxu0 0.0
      %1742 = vmatpush1.msra.mxu0 %v1608
      %1743 = vmatprep.subr.mxu0 0.0
      %1744 = vmatpush1.msra.mxu0 %v1611
      %1745 = vmatprep.subr.mxu0 0.0
      %1746 = vmatpush1.msra.mxu0 %v1614
      %1747 = vmatprep.subr.mxu0 0.0
      %1748 = vmatpush1.msra.mxu0 %v1617
      %1749 = vmatprep.subr.mxu0 0.0
      %1750 = vmatpush1.msra.mxu0 %v1620
      %1751 = vmatprep.subr.mxu0 0.0
      %1752 = vmatpush1.msra.mxu0 %v1623
      %1753 = vmatprep.subr.mxu0 0.0
      %1754 = vmatpush1.msra.mxu0 %v1626
      %1755 = vmatprep.subr.mxu0 0.0
      %1756 = vmatpush1.msra.mxu0 %v1629
      %1757 = vmatprep.subr.mxu0 0.0
      %1758 = vmatpush1.msra.mxu0 %v1632
      %1759 = vmatprep.subr.mxu0 0.0
      %1760 = vmatpush1.msra.mxu0 %v1635
      %1761 = vmatprep.subr.mxu0 0.0
      %1762 = vmatpush1.msra.mxu0 %v1638
      %1763 = vmatprep.subr.mxu0 0.0
      %1764 = vmatpush1.msra.mxu0 %v1641
      %1765 = vmatprep.subr.mxu0 0.0
      %1766 = vmatpush1.msra.mxu0 %v1644
      %1767 = vmatprep.subr.mxu0 0.0
      %1768 = vmatpush1.msra.mxu0 %v1647
      %1769 = vmatprep.subr.mxu0 0.0
      %1770 = vmatpush1.msra.mxu0 %v1650
      %1771 = vmatprep.subr.mxu0 0.0
      %1772 = vmatpush1.msra.mxu0 0.0
      %1773 = vmatprep.subr.mxu0 0.0
      %1774 = vmatpush1.msra.mxu0 0.0
      %1775 = vmatprep.subr.mxu0 0.0
      %1776 = vmatpush1.msra.mxu0 0.0
      %1777 = vmatprep.subr.mxu0 0.0
      %1778 = vmatpush1.msra.mxu0 0.0
      %1779 = vmatprep.subr.mxu0 0.0
      %1780 = vmatpush1.msra.mxu0 0.0
      %1781 = vmatprep.subr.mxu0 0.0
      %1782 = vmatpush1.msra.mxu0 0.0
      %1783 = vmatprep.subr.mxu0 0.0
      %1784 = vmatpush1.msra.mxu0 0.0
      %1785 = vmatprep.subr.mxu0 0.0
      %1786 = vmatpush1.msra.mxu0 0.0
      %1787 = vmatprep.subr.mxu0 0.0
      %1788 = vmatpush1.msra.mxu0 0.0
      %1789 = vmatprep.subr.mxu0 0.0
      %1790 = vmatpush1.msra.mxu0 0.0
      %1791 = vmatprep.subr.mxu0 0.0
      %1792 = vmatpush1.msra.mxu0 0.0
      %1793 = vmatprep.subr.mxu0 0.0
      %1794 = vmatpush1.msra.mxu0 0.0
      %1795 = vmatprep.subr.mxu0 0.0
      %1796 = vmatpush1.msra.mxu0 0.0
      %1797 = vmatprep.subr.mxu0 0.0
      %1798 = vmatpush1.msra.mxu0 0.0
      %1799 = vmatprep.subr.mxu0 0.0
      %1800 = vmatpush1.msra.mxu0 0.0
      %1801 = vmatprep.subr.mxu0 0.0
      %1802 = vmatpush1.msra.mxu0 0.0
      %1803 = vmatprep.mubr.f32.mxu0 0.0
      %1804 = vmatmul.mubr.f32.gmra.mrb[0].mxu0 %v1600
      %v1805 = vpop.f32.mrb[0].mxu0
      %v1806 = vadd.f32 %v1664, %v1805
      %v1807 = vpop.f32.mrb[0].mxu0
      %1808 = vdwg.mxu0
      %s1809 = scalar_lea.vmem [#allocation3], 72
      %v1810 = vld [vmem:[%s1809] sm:$0xff]
      %v1811 = vld [vmem:[%s1809 + $0x8] sm:$0xff]
      %v1812 = vld [vmem:[%s1809 + $0x10] sm:$0xff]
      %v1813 = vadd.f32 %v1810, %v1735
      %v1814 = vxor.u32 %v1813, 2147483648
      %v1815 = vmul.f32 %v1814, 1.442695
      %v1816 = vpow.pop %v1815
      %v1817 = vadd.f32 %v1816, 1.0
      %v1818 = vrcp.pop %v1817
      %v1819 = vmul.f32 1.0, %v1818
      %v1820 = vadd.f32 %v1811, %v1737
      %v1821 = vxor.u32 %v1820, 2147483648
      %v1822 = vmul.f32 %v1821, 1.442695
      %v1823 = vpow.pop %v1822
      %v1824 = vadd.f32 %v1823, 1.0
      %v1825 = vrcp.pop %v1824
      %v1826 = vmul.f32 1.0, %v1825
      %v1827 = vmul.f32 %v1819, %v1806
      %v1828 = vadd.f32 %v1812, %v1827
      %v1829 = vtanh.pop %v1828
      %v1830 = vsub.f32 %v1600, %v1829
      %v1831 = vmul.f32 %v1826, %v1830
      %v1832 = vadd.f32 %v1829, %v1831
      %s1833 = scalar_lea.vmem %s226, 24
      %1834 = vst [vmem:[%s1833] sm:$0xff] %v1832
      %v1835 = vld [vmem:[%s2] sm:$0xff]
      %v1836 = vld [vmem:[%s2 + $0x8] sm:$0xff]
      %v1837 = vld [vmem:[%s2 + $0x10] sm:$0xff]
      %v1838 = vld [vmem:[%s2 + $0x18] sm:$0xff]
      %v1839 = vld [vmem:[%s2 + $0x20] sm:$0xff]
      %v1840 = vld [vmem:[%s2 + $0x28] sm:$0xff]
      %v1841 = vld [vmem:[%s2 + $0x30] sm:$0xff]
      %v1842 = vld [vmem:[%s2 + $0x38] sm:$0xff]
      %v1843 = vld [vmem:[%s2 + $0x40] sm:$0xff]
      %v1844 = vld [vmem:[%s2 + $0x48] sm:$0xff]
      %v1845 = vld [vmem:[%s2 + $0x50] sm:$0xff]
      %v1846 = vld [vmem:[%s2 + $0x58] sm:$0xff]
      %v1847 = vld [vmem:[%s2 + $0x60] sm:$0xff]
      %v1848 = vld [vmem:[%s2 + $0x68] sm:$0xff]
      %v1849 = vld [vmem:[%s2 + $0x70] sm:$0xff]
      %v1850 = vld [vmem:[%s2 + $0x78] sm:$0xff]
      %v1851 = vld [vmem:[%s2 + $0x80] sm:$0xff]
      %v1852 = vld [vmem:[%s2 + $0x88] sm:$0xff]
      %v1853 = vld [vmem:[%s2 + $0x90] sm:$0xff]
      %v1854 = vld [vmem:[%s2 + $0x98] sm:$0xff]
      %v1855 = vld [vmem:[%s2 + $0xa0] sm:$0xff]
      %v1856 = vld [vmem:[%s2 + $0xa8] sm:$0xff]
      %v1857 = vld [vmem:[%s2 + $0xb0] sm:$0xff]
      %v1858 = vld [vmem:[%s2 + $0xb8] sm:$0xff]
      %v1859 = vld [vmem:[%s2 + $0xc0] sm:$0xff]
      %v1860 = vld [vmem:[%s2 + $0xc8] sm:$0xff]
      %v1861 = vld [vmem:[%s2 + $0xd0] sm:$0xff]
      %v1862 = vld [vmem:[%s2 + $0xd8] sm:$0xff]
      %v1863 = vld [vmem:[%s2 + $0xe0] sm:$0xff]
      %v1864 = vld [vmem:[%s2 + $0xe8] sm:$0xff]
      %v1865 = vld [vmem:[%s2 + $0xf0] sm:$0xff]
      %v1866 = vld [vmem:[%s2 + $0xf8] sm:$0xff]
      %v1867 = vld [vmem:[%s2 + $0x100] sm:$0xff]
      %v1868 = vld [vmem:[%s2 + $0x108] sm:$0xff]
      %v1869 = vld [vmem:[%s2 + $0x110] sm:$0xff]
      %v1870 = vld [vmem:[%s2 + $0x118] sm:$0xff]
      %v1871 = vld [vmem:[%s2 + $0x120] sm:$0xff]
      %v1872 = vld [vmem:[%s2 + $0x128] sm:$0xff]
      %v1873 = vld [vmem:[%s2 + $0x130] sm:$0xff]
      %v1874 = vld [vmem:[%s2 + $0x138] sm:$0xff]
      %v1875 = vld [vmem:[%s2 + $0x140] sm:$0xff]
      %v1876 = vld [vmem:[%s2 + $0x148] sm:$0xff]
      %v1877 = vld [vmem:[%s2 + $0x150] sm:$0xff]
      %v1878 = vld [vmem:[%s2 + $0x158] sm:$0xff]
      %v1879 = vld [vmem:[%s2 + $0x160] sm:$0xff]
      %v1880 = vld [vmem:[%s2 + $0x168] sm:$0xff]
      %v1881 = vld [vmem:[%s2 + $0x170] sm:$0xff]
      %v1882 = vld [vmem:[%s2 + $0x178] sm:$0xff]
      %v1883 = vld [vmem:[%s4] sm:$0x7]
      %v1885 = vlaneseq
      %v1886 = vshrl.u32 %v1885, 7
      %v1887 = vsub.s32 0, %v1886
      %v1888 = vrot.slane %v1883, %v1887
      %v1889 = vlaneseq
      %v1890 = vshrl.u32 %v1889, 7
      %v1891 = vsub.s32 1, %v1890
      %v1892 = vrot.slane %v1883, %v1891
      %v1893 = vlaneseq
      %v1894 = vshrl.u32 %v1893, 7
      %v1895 = vsub.s32 2, %v1894
      %v1896 = vrot.slane %v1883, %v1895
      %1900 = vmatprep.subr.mxu0 %v1836
      %1901 = vmatpush1.msra.mxu0 %v1835
      %1902 = vmatprep.subr.mxu0 %v1839
      %1903 = vmatpush1.msra.mxu0 %v1838
      %1904 = vmatprep.subr.mxu0 %v1842
      %1905 = vmatpush1.msra.mxu0 %v1841
      %1906 = vmatprep.subr.mxu0 %v1845
      %1907 = vmatpush1.msra.mxu0 %v1844
      %1908 = vmatprep.subr.mxu0 %v1848
      %1909 = vmatpush1.msra.mxu0 %v1847
      %1910 = vmatprep.subr.mxu0 %v1851
      %1911 = vmatpush1.msra.mxu0 %v1850
      %1912 = vmatprep.subr.mxu0 %v1854
      %1913 = vmatpush1.msra.mxu0 %v1853
      %1914 = vmatprep.subr.mxu0 %v1857
      %1915 = vmatpush1.msra.mxu0 %v1856
      %1916 = vmatprep.subr.mxu0 %v1860
      %1917 = vmatpush1.msra.mxu0 %v1859
      %1918 = vmatprep.subr.mxu0 %v1863
      %1919 = vmatpush1.msra.mxu0 %v1862
      %1920 = vmatprep.subr.mxu0 %v1866
      %1921 = vmatpush1.msra.mxu0 %v1865
      %1922 = vmatprep.subr.mxu0 %v1869
      %1923 = vmatpush1.msra.mxu0 %v1868
      %1924 = vmatprep.subr.mxu0 %v1872
      %1925 = vmatpush1.msra.mxu0 %v1871
      %1926 = vmatprep.subr.mxu0 %v1875
      %1927 = vmatpush1.msra.mxu0 %v1874
      %1928 = vmatprep.subr.mxu0 %v1878
      %1929 = vmatpush1.msra.mxu0 %v1877
      %1930 = vmatprep.subr.mxu0 %v1881
      %1931 = vmatpush1.msra.mxu0 %v1880
      %1932 = vmatprep.subr.mxu0 0.0
      %1933 = vmatpush1.msra.mxu0 0.0
      %1934 = vmatprep.subr.mxu0 0.0
      %1935 = vmatpush1.msra.mxu0 0.0
      %1936 = vmatprep.subr.mxu0 0.0
      %1937 = vmatpush1.msra.mxu0 0.0
      %1938 = vmatprep.subr.mxu0 0.0
      %1939 = vmatpush1.msra.mxu0 0.0
      %1940 = vmatprep.subr.mxu0 0.0
      %1941 = vmatpush1.msra.mxu0 0.0
      %1942 = vmatprep.subr.mxu0 0.0
      %1943 = vmatpush1.msra.mxu0 0.0
      %1944 = vmatprep.subr.mxu0 0.0
      %1945 = vmatpush1.msra.mxu0 0.0
      %1946 = vmatprep.subr.mxu0 0.0
      %1947 = vmatpush1.msra.mxu0 0.0
      %1948 = vmatprep.subr.mxu0 0.0
      %1949 = vmatpush1.msra.mxu0 0.0
      %1950 = vmatprep.subr.mxu0 0.0
      %1951 = vmatpush1.msra.mxu0 0.0
      %1952 = vmatprep.subr.mxu0 0.0
      %1953 = vmatpush1.msra.mxu0 0.0
      %1954 = vmatprep.subr.mxu0 0.0
      %1955 = vmatpush1.msra.mxu0 0.0
      %1956 = vmatprep.subr.mxu0 0.0
      %1957 = vmatpush1.msra.mxu0 0.0
      %1958 = vmatprep.subr.mxu0 0.0
      %1959 = vmatpush1.msra.mxu0 0.0
      %1960 = vmatprep.subr.mxu0 0.0
      %1961 = vmatpush1.msra.mxu0 0.0
      %1962 = vmatprep.subr.mxu0 0.0
      %1963 = vmatpush1.msra.mxu0 0.0
      %1964 = vmatprep.mubr.f32.mxu0 0.0
      %1965 = vmatmul.mubr.f32.gmra.mrb[0].mxu0 %v1832
      %v1966 = vpop.f32.mrb[0].mxu0
      %v1967 = vadd.f32 %v1888, %v1966
      %v1968 = vpop.f32.mrb[0].mxu0
      %v1969 = vadd.f32 %v1892, %v1968
      %1970 = vdwg.mxu0
      %1971 = vmatprep.subr.mxu0 0.0
      %1972 = vmatpush1.msra.mxu0 %v1837
      %1973 = vmatprep.subr.mxu0 0.0
      %1974 = vmatpush1.msra.mxu0 %v1840
      %1975 = vmatprep.subr.mxu0 0.0
      %1976 = vmatpush1.msra.mxu0 %v1843
      %1977 = vmatprep.subr.mxu0 0.0
      %1978 = vmatpush1.msra.mxu0 %v1846
      %1979 = vmatprep.subr.mxu0 0.0
      %1980 = vmatpush1.msra.mxu0 %v1849
      %1981 = vmatprep.subr.mxu0 0.0
      %1982 = vmatpush1.msra.mxu0 %v1852
      %1983 = vmatprep.subr.mxu0 0.0
      %1984 = vmatpush1.msra.mxu0 %v1855
      %1985 = vmatprep.subr.mxu0 0.0
      %1986 = vmatpush1.msra.mxu0 %v1858
      %1987 = vmatprep.subr.mxu0 0.0
      %1988 = vmatpush1.msra.mxu0 %v1861
      %1989 = vmatprep.subr.mxu0 0.0
      %1990 = vmatpush1.msra.mxu0 %v1864
      %1991 = vmatprep.subr.mxu0 0.0
      %1992 = vmatpush1.msra.mxu0 %v1867
      %1993 = vmatprep.subr.mxu0 0.0
      %1994 = vmatpush1.msra.mxu0 %v1870
      %1995 = vmatprep.subr.mxu0 0.0
      %1996 = vmatpush1.msra.mxu0 %v1873
      %1997 = vmatprep.subr.mxu0 0.0
      %1998 = vmatpush1.msra.mxu0 %v1876
      %1999 = vmatprep.subr.mxu0 0.0
      %2000 = vmatpush1.msra.mxu0 %v1879
      %2001 = vmatprep.subr.mxu0 0.0
      %2002 = vmatpush1.msra.mxu0 %v1882
      %2003 = vmatprep.subr.mxu0 0.0
      %2004 = vmatpush1.msra.mxu0 0.0
      %2005 = vmatprep.subr.mxu0 0.0
      %2006 = vmatpush1.msra.mxu0 0.0
      %2007 = vmatprep.subr.mxu0 0.0
      %2008 = vmatpush1.msra.mxu0 0.0
      %2009 = vmatprep.subr.mxu0 0.0
      %2010 = vmatpush1.msra.mxu0 0.0
      %2011 = vmatprep.subr.mxu0 0.0
      %2012 = vmatpush1.msra.mxu0 0.0
      %2013 = vmatprep.subr.mxu0 0.0
      %2014 = vmatpush1.msra.mxu0 0.0
      %2015 = vmatprep.subr.mxu0 0.0
      %2016 = vmatpush1.msra.mxu0 0.0
      %2017 = vmatprep.subr.mxu0 0.0
      %2018 = vmatpush1.msra.mxu0 0.0
      %2019 = vmatprep.subr.mxu0 0.0
      %2020 = vmatpush1.msra.mxu0 0.0
      %2021 = vmatprep.subr.mxu0 0.0
      %2022 = vmatpush1.msra.mxu0 0.0
      %2023 = vmatprep.subr.mxu0 0.0
      %2024 = vmatpush1.msra.mxu0 0.0
      %2025 = vmatprep.subr.mxu0 0.0
      %2026 = vmatpush1.msra.mxu0 0.0
      %2027 = vmatprep.subr.mxu0 0.0
      %2028 = vmatpush1.msra.mxu0 0.0
      %2029 = vmatprep.subr.mxu0 0.0
      %2030 = vmatpush1.msra.mxu0 0.0
      %2031 = vmatprep.subr.mxu0 0.0
      %2032 = vmatpush1.msra.mxu0 0.0
      %2033 = vmatprep.subr.mxu0 0.0
      %2034 = vmatpush1.msra.mxu0 0.0
      %2035 = vmatprep.mubr.f32.mxu0 0.0
      %2036 = vmatmul.mubr.f32.gmra.mrb[0].mxu0 %v1832
      %v2037 = vpop.f32.mrb[0].mxu0
      %v2038 = vadd.f32 %v1896, %v2037
      %v2039 = vpop.f32.mrb[0].mxu0
      %2040 = vdwg.mxu0
      %s2041 = scalar_lea.vmem [#allocation3], 96
      %v2042 = vld [vmem:[%s2041] sm:$0xff]
      %v2043 = vld [vmem:[%s2041 + $0x8] sm:$0xff]
      %v2044 = vld [vmem:[%s2041 + $0x10] sm:$0xff]
      %v2045 = vadd.f32 %v2042, %v1967
      %v2046 = vxor.u32 %v2045, 2147483648
      %v2047 = vmul.f32 %v2046, 1.442695
      %v2048 = vpow.pop %v2047
      %v2049 = vadd.f32 %v2048, 1.0
      %v2050 = vrcp.pop %v2049
      %v2051 = vmul.f32 1.0, %v2050
      %v2052 = vadd.f32 %v2043, %v1969
      %v2053 = vxor.u32 %v2052, 2147483648
      %v2054 = vmul.f32 %v2053, 1.442695
      %v2055 = vpow.pop %v2054
      %v2056 = vadd.f32 %v2055, 1.0
      %v2057 = vrcp.pop %v2056
      %v2058 = vmul.f32 1.0, %v2057
      %v2059 = vmul.f32 %v2051, %v2038
      %v2060 = vadd.f32 %v2044, %v2059
      %v2061 = vtanh.pop %v2060
      %v2062 = vsub.f32 %v1832, %v2061
      %v2063 = vmul.f32 %v2058, %v2062
      %v2064 = vadd.f32 %v2061, %v2063
      %s2065 = scalar_lea.vmem %s226, 32
      %2066 = vst [vmem:[%s2065] sm:$0xff] %v2064
      %v2067 = vld [vmem:[%s2] sm:$0xff]
      %v2068 = vld [vmem:[%s2 + $0x8] sm:$0xff]
      %v2069 = vld [vmem:[%s2 + $0x10] sm:$0xff]
      %v2070 = vld [vmem:[%s2 + $0x18] sm:$0xff]
      %v2071 = vld [vmem:[%s2 + $0x20] sm:$0xff]
      %v2072 = vld [vmem:[%s2 + $0x28] sm:$0xff]
      %v2073 = vld [vmem:[%s2 + $0x30] sm:$0xff]
      %v2074 = vld [vmem:[%s2 + $0x38] sm:$0xff]
      %v2075 = vld [vmem:[%s2 + $0x40] sm:$0xff]
      %v2076 = vld [vmem:[%s2 + $0x48] sm:$0xff]
      %v2077 = vld [vmem:[%s2 + $0x50] sm:$0xff]
      %v2078 = vld [vmem:[%s2 + $0x58] sm:$0xff]
      %v2079 = vld [vmem:[%s2 + $0x60] sm:$0xff]
      %v2080 = vld [vmem:[%s2 + $0x68] sm:$0xff]
      %v2081 = vld [vmem:[%s2 + $0x70] sm:$0xff]
      %v2082 = vld [vmem:[%s2 + $0x78] sm:$0xff]
      %v2083 = vld [vmem:[%s2 + $0x80] sm:$0xff]
      %v2084 = vld [vmem:[%s2 + $0x88] sm:$0xff]
      %v2085 = vld [vmem:[%s2 + $0x90] sm:$0xff]
      %v2086 = vld [vmem:[%s2 + $0x98] sm:$0xff]
      %v2087 = vld [vmem:[%s2 + $0xa0] sm:$0xff]
      %v2088 = vld [vmem:[%s2 + $0xa8] sm:$0xff]
      %v2089 = vld [vmem:[%s2 + $0xb0] sm:$0xff]
      %v2090 = vld [vmem:[%s2 + $0xb8] sm:$0xff]
      %v2091 = vld [vmem:[%s2 + $0xc0] sm:$0xff]
      %v2092 = vld [vmem:[%s2 + $0xc8] sm:$0xff]
      %v2093 = vld [vmem:[%s2 + $0xd0] sm:$0xff]
      %v2094 = vld [vmem:[%s2 + $0xd8] sm:$0xff]
      %v2095 = vld [vmem:[%s2 + $0xe0] sm:$0xff]
      %v2096 = vld [vmem:[%s2 + $0xe8] sm:$0xff]
      %v2097 = vld [vmem:[%s2 + $0xf0] sm:$0xff]
      %v2098 = vld [vmem:[%s2 + $0xf8] sm:$0xff]
      %v2099 = vld [vmem:[%s2 + $0x100] sm:$0xff]
      %v2100 = vld [vmem:[%s2 + $0x108] sm:$0xff]
      %v2101 = vld [vmem:[%s2 + $0x110] sm:$0xff]
      %v2102 = vld [vmem:[%s2 + $0x118] sm:$0xff]
      %v2103 = vld [vmem:[%s2 + $0x120] sm:$0xff]
      %v2104 = vld [vmem:[%s2 + $0x128] sm:$0xff]
      %v2105 = vld [vmem:[%s2 + $0x130] sm:$0xff]
      %v2106 = vld [vmem:[%s2 + $0x138] sm:$0xff]
      %v2107 = vld [vmem:[%s2 + $0x140] sm:$0xff]
      %v2108 = vld [vmem:[%s2 + $0x148] sm:$0xff]
      %v2109 = vld [vmem:[%s2 + $0x150] sm:$0xff]
      %v2110 = vld [vmem:[%s2 + $0x158] sm:$0xff]
      %v2111 = vld [vmem:[%s2 + $0x160] sm:$0xff]
      %v2112 = vld [vmem:[%s2 + $0x168] sm:$0xff]
      %v2113 = vld [vmem:[%s2 + $0x170] sm:$0xff]
      %v2114 = vld [vmem:[%s2 + $0x178] sm:$0xff]
      %v2115 = vld [vmem:[%s4] sm:$0x7]
      %v2117 = vlaneseq
      %v2118 = vshrl.u32 %v2117, 7
      %v2119 = vsub.s32 0, %v2118
      %v2120 = vrot.slane %v2115, %v2119
      %v2121 = vlaneseq
      %v2122 = vshrl.u32 %v2121, 7
      %v2123 = vsub.s32 1, %v2122
      %v2124 = vrot.slane %v2115, %v2123
      %v2125 = vlaneseq
      %v2126 = vshrl.u32 %v2125, 7
      %v2127 = vsub.s32 2, %v2126
      %v2128 = vrot.slane %v2115, %v2127
      %2132 = vmatprep.subr.mxu0 %v2068
      %2133 = vmatpush1.msra.mxu0 %v2067
      %2134 = vmatprep.subr.mxu0 %v2071
      %2135 = vmatpush1.msra.mxu0 %v2070
      %2136 = vmatprep.subr.mxu0 %v2074
      %2137 = vmatpush1.msra.mxu0 %v2073
      %2138 = vmatprep.subr.mxu0 %v2077
      %2139 = vmatpush1.msra.mxu0 %v2076
      %2140 = vmatprep.subr.mxu0 %v2080
      %2141 = vmatpush1.msra.mxu0 %v2079
      %2142 = vmatprep.subr.mxu0 %v2083
      %2143 = vmatpush1.msra.mxu0 %v2082
      %2144 = vmatprep.subr.mxu0 %v2086
      %2145 = vmatpush1.msra.mxu0 %v2085
      %2146 = vmatprep.subr.mxu0 %v2089
      %2147 = vmatpush1.msra.mxu0 %v2088
      %2148 = vmatprep.subr.mxu0 %v2092
      %2149 = vmatpush1.msra.mxu0 %v2091
      %2150 = vmatprep.subr.mxu0 %v2095
      %2151 = vmatpush1.msra.mxu0 %v2094
      %2152 = vmatprep.subr.mxu0 %v2098
      %2153 = vmatpush1.msra.mxu0 %v2097
      %2154 = vmatprep.subr.mxu0 %v2101
      %2155 = vmatpush1.msra.mxu0 %v2100
      %2156 = vmatprep.subr.mxu0 %v2104
      %2157 = vmatpush1.msra.mxu0 %v2103
      %2158 = vmatprep.subr.mxu0 %v2107
      %2159 = vmatpush1.msra.mxu0 %v2106
      %2160 = vmatprep.subr.mxu0 %v2110
      %2161 = vmatpush1.msra.mxu0 %v2109
      %2162 = vmatprep.subr.mxu0 %v2113
      %2163 = vmatpush1.msra.mxu0 %v2112
      %2164 = vmatprep.subr.mxu0 0.0
      %2165 = vmatpush1.msra.mxu0 0.0
      %2166 = vmatprep.subr.mxu0 0.0
      %2167 = vmatpush1.msra.mxu0 0.0
      %2168 = vmatprep.subr.mxu0 0.0
      %2169 = vmatpush1.msra.mxu0 0.0
      %2170 = vmatprep.subr.mxu0 0.0
      %2171 = vmatpush1.msra.mxu0 0.0
      %2172 = vmatprep.subr.mxu0 0.0
      %2173 = vmatpush1.msra.mxu0 0.0
      %2174 = vmatprep.subr.mxu0 0.0
      %2175 = vmatpush1.msra.mxu0 0.0
      %2176 = vmatprep.subr.mxu0 0.0
      %2177 = vmatpush1.msra.mxu0 0.0
      %2178 = vmatprep.subr.mxu0 0.0
      %2179 = vmatpush1.msra.mxu0 0.0
      %2180 = vmatprep.subr.mxu0 0.0
      %2181 = vmatpush1.msra.mxu0 0.0
      %2182 = vmatprep.subr.mxu0 0.0
      %2183 = vmatpush1.msra.mxu0 0.0
      %2184 = vmatprep.subr.mxu0 0.0
      %2185 = vmatpush1.msra.mxu0 0.0
      %2186 = vmatprep.subr.mxu0 0.0
      %2187 = vmatpush1.msra.mxu0 0.0
      %2188 = vmatprep.subr.mxu0 0.0
      %2189 = vmatpush1.msra.mxu0 0.0
      %2190 = vmatprep.subr.mxu0 0.0
      %2191 = vmatpush1.msra.mxu0 0.0
      %2192 = vmatprep.subr.mxu0 0.0
      %2193 = vmatpush1.msra.mxu0 0.0
      %2194 = vmatprep.subr.mxu0 0.0
      %2195 = vmatpush1.msra.mxu0 0.0
      %2196 = vmatprep.mubr.f32.mxu0 0.0
      %2197 = vmatmul.mubr.f32.gmra.mrb[0].mxu0 %v2064
      %v2198 = vpop.f32.mrb[0].mxu0
      %v2199 = vadd.f32 %v2120, %v2198
      %v2200 = vpop.f32.mrb[0].mxu0
      %v2201 = vadd.f32 %v2124, %v2200
      %2202 = vdwg.mxu0
      %2203 = vmatprep.subr.mxu0 0.0
      %2204 = vmatpush1.msra.mxu0 %v2069
      %2205 = vmatprep.subr.mxu0 0.0
      %2206 = vmatpush1.msra.mxu0 %v2072
      %2207 = vmatprep.subr.mxu0 0.0
      %2208 = vmatpush1.msra.mxu0 %v2075
      %2209 = vmatprep.subr.mxu0 0.0
      %2210 = vmatpush1.msra.mxu0 %v2078
      %2211 = vmatprep.subr.mxu0 0.0
      %2212 = vmatpush1.msra.mxu0 %v2081
      %2213 = vmatprep.subr.mxu0 0.0
      %2214 = vmatpush1.msra.mxu0 %v2084
      %2215 = vmatprep.subr.mxu0 0.0
      %2216 = vmatpush1.msra.mxu0 %v2087
      %2217 = vmatprep.subr.mxu0 0.0
      %2218 = vmatpush1.msra.mxu0 %v2090
      %2219 = vmatprep.subr.mxu0 0.0
      %2220 = vmatpush1.msra.mxu0 %v2093
      %2221 = vmatprep.subr.mxu0 0.0
      %2222 = vmatpush1.msra.mxu0 %v2096
      %2223 = vmatprep.subr.mxu0 0.0
      %2224 = vmatpush1.msra.mxu0 %v2099
      %2225 = vmatprep.subr.mxu0 0.0
      %2226 = vmatpush1.msra.mxu0 %v2102
      %2227 = vmatprep.subr.mxu0 0.0
      %2228 = vmatpush1.msra.mxu0 %v2105
      %2229 = vmatprep.subr.mxu0 0.0
      %2230 = vmatpush1.msra.mxu0 %v2108
      %2231 = vmatprep.subr.mxu0 0.0
      %2232 = vmatpush1.msra.mxu0 %v2111
      %2233 = vmatprep.subr.mxu0 0.0
      %2234 = vmatpush1.msra.mxu0 %v2114
      %2235 = vmatprep.subr.mxu0 0.0
      %2236 = vmatpush1.msra.mxu0 0.0
      %2237 = vmatprep.subr.mxu0 0.0
      %2238 = vmatpush1.msra.mxu0 0.0
      %2239 = vmatprep.subr.mxu0 0.0
      %2240 = vmatpush1.msra.mxu0 0.0
      %2241 = vmatprep.subr.mxu0 0.0
      %2242 = vmatpush1.msra.mxu0 0.0
      %2243 = vmatprep.subr.mxu0 0.0
      %2244 = vmatpush1.msra.mxu0 0.0
      %2245 = vmatprep.subr.mxu0 0.0
      %2246 = vmatpush1.msra.mxu0 0.0
      %2247 = vmatprep.subr.mxu0 0.0
      %2248 = vmatpush1.msra.mxu0 0.0
      %2249 = vmatprep.subr.mxu0 0.0
      %2250 = vmatpush1.msra.mxu0 0.0
      %2251 = vmatprep.subr.mxu0 0.0
      %2252 = vmatpush1.msra.mxu0 0.0
      %2253 = vmatprep.subr.mxu0 0.0
      %2254 = vmatpush1.msra.mxu0 0.0
      %2255 = vmatprep.subr.mxu0 0.0
      %2256 = vmatpush1.msra.mxu0 0.0
      %2257 = vmatprep.subr.mxu0 0.0
      %2258 = vmatpush1.msra.mxu0 0.0
      %2259 = vmatprep.subr.mxu0 0.0
      %2260 = vmatpush1.msra.mxu0 0.0
      %2261 = vmatprep.subr.mxu0 0.0
      %2262 = vmatpush1.msra.mxu0 0.0
      %2263 = vmatprep.subr.mxu0 0.0
      %2264 = vmatpush1.msra.mxu0 0.0
      %2265 = vmatprep.subr.mxu0 0.0
      %2266 = vmatpush1.msra.mxu0 0.0
      %2267 = vmatprep.mubr.f32.mxu0 0.0
      %2268 = vmatmul.mubr.f32.gmra.mrb[0].mxu0 %v2064
      %v2269 = vpop.f32.mrb[0].mxu0
      %v2270 = vadd.f32 %v2128, %v2269
      %v2271 = vpop.f32.mrb[0].mxu0
      %2272 = vdwg.mxu0
      %s2273 = scalar_lea.vmem [#allocation3], 120
      %v2274 = vld [vmem:[%s2273] sm:$0xff]
      %v2275 = vld [vmem:[%s2273 + $0x8] sm:$0xff]
      %v2276 = vld [vmem:[%s2273 + $0x10] sm:$0xff]
      %v2277 = vadd.f32 %v2274, %v2199
      %v2278 = vxor.u32 %v2277, 2147483648
      %v2279 = vmul.f32 %v2278, 1.442695
      %v2280 = vpow.pop %v2279
      %v2281 = vadd.f32 %v2280, 1.0
      %v2282 = vrcp.pop %v2281
      %v2283 = vmul.f32 1.0, %v2282
      %v2284 = vadd.f32 %v2275, %v2201
      %v2285 = vxor.u32 %v2284, 2147483648
      %v2286 = vmul.f32 %v2285, 1.442695
      %v2287 = vpow.pop %v2286
      %v2288 = vadd.f32 %v2287, 1.0
      %v2289 = vrcp.pop %v2288
      %v2290 = vmul.f32 1.0, %v2289
      %v2291 = vmul.f32 %v2283, %v2270
      %v2292 = vadd.f32 %v2276, %v2291
      %v2293 = vtanh.pop %v2292
      %v2294 = vsub.f32 %v2064, %v2293
      %v2295 = vmul.f32 %v2290, %v2294
      %v2296 = vadd.f32 %v2293, %v2295
      %s2297 = scalar_lea.vmem %s226, 40
      %2298 = vst [vmem:[%s2297] sm:$0xff] %v2296
      %v2299 = vld [vmem:[%s2] sm:$0xff]
      %v2300 = vld [vmem:[%s2 + $0x8] sm:$0xff]
      %v2301 = vld [vmem:[%s2 + $0x10] sm:$0xff]
      %v2302 = vld [vmem:[%s2 + $0x18] sm:$0xff]
      %v2303 = vld [vmem:[%s2 + $0x20] sm:$0xff]
      %v2304 = vld [vmem:[%s2 + $0x28] sm:$0xff]
      %v2305 = vld [vmem:[%s2 + $0x30] sm:$0xff]
      %v2306 = vld [vmem:[%s2 + $0x38] sm:$0xff]
      %v2307 = vld [vmem:[%s2 + $0x40] sm:$0xff]
      %v2308 = vld [vmem:[%s2 + $0x48] sm:$0xff]
      %v2309 = vld [vmem:[%s2 + $0x50] sm:$0xff]
      %v2310 = vld [vmem:[%s2 + $0x58] sm:$0xff]
      %v2311 = vld [vmem:[%s2 + $0x60] sm:$0xff]
      %v2312 = vld [vmem:[%s2 + $0x68] sm:$0xff]
      %v2313 = vld [vmem:[%s2 + $0x70] sm:$0xff]
      %v2314 = vld [vmem:[%s2 + $0x78] sm:$0xff]
      %v2315 = vld [vmem:[%s2 + $0x80] sm:$0xff]
      %v2316 = vld [vmem:[%s2 + $0x88] sm:$0xff]
      %v2317 = vld [vmem:[%s2 + $0x90] sm:$0xff]
      %v2318 = vld [vmem:[%s2 + $0x98] sm:$0xff]
      %v2319 = vld [vmem:[%s2 + $0xa0] sm:$0xff]
      %v2320 = vld [vmem:[%s2 + $0xa8] sm:$0xff]
      %v2321 = vld [vmem:[%s2 + $0xb0] sm:$0xff]
      %v2322 = vld [vmem:[%s2 + $0xb8] sm:$0xff]
      %v2323 = vld [vmem:[%s2 + $0xc0] sm:$0xff]
      %v2324 = vld [vmem:[%s2 + $0xc8] sm:$0xff]
      %v2325 = vld [vmem:[%s2 + $0xd0] sm:$0xff]
      %v2326 = vld [vmem:[%s2 + $0xd8] sm:$0xff]
      %v2327 = vld [vmem:[%s2 + $0xe0] sm:$0xff]
      %v2328 = vld [vmem:[%s2 + $0xe8] sm:$0xff]
      %v2329 = vld [vmem:[%s2 + $0xf0] sm:$0xff]
      %v2330 = vld [vmem:[%s2 + $0xf8] sm:$0xff]
      %v2331 = vld [vmem:[%s2 + $0x100] sm:$0xff]
      %v2332 = vld [vmem:[%s2 + $0x108] sm:$0xff]
      %v2333 = vld [vmem:[%s2 + $0x110] sm:$0xff]
      %v2334 = vld [vmem:[%s2 + $0x118] sm:$0xff]
      %v2335 = vld [vmem:[%s2 + $0x120] sm:$0xff]
      %v2336 = vld [vmem:[%s2 + $0x128] sm:$0xff]
      %v2337 = vld [vmem:[%s2 + $0x130] sm:$0xff]
      %v2338 = vld [vmem:[%s2 + $0x138] sm:$0xff]
      %v2339 = vld [vmem:[%s2 + $0x140] sm:$0xff]
      %v2340 = vld [vmem:[%s2 + $0x148] sm:$0xff]
      %v2341 = vld [vmem:[%s2 + $0x150] sm:$0xff]
      %v2342 = vld [vmem:[%s2 + $0x158] sm:$0xff]
      %v2343 = vld [vmem:[%s2 + $0x160] sm:$0xff]
      %v2344 = vld [vmem:[%s2 + $0x168] sm:$0xff]
      %v2345 = vld [vmem:[%s2 + $0x170] sm:$0xff]
      %v2346 = vld [vmem:[%s2 + $0x178] sm:$0xff]
      %v2347 = vld [vmem:[%s4] sm:$0x7]
      %v2349 = vlaneseq
      %v2350 = vshrl.u32 %v2349, 7
      %v2351 = vsub.s32 0, %v2350
      %v2352 = vrot.slane %v2347, %v2351
      %v2353 = vlaneseq
      %v2354 = vshrl.u32 %v2353, 7
      %v2355 = vsub.s32 1, %v2354
      %v2356 = vrot.slane %v2347, %v2355
      %v2357 = vlaneseq
      %v2358 = vshrl.u32 %v2357, 7
      %v2359 = vsub.s32 2, %v2358
      %v2360 = vrot.slane %v2347, %v2359
      %2364 = vmatprep.subr.mxu0 %v2300
      %2365 = vmatpush1.msra.mxu0 %v2299
      %2366 = vmatprep.subr.mxu0 %v2303
      %2367 = vmatpush1.msra.mxu0 %v2302
      %2368 = vmatprep.subr.mxu0 %v2306
      %2369 = vmatpush1.msra.mxu0 %v2305
      %2370 = vmatprep.subr.mxu0 %v2309
      %2371 = vmatpush1.msra.mxu0 %v2308
      %2372 = vmatprep.subr.mxu0 %v2312
      %2373 = vmatpush1.msra.mxu0 %v2311
      %2374 = vmatprep.subr.mxu0 %v2315
      %2375 = vmatpush1.msra.mxu0 %v2314
      %2376 = vmatprep.subr.mxu0 %v2318
      %2377 = vmatpush1.msra.mxu0 %v2317
      %2378 = vmatprep.subr.mxu0 %v2321
      %2379 = vmatpush1.msra.mxu0 %v2320
      %2380 = vmatprep.subr.mxu0 %v2324
      %2381 = vmatpush1.msra.mxu0 %v2323
      %2382 = vmatprep.subr.mxu0 %v2327
      %2383 = vmatpush1.msra.mxu0 %v2326
      %2384 = vmatprep.subr.mxu0 %v2330
      %2385 = vmatpush1.msra.mxu0 %v2329
      %2386 = vmatprep.subr.mxu0 %v2333
      %2387 = vmatpush1.msra.mxu0 %v2332
      %2388 = vmatprep.subr.mxu0 %v2336
      %2389 = vmatpush1.msra.mxu0 %v2335
      %2390 = vmatprep.subr.mxu0 %v2339
      %2391 = vmatpush1.msra.mxu0 %v2338
      %2392 = vmatprep.subr.mxu0 %v2342
      %2393 = vmatpush1.msra.mxu0 %v2341
      %2394 = vmatprep.subr.mxu0 %v2345
      %2395 = vmatpush1.msra.mxu0 %v2344
      %2396 = vmatprep.subr.mxu0 0.0
      %2397 = vmatpush1.msra.mxu0 0.0
      %2398 = vmatprep.subr.mxu0 0.0
      %2399 = vmatpush1.msra.mxu0 0.0
      %2400 = vmatprep.subr.mxu0 0.0
      %2401 = vmatpush1.msra.mxu0 0.0
      %2402 = vmatprep.subr.mxu0 0.0
      %2403 = vmatpush1.msra.mxu0 0.0
      %2404 = vmatprep.subr.mxu0 0.0
      %2405 = vmatpush1.msra.mxu0 0.0
      %2406 = vmatprep.subr.mxu0 0.0
      %2407 = vmatpush1.msra.mxu0 0.0
      %2408 = vmatprep.subr.mxu0 0.0
      %2409 = vmatpush1.msra.mxu0 0.0
      %2410 = vmatprep.subr.mxu0 0.0
      %2411 = vmatpush1.msra.mxu0 0.0
      %2412 = vmatprep.subr.mxu0 0.0
      %2413 = vmatpush1.msra.mxu0 0.0
      %2414 = vmatprep.subr.mxu0 0.0
      %2415 = vmatpush1.msra.mxu0 0.0
      %2416 = vmatprep.subr.mxu0 0.0
      %2417 = vmatpush1.msra.mxu0 0.0
      %2418 = vmatprep.subr.mxu0 0.0
      %2419 = vmatpush1.msra.mxu0 0.0
      %2420 = vmatprep.subr.mxu0 0.0
      %2421 = vmatpush1.msra.mxu0 0.0
      %2422 = vmatprep.subr.mxu0 0.0
      %2423 = vmatpush1.msra.mxu0 0.0
      %2424 = vmatprep.subr.mxu0 0.0
      %2425 = vmatpush1.msra.mxu0 0.0
      %2426 = vmatprep.subr.mxu0 0.0
      %2427 = vmatpush1.msra.mxu0 0.0
      %2428 = vmatprep.mubr.f32.mxu0 0.0
      %2429 = vmatmul.mubr.f32.gmra.mrb[0].mxu0 %v2296
      %v2430 = vpop.f32.mrb[0].mxu0
      %v2431 = vadd.f32 %v2352, %v2430
      %v2432 = vpop.f32.mrb[0].mxu0
      %v2433 = vadd.f32 %v2356, %v2432
      %2434 = vdwg.mxu0
      %2435 = vmatprep.subr.mxu0 0.0
      %2436 = vmatpush1.msra.mxu0 %v2301
      %2437 = vmatprep.subr.mxu0 0.0
      %2438 = vmatpush1.msra.mxu0 %v2304
      %2439 = vmatprep.subr.mxu0 0.0
      %2440 = vmatpush1.msra.mxu0 %v2307
      %2441 = vmatprep.subr.mxu0 0.0
      %2442 = vmatpush1.msra.mxu0 %v2310
      %2443 = vmatprep.subr.mxu0 0.0
      %2444 = vmatpush1.msra.mxu0 %v2313
      %2445 = vmatprep.subr.mxu0 0.0
      %2446 = vmatpush1.msra.mxu0 %v2316
      %2447 = vmatprep.subr.mxu0 0.0
      %2448 = vmatpush1.msra.mxu0 %v2319
      %2449 = vmatprep.subr.mxu0 0.0
      %2450 = vmatpush1.msra.mxu0 %v2322
      %2451 = vmatprep.subr.mxu0 0.0
      %2452 = vmatpush1.msra.mxu0 %v2325
      %2453 = vmatprep.subr.mxu0 0.0
      %2454 = vmatpush1.msra.mxu0 %v2328
      %2455 = vmatprep.subr.mxu0 0.0
      %2456 = vmatpush1.msra.mxu0 %v2331
      %2457 = vmatprep.subr.mxu0 0.0
      %2458 = vmatpush1.msra.mxu0 %v2334
      %2459 = vmatprep.subr.mxu0 0.0
      %2460 = vmatpush1.msra.mxu0 %v2337
      %2461 = vmatprep.subr.mxu0 0.0
      %2462 = vmatpush1.msra.mxu0 %v2340
      %2463 = vmatprep.subr.mxu0 0.0
      %2464 = vmatpush1.msra.mxu0 %v2343
      %2465 = vmatprep.subr.mxu0 0.0
      %2466 = vmatpush1.msra.mxu0 %v2346
      %2467 = vmatprep.subr.mxu0 0.0
      %2468 = vmatpush1.msra.mxu0 0.0
      %2469 = vmatprep.subr.mxu0 0.0
      %2470 = vmatpush1.msra.mxu0 0.0
      %2471 = vmatprep.subr.mxu0 0.0
      %2472 = vmatpush1.msra.mxu0 0.0
      %2473 = vmatprep.subr.mxu0 0.0
      %2474 = vmatpush1.msra.mxu0 0.0
      %2475 = vmatprep.subr.mxu0 0.0
      %2476 = vmatpush1.msra.mxu0 0.0
      %2477 = vmatprep.subr.mxu0 0.0
      %2478 = vmatpush1.msra.mxu0 0.0
      %2479 = vmatprep.subr.mxu0 0.0
      %2480 = vmatpush1.msra.mxu0 0.0
      %2481 = vmatprep.subr.mxu0 0.0
      %2482 = vmatpush1.msra.mxu0 0.0
      %2483 = vmatprep.subr.mxu0 0.0
      %2484 = vmatpush1.msra.mxu0 0.0
      %2485 = vmatprep.subr.mxu0 0.0
      %2486 = vmatpush1.msra.mxu0 0.0
      %2487 = vmatprep.subr.mxu0 0.0
      %2488 = vmatpush1.msra.mxu0 0.0
      %2489 = vmatprep.subr.mxu0 0.0
      %2490 = vmatpush1.msra.mxu0 0.0
      %2491 = vmatprep.subr.mxu0 0.0
      %2492 = vmatpush1.msra.mxu0 0.0
      %2493 = vmatprep.subr.mxu0 0.0
      %2494 = vmatpush1.msra.mxu0 0.0
      %2495 = vmatprep.subr.mxu0 0.0
      %2496 = vmatpush1.msra.mxu0 0.0
      %2497 = vmatprep.subr.mxu0 0.0
      %2498 = vmatpush1.msra.mxu0 0.0
      %2499 = vmatprep.mubr.f32.mxu0 0.0
      %2500 = vmatmul.mubr.f32.gmra.mrb[0].mxu0 %v2296
      %v2501 = vpop.f32.mrb[0].mxu0
      %v2502 = vadd.f32 %v2360, %v2501
      %v2503 = vpop.f32.mrb[0].mxu0
      %2504 = vdwg.mxu0
      %s2505 = scalar_lea.vmem [#allocation3], 144
      %v2506 = vld [vmem:[%s2505] sm:$0xff]
      %v2507 = vld [vmem:[%s2505 + $0x8] sm:$0xff]
      %v2508 = vld [vmem:[%s2505 + $0x10] sm:$0xff]
      %v2509 = vadd.f32 %v2506, %v2431
      %v2510 = vxor.u32 %v2509, 2147483648
      %v2511 = vmul.f32 %v2510, 1.442695
      %v2512 = vpow.pop %v2511
      %v2513 = vadd.f32 %v2512, 1.0
      %v2514 = vrcp.pop %v2513
      %v2515 = vmul.f32 1.0, %v2514
      %v2516 = vadd.f32 %v2507, %v2433
      %v2517 = vxor.u32 %v2516, 2147483648
      %v2518 = vmul.f32 %v2517, 1.442695
      %v2519 = vpow.pop %v2518
      %v2520 = vadd.f32 %v2519, 1.0
      %v2521 = vrcp.pop %v2520
      %v2522 = vmul.f32 1.0, %v2521
      %v2523 = vmul.f32 %v2515, %v2502
      %v2524 = vadd.f32 %v2508, %v2523
      %v2525 = vtanh.pop %v2524
      %v2526 = vsub.f32 %v2296, %v2525
      %v2527 = vmul.f32 %v2522, %v2526
      %v2528 = vadd.f32 %v2525, %v2527
      %s2529 = scalar_lea.vmem %s226, 48
      %2530 = vst [vmem:[%s2529] sm:$0xff] %v2528
      %v2531 = vld [vmem:[%s2] sm:$0xff]
      %v2532 = vld [vmem:[%s2 + $0x8] sm:$0xff]
      %v2533 = vld [vmem:[%s2 + $0x10] sm:$0xff]
      %v2534 = vld [vmem:[%s2 + $0x18] sm:$0xff]
      %v2535 = vld [vmem:[%s2 + $0x20] sm:$0xff]
      %v2536 = vld [vmem:[%s2 + $0x28] sm:$0xff]
      %v2537 = vld [vmem:[%s2 + $0x30] sm:$0xff]
      %v2538 = vld [vmem:[%s2 + $0x38] sm:$0xff]
      %v2539 = vld [vmem:[%s2 + $0x40] sm:$0xff]
      %v2540 = vld [vmem:[%s2 + $0x48] sm:$0xff]
      %v2541 = vld [vmem:[%s2 + $0x50] sm:$0xff]
      %v2542 = vld [vmem:[%s2 + $0x58] sm:$0xff]
      %v2543 = vld [vmem:[%s2 + $0x60] sm:$0xff]
      %v2544 = vld [vmem:[%s2 + $0x68] sm:$0xff]
      %v2545 = vld [vmem:[%s2 + $0x70] sm:$0xff]
      %v2546 = vld [vmem:[%s2 + $0x78] sm:$0xff]
      %v2547 = vld [vmem:[%s2 + $0x80] sm:$0xff]
      %v2548 = vld [vmem:[%s2 + $0x88] sm:$0xff]
      %v2549 = vld [vmem:[%s2 + $0x90] sm:$0xff]
      %v2550 = vld [vmem:[%s2 + $0x98] sm:$0xff]
      %v2551 = vld [vmem:[%s2 + $0xa0] sm:$0xff]
      %v2552 = vld [vmem:[%s2 + $0xa8] sm:$0xff]
      %v2553 = vld [vmem:[%s2 + $0xb0] sm:$0xff]
      %v2554 = vld [vmem:[%s2 + $0xb8] sm:$0xff]
      %v2555 = vld [vmem:[%s2 + $0xc0] sm:$0xff]
      %v2556 = vld [vmem:[%s2 + $0xc8] sm:$0xff]
      %v2557 = vld [vmem:[%s2 + $0xd0] sm:$0xff]
      %v2558 = vld [vmem:[%s2 + $0xd8] sm:$0xff]
      %v2559 = vld [vmem:[%s2 + $0xe0] sm:$0xff]
      %v2560 = vld [vmem:[%s2 + $0xe8] sm:$0xff]
      %v2561 = vld [vmem:[%s2 + $0xf0] sm:$0xff]
      %v2562 = vld [vmem:[%s2 + $0xf8] sm:$0xff]
      %v2563 = vld [vmem:[%s2 + $0x100] sm:$0xff]
      %v2564 = vld [vmem:[%s2 + $0x108] sm:$0xff]
      %v2565 = vld [vmem:[%s2 + $0x110] sm:$0xff]
      %v2566 = vld [vmem:[%s2 + $0x118] sm:$0xff]
      %v2567 = vld [vmem:[%s2 + $0x120] sm:$0xff]
      %v2568 = vld [vmem:[%s2 + $0x128] sm:$0xff]
      %v2569 = vld [vmem:[%s2 + $0x130] sm:$0xff]
      %v2570 = vld [vmem:[%s2 + $0x138] sm:$0xff]
      %v2571 = vld [vmem:[%s2 + $0x140] sm:$0xff]
      %v2572 = vld [vmem:[%s2 + $0x148] sm:$0xff]
      %v2573 = vld [vmem:[%s2 + $0x150] sm:$0xff]
      %v2574 = vld [vmem:[%s2 + $0x158] sm:$0xff]
      %v2575 = vld [vmem:[%s2 + $0x160] sm:$0xff]
      %v2576 = vld [vmem:[%s2 + $0x168] sm:$0xff]
      %v2577 = vld [vmem:[%s2 + $0x170] sm:$0xff]
      %v2578 = vld [vmem:[%s2 + $0x178] sm:$0xff]
      %v2579 = vld [vmem:[%s4] sm:$0x7]
      %v2581 = vlaneseq
      %v2582 = vshrl.u32 %v2581, 7
      %v2583 = vsub.s32 0, %v2582
      %v2584 = vrot.slane %v2579, %v2583
      %v2585 = vlaneseq
      %v2586 = vshrl.u32 %v2585, 7
      %v2587 = vsub.s32 1, %v2586
      %v2588 = vrot.slane %v2579, %v2587
      %v2589 = vlaneseq
      %v2590 = vshrl.u32 %v2589, 7
      %v2591 = vsub.s32 2, %v2590
      %v2592 = vrot.slane %v2579, %v2591
      %2596 = vmatprep.subr.mxu0 %v2532
      %2597 = vmatpush1.msra.mxu0 %v2531
      %2598 = vmatprep.subr.mxu0 %v2535
      %2599 = vmatpush1.msra.mxu0 %v2534
      %2600 = vmatprep.subr.mxu0 %v2538
      %2601 = vmatpush1.msra.mxu0 %v2537
      %2602 = vmatprep.subr.mxu0 %v2541
      %2603 = vmatpush1.msra.mxu0 %v2540
      %2604 = vmatprep.subr.mxu0 %v2544
      %2605 = vmatpush1.msra.mxu0 %v2543
      %2606 = vmatprep.subr.mxu0 %v2547
      %2607 = vmatpush1.msra.mxu0 %v2546
      %2608 = vmatprep.subr.mxu0 %v2550
      %2609 = vmatpush1.msra.mxu0 %v2549
      %2610 = vmatprep.subr.mxu0 %v2553
      %2611 = vmatpush1.msra.mxu0 %v2552
      %2612 = vmatprep.subr.mxu0 %v2556
      %2613 = vmatpush1.msra.mxu0 %v2555
      %2614 = vmatprep.subr.mxu0 %v2559
      %2615 = vmatpush1.msra.mxu0 %v2558
      %2616 = vmatprep.subr.mxu0 %v2562
      %2617 = vmatpush1.msra.mxu0 %v2561
      %2618 = vmatprep.subr.mxu0 %v2565
      %2619 = vmatpush1.msra.mxu0 %v2564
      %2620 = vmatprep.subr.mxu0 %v2568
      %2621 = vmatpush1.msra.mxu0 %v2567
      %2622 = vmatprep.subr.mxu0 %v2571
      %2623 = vmatpush1.msra.mxu0 %v2570
      %2624 = vmatprep.subr.mxu0 %v2574
      %2625 = vmatpush1.msra.mxu0 %v2573
      %2626 = vmatprep.subr.mxu0 %v2577
      %2627 = vmatpush1.msra.mxu0 %v2576
      %2628 = vmatprep.subr.mxu0 0.0
      %2629 = vmatpush1.msra.mxu0 0.0
      %2630 = vmatprep.subr.mxu0 0.0
      %2631 = vmatpush1.msra.mxu0 0.0
      %2632 = vmatprep.subr.mxu0 0.0
      %2633 = vmatpush1.msra.mxu0 0.0
      %2634 = vmatprep.subr.mxu0 0.0
      %2635 = vmatpush1.msra.mxu0 0.0
      %2636 = vmatprep.subr.mxu0 0.0
      %2637 = vmatpush1.msra.mxu0 0.0
      %2638 = vmatprep.subr.mxu0 0.0
      %2639 = vmatpush1.msra.mxu0 0.0
      %2640 = vmatprep.subr.mxu0 0.0
      %2641 = vmatpush1.msra.mxu0 0.0
      %2642 = vmatprep.subr.mxu0 0.0
      %2643 = vmatpush1.msra.mxu0 0.0
      %2644 = vmatprep.subr.mxu0 0.0
      %2645 = vmatpush1.msra.mxu0 0.0
      %2646 = vmatprep.subr.mxu0 0.0
      %2647 = vmatpush1.msra.mxu0 0.0
      %2648 = vmatprep.subr.mxu0 0.0
      %2649 = vmatpush1.msra.mxu0 0.0
      %2650 = vmatprep.subr.mxu0 0.0
      %2651 = vmatpush1.msra.mxu0 0.0
      %2652 = vmatprep.subr.mxu0 0.0
      %2653 = vmatpush1.msra.mxu0 0.0
      %2654 = vmatprep.subr.mxu0 0.0
      %2655 = vmatpush1.msra.mxu0 0.0
      %2656 = vmatprep.subr.mxu0 0.0
      %2657 = vmatpush1.msra.mxu0 0.0
      %2658 = vmatprep.subr.mxu0 0.0
      %2659 = vmatpush1.msra.mxu0 0.0
      %2660 = vmatprep.mubr.f32.mxu0 0.0
      %2661 = vmatmul.mubr.f32.gmra.mrb[0].mxu0 %v2528
      %v2662 = vpop.f32.mrb[0].mxu0
      %v2663 = vadd.f32 %v2584, %v2662
      %v2664 = vpop.f32.mrb[0].mxu0
      %v2665 = vadd.f32 %v2588, %v2664
      %2666 = vdwg.mxu0
      %2667 = vmatprep.subr.mxu0 0.0
      %2668 = vmatpush1.msra.mxu0 %v2533
      %2669 = vmatprep.subr.mxu0 0.0
      %2670 = vmatpush1.msra.mxu0 %v2536
      %2671 = vmatprep.subr.mxu0 0.0
      %2672 = vmatpush1.msra.mxu0 %v2539
      %2673 = vmatprep.subr.mxu0 0.0
      %2674 = vmatpush1.msra.mxu0 %v2542
      %2675 = vmatprep.subr.mxu0 0.0
      %2676 = vmatpush1.msra.mxu0 %v2545
      %2677 = vmatprep.subr.mxu0 0.0
      %2678 = vmatpush1.msra.mxu0 %v2548
      %2679 = vmatprep.subr.mxu0 0.0
      %2680 = vmatpush1.msra.mxu0 %v2551
      %2681 = vmatprep.subr.mxu0 0.0
      %2682 = vmatpush1.msra.mxu0 %v2554
      %2683 = vmatprep.subr.mxu0 0.0
      %2684 = vmatpush1.msra.mxu0 %v2557
      %2685 = vmatprep.subr.mxu0 0.0
      %2686 = vmatpush1.msra.mxu0 %v2560
      %2687 = vmatprep.subr.mxu0 0.0
      %2688 = vmatpush1.msra.mxu0 %v2563
      %2689 = vmatprep.subr.mxu0 0.0
      %2690 = vmatpush1.msra.mxu0 %v2566
      %2691 = vmatprep.subr.mxu0 0.0
      %2692 = vmatpush1.msra.mxu0 %v2569
      %2693 = vmatprep.subr.mxu0 0.0
      %2694 = vmatpush1.msra.mxu0 %v2572
      %2695 = vmatprep.subr.mxu0 0.0
      %2696 = vmatpush1.msra.mxu0 %v2575
      %2697 = vmatprep.subr.mxu0 0.0
      %2698 = vmatpush1.msra.mxu0 %v2578
      %2699 = vmatprep.subr.mxu0 0.0
      %2700 = vmatpush1.msra.mxu0 0.0
      %2701 = vmatprep.subr.mxu0 0.0
      %2702 = vmatpush1.msra.mxu0 0.0
      %2703 = vmatprep.subr.mxu0 0.0
      %2704 = vmatpush1.msra.mxu0 0.0
      %2705 = vmatprep.subr.mxu0 0.0
      %2706 = vmatpush1.msra.mxu0 0.0
      %2707 = vmatprep.subr.mxu0 0.0
      %2708 = vmatpush1.msra.mxu0 0.0
      %2709 = vmatprep.subr.mxu0 0.0
      %2710 = vmatpush1.msra.mxu0 0.0
      %2711 = vmatprep.subr.mxu0 0.0
      %2712 = vmatpush1.msra.mxu0 0.0
      %2713 = vmatprep.subr.mxu0 0.0
      %2714 = vmatpush1.msra.mxu0 0.0
      %2715 = vmatprep.subr.mxu0 0.0
      %2716 = vmatpush1.msra.mxu0 0.0
      %2717 = vmatprep.subr.mxu0 0.0
      %2718 = vmatpush1.msra.mxu0 0.0
      %2719 = vmatprep.subr.mxu0 0.0
      %2720 = vmatpush1.msra.mxu0 0.0
      %2721 = vmatprep.subr.mxu0 0.0
      %2722 = vmatpush1.msra.mxu0 0.0
      %2723 = vmatprep.subr.mxu0 0.0
      %2724 = vmatpush1.msra.mxu0 0.0
      %2725 = vmatprep.subr.mxu0 0.0
      %2726 = vmatpush1.msra.mxu0 0.0
      %2727 = vmatprep.subr.mxu0 0.0
      %2728 = vmatpush1.msra.mxu0 0.0
      %2729 = vmatprep.subr.mxu0 0.0
      %2730 = vmatpush1.msra.mxu0 0.0
      %2731 = vmatprep.mubr.f32.mxu0 0.0
      %2732 = vmatmul.mubr.f32.gmra.mrb[0].mxu0 %v2528
      %v2733 = vpop.f32.mrb[0].mxu0
      %v2734 = vadd.f32 %v2592, %v2733
      %v2735 = vpop.f32.mrb[0].mxu0
      %2736 = vdwg.mxu0
      %s2737 = scalar_lea.vmem [#allocation3], 168
      %v2738 = vld [vmem:[%s2737] sm:$0xff]
      %v2739 = vld [vmem:[%s2737 + $0x8] sm:$0xff]
      %v2740 = vld [vmem:[%s2737 + $0x10] sm:$0xff]
      %v2741 = vadd.f32 %v2738, %v2663
      %v2742 = vxor.u32 %v2741, 2147483648
      %v2743 = vmul.f32 %v2742, 1.442695
      %v2744 = vpow.pop %v2743
      %v2745 = vadd.f32 %v2744, 1.0
      %v2746 = vrcp.pop %v2745
      %v2747 = vmul.f32 1.0, %v2746
      %v2748 = vadd.f32 %v2739, %v2665
      %v2749 = vxor.u32 %v2748, 2147483648
      %v2750 = vmul.f32 %v2749, 1.442695
      %v2751 = vpow.pop %v2750
      %v2752 = vadd.f32 %v2751, 1.0
      %v2753 = vrcp.pop %v2752
      %v2754 = vmul.f32 1.0, %v2753
      %v2755 = vmul.f32 %v2747, %v2734
      %v2756 = vadd.f32 %v2740, %v2755
      %v2757 = vtanh.pop %v2756
      %v2758 = vsub.f32 %v2528, %v2757
      %v2759 = vmul.f32 %v2754, %v2758
      %v2760 = vadd.f32 %v2757, %v2759
      %s2761 = scalar_lea.vmem %s226, 56
      %2762 = vst [vmem:[%s2761] sm:$0xff] %v2760
      %v2763 = vld [vmem:[%s2] sm:$0xff]
      %v2764 = vld [vmem:[%s2 + $0x8] sm:$0xff]
      %v2765 = vld [vmem:[%s2 + $0x10] sm:$0xff]
      %v2766 = vld [vmem:[%s2 + $0x18] sm:$0xff]
      %v2767 = vld [vmem:[%s2 + $0x20] sm:$0xff]
      %v2768 = vld [vmem:[%s2 + $0x28] sm:$0xff]
      %v2769 = vld [vmem:[%s2 + $0x30] sm:$0xff]
      %v2770 = vld [vmem:[%s2 + $0x38] sm:$0xff]
      %v2771 = vld [vmem:[%s2 + $0x40] sm:$0xff]
      %v2772 = vld [vmem:[%s2 + $0x48] sm:$0xff]
      %v2773 = vld [vmem:[%s2 + $0x50] sm:$0xff]
      %v2774 = vld [vmem:[%s2 + $0x58] sm:$0xff]
      %v2775 = vld [vmem:[%s2 + $0x60] sm:$0xff]
      %v2776 = vld [vmem:[%s2 + $0x68] sm:$0xff]
      %v2777 = vld [vmem:[%s2 + $0x70] sm:$0xff]
      %v2778 = vld [vmem:[%s2 + $0x78] sm:$0xff]
      %v2779 = vld [vmem:[%s2 + $0x80] sm:$0xff]
      %v2780 = vld [vmem:[%s2 + $0x88] sm:$0xff]
      %v2781 = vld [vmem:[%s2 + $0x90] sm:$0xff]
      %v2782 = vld [vmem:[%s2 + $0x98] sm:$0xff]
      %v2783 = vld [vmem:[%s2 + $0xa0] sm:$0xff]
      %v2784 = vld [vmem:[%s2 + $0xa8] sm:$0xff]
      %v2785 = vld [vmem:[%s2 + $0xb0] sm:$0xff]
      %v2786 = vld [vmem:[%s2 + $0xb8] sm:$0xff]
      %v2787 = vld [vmem:[%s2 + $0xc0] sm:$0xff]
      %v2788 = vld [vmem:[%s2 + $0xc8] sm:$0xff]
      %v2789 = vld [vmem:[%s2 + $0xd0] sm:$0xff]
      %v2790 = vld [vmem:[%s2 + $0xd8] sm:$0xff]
      %v2791 = vld [vmem:[%s2 + $0xe0] sm:$0xff]
      %v2792 = vld [vmem:[%s2 + $0xe8] sm:$0xff]
      %v2793 = vld [vmem:[%s2 + $0xf0] sm:$0xff]
      %v2794 = vld [vmem:[%s2 + $0xf8] sm:$0xff]
      %v2795 = vld [vmem:[%s2 + $0x100] sm:$0xff]
      %v2796 = vld [vmem:[%s2 + $0x108] sm:$0xff]
      %v2797 = vld [vmem:[%s2 + $0x110] sm:$0xff]
      %v2798 = vld [vmem:[%s2 + $0x118] sm:$0xff]
      %v2799 = vld [vmem:[%s2 + $0x120] sm:$0xff]
      %v2800 = vld [vmem:[%s2 + $0x128] sm:$0xff]
      %v2801 = vld [vmem:[%s2 + $0x130] sm:$0xff]
      %v2802 = vld [vmem:[%s2 + $0x138] sm:$0xff]
      %v2803 = vld [vmem:[%s2 + $0x140] sm:$0xff]
      %v2804 = vld [vmem:[%s2 + $0x148] sm:$0xff]
      %v2805 = vld [vmem:[%s2 + $0x150] sm:$0xff]
      %v2806 = vld [vmem:[%s2 + $0x158] sm:$0xff]
      %v2807 = vld [vmem:[%s2 + $0x160] sm:$0xff]
      %v2808 = vld [vmem:[%s2 + $0x168] sm:$0xff]
      %v2809 = vld [vmem:[%s2 + $0x170] sm:$0xff]
      %v2810 = vld [vmem:[%s2 + $0x178] sm:$0xff]
      %v2811 = vld [vmem:[%s4] sm:$0x7]
      %v2813 = vlaneseq
      %v2814 = vshrl.u32 %v2813, 7
      %v2815 = vsub.s32 0, %v2814
      %v2816 = vrot.slane %v2811, %v2815
      %v2817 = vlaneseq
      %v2818 = vshrl.u32 %v2817, 7
      %v2819 = vsub.s32 1, %v2818
      %v2820 = vrot.slane %v2811, %v2819
      %v2821 = vlaneseq
      %v2822 = vshrl.u32 %v2821, 7
      %v2823 = vsub.s32 2, %v2822
      %v2824 = vrot.slane %v2811, %v2823
      %2828 = vmatprep.subr.mxu0 %v2764
      %2829 = vmatpush1.msra.mxu0 %v2763
      %2830 = vmatprep.subr.mxu0 %v2767
      %2831 = vmatpush1.msra.mxu0 %v2766
      %2832 = vmatprep.subr.mxu0 %v2770
      %2833 = vmatpush1.msra.mxu0 %v2769
      %2834 = vmatprep.subr.mxu0 %v2773
      %2835 = vmatpush1.msra.mxu0 %v2772
      %2836 = vmatprep.subr.mxu0 %v2776
      %2837 = vmatpush1.msra.mxu0 %v2775
      %2838 = vmatprep.subr.mxu0 %v2779
      %2839 = vmatpush1.msra.mxu0 %v2778
      %2840 = vmatprep.subr.mxu0 %v2782
      %2841 = vmatpush1.msra.mxu0 %v2781
      %2842 = vmatprep.subr.mxu0 %v2785
      %2843 = vmatpush1.msra.mxu0 %v2784
      %2844 = vmatprep.subr.mxu0 %v2788
      %2845 = vmatpush1.msra.mxu0 %v2787
      %2846 = vmatprep.subr.mxu0 %v2791
      %2847 = vmatpush1.msra.mxu0 %v2790
      %2848 = vmatprep.subr.mxu0 %v2794
      %2849 = vmatpush1.msra.mxu0 %v2793
      %2850 = vmatprep.subr.mxu0 %v2797
      %2851 = vmatpush1.msra.mxu0 %v2796
      %2852 = vmatprep.subr.mxu0 %v2800
      %2853 = vmatpush1.msra.mxu0 %v2799
      %2854 = vmatprep.subr.mxu0 %v2803
      %2855 = vmatpush1.msra.mxu0 %v2802
      %2856 = vmatprep.subr.mxu0 %v2806
      %2857 = vmatpush1.msra.mxu0 %v2805
      %2858 = vmatprep.subr.mxu0 %v2809
      %2859 = vmatpush1.msra.mxu0 %v2808
      %2860 = vmatprep.subr.mxu0 0.0
      %2861 = vmatpush1.msra.mxu0 0.0
      %2862 = vmatprep.subr.mxu0 0.0
      %2863 = vmatpush1.msra.mxu0 0.0
      %2864 = vmatprep.subr.mxu0 0.0
      %2865 = vmatpush1.msra.mxu0 0.0
      %2866 = vmatprep.subr.mxu0 0.0
      %2867 = vmatpush1.msra.mxu0 0.0
      %2868 = vmatprep.subr.mxu0 0.0
      %2869 = vmatpush1.msra.mxu0 0.0
      %2870 = vmatprep.subr.mxu0 0.0
      %2871 = vmatpush1.msra.mxu0 0.0
      %2872 = vmatprep.subr.mxu0 0.0
      %2873 = vmatpush1.msra.mxu0 0.0
      %2874 = vmatprep.subr.mxu0 0.0
      %2875 = vmatpush1.msra.mxu0 0.0
      %2876 = vmatprep.subr.mxu0 0.0
      %2877 = vmatpush1.msra.mxu0 0.0
      %2878 = vmatprep.subr.mxu0 0.0
      %2879 = vmatpush1.msra.mxu0 0.0
      %2880 = vmatprep.subr.mxu0 0.0
      %2881 = vmatpush1.msra.mxu0 0.0
      %2882 = vmatprep.subr.mxu0 0.0
      %2883 = vmatpush1.msra.mxu0 0.0
      %2884 = vmatprep.subr.mxu0 0.0
      %2885 = vmatpush1.msra.mxu0 0.0
      %2886 = vmatprep.subr.mxu0 0.0
      %2887 = vmatpush1.msra.mxu0 0.0
      %2888 = vmatprep.subr.mxu0 0.0
      %2889 = vmatpush1.msra.mxu0 0.0
      %2890 = vmatprep.subr.mxu0 0.0
      %2891 = vmatpush1.msra.mxu0 0.0
      %2892 = vmatprep.mubr.f32.mxu0 0.0
      %2893 = vmatmul.mubr.f32.gmra.mrb[0].mxu0 %v2760
      %v2894 = vpop.f32.mrb[0].mxu0
      %v2895 = vadd.f32 %v2816, %v2894
      %v2896 = vpop.f32.mrb[0].mxu0
      %v2897 = vadd.f32 %v2820, %v2896
      %2898 = vdwg.mxu0
      %2899 = vmatprep.subr.mxu0 0.0
      %2900 = vmatpush1.msra.mxu0 %v2765
      %2901 = vmatprep.subr.mxu0 0.0
      %2902 = vmatpush1.msra.mxu0 %v2768
      %2903 = vmatprep.subr.mxu0 0.0
      %2904 = vmatpush1.msra.mxu0 %v2771
      %2905 = vmatprep.subr.mxu0 0.0
      %2906 = vmatpush1.msra.mxu0 %v2774
      %2907 = vmatprep.subr.mxu0 0.0
      %2908 = vmatpush1.msra.mxu0 %v2777
      %2909 = vmatprep.subr.mxu0 0.0
      %2910 = vmatpush1.msra.mxu0 %v2780
      %2911 = vmatprep.subr.mxu0 0.0
      %2912 = vmatpush1.msra.mxu0 %v2783
      %2913 = vmatprep.subr.mxu0 0.0
      %2914 = vmatpush1.msra.mxu0 %v2786
      %2915 = vmatprep.subr.mxu0 0.0
      %2916 = vmatpush1.msra.mxu0 %v2789
      %2917 = vmatprep.subr.mxu0 0.0
      %2918 = vmatpush1.msra.mxu0 %v2792
      %2919 = vmatprep.subr.mxu0 0.0
      %2920 = vmatpush1.msra.mxu0 %v2795
      %2921 = vmatprep.subr.mxu0 0.0
      %2922 = vmatpush1.msra.mxu0 %v2798
      %2923 = vmatprep.subr.mxu0 0.0
      %2924 = vmatpush1.msra.mxu0 %v2801
      %2925 = vmatprep.subr.mxu0 0.0
      %2926 = vmatpush1.msra.mxu0 %v2804
      %2927 = vmatprep.subr.mxu0 0.0
      %2928 = vmatpush1.msra.mxu0 %v2807
      %2929 = vmatprep.subr.mxu0 0.0
      %2930 = vmatpush1.msra.mxu0 %v2810
      %2931 = vmatprep.subr.mxu0 0.0
      %2932 = vmatpush1.msra.mxu0 0.0
      %2933 = vmatprep.subr.mxu0 0.0
      %2934 = vmatpush1.msra.mxu0 0.0
      %2935 = vmatprep.subr.mxu0 0.0
      %2936 = vmatpush1.msra.mxu0 0.0
      %2937 = vmatprep.subr.mxu0 0.0
      %2938 = vmatpush1.msra.mxu0 0.0
      %2939 = vmatprep.subr.mxu0 0.0
      %2940 = vmatpush1.msra.mxu0 0.0
      %2941 = vmatprep.subr.mxu0 0.0
      %2942 = vmatpush1.msra.mxu0 0.0
      %2943 = vmatprep.subr.mxu0 0.0
      %2944 = vmatpush1.msra.mxu0 0.0
      %2945 = vmatprep.subr.mxu0 0.0
      %2946 = vmatpush1.msra.mxu0 0.0
      %2947 = vmatprep.subr.mxu0 0.0
      %2948 = vmatpush1.msra.mxu0 0.0
      %2949 = vmatprep.subr.mxu0 0.0
      %2950 = vmatpush1.msra.mxu0 0.0
      %2951 = vmatprep.subr.mxu0 0.0
      %2952 = vmatpush1.msra.mxu0 0.0
      %2953 = vmatprep.subr.mxu0 0.0
      %2954 = vmatpush1.msra.mxu0 0.0
      %2955 = vmatprep.subr.mxu0 0.0
      %2956 = vmatpush1.msra.mxu0 0.0
      %2957 = vmatprep.subr.mxu0 0.0
      %2958 = vmatpush1.msra.mxu0 0.0
      %2959 = vmatprep.subr.mxu0 0.0
      %2960 = vmatpush1.msra.mxu0 0.0
      %2961 = vmatprep.subr.mxu0 0.0
      %2962 = vmatpush1.msra.mxu0 0.0
      %2963 = vmatprep.mubr.f32.mxu0 0.0
      %2964 = vmatmul.mubr.f32.gmra.mrb[0].mxu0 %v2760
      %v2965 = vpop.f32.mrb[0].mxu0
      %v2966 = vadd.f32 %v2824, %v2965
      %v2967 = vpop.f32.mrb[0].mxu0
      %2968 = vdwg.mxu0
      %s2969 = scalar_lea.vmem [#allocation3], 192
      %v2970 = vld [vmem:[%s2969] sm:$0xff]
      %v2971 = vld [vmem:[%s2969 + $0x8] sm:$0xff]
      %v2972 = vld [vmem:[%s2969 + $0x10] sm:$0xff]
      %v2973 = vadd.f32 %v2970, %v2895
      %v2974 = vxor.u32 %v2973, 2147483648
      %v2975 = vmul.f32 %v2974, 1.442695
      %v2976 = vpow.pop %v2975
      %v2977 = vadd.f32 %v2976, 1.0
      %v2978 = vrcp.pop %v2977
      %v2979 = vmul.f32 1.0, %v2978
      %v2980 = vadd.f32 %v2971, %v2897
      %v2981 = vxor.u32 %v2980, 2147483648
      %v2982 = vmul.f32 %v2981, 1.442695
      %v2983 = vpow.pop %v2982
      %v2984 = vadd.f32 %v2983, 1.0
      %v2985 = vrcp.pop %v2984
      %v2986 = vmul.f32 1.0, %v2985
      %v2987 = vmul.f32 %v2979, %v2966
      %v2988 = vadd.f32 %v2972, %v2987
      %v2989 = vtanh.pop %v2988
      %v2990 = vsub.f32 %v2760, %v2989
      %v2991 = vmul.f32 %v2986, %v2990
      %v2992 = vadd.f32 %v2989, %v2991
      %s2993 = scalar_lea.vmem %s226, 64
      %2994 = vst [vmem:[%s2993] sm:$0xff] %v2992
      %v2995 = vld [vmem:[%s2] sm:$0xff]
      %v2996 = vld [vmem:[%s2 + $0x8] sm:$0xff]
      %v2997 = vld [vmem:[%s2 + $0x10] sm:$0xff]
      %v2998 = vld [vmem:[%s2 + $0x18] sm:$0xff]
      %v2999 = vld [vmem:[%s2 + $0x20] sm:$0xff]
      %v3000 = vld [vmem:[%s2 + $0x28] sm:$0xff]
      %v3001 = vld [vmem:[%s2 + $0x30] sm:$0xff]
      %v3002 = vld [vmem:[%s2 + $0x38] sm:$0xff]
      %v3003 = vld [vmem:[%s2 + $0x40] sm:$0xff]
      %v3004 = vld [vmem:[%s2 + $0x48] sm:$0xff]
      %v3005 = vld [vmem:[%s2 + $0x50] sm:$0xff]
      %v3006 = vld [vmem:[%s2 + $0x58] sm:$0xff]
      %v3007 = vld [vmem:[%s2 + $0x60] sm:$0xff]
      %v3008 = vld [vmem:[%s2 + $0x68] sm:$0xff]
      %v3009 = vld [vmem:[%s2 + $0x70] sm:$0xff]
      %v3010 = vld [vmem:[%s2 + $0x78] sm:$0xff]
      %v3011 = vld [vmem:[%s2 + $0x80] sm:$0xff]
      %v3012 = vld [vmem:[%s2 + $0x88] sm:$0xff]
      %v3013 = vld [vmem:[%s2 + $0x90] sm:$0xff]
      %v3014 = vld [vmem:[%s2 + $0x98] sm:$0xff]
      %v3015 = vld [vmem:[%s2 + $0xa0] sm:$0xff]
      %v3016 = vld [vmem:[%s2 + $0xa8] sm:$0xff]
      %v3017 = vld [vmem:[%s2 + $0xb0] sm:$0xff]
      %v3018 = vld [vmem:[%s2 + $0xb8] sm:$0xff]
      %v3019 = vld [vmem:[%s2 + $0xc0] sm:$0xff]
      %v3020 = vld [vmem:[%s2 + $0xc8] sm:$0xff]
      %v3021 = vld [vmem:[%s2 + $0xd0] sm:$0xff]
      %v3022 = vld [vmem:[%s2 + $0xd8] sm:$0xff]
      %v3023 = vld [vmem:[%s2 + $0xe0] sm:$0xff]
      %v3024 = vld [vmem:[%s2 + $0xe8] sm:$0xff]
      %v3025 = vld [vmem:[%s2 + $0xf0] sm:$0xff]
      %v3026 = vld [vmem:[%s2 + $0xf8] sm:$0xff]
      %v3027 = vld [vmem:[%s2 + $0x100] sm:$0xff]
      %v3028 = vld [vmem:[%s2 + $0x108] sm:$0xff]
      %v3029 = vld [vmem:[%s2 + $0x110] sm:$0xff]
      %v3030 = vld [vmem:[%s2 + $0x118] sm:$0xff]
      %v3031 = vld [vmem:[%s2 + $0x120] sm:$0xff]
      %v3032 = vld [vmem:[%s2 + $0x128] sm:$0xff]
      %v3033 = vld [vmem:[%s2 + $0x130] sm:$0xff]
      %v3034 = vld [vmem:[%s2 + $0x138] sm:$0xff]
      %v3035 = vld [vmem:[%s2 + $0x140] sm:$0xff]
      %v3036 = vld [vmem:[%s2 + $0x148] sm:$0xff]
      %v3037 = vld [vmem:[%s2 + $0x150] sm:$0xff]
      %v3038 = vld [vmem:[%s2 + $0x158] sm:$0xff]
      %v3039 = vld [vmem:[%s2 + $0x160] sm:$0xff]
      %v3040 = vld [vmem:[%s2 + $0x168] sm:$0xff]
      %v3041 = vld [vmem:[%s2 + $0x170] sm:$0xff]
      %v3042 = vld [vmem:[%s2 + $0x178] sm:$0xff]
      %v3043 = vld [vmem:[%s4] sm:$0x7]
      %v3045 = vlaneseq
      %v3046 = vshrl.u32 %v3045, 7
      %v3047 = vsub.s32 0, %v3046
      %v3048 = vrot.slane %v3043, %v3047
      %v3049 = vlaneseq
      %v3050 = vshrl.u32 %v3049, 7
      %v3051 = vsub.s32 1, %v3050
      %v3052 = vrot.slane %v3043, %v3051
      %v3053 = vlaneseq
      %v3054 = vshrl.u32 %v3053, 7
      %v3055 = vsub.s32 2, %v3054
      %v3056 = vrot.slane %v3043, %v3055
      %3060 = vmatprep.subr.mxu0 %v2996
      %3061 = vmatpush1.msra.mxu0 %v2995
      %3062 = vmatprep.subr.mxu0 %v2999
      %3063 = vmatpush1.msra.mxu0 %v2998
      %3064 = vmatprep.subr.mxu0 %v3002
      %3065 = vmatpush1.msra.mxu0 %v3001
      %3066 = vmatprep.subr.mxu0 %v3005
      %3067 = vmatpush1.msra.mxu0 %v3004
      %3068 = vmatprep.subr.mxu0 %v3008
      %3069 = vmatpush1.msra.mxu0 %v3007
      %3070 = vmatprep.subr.mxu0 %v3011
      %3071 = vmatpush1.msra.mxu0 %v3010
      %3072 = vmatprep.subr.mxu0 %v3014
      %3073 = vmatpush1.msra.mxu0 %v3013
      %3074 = vmatprep.subr.mxu0 %v3017
      %3075 = vmatpush1.msra.mxu0 %v3016
      %3076 = vmatprep.subr.mxu0 %v3020
      %3077 = vmatpush1.msra.mxu0 %v3019
      %3078 = vmatprep.subr.mxu0 %v3023
      %3079 = vmatpush1.msra.mxu0 %v3022
      %3080 = vmatprep.subr.mxu0 %v3026
      %3081 = vmatpush1.msra.mxu0 %v3025
      %3082 = vmatprep.subr.mxu0 %v3029
      %3083 = vmatpush1.msra.mxu0 %v3028
      %3084 = vmatprep.subr.mxu0 %v3032
      %3085 = vmatpush1.msra.mxu0 %v3031
      %3086 = vmatprep.subr.mxu0 %v3035
      %3087 = vmatpush1.msra.mxu0 %v3034
      %3088 = vmatprep.subr.mxu0 %v3038
      %3089 = vmatpush1.msra.mxu0 %v3037
      %3090 = vmatprep.subr.mxu0 %v3041
      %3091 = vmatpush1.msra.mxu0 %v3040
      %3092 = vmatprep.subr.mxu0 0.0
      %3093 = vmatpush1.msra.mxu0 0.0
      %3094 = vmatprep.subr.mxu0 0.0
      %3095 = vmatpush1.msra.mxu0 0.0
      %3096 = vmatprep.subr.mxu0 0.0
      %3097 = vmatpush1.msra.mxu0 0.0
      %3098 = vmatprep.subr.mxu0 0.0
      %3099 = vmatpush1.msra.mxu0 0.0
      %3100 = vmatprep.subr.mxu0 0.0
      %3101 = vmatpush1.msra.mxu0 0.0
      %3102 = vmatprep.subr.mxu0 0.0
      %3103 = vmatpush1.msra.mxu0 0.0
      %3104 = vmatprep.subr.mxu0 0.0
      %3105 = vmatpush1.msra.mxu0 0.0
      %3106 = vmatprep.subr.mxu0 0.0
      %3107 = vmatpush1.msra.mxu0 0.0
      %3108 = vmatprep.subr.mxu0 0.0
      %3109 = vmatpush1.msra.mxu0 0.0
      %3110 = vmatprep.subr.mxu0 0.0
      %3111 = vmatpush1.msra.mxu0 0.0
      %3112 = vmatprep.subr.mxu0 0.0
      %3113 = vmatpush1.msra.mxu0 0.0
      %3114 = vmatprep.subr.mxu0 0.0
      %3115 = vmatpush1.msra.mxu0 0.0
      %3116 = vmatprep.subr.mxu0 0.0
      %3117 = vmatpush1.msra.mxu0 0.0
      %3118 = vmatprep.subr.mxu0 0.0
      %3119 = vmatpush1.msra.mxu0 0.0
      %3120 = vmatprep.subr.mxu0 0.0
      %3121 = vmatpush1.msra.mxu0 0.0
      %3122 = vmatprep.subr.mxu0 0.0
      %3123 = vmatpush1.msra.mxu0 0.0
      %3124 = vmatprep.mubr.f32.mxu0 0.0
      %3125 = vmatmul.mubr.f32.gmra.mrb[0].mxu0 %v2992
      %v3126 = vpop.f32.mrb[0].mxu0
      %v3127 = vadd.f32 %v3048, %v3126
      %v3128 = vpop.f32.mrb[0].mxu0
      %v3129 = vadd.f32 %v3052, %v3128
      %3130 = vdwg.mxu0
      %3131 = vmatprep.subr.mxu0 0.0
      %3132 = vmatpush1.msra.mxu0 %v2997
      %3133 = vmatprep.subr.mxu0 0.0
      %3134 = vmatpush1.msra.mxu0 %v3000
      %3135 = vmatprep.subr.mxu0 0.0
      %3136 = vmatpush1.msra.mxu0 %v3003
      %3137 = vmatprep.subr.mxu0 0.0
      %3138 = vmatpush1.msra.mxu0 %v3006
      %3139 = vmatprep.subr.mxu0 0.0
      %3140 = vmatpush1.msra.mxu0 %v3009
      %3141 = vmatprep.subr.mxu0 0.0
      %3142 = vmatpush1.msra.mxu0 %v3012
      %3143 = vmatprep.subr.mxu0 0.0
      %3144 = vmatpush1.msra.mxu0 %v3015
      %3145 = vmatprep.subr.mxu0 0.0
      %3146 = vmatpush1.msra.mxu0 %v3018
      %3147 = vmatprep.subr.mxu0 0.0
      %3148 = vmatpush1.msra.mxu0 %v3021
      %3149 = vmatprep.subr.mxu0 0.0
      %3150 = vmatpush1.msra.mxu0 %v3024
      %3151 = vmatprep.subr.mxu0 0.0
      %3152 = vmatpush1.msra.mxu0 %v3027
      %3153 = vmatprep.subr.mxu0 0.0
      %3154 = vmatpush1.msra.mxu0 %v3030
      %3155 = vmatprep.subr.mxu0 0.0
      %3156 = vmatpush1.msra.mxu0 %v3033
      %3157 = vmatprep.subr.mxu0 0.0
      %3158 = vmatpush1.msra.mxu0 %v3036
      %3159 = vmatprep.subr.mxu0 0.0
      %3160 = vmatpush1.msra.mxu0 %v3039
      %3161 = vmatprep.subr.mxu0 0.0
      %3162 = vmatpush1.msra.mxu0 %v3042
      %3163 = vmatprep.subr.mxu0 0.0
      %3164 = vmatpush1.msra.mxu0 0.0
      %3165 = vmatprep.subr.mxu0 0.0
      %3166 = vmatpush1.msra.mxu0 0.0
      %3167 = vmatprep.subr.mxu0 0.0
      %3168 = vmatpush1.msra.mxu0 0.0
      %3169 = vmatprep.subr.mxu0 0.0
      %3170 = vmatpush1.msra.mxu0 0.0
      %3171 = vmatprep.subr.mxu0 0.0
      %3172 = vmatpush1.msra.mxu0 0.0
      %3173 = vmatprep.subr.mxu0 0.0
      %3174 = vmatpush1.msra.mxu0 0.0
      %3175 = vmatprep.subr.mxu0 0.0
      %3176 = vmatpush1.msra.mxu0 0.0
      %3177 = vmatprep.subr.mxu0 0.0
      %3178 = vmatpush1.msra.mxu0 0.0
      %3179 = vmatprep.subr.mxu0 0.0
      %3180 = vmatpush1.msra.mxu0 0.0
      %3181 = vmatprep.subr.mxu0 0.0
      %3182 = vmatpush1.msra.mxu0 0.0
      %3183 = vmatprep.subr.mxu0 0.0
      %3184 = vmatpush1.msra.mxu0 0.0
      %3185 = vmatprep.subr.mxu0 0.0
      %3186 = vmatpush1.msra.mxu0 0.0
      %3187 = vmatprep.subr.mxu0 0.0
      %3188 = vmatpush1.msra.mxu0 0.0
      %3189 = vmatprep.subr.mxu0 0.0
      %3190 = vmatpush1.msra.mxu0 0.0
      %3191 = vmatprep.subr.mxu0 0.0
      %3192 = vmatpush1.msra.mxu0 0.0
      %3193 = vmatprep.subr.mxu0 0.0
      %3194 = vmatpush1.msra.mxu0 0.0
      %3195 = vmatprep.mubr.f32.mxu0 0.0
      %3196 = vmatmul.mubr.f32.gmra.mrb[0].mxu0 %v2992
      %v3197 = vpop.f32.mrb[0].mxu0
      %v3198 = vadd.f32 %v3056, %v3197
      %v3199 = vpop.f32.mrb[0].mxu0
      %3200 = vdwg.mxu0
      %s3201 = scalar_lea.vmem [#allocation3], 216
      %v3202 = vld [vmem:[%s3201] sm:$0xff]
      %v3203 = vld [vmem:[%s3201 + $0x8] sm:$0xff]
      %v3204 = vld [vmem:[%s3201 + $0x10] sm:$0xff]
      %v3205 = vadd.f32 %v3202, %v3127
      %v3206 = vxor.u32 %v3205, 2147483648
      %v3207 = vmul.f32 %v3206, 1.442695
      %v3208 = vpow.pop %v3207
      %v3209 = vadd.f32 %v3208, 1.0
      %v3210 = vrcp.pop %v3209
      %v3211 = vmul.f32 1.0, %v3210
      %v3212 = vadd.f32 %v3203, %v3129
      %v3213 = vxor.u32 %v3212, 2147483648
      %v3214 = vmul.f32 %v3213, 1.442695
      %v3215 = vpow.pop %v3214
      %v3216 = vadd.f32 %v3215, 1.0
      %v3217 = vrcp.pop %v3216
      %v3218 = vmul.f32 1.0, %v3217
      %v3219 = vmul.f32 %v3211, %v3198
      %v3220 = vadd.f32 %v3204, %v3219
      %v3221 = vtanh.pop %v3220
      %v3222 = vsub.f32 %v2992, %v3221
      %v3223 = vmul.f32 %v3218, %v3222
      %v3224 = vadd.f32 %v3221, %v3223
      %s3225 = scalar_lea.vmem %s226, 72
      %3226 = vst [vmem:[%s3225] sm:$0xff] %v3224
      %v3227 = vld [vmem:[%s2] sm:$0xff]
      %v3228 = vld [vmem:[%s2 + $0x8] sm:$0xff]
      %v3229 = vld [vmem:[%s2 + $0x10] sm:$0xff]
      %v3230 = vld [vmem:[%s2 + $0x18] sm:$0xff]
      %v3231 = vld [vmem:[%s2 + $0x20] sm:$0xff]
      %v3232 = vld [vmem:[%s2 + $0x28] sm:$0xff]
      %v3233 = vld [vmem:[%s2 + $0x30] sm:$0xff]
      %v3234 = vld [vmem:[%s2 + $0x38] sm:$0xff]
      %v3235 = vld [vmem:[%s2 + $0x40] sm:$0xff]
      %v3236 = vld [vmem:[%s2 + $0x48] sm:$0xff]
      %v3237 = vld [vmem:[%s2 + $0x50] sm:$0xff]
      %v3238 = vld [vmem:[%s2 + $0x58] sm:$0xff]
      %v3239 = vld [vmem:[%s2 + $0x60] sm:$0xff]
      %v3240 = vld [vmem:[%s2 + $0x68] sm:$0xff]
      %v3241 = vld [vmem:[%s2 + $0x70] sm:$0xff]
      %v3242 = vld [vmem:[%s2 + $0x78] sm:$0xff]
      %v3243 = vld [vmem:[%s2 + $0x80] sm:$0xff]
      %v3244 = vld [vmem:[%s2 + $0x88] sm:$0xff]
      %v3245 = vld [vmem:[%s2 + $0x90] sm:$0xff]
      %v3246 = vld [vmem:[%s2 + $0x98] sm:$0xff]
      %v3247 = vld [vmem:[%s2 + $0xa0] sm:$0xff]
      %v3248 = vld [vmem:[%s2 + $0xa8] sm:$0xff]
      %v3249 = vld [vmem:[%s2 + $0xb0] sm:$0xff]
      %v3250 = vld [vmem:[%s2 + $0xb8] sm:$0xff]
      %v3251 = vld [vmem:[%s2 + $0xc0] sm:$0xff]
      %v3252 = vld [vmem:[%s2 + $0xc8] sm:$0xff]
      %v3253 = vld [vmem:[%s2 + $0xd0] sm:$0xff]
      %v3254 = vld [vmem:[%s2 + $0xd8] sm:$0xff]
      %v3255 = vld [vmem:[%s2 + $0xe0] sm:$0xff]
      %v3256 = vld [vmem:[%s2 + $0xe8] sm:$0xff]
      %v3257 = vld [vmem:[%s2 + $0xf0] sm:$0xff]
      %v3258 = vld [vmem:[%s2 + $0xf8] sm:$0xff]
      %v3259 = vld [vmem:[%s2 + $0x100] sm:$0xff]
      %v3260 = vld [vmem:[%s2 + $0x108] sm:$0xff]
      %v3261 = vld [vmem:[%s2 + $0x110] sm:$0xff]
      %v3262 = vld [vmem:[%s2 + $0x118] sm:$0xff]
      %v3263 = vld [vmem:[%s2 + $0x120] sm:$0xff]
      %v3264 = vld [vmem:[%s2 + $0x128] sm:$0xff]
      %v3265 = vld [vmem:[%s2 + $0x130] sm:$0xff]
      %v3266 = vld [vmem:[%s2 + $0x138] sm:$0xff]
      %v3267 = vld [vmem:[%s2 + $0x140] sm:$0xff]
      %v3268 = vld [vmem:[%s2 + $0x148] sm:$0xff]
      %v3269 = vld [vmem:[%s2 + $0x150] sm:$0xff]
      %v3270 = vld [vmem:[%s2 + $0x158] sm:$0xff]
      %v3271 = vld [vmem:[%s2 + $0x160] sm:$0xff]
      %v3272 = vld [vmem:[%s2 + $0x168] sm:$0xff]
      %v3273 = vld [vmem:[%s2 + $0x170] sm:$0xff]
      %v3274 = vld [vmem:[%s2 + $0x178] sm:$0xff]
      %v3275 = vld [vmem:[%s4] sm:$0x7]
      %v3277 = vlaneseq
      %v3278 = vshrl.u32 %v3277, 7
      %v3279 = vsub.s32 0, %v3278
      %v3280 = vrot.slane %v3275, %v3279
      %v3281 = vlaneseq
      %v3282 = vshrl.u32 %v3281, 7
      %v3283 = vsub.s32 1, %v3282
      %v3284 = vrot.slane %v3275, %v3283
      %v3285 = vlaneseq
      %v3286 = vshrl.u32 %v3285, 7
      %v3287 = vsub.s32 2, %v3286
      %v3288 = vrot.slane %v3275, %v3287
      %3292 = vmatprep.subr.mxu0 %v3228
      %3293 = vmatpush1.msra.mxu0 %v3227
      %3294 = vmatprep.subr.mxu0 %v3231
      %3295 = vmatpush1.msra.mxu0 %v3230
      %3296 = vmatprep.subr.mxu0 %v3234
      %3297 = vmatpush1.msra.mxu0 %v3233
      %3298 = vmatprep.subr.mxu0 %v3237
      %3299 = vmatpush1.msra.mxu0 %v3236
      %3300 = vmatprep.subr.mxu0 %v3240
      %3301 = vmatpush1.msra.mxu0 %v3239
      %3302 = vmatprep.subr.mxu0 %v3243
      %3303 = vmatpush1.msra.mxu0 %v3242
      %3304 = vmatprep.subr.mxu0 %v3246
      %3305 = vmatpush1.msra.mxu0 %v3245
      %3306 = vmatprep.subr.mxu0 %v3249
      %3307 = vmatpush1.msra.mxu0 %v3248
      %3308 = vmatprep.subr.mxu0 %v3252
      %3309 = vmatpush1.msra.mxu0 %v3251
      %3310 = vmatprep.subr.mxu0 %v3255
      %3311 = vmatpush1.msra.mxu0 %v3254
      %3312 = vmatprep.subr.mxu0 %v3258
      %3313 = vmatpush1.msra.mxu0 %v3257
      %3314 = vmatprep.subr.mxu0 %v3261
      %3315 = vmatpush1.msra.mxu0 %v3260
      %3316 = vmatprep.subr.mxu0 %v3264
      %3317 = vmatpush1.msra.mxu0 %v3263
      %3318 = vmatprep.subr.mxu0 %v3267
      %3319 = vmatpush1.msra.mxu0 %v3266
      %3320 = vmatprep.subr.mxu0 %v3270
      %3321 = vmatpush1.msra.mxu0 %v3269
      %3322 = vmatprep.subr.mxu0 %v3273
      %3323 = vmatpush1.msra.mxu0 %v3272
      %3324 = vmatprep.subr.mxu0 0.0
      %3325 = vmatpush1.msra.mxu0 0.0
      %3326 = vmatprep.subr.mxu0 0.0
      %3327 = vmatpush1.msra.mxu0 0.0
      %3328 = vmatprep.subr.mxu0 0.0
      %3329 = vmatpush1.msra.mxu0 0.0
      %3330 = vmatprep.subr.mxu0 0.0
      %3331 = vmatpush1.msra.mxu0 0.0
      %3332 = vmatprep.subr.mxu0 0.0
      %3333 = vmatpush1.msra.mxu0 0.0
      %3334 = vmatprep.subr.mxu0 0.0
      %3335 = vmatpush1.msra.mxu0 0.0
      %3336 = vmatprep.subr.mxu0 0.0
      %3337 = vmatpush1.msra.mxu0 0.0
      %3338 = vmatprep.subr.mxu0 0.0
      %3339 = vmatpush1.msra.mxu0 0.0
      %3340 = vmatprep.subr.mxu0 0.0
      %3341 = vmatpush1.msra.mxu0 0.0
      %3342 = vmatprep.subr.mxu0 0.0
      %3343 = vmatpush1.msra.mxu0 0.0
      %3344 = vmatprep.subr.mxu0 0.0
      %3345 = vmatpush1.msra.mxu0 0.0
      %3346 = vmatprep.subr.mxu0 0.0
      %3347 = vmatpush1.msra.mxu0 0.0
      %3348 = vmatprep.subr.mxu0 0.0
      %3349 = vmatpush1.msra.mxu0 0.0
      %3350 = vmatprep.subr.mxu0 0.0
      %3351 = vmatpush1.msra.mxu0 0.0
      %3352 = vmatprep.subr.mxu0 0.0
      %3353 = vmatpush1.msra.mxu0 0.0
      %3354 = vmatprep.subr.mxu0 0.0
      %3355 = vmatpush1.msra.mxu0 0.0
      %3356 = vmatprep.mubr.f32.mxu0 0.0
      %3357 = vmatmul.mubr.f32.gmra.mrb[0].mxu0 %v3224
      %v3358 = vpop.f32.mrb[0].mxu0
      %v3359 = vadd.f32 %v3280, %v3358
      %v3360 = vpop.f32.mrb[0].mxu0
      %v3361 = vadd.f32 %v3284, %v3360
      %3362 = vdwg.mxu0
      %3363 = vmatprep.subr.mxu0 0.0
      %3364 = vmatpush1.msra.mxu0 %v3229
      %3365 = vmatprep.subr.mxu0 0.0
      %3366 = vmatpush1.msra.mxu0 %v3232
      %3367 = vmatprep.subr.mxu0 0.0
      %3368 = vmatpush1.msra.mxu0 %v3235
      %3369 = vmatprep.subr.mxu0 0.0
      %3370 = vmatpush1.msra.mxu0 %v3238
      %3371 = vmatprep.subr.mxu0 0.0
      %3372 = vmatpush1.msra.mxu0 %v3241
      %3373 = vmatprep.subr.mxu0 0.0
      %3374 = vmatpush1.msra.mxu0 %v3244
      %3375 = vmatprep.subr.mxu0 0.0
      %3376 = vmatpush1.msra.mxu0 %v3247
      %3377 = vmatprep.subr.mxu0 0.0
      %3378 = vmatpush1.msra.mxu0 %v3250
      %3379 = vmatprep.subr.mxu0 0.0
      %3380 = vmatpush1.msra.mxu0 %v3253
      %3381 = vmatprep.subr.mxu0 0.0
      %3382 = vmatpush1.msra.mxu0 %v3256
      %3383 = vmatprep.subr.mxu0 0.0
      %3384 = vmatpush1.msra.mxu0 %v3259
      %3385 = vmatprep.subr.mxu0 0.0
      %3386 = vmatpush1.msra.mxu0 %v3262
      %3387 = vmatprep.subr.mxu0 0.0
      %3388 = vmatpush1.msra.mxu0 %v3265
      %3389 = vmatprep.subr.mxu0 0.0
      %3390 = vmatpush1.msra.mxu0 %v3268
      %3391 = vmatprep.subr.mxu0 0.0
      %3392 = vmatpush1.msra.mxu0 %v3271
      %3393 = vmatprep.subr.mxu0 0.0
      %3394 = vmatpush1.msra.mxu0 %v3274
      %3395 = vmatprep.subr.mxu0 0.0
      %3396 = vmatpush1.msra.mxu0 0.0
      %3397 = vmatprep.subr.mxu0 0.0
      %3398 = vmatpush1.msra.mxu0 0.0
      %3399 = vmatprep.subr.mxu0 0.0
      %3400 = vmatpush1.msra.mxu0 0.0
      %3401 = vmatprep.subr.mxu0 0.0
      %3402 = vmatpush1.msra.mxu0 0.0
      %3403 = vmatprep.subr.mxu0 0.0
      %3404 = vmatpush1.msra.mxu0 0.0
      %3405 = vmatprep.subr.mxu0 0.0
      %3406 = vmatpush1.msra.mxu0 0.0
      %3407 = vmatprep.subr.mxu0 0.0
      %3408 = vmatpush1.msra.mxu0 0.0
      %3409 = vmatprep.subr.mxu0 0.0
      %3410 = vmatpush1.msra.mxu0 0.0
      %3411 = vmatprep.subr.mxu0 0.0
      %3412 = vmatpush1.msra.mxu0 0.0
      %3413 = vmatprep.subr.mxu0 0.0
      %3414 = vmatpush1.msra.mxu0 0.0
      %3415 = vmatprep.subr.mxu0 0.0
      %3416 = vmatpush1.msra.mxu0 0.0
      %3417 = vmatprep.subr.mxu0 0.0
      %3418 = vmatpush1.msra.mxu0 0.0
      %3419 = vmatprep.subr.mxu0 0.0
      %3420 = vmatpush1.msra.mxu0 0.0
      %3421 = vmatprep.subr.mxu0 0.0
      %3422 = vmatpush1.msra.mxu0 0.0
      %3423 = vmatprep.subr.mxu0 0.0
      %3424 = vmatpush1.msra.mxu0 0.0
      %3425 = vmatprep.subr.mxu0 0.0
      %3426 = vmatpush1.msra.mxu0 0.0
      %3427 = vmatprep.mubr.f32.mxu0 0.0
      %3428 = vmatmul.mubr.f32.gmra.mrb[0].mxu0 %v3224
      %v3429 = vpop.f32.mrb[0].mxu0
      %v3430 = vadd.f32 %v3288, %v3429
      %v3431 = vpop.f32.mrb[0].mxu0
      %3432 = vdwg.mxu0
      %s3433 = scalar_lea.vmem [#allocation3], 240
      %v3434 = vld [vmem:[%s3433] sm:$0xff]
      %v3435 = vld [vmem:[%s3433 + $0x8] sm:$0xff]
      %v3436 = vld [vmem:[%s3433 + $0x10] sm:$0xff]
      %v3437 = vadd.f32 %v3434, %v3359
      %v3438 = vxor.u32 %v3437, 2147483648
      %v3439 = vmul.f32 %v3438, 1.442695
      %v3440 = vpow.pop %v3439
      %v3441 = vadd.f32 %v3440, 1.0
      %v3442 = vrcp.pop %v3441
      %v3443 = vmul.f32 1.0, %v3442
      %v3444 = vadd.f32 %v3435, %v3361
      %v3445 = vxor.u32 %v3444, 2147483648
      %v3446 = vmul.f32 %v3445, 1.442695
      %v3447 = vpow.pop %v3446
      %v3448 = vadd.f32 %v3447, 1.0
      %v3449 = vrcp.pop %v3448
      %v3450 = vmul.f32 1.0, %v3449
      %v3451 = vmul.f32 %v3443, %v3430
      %v3452 = vadd.f32 %v3436, %v3451
      %v3453 = vtanh.pop %v3452
      %v3454 = vsub.f32 %v3224, %v3453
      %v3455 = vmul.f32 %v3450, %v3454
      %v3456 = vadd.f32 %v3453, %v3455
      %s3457 = scalar_lea.vmem %s226, 80
      %3458 = vst [vmem:[%s3457] sm:$0xff] %v3456
      %v3459 = vld [vmem:[%s2] sm:$0xff]
      %v3460 = vld [vmem:[%s2 + $0x8] sm:$0xff]
      %v3461 = vld [vmem:[%s2 + $0x10] sm:$0xff]
      %v3462 = vld [vmem:[%s2 + $0x18] sm:$0xff]
      %v3463 = vld [vmem:[%s2 + $0x20] sm:$0xff]
      %v3464 = vld [vmem:[%s2 + $0x28] sm:$0xff]
      %v3465 = vld [vmem:[%s2 + $0x30] sm:$0xff]
      %v3466 = vld [vmem:[%s2 + $0x38] sm:$0xff]
      %v3467 = vld [vmem:[%s2 + $0x40] sm:$0xff]
      %v3468 = vld [vmem:[%s2 + $0x48] sm:$0xff]
      %v3469 = vld [vmem:[%s2 + $0x50] sm:$0xff]
      %v3470 = vld [vmem:[%s2 + $0x58] sm:$0xff]
      %v3471 = vld [vmem:[%s2 + $0x60] sm:$0xff]
      %v3472 = vld [vmem:[%s2 + $0x68] sm:$0xff]
      %v3473 = vld [vmem:[%s2 + $0x70] sm:$0xff]
      %v3474 = vld [vmem:[%s2 + $0x78] sm:$0xff]
      %v3475 = vld [vmem:[%s2 + $0x80] sm:$0xff]
      %v3476 = vld [vmem:[%s2 + $0x88] sm:$0xff]
      %v3477 = vld [vmem:[%s2 + $0x90] sm:$0xff]
      %v3478 = vld [vmem:[%s2 + $0x98] sm:$0xff]
      %v3479 = vld [vmem:[%s2 + $0xa0] sm:$0xff]
      %v3480 = vld [vmem:[%s2 + $0xa8] sm:$0xff]
      %v3481 = vld [vmem:[%s2 + $0xb0] sm:$0xff]
      %v3482 = vld [vmem:[%s2 + $0xb8] sm:$0xff]
      %v3483 = vld [vmem:[%s2 + $0xc0] sm:$0xff]
      %v3484 = vld [vmem:[%s2 + $0xc8] sm:$0xff]
      %v3485 = vld [vmem:[%s2 + $0xd0] sm:$0xff]
      %v3486 = vld [vmem:[%s2 + $0xd8] sm:$0xff]
      %v3487 = vld [vmem:[%s2 + $0xe0] sm:$0xff]
      %v3488 = vld [vmem:[%s2 + $0xe8] sm:$0xff]
      %v3489 = vld [vmem:[%s2 + $0xf0] sm:$0xff]
      %v3490 = vld [vmem:[%s2 + $0xf8] sm:$0xff]
      %v3491 = vld [vmem:[%s2 + $0x100] sm:$0xff]
      %v3492 = vld [vmem:[%s2 + $0x108] sm:$0xff]
      %v3493 = vld [vmem:[%s2 + $0x110] sm:$0xff]
      %v3494 = vld [vmem:[%s2 + $0x118] sm:$0xff]
      %v3495 = vld [vmem:[%s2 + $0x120] sm:$0xff]
      %v3496 = vld [vmem:[%s2 + $0x128] sm:$0xff]
      %v3497 = vld [vmem:[%s2 + $0x130] sm:$0xff]
      %v3498 = vld [vmem:[%s2 + $0x138] sm:$0xff]
      %v3499 = vld [vmem:[%s2 + $0x140] sm:$0xff]
      %v3500 = vld [vmem:[%s2 + $0x148] sm:$0xff]
      %v3501 = vld [vmem:[%s2 + $0x150] sm:$0xff]
      %v3502 = vld [vmem:[%s2 + $0x158] sm:$0xff]
      %v3503 = vld [vmem:[%s2 + $0x160] sm:$0xff]
      %v3504 = vld [vmem:[%s2 + $0x168] sm:$0xff]
      %v3505 = vld [vmem:[%s2 + $0x170] sm:$0xff]
      %v3506 = vld [vmem:[%s2 + $0x178] sm:$0xff]
      %v3507 = vld [vmem:[%s4] sm:$0x7]
      %v3509 = vlaneseq
      %v3510 = vshrl.u32 %v3509, 7
      %v3511 = vsub.s32 0, %v3510
      %v3512 = vrot.slane %v3507, %v3511
      %v3513 = vlaneseq
      %v3514 = vshrl.u32 %v3513, 7
      %v3515 = vsub.s32 1, %v3514
      %v3516 = vrot.slane %v3507, %v3515
      %v3517 = vlaneseq
      %v3518 = vshrl.u32 %v3517, 7
      %v3519 = vsub.s32 2, %v3518
      %v3520 = vrot.slane %v3507, %v3519
      %3524 = vmatprep.subr.mxu0 %v3460
      %3525 = vmatpush1.msra.mxu0 %v3459
      %3526 = vmatprep.subr.mxu0 %v3463
      %3527 = vmatpush1.msra.mxu0 %v3462
      %3528 = vmatprep.subr.mxu0 %v3466
      %3529 = vmatpush1.msra.mxu0 %v3465
      %3530 = vmatprep.subr.mxu0 %v3469
      %3531 = vmatpush1.msra.mxu0 %v3468
      %3532 = vmatprep.subr.mxu0 %v3472
      %3533 = vmatpush1.msra.mxu0 %v3471
      %3534 = vmatprep.subr.mxu0 %v3475
      %3535 = vmatpush1.msra.mxu0 %v3474
      %3536 = vmatprep.subr.mxu0 %v3478
      %3537 = vmatpush1.msra.mxu0 %v3477
      %3538 = vmatprep.subr.mxu0 %v3481
      %3539 = vmatpush1.msra.mxu0 %v3480
      %3540 = vmatprep.subr.mxu0 %v3484
      %3541 = vmatpush1.msra.mxu0 %v3483
      %3542 = vmatprep.subr.mxu0 %v3487
      %3543 = vmatpush1.msra.mxu0 %v3486
      %3544 = vmatprep.subr.mxu0 %v3490
      %3545 = vmatpush1.msra.mxu0 %v3489
      %3546 = vmatprep.subr.mxu0 %v3493
      %3547 = vmatpush1.msra.mxu0 %v3492
      %3548 = vmatprep.subr.mxu0 %v3496
      %3549 = vmatpush1.msra.mxu0 %v3495
      %3550 = vmatprep.subr.mxu0 %v3499
      %3551 = vmatpush1.msra.mxu0 %v3498
      %3552 = vmatprep.subr.mxu0 %v3502
      %3553 = vmatpush1.msra.mxu0 %v3501
      %3554 = vmatprep.subr.mxu0 %v3505
      %3555 = vmatpush1.msra.mxu0 %v3504
      %3556 = vmatprep.subr.mxu0 0.0
      %3557 = vmatpush1.msra.mxu0 0.0
      %3558 = vmatprep.subr.mxu0 0.0
      %3559 = vmatpush1.msra.mxu0 0.0
      %3560 = vmatprep.subr.mxu0 0.0
      %3561 = vmatpush1.msra.mxu0 0.0
      %3562 = vmatprep.subr.mxu0 0.0
      %3563 = vmatpush1.msra.mxu0 0.0
      %3564 = vmatprep.subr.mxu0 0.0
      %3565 = vmatpush1.msra.mxu0 0.0
      %3566 = vmatprep.subr.mxu0 0.0
      %3567 = vmatpush1.msra.mxu0 0.0
      %3568 = vmatprep.subr.mxu0 0.0
      %3569 = vmatpush1.msra.mxu0 0.0
      %3570 = vmatprep.subr.mxu0 0.0
      %3571 = vmatpush1.msra.mxu0 0.0
      %3572 = vmatprep.subr.mxu0 0.0
      %3573 = vmatpush1.msra.mxu0 0.0
      %3574 = vmatprep.subr.mxu0 0.0
      %3575 = vmatpush1.msra.mxu0 0.0
      %3576 = vmatprep.subr.mxu0 0.0
      %3577 = vmatpush1.msra.mxu0 0.0
      %3578 = vmatprep.subr.mxu0 0.0
      %3579 = vmatpush1.msra.mxu0 0.0
      %3580 = vmatprep.subr.mxu0 0.0
      %3581 = vmatpush1.msra.mxu0 0.0
      %3582 = vmatprep.subr.mxu0 0.0
      %3583 = vmatpush1.msra.mxu0 0.0
      %3584 = vmatprep.subr.mxu0 0.0
      %3585 = vmatpush1.msra.mxu0 0.0
      %3586 = vmatprep.subr.mxu0 0.0
      %3587 = vmatpush1.msra.mxu0 0.0
      %3588 = vmatprep.mubr.f32.mxu0 0.0
      %3589 = vmatmul.mubr.f32.gmra.mrb[0].mxu0 %v3456
      %v3590 = vpop.f32.mrb[0].mxu0
      %v3591 = vadd.f32 %v3512, %v3590
      %v3592 = vpop.f32.mrb[0].mxu0
      %v3593 = vadd.f32 %v3516, %v3592
      %3594 = vdwg.mxu0
      %3595 = vmatprep.subr.mxu0 0.0
      %3596 = vmatpush1.msra.mxu0 %v3461
      %3597 = vmatprep.subr.mxu0 0.0
      %3598 = vmatpush1.msra.mxu0 %v3464
      %3599 = vmatprep.subr.mxu0 0.0
      %3600 = vmatpush1.msra.mxu0 %v3467
      %3601 = vmatprep.subr.mxu0 0.0
      %3602 = vmatpush1.msra.mxu0 %v3470
      %3603 = vmatprep.subr.mxu0 0.0
      %3604 = vmatpush1.msra.mxu0 %v3473
      %3605 = vmatprep.subr.mxu0 0.0
      %3606 = vmatpush1.msra.mxu0 %v3476
      %3607 = vmatprep.subr.mxu0 0.0
      %3608 = vmatpush1.msra.mxu0 %v3479
      %3609 = vmatprep.subr.mxu0 0.0
      %3610 = vmatpush1.msra.mxu0 %v3482
      %3611 = vmatprep.subr.mxu0 0.0
      %3612 = vmatpush1.msra.mxu0 %v3485
      %3613 = vmatprep.subr.mxu0 0.0
      %3614 = vmatpush1.msra.mxu0 %v3488
      %3615 = vmatprep.subr.mxu0 0.0
      %3616 = vmatpush1.msra.mxu0 %v3491
      %3617 = vmatprep.subr.mxu0 0.0
      %3618 = vmatpush1.msra.mxu0 %v3494
      %3619 = vmatprep.subr.mxu0 0.0
      %3620 = vmatpush1.msra.mxu0 %v3497
      %3621 = vmatprep.subr.mxu0 0.0
      %3622 = vmatpush1.msra.mxu0 %v3500
      %3623 = vmatprep.subr.mxu0 0.0
      %3624 = vmatpush1.msra.mxu0 %v3503
      %3625 = vmatprep.subr.mxu0 0.0
      %3626 = vmatpush1.msra.mxu0 %v3506
      %3627 = vmatprep.subr.mxu0 0.0
      %3628 = vmatpush1.msra.mxu0 0.0
      %3629 = vmatprep.subr.mxu0 0.0
      %3630 = vmatpush1.msra.mxu0 0.0
      %3631 = vmatprep.subr.mxu0 0.0
      %3632 = vmatpush1.msra.mxu0 0.0
      %3633 = vmatprep.subr.mxu0 0.0
      %3634 = vmatpush1.msra.mxu0 0.0
      %3635 = vmatprep.subr.mxu0 0.0
      %3636 = vmatpush1.msra.mxu0 0.0
      %3637 = vmatprep.subr.mxu0 0.0
      %3638 = vmatpush1.msra.mxu0 0.0
      %3639 = vmatprep.subr.mxu0 0.0
      %3640 = vmatpush1.msra.mxu0 0.0
      %3641 = vmatprep.subr.mxu0 0.0
      %3642 = vmatpush1.msra.mxu0 0.0
      %3643 = vmatprep.subr.mxu0 0.0
      %3644 = vmatpush1.msra.mxu0 0.0
      %3645 = vmatprep.subr.mxu0 0.0
      %3646 = vmatpush1.msra.mxu0 0.0
      %3647 = vmatprep.subr.mxu0 0.0
      %3648 = vmatpush1.msra.mxu0 0.0
      %3649 = vmatprep.subr.mxu0 0.0
      %3650 = vmatpush1.msra.mxu0 0.0
      %3651 = vmatprep.subr.mxu0 0.0
      %3652 = vmatpush1.msra.mxu0 0.0
      %3653 = vmatprep.subr.mxu0 0.0
      %3654 = vmatpush1.msra.mxu0 0.0
      %3655 = vmatprep.subr.mxu0 0.0
      %3656 = vmatpush1.msra.mxu0 0.0
      %3657 = vmatprep.subr.mxu0 0.0
      %3658 = vmatpush1.msra.mxu0 0.0
      %3659 = vmatprep.mubr.f32.mxu0 0.0
      %3660 = vmatmul.mubr.f32.gmra.mrb[0].mxu0 %v3456
      %v3661 = vpop.f32.mrb[0].mxu0
      %v3662 = vadd.f32 %v3520, %v3661
      %v3663 = vpop.f32.mrb[0].mxu0
      %3664 = vdwg.mxu0
      %s3665 = scalar_lea.vmem [#allocation3], 264
      %v3666 = vld [vmem:[%s3665] sm:$0xff]
      %v3667 = vld [vmem:[%s3665 + $0x8] sm:$0xff]
      %v3668 = vld [vmem:[%s3665 + $0x10] sm:$0xff]
      %v3669 = vadd.f32 %v3666, %v3591
      %v3670 = vxor.u32 %v3669, 2147483648
      %v3671 = vmul.f32 %v3670, 1.442695
      %v3672 = vpow.pop %v3671
      %v3673 = vadd.f32 %v3672, 1.0
      %v3674 = vrcp.pop %v3673
      %v3675 = vmul.f32 1.0, %v3674
      %v3676 = vadd.f32 %v3667, %v3593
      %v3677 = vxor.u32 %v3676, 2147483648
      %v3678 = vmul.f32 %v3677, 1.442695
      %v3679 = vpow.pop %v3678
      %v3680 = vadd.f32 %v3679, 1.0
      %v3681 = vrcp.pop %v3680
      %v3682 = vmul.f32 1.0, %v3681
      %v3683 = vmul.f32 %v3675, %v3662
      %v3684 = vadd.f32 %v3668, %v3683
      %v3685 = vtanh.pop %v3684
      %v3686 = vsub.f32 %v3456, %v3685
      %v3687 = vmul.f32 %v3682, %v3686
      %v3688 = vadd.f32 %v3685, %v3687
      %s3689 = scalar_lea.vmem %s226, 88
      %3690 = vst [vmem:[%s3689] sm:$0xff] %v3688
      %v3691 = vld [vmem:[%s2] sm:$0xff]
      %v3692 = vld [vmem:[%s2 + $0x8] sm:$0xff]
      %v3693 = vld [vmem:[%s2 + $0x10] sm:$0xff]
      %v3694 = vld [vmem:[%s2 + $0x18] sm:$0xff]
      %v3695 = vld [vmem:[%s2 + $0x20] sm:$0xff]
      %v3696 = vld [vmem:[%s2 + $0x28] sm:$0xff]
      %v3697 = vld [vmem:[%s2 + $0x30] sm:$0xff]
      %v3698 = vld [vmem:[%s2 + $0x38] sm:$0xff]
      %v3699 = vld [vmem:[%s2 + $0x40] sm:$0xff]
      %v3700 = vld [vmem:[%s2 + $0x48] sm:$0xff]
      %v3701 = vld [vmem:[%s2 + $0x50] sm:$0xff]
      %v3702 = vld [vmem:[%s2 + $0x58] sm:$0xff]
      %v3703 = vld [vmem:[%s2 + $0x60] sm:$0xff]
      %v3704 = vld [vmem:[%s2 + $0x68] sm:$0xff]
      %v3705 = vld [vmem:[%s2 + $0x70] sm:$0xff]
      %v3706 = vld [vmem:[%s2 + $0x78] sm:$0xff]
      %v3707 = vld [vmem:[%s2 + $0x80] sm:$0xff]
      %v3708 = vld [vmem:[%s2 + $0x88] sm:$0xff]
      %v3709 = vld [vmem:[%s2 + $0x90] sm:$0xff]
      %v3710 = vld [vmem:[%s2 + $0x98] sm:$0xff]
      %v3711 = vld [vmem:[%s2 + $0xa0] sm:$0xff]
      %v3712 = vld [vmem:[%s2 + $0xa8] sm:$0xff]
      %v3713 = vld [vmem:[%s2 + $0xb0] sm:$0xff]
      %v3714 = vld [vmem:[%s2 + $0xb8] sm:$0xff]
      %v3715 = vld [vmem:[%s2 + $0xc0] sm:$0xff]
      %v3716 = vld [vmem:[%s2 + $0xc8] sm:$0xff]
      %v3717 = vld [vmem:[%s2 + $0xd0] sm:$0xff]
      %v3718 = vld [vmem:[%s2 + $0xd8] sm:$0xff]
      %v3719 = vld [vmem:[%s2 + $0xe0] sm:$0xff]
      %v3720 = vld [vmem:[%s2 + $0xe8] sm:$0xff]
      %v3721 = vld [vmem:[%s2 + $0xf0] sm:$0xff]
      %v3722 = vld [vmem:[%s2 + $0xf8] sm:$0xff]
      %v3723 = vld [vmem:[%s2 + $0x100] sm:$0xff]
      %v3724 = vld [vmem:[%s2 + $0x108] sm:$0xff]
      %v3725 = vld [vmem:[%s2 + $0x110] sm:$0xff]
      %v3726 = vld [vmem:[%s2 + $0x118] sm:$0xff]
      %v3727 = vld [vmem:[%s2 + $0x120] sm:$0xff]
      %v3728 = vld [vmem:[%s2 + $0x128] sm:$0xff]
      %v3729 = vld [vmem:[%s2 + $0x130] sm:$0xff]
      %v3730 = vld [vmem:[%s2 + $0x138] sm:$0xff]
      %v3731 = vld [vmem:[%s2 + $0x140] sm:$0xff]
      %v3732 = vld [vmem:[%s2 + $0x148] sm:$0xff]
      %v3733 = vld [vmem:[%s2 + $0x150] sm:$0xff]
      %v3734 = vld [vmem:[%s2 + $0x158] sm:$0xff]
      %v3735 = vld [vmem:[%s2 + $0x160] sm:$0xff]
      %v3736 = vld [vmem:[%s2 + $0x168] sm:$0xff]
      %v3737 = vld [vmem:[%s2 + $0x170] sm:$0xff]
      %v3738 = vld [vmem:[%s2 + $0x178] sm:$0xff]
      %v3739 = vld [vmem:[%s4] sm:$0x7]
      %v3741 = vlaneseq
      %v3742 = vshrl.u32 %v3741, 7
      %v3743 = vsub.s32 0, %v3742
      %v3744 = vrot.slane %v3739, %v3743
      %v3745 = vlaneseq
      %v3746 = vshrl.u32 %v3745, 7
      %v3747 = vsub.s32 1, %v3746
      %v3748 = vrot.slane %v3739, %v3747
      %v3749 = vlaneseq
      %v3750 = vshrl.u32 %v3749, 7
      %v3751 = vsub.s32 2, %v3750
      %v3752 = vrot.slane %v3739, %v3751
      %3756 = vmatprep.subr.mxu0 %v3692
      %3757 = vmatpush1.msra.mxu0 %v3691
      %3758 = vmatprep.subr.mxu0 %v3695
      %3759 = vmatpush1.msra.mxu0 %v3694
      %3760 = vmatprep.subr.mxu0 %v3698
      %3761 = vmatpush1.msra.mxu0 %v3697
      %3762 = vmatprep.subr.mxu0 %v3701
      %3763 = vmatpush1.msra.mxu0 %v3700
      %3764 = vmatprep.subr.mxu0 %v3704
      %3765 = vmatpush1.msra.mxu0 %v3703
      %3766 = vmatprep.subr.mxu0 %v3707
      %3767 = vmatpush1.msra.mxu0 %v3706
      %3768 = vmatprep.subr.mxu0 %v3710
      %3769 = vmatpush1.msra.mxu0 %v3709
      %3770 = vmatprep.subr.mxu0 %v3713
      %3771 = vmatpush1.msra.mxu0 %v3712
      %3772 = vmatprep.subr.mxu0 %v3716
      %3773 = vmatpush1.msra.mxu0 %v3715
      %3774 = vmatprep.subr.mxu0 %v3719
      %3775 = vmatpush1.msra.mxu0 %v3718
      %3776 = vmatprep.subr.mxu0 %v3722
      %3777 = vmatpush1.msra.mxu0 %v3721
      %3778 = vmatprep.subr.mxu0 %v3725
      %3779 = vmatpush1.msra.mxu0 %v3724
      %3780 = vmatprep.subr.mxu0 %v3728
      %3781 = vmatpush1.msra.mxu0 %v3727
      %3782 = vmatprep.subr.mxu0 %v3731
      %3783 = vmatpush1.msra.mxu0 %v3730
      %3784 = vmatprep.subr.mxu0 %v3734
      %3785 = vmatpush1.msra.mxu0 %v3733
      %3786 = vmatprep.subr.mxu0 %v3737
      %3787 = vmatpush1.msra.mxu0 %v3736
      %3788 = vmatprep.subr.mxu0 0.0
      %3789 = vmatpush1.msra.mxu0 0.0
      %3790 = vmatprep.subr.mxu0 0.0
      %3791 = vmatpush1.msra.mxu0 0.0
      %3792 = vmatprep.subr.mxu0 0.0
      %3793 = vmatpush1.msra.mxu0 0.0
      %3794 = vmatprep.subr.mxu0 0.0
      %3795 = vmatpush1.msra.mxu0 0.0
      %3796 = vmatprep.subr.mxu0 0.0
      %3797 = vmatpush1.msra.mxu0 0.0
      %3798 = vmatprep.subr.mxu0 0.0
      %3799 = vmatpush1.msra.mxu0 0.0
      %3800 = vmatprep.subr.mxu0 0.0
      %3801 = vmatpush1.msra.mxu0 0.0
      %3802 = vmatprep.subr.mxu0 0.0
      %3803 = vmatpush1.msra.mxu0 0.0
      %3804 = vmatprep.subr.mxu0 0.0
      %3805 = vmatpush1.msra.mxu0 0.0
      %3806 = vmatprep.subr.mxu0 0.0
      %3807 = vmatpush1.msra.mxu0 0.0
      %3808 = vmatprep.subr.mxu0 0.0
      %3809 = vmatpush1.msra.mxu0 0.0
      %3810 = vmatprep.subr.mxu0 0.0
      %3811 = vmatpush1.msra.mxu0 0.0
      %3812 = vmatprep.subr.mxu0 0.0
      %3813 = vmatpush1.msra.mxu0 0.0
      %3814 = vmatprep.subr.mxu0 0.0
      %3815 = vmatpush1.msra.mxu0 0.0
      %3816 = vmatprep.subr.mxu0 0.0
      %3817 = vmatpush1.msra.mxu0 0.0
      %3818 = vmatprep.subr.mxu0 0.0
      %3819 = vmatpush1.msra.mxu0 0.0
      %3820 = vmatprep.mubr.f32.mxu0 0.0
      %3821 = vmatmul.mubr.f32.gmra.mrb[0].mxu0 %v3688
      %v3822 = vpop.f32.mrb[0].mxu0
      %v3823 = vadd.f32 %v3744, %v3822
      %v3824 = vpop.f32.mrb[0].mxu0
      %v3825 = vadd.f32 %v3748, %v3824
      %3826 = vdwg.mxu0
      %3827 = vmatprep.subr.mxu0 0.0
      %3828 = vmatpush1.msra.mxu0 %v3693
      %3829 = vmatprep.subr.mxu0 0.0
      %3830 = vmatpush1.msra.mxu0 %v3696
      %3831 = vmatprep.subr.mxu0 0.0
      %3832 = vmatpush1.msra.mxu0 %v3699
      %3833 = vmatprep.subr.mxu0 0.0
      %3834 = vmatpush1.msra.mxu0 %v3702
      %3835 = vmatprep.subr.mxu0 0.0
      %3836 = vmatpush1.msra.mxu0 %v3705
      %3837 = vmatprep.subr.mxu0 0.0
      %3838 = vmatpush1.msra.mxu0 %v3708
      %3839 = vmatprep.subr.mxu0 0.0
      %3840 = vmatpush1.msra.mxu0 %v3711
      %3841 = vmatprep.subr.mxu0 0.0
      %3842 = vmatpush1.msra.mxu0 %v3714
      %3843 = vmatprep.subr.mxu0 0.0
      %3844 = vmatpush1.msra.mxu0 %v3717
      %3845 = vmatprep.subr.mxu0 0.0
      %3846 = vmatpush1.msra.mxu0 %v3720
      %3847 = vmatprep.subr.mxu0 0.0
      %3848 = vmatpush1.msra.mxu0 %v3723
      %3849 = vmatprep.subr.mxu0 0.0
      %3850 = vmatpush1.msra.mxu0 %v3726
      %3851 = vmatprep.subr.mxu0 0.0
      %3852 = vmatpush1.msra.mxu0 %v3729
      %3853 = vmatprep.subr.mxu0 0.0
      %3854 = vmatpush1.msra.mxu0 %v3732
      %3855 = vmatprep.subr.mxu0 0.0
      %3856 = vmatpush1.msra.mxu0 %v3735
      %3857 = vmatprep.subr.mxu0 0.0
      %3858 = vmatpush1.msra.mxu0 %v3738
      %3859 = vmatprep.subr.mxu0 0.0
      %3860 = vmatpush1.msra.mxu0 0.0
      %3861 = vmatprep.subr.mxu0 0.0
      %3862 = vmatpush1.msra.mxu0 0.0
      %3863 = vmatprep.subr.mxu0 0.0
      %3864 = vmatpush1.msra.mxu0 0.0
      %3865 = vmatprep.subr.mxu0 0.0
      %3866 = vmatpush1.msra.mxu0 0.0
      %3867 = vmatprep.subr.mxu0 0.0
      %3868 = vmatpush1.msra.mxu0 0.0
      %3869 = vmatprep.subr.mxu0 0.0
      %3870 = vmatpush1.msra.mxu0 0.0
      %3871 = vmatprep.subr.mxu0 0.0
      %3872 = vmatpush1.msra.mxu0 0.0
      %3873 = vmatprep.subr.mxu0 0.0
      %3874 = vmatpush1.msra.mxu0 0.0
      %3875 = vmatprep.subr.mxu0 0.0
      %3876 = vmatpush1.msra.mxu0 0.0
      %3877 = vmatprep.subr.mxu0 0.0
      %3878 = vmatpush1.msra.mxu0 0.0
      %3879 = vmatprep.subr.mxu0 0.0
      %3880 = vmatpush1.msra.mxu0 0.0
      %3881 = vmatprep.subr.mxu0 0.0
      %3882 = vmatpush1.msra.mxu0 0.0
      %3883 = vmatprep.subr.mxu0 0.0
      %3884 = vmatpush1.msra.mxu0 0.0
      %3885 = vmatprep.subr.mxu0 0.0
      %3886 = vmatpush1.msra.mxu0 0.0
      %3887 = vmatprep.subr.mxu0 0.0
      %3888 = vmatpush1.msra.mxu0 0.0
      %3889 = vmatprep.subr.mxu0 0.0
      %3890 = vmatpush1.msra.mxu0 0.0
      %3891 = vmatprep.mubr.f32.mxu0 0.0
      %3892 = vmatmul.mubr.f32.gmra.mrb[0].mxu0 %v3688
      %v3893 = vpop.f32.mrb[0].mxu0
      %v3894 = vadd.f32 %v3752, %v3893
      %v3895 = vpop.f32.mrb[0].mxu0
      %3896 = vdwg.mxu0
      %s3897 = scalar_lea.vmem [#allocation3], 288
      %v3898 = vld [vmem:[%s3897] sm:$0xff]
      %v3899 = vld [vmem:[%s3897 + $0x8] sm:$0xff]
      %v3900 = vld [vmem:[%s3897 + $0x10] sm:$0xff]
      %v3901 = vadd.f32 %v3898, %v3823
      %v3902 = vxor.u32 %v3901, 2147483648
      %v3903 = vmul.f32 %v3902, 1.442695
      %v3904 = vpow.pop %v3903
      %v3905 = vadd.f32 %v3904, 1.0
      %v3906 = vrcp.pop %v3905
      %v3907 = vmul.f32 1.0, %v3906
      %v3908 = vadd.f32 %v3899, %v3825
      %v3909 = vxor.u32 %v3908, 2147483648
      %v3910 = vmul.f32 %v3909, 1.442695
      %v3911 = vpow.pop %v3910
      %v3912 = vadd.f32 %v3911, 1.0
      %v3913 = vrcp.pop %v3912
      %v3914 = vmul.f32 1.0, %v3913
      %v3915 = vmul.f32 %v3907, %v3894
      %v3916 = vadd.f32 %v3900, %v3915
      %v3917 = vtanh.pop %v3916
      %v3918 = vsub.f32 %v3688, %v3917
      %v3919 = vmul.f32 %v3914, %v3918
      %v3920 = vadd.f32 %v3917, %v3919
      %s3921 = scalar_lea.vmem %s226, 96
      %3922 = vst [vmem:[%s3921] sm:$0xff] %v3920
      %v3923 = vld [vmem:[%s2] sm:$0xff]
      %v3924 = vld [vmem:[%s2 + $0x8] sm:$0xff]
      %v3925 = vld [vmem:[%s2 + $0x10] sm:$0xff]
      %v3926 = vld [vmem:[%s2 + $0x18] sm:$0xff]
      %v3927 = vld [vmem:[%s2 + $0x20] sm:$0xff]
      %v3928 = vld [vmem:[%s2 + $0x28] sm:$0xff]
      %v3929 = vld [vmem:[%s2 + $0x30] sm:$0xff]
      %v3930 = vld [vmem:[%s2 + $0x38] sm:$0xff]
      %v3931 = vld [vmem:[%s2 + $0x40] sm:$0xff]
      %v3932 = vld [vmem:[%s2 + $0x48] sm:$0xff]
      %v3933 = vld [vmem:[%s2 + $0x50] sm:$0xff]
      %v3934 = vld [vmem:[%s2 + $0x58] sm:$0xff]
      %v3935 = vld [vmem:[%s2 + $0x60] sm:$0xff]
      %v3936 = vld [vmem:[%s2 + $0x68] sm:$0xff]
      %v3937 = vld [vmem:[%s2 + $0x70] sm:$0xff]
      %v3938 = vld [vmem:[%s2 + $0x78] sm:$0xff]
      %v3939 = vld [vmem:[%s2 + $0x80] sm:$0xff]
      %v3940 = vld [vmem:[%s2 + $0x88] sm:$0xff]
      %v3941 = vld [vmem:[%s2 + $0x90] sm:$0xff]
      %v3942 = vld [vmem:[%s2 + $0x98] sm:$0xff]
      %v3943 = vld [vmem:[%s2 + $0xa0] sm:$0xff]
      %v3944 = vld [vmem:[%s2 + $0xa8] sm:$0xff]
      %v3945 = vld [vmem:[%s2 + $0xb0] sm:$0xff]
      %v3946 = vld [vmem:[%s2 + $0xb8] sm:$0xff]
      %v3947 = vld [vmem:[%s2 + $0xc0] sm:$0xff]
      %v3948 = vld [vmem:[%s2 + $0xc8] sm:$0xff]
      %v3949 = vld [vmem:[%s2 + $0xd0] sm:$0xff]
      %v3950 = vld [vmem:[%s2 + $0xd8] sm:$0xff]
      %v3951 = vld [vmem:[%s2 + $0xe0] sm:$0xff]
      %v3952 = vld [vmem:[%s2 + $0xe8] sm:$0xff]
      %v3953 = vld [vmem:[%s2 + $0xf0] sm:$0xff]
      %v3954 = vld [vmem:[%s2 + $0xf8] sm:$0xff]
      %v3955 = vld [vmem:[%s2 + $0x100] sm:$0xff]
      %v3956 = vld [vmem:[%s2 + $0x108] sm:$0xff]
      %v3957 = vld [vmem:[%s2 + $0x110] sm:$0xff]
      %v3958 = vld [vmem:[%s2 + $0x118] sm:$0xff]
      %v3959 = vld [vmem:[%s2 + $0x120] sm:$0xff]
      %v3960 = vld [vmem:[%s2 + $0x128] sm:$0xff]
      %v3961 = vld [vmem:[%s2 + $0x130] sm:$0xff]
      %v3962 = vld [vmem:[%s2 + $0x138] sm:$0xff]
      %v3963 = vld [vmem:[%s2 + $0x140] sm:$0xff]
      %v3964 = vld [vmem:[%s2 + $0x148] sm:$0xff]
      %v3965 = vld [vmem:[%s2 + $0x150] sm:$0xff]
      %v3966 = vld [vmem:[%s2 + $0x158] sm:$0xff]
      %v3967 = vld [vmem:[%s2 + $0x160] sm:$0xff]
      %v3968 = vld [vmem:[%s2 + $0x168] sm:$0xff]
      %v3969 = vld [vmem:[%s2 + $0x170] sm:$0xff]
      %v3970 = vld [vmem:[%s2 + $0x178] sm:$0xff]
      %v3971 = vld [vmem:[%s4] sm:$0x7]
      %v3973 = vlaneseq
      %v3974 = vshrl.u32 %v3973, 7
      %v3975 = vsub.s32 0, %v3974
      %v3976 = vrot.slane %v3971, %v3975
      %v3977 = vlaneseq
      %v3978 = vshrl.u32 %v3977, 7
      %v3979 = vsub.s32 1, %v3978
      %v3980 = vrot.slane %v3971, %v3979
      %v3981 = vlaneseq
      %v3982 = vshrl.u32 %v3981, 7
      %v3983 = vsub.s32 2, %v3982
      %v3984 = vrot.slane %v3971, %v3983
      %3988 = vmatprep.subr.mxu0 %v3924
      %3989 = vmatpush1.msra.mxu0 %v3923
      %3990 = vmatprep.subr.mxu0 %v3927
      %3991 = vmatpush1.msra.mxu0 %v3926
      %3992 = vmatprep.subr.mxu0 %v3930
      %3993 = vmatpush1.msra.mxu0 %v3929
      %3994 = vmatprep.subr.mxu0 %v3933
      %3995 = vmatpush1.msra.mxu0 %v3932
      %3996 = vmatprep.subr.mxu0 %v3936
      %3997 = vmatpush1.msra.mxu0 %v3935
      %3998 = vmatprep.subr.mxu0 %v3939
      %3999 = vmatpush1.msra.mxu0 %v3938
      %4000 = vmatprep.subr.mxu0 %v3942
      %4001 = vmatpush1.msra.mxu0 %v3941
      %4002 = vmatprep.subr.mxu0 %v3945
      %4003 = vmatpush1.msra.mxu0 %v3944
      %4004 = vmatprep.subr.mxu0 %v3948
      %4005 = vmatpush1.msra.mxu0 %v3947
      %4006 = vmatprep.subr.mxu0 %v3951
      %4007 = vmatpush1.msra.mxu0 %v3950
      %4008 = vmatprep.subr.mxu0 %v3954
      %4009 = vmatpush1.msra.mxu0 %v3953
      %4010 = vmatprep.subr.mxu0 %v3957
      %4011 = vmatpush1.msra.mxu0 %v3956
      %4012 = vmatprep.subr.mxu0 %v3960
      %4013 = vmatpush1.msra.mxu0 %v3959
      %4014 = vmatprep.subr.mxu0 %v3963
      %4015 = vmatpush1.msra.mxu0 %v3962
      %4016 = vmatprep.subr.mxu0 %v3966
      %4017 = vmatpush1.msra.mxu0 %v3965
      %4018 = vmatprep.subr.mxu0 %v3969
      %4019 = vmatpush1.msra.mxu0 %v3968
      %4020 = vmatprep.subr.mxu0 0.0
      %4021 = vmatpush1.msra.mxu0 0.0
      %4022 = vmatprep.subr.mxu0 0.0
      %4023 = vmatpush1.msra.mxu0 0.0
      %4024 = vmatprep.subr.mxu0 0.0
      %4025 = vmatpush1.msra.mxu0 0.0
      %4026 = vmatprep.subr.mxu0 0.0
      %4027 = vmatpush1.msra.mxu0 0.0
      %4028 = vmatprep.subr.mxu0 0.0
      %4029 = vmatpush1.msra.mxu0 0.0
      %4030 = vmatprep.subr.mxu0 0.0
      %4031 = vmatpush1.msra.mxu0 0.0
      %4032 = vmatprep.subr.mxu0 0.0
      %4033 = vmatpush1.msra.mxu0 0.0
      %4034 = vmatprep.subr.mxu0 0.0
      %4035 = vmatpush1.msra.mxu0 0.0
      %4036 = vmatprep.subr.mxu0 0.0
      %4037 = vmatpush1.msra.mxu0 0.0
      %4038 = vmatprep.subr.mxu0 0.0
      %4039 = vmatpush1.msra.mxu0 0.0
      %4040 = vmatprep.subr.mxu0 0.0
      %4041 = vmatpush1.msra.mxu0 0.0
      %4042 = vmatprep.subr.mxu0 0.0
      %4043 = vmatpush1.msra.mxu0 0.0
      %4044 = vmatprep.subr.mxu0 0.0
      %4045 = vmatpush1.msra.mxu0 0.0
      %4046 = vmatprep.subr.mxu0 0.0
      %4047 = vmatpush1.msra.mxu0 0.0
      %4048 = vmatprep.subr.mxu0 0.0
      %4049 = vmatpush1.msra.mxu0 0.0
      %4050 = vmatprep.subr.mxu0 0.0
      %4051 = vmatpush1.msra.mxu0 0.0
      %4052 = vmatprep.mubr.f32.mxu0 0.0
      %4053 = vmatmul.mubr.f32.gmra.mrb[0].mxu0 %v3920
      %v4054 = vpop.f32.mrb[0].mxu0
      %v4055 = vadd.f32 %v3976, %v4054
      %v4056 = vpop.f32.mrb[0].mxu0
      %v4057 = vadd.f32 %v3980, %v4056
      %4058 = vdwg.mxu0
      %4059 = vmatprep.subr.mxu0 0.0
      %4060 = vmatpush1.msra.mxu0 %v3925
      %4061 = vmatprep.subr.mxu0 0.0
      %4062 = vmatpush1.msra.mxu0 %v3928
      %4063 = vmatprep.subr.mxu0 0.0
      %4064 = vmatpush1.msra.mxu0 %v3931
      %4065 = vmatprep.subr.mxu0 0.0
      %4066 = vmatpush1.msra.mxu0 %v3934
      %4067 = vmatprep.subr.mxu0 0.0
      %4068 = vmatpush1.msra.mxu0 %v3937
      %4069 = vmatprep.subr.mxu0 0.0
      %4070 = vmatpush1.msra.mxu0 %v3940
      %4071 = vmatprep.subr.mxu0 0.0
      %4072 = vmatpush1.msra.mxu0 %v3943
      %4073 = vmatprep.subr.mxu0 0.0
      %4074 = vmatpush1.msra.mxu0 %v3946
      %4075 = vmatprep.subr.mxu0 0.0
      %4076 = vmatpush1.msra.mxu0 %v3949
      %4077 = vmatprep.subr.mxu0 0.0
      %4078 = vmatpush1.msra.mxu0 %v3952
      %4079 = vmatprep.subr.mxu0 0.0
      %4080 = vmatpush1.msra.mxu0 %v3955
      %4081 = vmatprep.subr.mxu0 0.0
      %4082 = vmatpush1.msra.mxu0 %v3958
      %4083 = vmatprep.subr.mxu0 0.0
      %4084 = vmatpush1.msra.mxu0 %v3961
      %4085 = vmatprep.subr.mxu0 0.0
      %4086 = vmatpush1.msra.mxu0 %v3964
      %4087 = vmatprep.subr.mxu0 0.0
      %4088 = vmatpush1.msra.mxu0 %v3967
      %4089 = vmatprep.subr.mxu0 0.0
      %4090 = vmatpush1.msra.mxu0 %v3970
      %4091 = vmatprep.subr.mxu0 0.0
      %4092 = vmatpush1.msra.mxu0 0.0
      %4093 = vmatprep.subr.mxu0 0.0
      %4094 = vmatpush1.msra.mxu0 0.0
      %4095 = vmatprep.subr.mxu0 0.0
      %4096 = vmatpush1.msra.mxu0 0.0
      %4097 = vmatprep.subr.mxu0 0.0
      %4098 = vmatpush1.msra.mxu0 0.0
      %4099 = vmatprep.subr.mxu0 0.0
      %4100 = vmatpush1.msra.mxu0 0.0
      %4101 = vmatprep.subr.mxu0 0.0
      %4102 = vmatpush1.msra.mxu0 0.0
      %4103 = vmatprep.subr.mxu0 0.0
      %4104 = vmatpush1.msra.mxu0 0.0
      %4105 = vmatprep.subr.mxu0 0.0
      %4106 = vmatpush1.msra.mxu0 0.0
      %4107 = vmatprep.subr.mxu0 0.0
      %4108 = vmatpush1.msra.mxu0 0.0
      %4109 = vmatprep.subr.mxu0 0.0
      %4110 = vmatpush1.msra.mxu0 0.0
      %4111 = vmatprep.subr.mxu0 0.0
      %4112 = vmatpush1.msra.mxu0 0.0
      %4113 = vmatprep.subr.mxu0 0.0
      %4114 = vmatpush1.msra.mxu0 0.0
      %4115 = vmatprep.subr.mxu0 0.0
      %4116 = vmatpush1.msra.mxu0 0.0
      %4117 = vmatprep.subr.mxu0 0.0
      %4118 = vmatpush1.msra.mxu0 0.0
      %4119 = vmatprep.subr.mxu0 0.0
      %4120 = vmatpush1.msra.mxu0 0.0
      %4121 = vmatprep.subr.mxu0 0.0
      %4122 = vmatpush1.msra.mxu0 0.0
      %4123 = vmatprep.mubr.f32.mxu0 0.0
      %4124 = vmatmul.mubr.f32.gmra.mrb[0].mxu0 %v3920
      %v4125 = vpop.f32.mrb[0].mxu0
      %v4126 = vadd.f32 %v3984, %v4125
      %v4127 = vpop.f32.mrb[0].mxu0
      %4128 = vdwg.mxu0
      %s4129 = scalar_lea.vmem [#allocation3], 312
      %v4130 = vld [vmem:[%s4129] sm:$0xff]
      %v4131 = vld [vmem:[%s4129 + $0x8] sm:$0xff]
      %v4132 = vld [vmem:[%s4129 + $0x10] sm:$0xff]
      %v4133 = vadd.f32 %v4130, %v4055
      %v4134 = vxor.u32 %v4133, 2147483648
      %v4135 = vmul.f32 %v4134, 1.442695
      %v4136 = vpow.pop %v4135
      %v4137 = vadd.f32 %v4136, 1.0
      %v4138 = vrcp.pop %v4137
      %v4139 = vmul.f32 1.0, %v4138
      %v4140 = vadd.f32 %v4131, %v4057
      %v4141 = vxor.u32 %v4140, 2147483648
      %v4142 = vmul.f32 %v4141, 1.442695
      %v4143 = vpow.pop %v4142
      %v4144 = vadd.f32 %v4143, 1.0
      %v4145 = vrcp.pop %v4144
      %v4146 = vmul.f32 1.0, %v4145
      %v4147 = vmul.f32 %v4139, %v4126
      %v4148 = vadd.f32 %v4132, %v4147
      %v4149 = vtanh.pop %v4148
      %v4150 = vsub.f32 %v3920, %v4149
      %v4151 = vmul.f32 %v4146, %v4150
      %v4152 = vadd.f32 %v4149, %v4151
      %s4153 = scalar_lea.vmem %s226, 104
      %4154 = vst [vmem:[%s4153] sm:$0xff] %v4152
      %v4155 = vld [vmem:[%s2] sm:$0xff]
      %v4156 = vld [vmem:[%s2 + $0x8] sm:$0xff]
      %v4157 = vld [vmem:[%s2 + $0x10] sm:$0xff]
      %v4158 = vld [vmem:[%s2 + $0x18] sm:$0xff]
      %v4159 = vld [vmem:[%s2 + $0x20] sm:$0xff]
      %v4160 = vld [vmem:[%s2 + $0x28] sm:$0xff]
      %v4161 = vld [vmem:[%s2 + $0x30] sm:$0xff]
      %v4162 = vld [vmem:[%s2 + $0x38] sm:$0xff]
      %v4163 = vld [vmem:[%s2 + $0x40] sm:$0xff]
      %v4164 = vld [vmem:[%s2 + $0x48] sm:$0xff]
      %v4165 = vld [vmem:[%s2 + $0x50] sm:$0xff]
      %v4166 = vld [vmem:[%s2 + $0x58] sm:$0xff]
      %v4167 = vld [vmem:[%s2 + $0x60] sm:$0xff]
      %v4168 = vld [vmem:[%s2 + $0x68] sm:$0xff]
      %v4169 = vld [vmem:[%s2 + $0x70] sm:$0xff]
      %v4170 = vld [vmem:[%s2 + $0x78] sm:$0xff]
      %v4171 = vld [vmem:[%s2 + $0x80] sm:$0xff]
      %v4172 = vld [vmem:[%s2 + $0x88] sm:$0xff]
      %v4173 = vld [vmem:[%s2 + $0x90] sm:$0xff]
      %v4174 = vld [vmem:[%s2 + $0x98] sm:$0xff]
      %v4175 = vld [vmem:[%s2 + $0xa0] sm:$0xff]
      %v4176 = vld [vmem:[%s2 + $0xa8] sm:$0xff]
      %v4177 = vld [vmem:[%s2 + $0xb0] sm:$0xff]
      %v4178 = vld [vmem:[%s2 + $0xb8] sm:$0xff]
      %v4179 = vld [vmem:[%s2 + $0xc0] sm:$0xff]
      %v4180 = vld [vmem:[%s2 + $0xc8] sm:$0xff]
      %v4181 = vld [vmem:[%s2 + $0xd0] sm:$0xff]
      %v4182 = vld [vmem:[%s2 + $0xd8] sm:$0xff]
      %v4183 = vld [vmem:[%s2 + $0xe0] sm:$0xff]
      %v4184 = vld [vmem:[%s2 + $0xe8] sm:$0xff]
      %v4185 = vld [vmem:[%s2 + $0xf0] sm:$0xff]
      %v4186 = vld [vmem:[%s2 + $0xf8] sm:$0xff]
      %v4187 = vld [vmem:[%s2 + $0x100] sm:$0xff]
      %v4188 = vld [vmem:[%s2 + $0x108] sm:$0xff]
      %v4189 = vld [vmem:[%s2 + $0x110] sm:$0xff]
      %v4190 = vld [vmem:[%s2 + $0x118] sm:$0xff]
      %v4191 = vld [vmem:[%s2 + $0x120] sm:$0xff]
      %v4192 = vld [vmem:[%s2 + $0x128] sm:$0xff]
      %v4193 = vld [vmem:[%s2 + $0x130] sm:$0xff]
      %v4194 = vld [vmem:[%s2 + $0x138] sm:$0xff]
      %v4195 = vld [vmem:[%s2 + $0x140] sm:$0xff]
      %v4196 = vld [vmem:[%s2 + $0x148] sm:$0xff]
      %v4197 = vld [vmem:[%s2 + $0x150] sm:$0xff]
      %v4198 = vld [vmem:[%s2 + $0x158] sm:$0xff]
      %v4199 = vld [vmem:[%s2 + $0x160] sm:$0xff]
      %v4200 = vld [vmem:[%s2 + $0x168] sm:$0xff]
      %v4201 = vld [vmem:[%s2 + $0x170] sm:$0xff]
      %v4202 = vld [vmem:[%s2 + $0x178] sm:$0xff]
      %v4203 = vld [vmem:[%s4] sm:$0x7]
      %v4205 = vlaneseq
      %v4206 = vshrl.u32 %v4205, 7
      %v4207 = vsub.s32 0, %v4206
      %v4208 = vrot.slane %v4203, %v4207
      %v4209 = vlaneseq
      %v4210 = vshrl.u32 %v4209, 7
      %v4211 = vsub.s32 1, %v4210
      %v4212 = vrot.slane %v4203, %v4211
      %v4213 = vlaneseq
      %v4214 = vshrl.u32 %v4213, 7
      %v4215 = vsub.s32 2, %v4214
      %v4216 = vrot.slane %v4203, %v4215
      %4220 = vmatprep.subr.mxu0 %v4156
      %4221 = vmatpush1.msra.mxu0 %v4155
      %4222 = vmatprep.subr.mxu0 %v4159
      %4223 = vmatpush1.msra.mxu0 %v4158
      %4224 = vmatprep.subr.mxu0 %v4162
      %4225 = vmatpush1.msra.mxu0 %v4161
      %4226 = vmatprep.subr.mxu0 %v4165
      %4227 = vmatpush1.msra.mxu0 %v4164
      %4228 = vmatprep.subr.mxu0 %v4168
      %4229 = vmatpush1.msra.mxu0 %v4167
      %4230 = vmatprep.subr.mxu0 %v4171
      %4231 = vmatpush1.msra.mxu0 %v4170
      %4232 = vmatprep.subr.mxu0 %v4174
      %4233 = vmatpush1.msra.mxu0 %v4173
      %4234 = vmatprep.subr.mxu0 %v4177
      %4235 = vmatpush1.msra.mxu0 %v4176
      %4236 = vmatprep.subr.mxu0 %v4180
      %4237 = vmatpush1.msra.mxu0 %v4179
      %4238 = vmatprep.subr.mxu0 %v4183
      %4239 = vmatpush1.msra.mxu0 %v4182
      %4240 = vmatprep.subr.mxu0 %v4186
      %4241 = vmatpush1.msra.mxu0 %v4185
      %4242 = vmatprep.subr.mxu0 %v4189
      %4243 = vmatpush1.msra.mxu0 %v4188
      %4244 = vmatprep.subr.mxu0 %v4192
      %4245 = vmatpush1.msra.mxu0 %v4191
      %4246 = vmatprep.subr.mxu0 %v4195
      %4247 = vmatpush1.msra.mxu0 %v4194
      %4248 = vmatprep.subr.mxu0 %v4198
      %4249 = vmatpush1.msra.mxu0 %v4197
      %4250 = vmatprep.subr.mxu0 %v4201
      %4251 = vmatpush1.msra.mxu0 %v4200
      %4252 = vmatprep.subr.mxu0 0.0
      %4253 = vmatpush1.msra.mxu0 0.0
      %4254 = vmatprep.subr.mxu0 0.0
      %4255 = vmatpush1.msra.mxu0 0.0
      %4256 = vmatprep.subr.mxu0 0.0
      %4257 = vmatpush1.msra.mxu0 0.0
      %4258 = vmatprep.subr.mxu0 0.0
      %4259 = vmatpush1.msra.mxu0 0.0
      %4260 = vmatprep.subr.mxu0 0.0
      %4261 = vmatpush1.msra.mxu0 0.0
      %4262 = vmatprep.subr.mxu0 0.0
      %4263 = vmatpush1.msra.mxu0 0.0
      %4264 = vmatprep.subr.mxu0 0.0
      %4265 = vmatpush1.msra.mxu0 0.0
      %4266 = vmatprep.subr.mxu0 0.0
      %4267 = vmatpush1.msra.mxu0 0.0
      %4268 = vmatprep.subr.mxu0 0.0
      %4269 = vmatpush1.msra.mxu0 0.0
      %4270 = vmatprep.subr.mxu0 0.0
      %4271 = vmatpush1.msra.mxu0 0.0
      %4272 = vmatprep.subr.mxu0 0.0
      %4273 = vmatpush1.msra.mxu0 0.0
      %4274 = vmatprep.subr.mxu0 0.0
      %4275 = vmatpush1.msra.mxu0 0.0
      %4276 = vmatprep.subr.mxu0 0.0
      %4277 = vmatpush1.msra.mxu0 0.0
      %4278 = vmatprep.subr.mxu0 0.0
      %4279 = vmatpush1.msra.mxu0 0.0
      %4280 = vmatprep.subr.mxu0 0.0
      %4281 = vmatpush1.msra.mxu0 0.0
      %4282 = vmatprep.subr.mxu0 0.0
      %4283 = vmatpush1.msra.mxu0 0.0
      %4284 = vmatprep.mubr.f32.mxu0 0.0
      %4285 = vmatmul.mubr.f32.gmra.mrb[0].mxu0 %v4152
      %v4286 = vpop.f32.mrb[0].mxu0
      %v4287 = vadd.f32 %v4208, %v4286
      %v4288 = vpop.f32.mrb[0].mxu0
      %v4289 = vadd.f32 %v4212, %v4288
      %4290 = vdwg.mxu0
      %4291 = vmatprep.subr.mxu0 0.0
      %4292 = vmatpush1.msra.mxu0 %v4157
      %4293 = vmatprep.subr.mxu0 0.0
      %4294 = vmatpush1.msra.mxu0 %v4160
      %4295 = vmatprep.subr.mxu0 0.0
      %4296 = vmatpush1.msra.mxu0 %v4163
      %4297 = vmatprep.subr.mxu0 0.0
      %4298 = vmatpush1.msra.mxu0 %v4166
      %4299 = vmatprep.subr.mxu0 0.0
      %4300 = vmatpush1.msra.mxu0 %v4169
      %4301 = vmatprep.subr.mxu0 0.0
      %4302 = vmatpush1.msra.mxu0 %v4172
      %4303 = vmatprep.subr.mxu0 0.0
      %4304 = vmatpush1.msra.mxu0 %v4175
      %4305 = vmatprep.subr.mxu0 0.0
      %4306 = vmatpush1.msra.mxu0 %v4178
      %4307 = vmatprep.subr.mxu0 0.0
      %4308 = vmatpush1.msra.mxu0 %v4181
      %4309 = vmatprep.subr.mxu0 0.0
      %4310 = vmatpush1.msra.mxu0 %v4184
      %4311 = vmatprep.subr.mxu0 0.0
      %4312 = vmatpush1.msra.mxu0 %v4187
      %4313 = vmatprep.subr.mxu0 0.0
      %4314 = vmatpush1.msra.mxu0 %v4190
      %4315 = vmatprep.subr.mxu0 0.0
      %4316 = vmatpush1.msra.mxu0 %v4193
      %4317 = vmatprep.subr.mxu0 0.0
      %4318 = vmatpush1.msra.mxu0 %v4196
      %4319 = vmatprep.subr.mxu0 0.0
      %4320 = vmatpush1.msra.mxu0 %v4199
      %4321 = vmatprep.subr.mxu0 0.0
      %4322 = vmatpush1.msra.mxu0 %v4202
      %4323 = vmatprep.subr.mxu0 0.0
      %4324 = vmatpush1.msra.mxu0 0.0
      %4325 = vmatprep.subr.mxu0 0.0
      %4326 = vmatpush1.msra.mxu0 0.0
      %4327 = vmatprep.subr.mxu0 0.0
      %4328 = vmatpush1.msra.mxu0 0.0
      %4329 = vmatprep.subr.mxu0 0.0
      %4330 = vmatpush1.msra.mxu0 0.0
      %4331 = vmatprep.subr.mxu0 0.0
      %4332 = vmatpush1.msra.mxu0 0.0
      %4333 = vmatprep.subr.mxu0 0.0
      %4334 = vmatpush1.msra.mxu0 0.0
      %4335 = vmatprep.subr.mxu0 0.0
      %4336 = vmatpush1.msra.mxu0 0.0
      %4337 = vmatprep.subr.mxu0 0.0
      %4338 = vmatpush1.msra.mxu0 0.0
      %4339 = vmatprep.subr.mxu0 0.0
      %4340 = vmatpush1.msra.mxu0 0.0
      %4341 = vmatprep.subr.mxu0 0.0
      %4342 = vmatpush1.msra.mxu0 0.0
      %4343 = vmatprep.subr.mxu0 0.0
      %4344 = vmatpush1.msra.mxu0 0.0
      %4345 = vmatprep.subr.mxu0 0.0
      %4346 = vmatpush1.msra.mxu0 0.0
      %4347 = vmatprep.subr.mxu0 0.0
      %4348 = vmatpush1.msra.mxu0 0.0
      %4349 = vmatprep.subr.mxu0 0.0
      %4350 = vmatpush1.msra.mxu0 0.0
      %4351 = vmatprep.subr.mxu0 0.0
      %4352 = vmatpush1.msra.mxu0 0.0
      %4353 = vmatprep.subr.mxu0 0.0
      %4354 = vmatpush1.msra.mxu0 0.0
      %4355 = vmatprep.mubr.f32.mxu0 0.0
      %4356 = vmatmul.mubr.f32.gmra.mrb[0].mxu0 %v4152
      %v4357 = vpop.f32.mrb[0].mxu0
      %v4358 = vadd.f32 %v4216, %v4357
      %v4359 = vpop.f32.mrb[0].mxu0
      %4360 = vdwg.mxu0
      %s4361 = scalar_lea.vmem [#allocation3], 336
      %v4362 = vld [vmem:[%s4361] sm:$0xff]
      %v4363 = vld [vmem:[%s4361 + $0x8] sm:$0xff]
      %v4364 = vld [vmem:[%s4361 + $0x10] sm:$0xff]
      %v4365 = vadd.f32 %v4362, %v4287
      %v4366 = vxor.u32 %v4365, 2147483648
      %v4367 = vmul.f32 %v4366, 1.442695
      %v4368 = vpow.pop %v4367
      %v4369 = vadd.f32 %v4368, 1.0
      %v4370 = vrcp.pop %v4369
      %v4371 = vmul.f32 1.0, %v4370
      %v4372 = vadd.f32 %v4363, %v4289
      %v4373 = vxor.u32 %v4372, 2147483648
      %v4374 = vmul.f32 %v4373, 1.442695
      %v4375 = vpow.pop %v4374
      %v4376 = vadd.f32 %v4375, 1.0
      %v4377 = vrcp.pop %v4376
      %v4378 = vmul.f32 1.0, %v4377
      %v4379 = vmul.f32 %v4371, %v4358
      %v4380 = vadd.f32 %v4364, %v4379
      %v4381 = vtanh.pop %v4380
      %v4382 = vsub.f32 %v4152, %v4381
      %v4383 = vmul.f32 %v4378, %v4382
      %v4384 = vadd.f32 %v4381, %v4383
      %s4385 = scalar_lea.vmem %s226, 112
      %4386 = vst [vmem:[%s4385] sm:$0xff] %v4384
      %v4387 = vld [vmem:[%s2] sm:$0xff]
      %v4388 = vld [vmem:[%s2 + $0x8] sm:$0xff]
      %v4389 = vld [vmem:[%s2 + $0x10] sm:$0xff]
      %v4390 = vld [vmem:[%s2 + $0x18] sm:$0xff]
      %v4391 = vld [vmem:[%s2 + $0x20] sm:$0xff]
      %v4392 = vld [vmem:[%s2 + $0x28] sm:$0xff]
      %v4393 = vld [vmem:[%s2 + $0x30] sm:$0xff]
      %v4394 = vld [vmem:[%s2 + $0x38] sm:$0xff]
      %v4395 = vld [vmem:[%s2 + $0x40] sm:$0xff]
      %v4396 = vld [vmem:[%s2 + $0x48] sm:$0xff]
      %v4397 = vld [vmem:[%s2 + $0x50] sm:$0xff]
      %v4398 = vld [vmem:[%s2 + $0x58] sm:$0xff]
      %v4399 = vld [vmem:[%s2 + $0x60] sm:$0xff]
      %v4400 = vld [vmem:[%s2 + $0x68] sm:$0xff]
      %v4401 = vld [vmem:[%s2 + $0x70] sm:$0xff]
      %v4402 = vld [vmem:[%s2 + $0x78] sm:$0xff]
      %v4403 = vld [vmem:[%s2 + $0x80] sm:$0xff]
      %v4404 = vld [vmem:[%s2 + $0x88] sm:$0xff]
      %v4405 = vld [vmem:[%s2 + $0x90] sm:$0xff]
      %v4406 = vld [vmem:[%s2 + $0x98] sm:$0xff]
      %v4407 = vld [vmem:[%s2 + $0xa0] sm:$0xff]
      %v4408 = vld [vmem:[%s2 + $0xa8] sm:$0xff]
      %v4409 = vld [vmem:[%s2 + $0xb0] sm:$0xff]
      %v4410 = vld [vmem:[%s2 + $0xb8] sm:$0xff]
      %v4411 = vld [vmem:[%s2 + $0xc0] sm:$0xff]
      %v4412 = vld [vmem:[%s2 + $0xc8] sm:$0xff]
      %v4413 = vld [vmem:[%s2 + $0xd0] sm:$0xff]
      %v4414 = vld [vmem:[%s2 + $0xd8] sm:$0xff]
      %v4415 = vld [vmem:[%s2 + $0xe0] sm:$0xff]
      %v4416 = vld [vmem:[%s2 + $0xe8] sm:$0xff]
      %v4417 = vld [vmem:[%s2 + $0xf0] sm:$0xff]
      %v4418 = vld [vmem:[%s2 + $0xf8] sm:$0xff]
      %v4419 = vld [vmem:[%s2 + $0x100] sm:$0xff]
      %v4420 = vld [vmem:[%s2 + $0x108] sm:$0xff]
      %v4421 = vld [vmem:[%s2 + $0x110] sm:$0xff]
      %v4422 = vld [vmem:[%s2 + $0x118] sm:$0xff]
      %v4423 = vld [vmem:[%s2 + $0x120] sm:$0xff]
      %v4424 = vld [vmem:[%s2 + $0x128] sm:$0xff]
      %v4425 = vld [vmem:[%s2 + $0x130] sm:$0xff]
      %v4426 = vld [vmem:[%s2 + $0x138] sm:$0xff]
      %v4427 = vld [vmem:[%s2 + $0x140] sm:$0xff]
      %v4428 = vld [vmem:[%s2 + $0x148] sm:$0xff]
      %v4429 = vld [vmem:[%s2 + $0x150] sm:$0xff]
      %v4430 = vld [vmem:[%s2 + $0x158] sm:$0xff]
      %v4431 = vld [vmem:[%s2 + $0x160] sm:$0xff]
      %v4432 = vld [vmem:[%s2 + $0x168] sm:$0xff]
      %v4433 = vld [vmem:[%s2 + $0x170] sm:$0xff]
      %v4434 = vld [vmem:[%s2 + $0x178] sm:$0xff]
      %v4435 = vld [vmem:[%s4] sm:$0x7]
      %v4437 = vlaneseq
      %v4438 = vshrl.u32 %v4437, 7
      %v4439 = vsub.s32 0, %v4438
      %v4440 = vrot.slane %v4435, %v4439
      %v4441 = vlaneseq
      %v4442 = vshrl.u32 %v4441, 7
      %v4443 = vsub.s32 1, %v4442
      %v4444 = vrot.slane %v4435, %v4443
      %v4445 = vlaneseq
      %v4446 = vshrl.u32 %v4445, 7
      %v4447 = vsub.s32 2, %v4446
      %v4448 = vrot.slane %v4435, %v4447
      %4452 = vmatprep.subr.mxu0 %v4388
      %4453 = vmatpush1.msra.mxu0 %v4387
      %4454 = vmatprep.subr.mxu0 %v4391
      %4455 = vmatpush1.msra.mxu0 %v4390
      %4456 = vmatprep.subr.mxu0 %v4394
      %4457 = vmatpush1.msra.mxu0 %v4393
      %4458 = vmatprep.subr.mxu0 %v4397
      %4459 = vmatpush1.msra.mxu0 %v4396
      %4460 = vmatprep.subr.mxu0 %v4400
      %4461 = vmatpush1.msra.mxu0 %v4399
      %4462 = vmatprep.subr.mxu0 %v4403
      %4463 = vmatpush1.msra.mxu0 %v4402
      %4464 = vmatprep.subr.mxu0 %v4406
      %4465 = vmatpush1.msra.mxu0 %v4405
      %4466 = vmatprep.subr.mxu0 %v4409
      %4467 = vmatpush1.msra.mxu0 %v4408
      %4468 = vmatprep.subr.mxu0 %v4412
      %4469 = vmatpush1.msra.mxu0 %v4411
      %4470 = vmatprep.subr.mxu0 %v4415
      %4471 = vmatpush1.msra.mxu0 %v4414
      %4472 = vmatprep.subr.mxu0 %v4418
      %4473 = vmatpush1.msra.mxu0 %v4417
      %4474 = vmatprep.subr.mxu0 %v4421
      %4475 = vmatpush1.msra.mxu0 %v4420
      %4476 = vmatprep.subr.mxu0 %v4424
      %4477 = vmatpush1.msra.mxu0 %v4423
      %4478 = vmatprep.subr.mxu0 %v4427
      %4479 = vmatpush1.msra.mxu0 %v4426
      %4480 = vmatprep.subr.mxu0 %v4430
      %4481 = vmatpush1.msra.mxu0 %v4429
      %4482 = vmatprep.subr.mxu0 %v4433
      %4483 = vmatpush1.msra.mxu0 %v4432
      %4484 = vmatprep.subr.mxu0 0.0
      %4485 = vmatpush1.msra.mxu0 0.0
      %4486 = vmatprep.subr.mxu0 0.0
      %4487 = vmatpush1.msra.mxu0 0.0
      %4488 = vmatprep.subr.mxu0 0.0
      %4489 = vmatpush1.msra.mxu0 0.0
      %4490 = vmatprep.subr.mxu0 0.0
      %4491 = vmatpush1.msra.mxu0 0.0
      %4492 = vmatprep.subr.mxu0 0.0
      %4493 = vmatpush1.msra.mxu0 0.0
      %4494 = vmatprep.subr.mxu0 0.0
      %4495 = vmatpush1.msra.mxu0 0.0
      %4496 = vmatprep.subr.mxu0 0.0
      %4497 = vmatpush1.msra.mxu0 0.0
      %4498 = vmatprep.subr.mxu0 0.0
      %4499 = vmatpush1.msra.mxu0 0.0
      %4500 = vmatprep.subr.mxu0 0.0
      %4501 = vmatpush1.msra.mxu0 0.0
      %4502 = vmatprep.subr.mxu0 0.0
      %4503 = vmatpush1.msra.mxu0 0.0
      %4504 = vmatprep.subr.mxu0 0.0
      %4505 = vmatpush1.msra.mxu0 0.0
      %4506 = vmatprep.subr.mxu0 0.0
      %4507 = vmatpush1.msra.mxu0 0.0
      %4508 = vmatprep.subr.mxu0 0.0
      %4509 = vmatpush1.msra.mxu0 0.0
      %4510 = vmatprep.subr.mxu0 0.0
      %4511 = vmatpush1.msra.mxu0 0.0
      %4512 = vmatprep.subr.mxu0 0.0
      %4513 = vmatpush1.msra.mxu0 0.0
      %4514 = vmatprep.subr.mxu0 0.0
      %4515 = vmatpush1.msra.mxu0 0.0
      %4516 = vmatprep.mubr.f32.mxu0 0.0
      %4517 = vmatmul.mubr.f32.gmra.mrb[0].mxu0 %v4384
      %v4518 = vpop.f32.mrb[0].mxu0
      %v4519 = vadd.f32 %v4440, %v4518
      %v4520 = vpop.f32.mrb[0].mxu0
      %v4521 = vadd.f32 %v4444, %v4520
      %4522 = vdwg.mxu0
      %4523 = vmatprep.subr.mxu0 0.0
      %4524 = vmatpush1.msra.mxu0 %v4389
      %4525 = vmatprep.subr.mxu0 0.0
      %4526 = vmatpush1.msra.mxu0 %v4392
      %4527 = vmatprep.subr.mxu0 0.0
      %4528 = vmatpush1.msra.mxu0 %v4395
      %4529 = vmatprep.subr.mxu0 0.0
      %4530 = vmatpush1.msra.mxu0 %v4398
      %4531 = vmatprep.subr.mxu0 0.0
      %4532 = vmatpush1.msra.mxu0 %v4401
      %4533 = vmatprep.subr.mxu0 0.0
      %4534 = vmatpush1.msra.mxu0 %v4404
      %4535 = vmatprep.subr.mxu0 0.0
      %4536 = vmatpush1.msra.mxu0 %v4407
      %4537 = vmatprep.subr.mxu0 0.0
      %4538 = vmatpush1.msra.mxu0 %v4410
      %4539 = vmatprep.subr.mxu0 0.0
      %4540 = vmatpush1.msra.mxu0 %v4413
      %4541 = vmatprep.subr.mxu0 0.0
      %4542 = vmatpush1.msra.mxu0 %v4416
      %4543 = vmatprep.subr.mxu0 0.0
      %4544 = vmatpush1.msra.mxu0 %v4419
      %4545 = vmatprep.subr.mxu0 0.0
      %4546 = vmatpush1.msra.mxu0 %v4422
      %4547 = vmatprep.subr.mxu0 0.0
      %4548 = vmatpush1.msra.mxu0 %v4425
      %4549 = vmatprep.subr.mxu0 0.0
      %4550 = vmatpush1.msra.mxu0 %v4428
      %4551 = vmatprep.subr.mxu0 0.0
      %4552 = vmatpush1.msra.mxu0 %v4431
      %4553 = vmatprep.subr.mxu0 0.0
      %4554 = vmatpush1.msra.mxu0 %v4434
      %4555 = vmatprep.subr.mxu0 0.0
      %4556 = vmatpush1.msra.mxu0 0.0
      %4557 = vmatprep.subr.mxu0 0.0
      %4558 = vmatpush1.msra.mxu0 0.0
      %4559 = vmatprep.subr.mxu0 0.0
      %4560 = vmatpush1.msra.mxu0 0.0
      %4561 = vmatprep.subr.mxu0 0.0
      %4562 = vmatpush1.msra.mxu0 0.0
      %4563 = vmatprep.subr.mxu0 0.0
      %4564 = vmatpush1.msra.mxu0 0.0
      %4565 = vmatprep.subr.mxu0 0.0
      %4566 = vmatpush1.msra.mxu0 0.0
      %4567 = vmatprep.subr.mxu0 0.0
      %4568 = vmatpush1.msra.mxu0 0.0
      %4569 = vmatprep.subr.mxu0 0.0
      %4570 = vmatpush1.msra.mxu0 0.0
      %4571 = vmatprep.subr.mxu0 0.0
      %4572 = vmatpush1.msra.mxu0 0.0
      %4573 = vmatprep.subr.mxu0 0.0
      %4574 = vmatpush1.msra.mxu0 0.0
      %4575 = vmatprep.subr.mxu0 0.0
      %4576 = vmatpush1.msra.mxu0 0.0
      %4577 = vmatprep.subr.mxu0 0.0
      %4578 = vmatpush1.msra.mxu0 0.0
      %4579 = vmatprep.subr.mxu0 0.0
      %4580 = vmatpush1.msra.mxu0 0.0
      %4581 = vmatprep.subr.mxu0 0.0
      %4582 = vmatpush1.msra.mxu0 0.0
      %4583 = vmatprep.subr.mxu0 0.0
      %4584 = vmatpush1.msra.mxu0 0.0
      %4585 = vmatprep.subr.mxu0 0.0
      %4586 = vmatpush1.msra.mxu0 0.0
      %4587 = vmatprep.mubr.f32.mxu0 0.0
      %4588 = vmatmul.mubr.f32.gmra.mrb[0].mxu0 %v4384
      %v4589 = vpop.f32.mrb[0].mxu0
      %v4590 = vadd.f32 %v4448, %v4589
      %v4591 = vpop.f32.mrb[0].mxu0
      %4592 = vdwg.mxu0
      %s4593 = scalar_lea.vmem [#allocation3], 360
      %v4594 = vld [vmem:[%s4593] sm:$0xff]
      %v4595 = vld [vmem:[%s4593 + $0x8] sm:$0xff]
      %v4596 = vld [vmem:[%s4593 + $0x10] sm:$0xff]
      %v4597 = vadd.f32 %v4594, %v4519
      %v4598 = vxor.u32 %v4597, 2147483648
      %v4599 = vmul.f32 %v4598, 1.442695
      %v4600 = vpow.pop %v4599
      %v4601 = vadd.f32 %v4600, 1.0
      %v4602 = vrcp.pop %v4601
      %v4603 = vmul.f32 1.0, %v4602
      %v4604 = vadd.f32 %v4595, %v4521
      %v4605 = vxor.u32 %v4604, 2147483648
      %v4606 = vmul.f32 %v4605, 1.442695
      %v4607 = vpow.pop %v4606
      %v4608 = vadd.f32 %v4607, 1.0
      %v4609 = vrcp.pop %v4608
      %v4610 = vmul.f32 1.0, %v4609
      %v4611 = vmul.f32 %v4603, %v4590
      %v4612 = vadd.f32 %v4596, %v4611
      %v4613 = vtanh.pop %v4612
      %v4614 = vsub.f32 %v4384, %v4613
      %v4615 = vmul.f32 %v4610, %v4614
      %v4616 = vadd.f32 %v4613, %v4615
      %s4617 = scalar_lea.vmem %s226, 120
      %4618 = vst [vmem:[%s4617] sm:$0xff] %v4616
      %v4619 = vld [vmem:[%s2] sm:$0xff]
      %v4620 = vld [vmem:[%s2 + $0x8] sm:$0xff]
      %v4621 = vld [vmem:[%s2 + $0x10] sm:$0xff]
      %v4622 = vld [vmem:[%s2 + $0x18] sm:$0xff]
      %v4623 = vld [vmem:[%s2 + $0x20] sm:$0xff]
      %v4624 = vld [vmem:[%s2 + $0x28] sm:$0xff]
      %v4625 = vld [vmem:[%s2 + $0x30] sm:$0xff]
      %v4626 = vld [vmem:[%s2 + $0x38] sm:$0xff]
      %v4627 = vld [vmem:[%s2 + $0x40] sm:$0xff]
      %v4628 = vld [vmem:[%s2 + $0x48] sm:$0xff]
      %v4629 = vld [vmem:[%s2 + $0x50] sm:$0xff]
      %v4630 = vld [vmem:[%s2 + $0x58] sm:$0xff]
      %v4631 = vld [vmem:[%s2 + $0x60] sm:$0xff]
      %v4632 = vld [vmem:[%s2 + $0x68] sm:$0xff]
      %v4633 = vld [vmem:[%s2 + $0x70] sm:$0xff]
      %v4634 = vld [vmem:[%s2 + $0x78] sm:$0xff]
      %v4635 = vld [vmem:[%s2 + $0x80] sm:$0xff]
      %v4636 = vld [vmem:[%s2 + $0x88] sm:$0xff]
      %v4637 = vld [vmem:[%s2 + $0x90] sm:$0xff]
      %v4638 = vld [vmem:[%s2 + $0x98] sm:$0xff]
      %v4639 = vld [vmem:[%s2 + $0xa0] sm:$0xff]
      %v4640 = vld [vmem:[%s2 + $0xa8] sm:$0xff]
      %v4641 = vld [vmem:[%s2 + $0xb0] sm:$0xff]
      %v4642 = vld [vmem:[%s2 + $0xb8] sm:$0xff]
      %v4643 = vld [vmem:[%s2 + $0xc0] sm:$0xff]
      %v4644 = vld [vmem:[%s2 + $0xc8] sm:$0xff]
      %v4645 = vld [vmem:[%s2 + $0xd0] sm:$0xff]
      %v4646 = vld [vmem:[%s2 + $0xd8] sm:$0xff]
      %v4647 = vld [vmem:[%s2 + $0xe0] sm:$0xff]
      %v4648 = vld [vmem:[%s2 + $0xe8] sm:$0xff]
      %v4649 = vld [vmem:[%s2 + $0xf0] sm:$0xff]
      %v4650 = vld [vmem:[%s2 + $0xf8] sm:$0xff]
      %v4651 = vld [vmem:[%s2 + $0x100] sm:$0xff]
      %v4652 = vld [vmem:[%s2 + $0x108] sm:$0xff]
      %v4653 = vld [vmem:[%s2 + $0x110] sm:$0xff]
      %v4654 = vld [vmem:[%s2 + $0x118] sm:$0xff]
      %v4655 = vld [vmem:[%s2 + $0x120] sm:$0xff]
      %v4656 = vld [vmem:[%s2 + $0x128] sm:$0xff]
      %v4657 = vld [vmem:[%s2 + $0x130] sm:$0xff]
      %v4658 = vld [vmem:[%s2 + $0x138] sm:$0xff]
      %v4659 = vld [vmem:[%s2 + $0x140] sm:$0xff]
      %v4660 = vld [vmem:[%s2 + $0x148] sm:$0xff]
      %v4661 = vld [vmem:[%s2 + $0x150] sm:$0xff]
      %v4662 = vld [vmem:[%s2 + $0x158] sm:$0xff]
      %v4663 = vld [vmem:[%s2 + $0x160] sm:$0xff]
      %v4664 = vld [vmem:[%s2 + $0x168] sm:$0xff]
      %v4665 = vld [vmem:[%s2 + $0x170] sm:$0xff]
      %v4666 = vld [vmem:[%s2 + $0x178] sm:$0xff]
      %v4667 = vld [vmem:[%s4] sm:$0x7]
      %v4669 = vlaneseq
      %v4670 = vshrl.u32 %v4669, 7
      %v4671 = vsub.s32 0, %v4670
      %v4672 = vrot.slane %v4667, %v4671
      %v4673 = vlaneseq
      %v4674 = vshrl.u32 %v4673, 7
      %v4675 = vsub.s32 1, %v4674
      %v4676 = vrot.slane %v4667, %v4675
      %v4677 = vlaneseq
      %v4678 = vshrl.u32 %v4677, 7
      %v4679 = vsub.s32 2, %v4678
      %v4680 = vrot.slane %v4667, %v4679
      %4684 = vmatprep.subr.mxu0 %v4620
      %4685 = vmatpush1.msra.mxu0 %v4619
      %4686 = vmatprep.subr.mxu0 %v4623
      %4687 = vmatpush1.msra.mxu0 %v4622
      %4688 = vmatprep.subr.mxu0 %v4626
      %4689 = vmatpush1.msra.mxu0 %v4625
      %4690 = vmatprep.subr.mxu0 %v4629
      %4691 = vmatpush1.msra.mxu0 %v4628
      %4692 = vmatprep.subr.mxu0 %v4632
      %4693 = vmatpush1.msra.mxu0 %v4631
      %4694 = vmatprep.subr.mxu0 %v4635
      %4695 = vmatpush1.msra.mxu0 %v4634
      %4696 = vmatprep.subr.mxu0 %v4638
      %4697 = vmatpush1.msra.mxu0 %v4637
      %4698 = vmatprep.subr.mxu0 %v4641
      %4699 = vmatpush1.msra.mxu0 %v4640
      %4700 = vmatprep.subr.mxu0 %v4644
      %4701 = vmatpush1.msra.mxu0 %v4643
      %4702 = vmatprep.subr.mxu0 %v4647
      %4703 = vmatpush1.msra.mxu0 %v4646
      %4704 = vmatprep.subr.mxu0 %v4650
      %4705 = vmatpush1.msra.mxu0 %v4649
      %4706 = vmatprep.subr.mxu0 %v4653
      %4707 = vmatpush1.msra.mxu0 %v4652
      %4708 = vmatprep.subr.mxu0 %v4656
      %4709 = vmatpush1.msra.mxu0 %v4655
      %4710 = vmatprep.subr.mxu0 %v4659
      %4711 = vmatpush1.msra.mxu0 %v4658
      %4712 = vmatprep.subr.mxu0 %v4662
      %4713 = vmatpush1.msra.mxu0 %v4661
      %4714 = vmatprep.subr.mxu0 %v4665
      %4715 = vmatpush1.msra.mxu0 %v4664
      %4716 = vmatprep.subr.mxu0 0.0
      %4717 = vmatpush1.msra.mxu0 0.0
      %4718 = vmatprep.subr.mxu0 0.0
      %4719 = vmatpush1.msra.mxu0 0.0
      %4720 = vmatprep.subr.mxu0 0.0
      %4721 = vmatpush1.msra.mxu0 0.0
      %4722 = vmatprep.subr.mxu0 0.0
      %4723 = vmatpush1.msra.mxu0 0.0
      %4724 = vmatprep.subr.mxu0 0.0
      %4725 = vmatpush1.msra.mxu0 0.0
      %4726 = vmatprep.subr.mxu0 0.0
      %4727 = vmatpush1.msra.mxu0 0.0
      %4728 = vmatprep.subr.mxu0 0.0
      %4729 = vmatpush1.msra.mxu0 0.0
      %4730 = vmatprep.subr.mxu0 0.0
      %4731 = vmatpush1.msra.mxu0 0.0
      %4732 = vmatprep.subr.mxu0 0.0
      %4733 = vmatpush1.msra.mxu0 0.0
      %4734 = vmatprep.subr.mxu0 0.0
      %4735 = vmatpush1.msra.mxu0 0.0
      %4736 = vmatprep.subr.mxu0 0.0
      %4737 = vmatpush1.msra.mxu0 0.0
      %4738 = vmatprep.subr.mxu0 0.0
      %4739 = vmatpush1.msra.mxu0 0.0
      %4740 = vmatprep.subr.mxu0 0.0
      %4741 = vmatpush1.msra.mxu0 0.0
      %4742 = vmatprep.subr.mxu0 0.0
      %4743 = vmatpush1.msra.mxu0 0.0
      %4744 = vmatprep.subr.mxu0 0.0
      %4745 = vmatpush1.msra.mxu0 0.0
      %4746 = vmatprep.subr.mxu0 0.0
      %4747 = vmatpush1.msra.mxu0 0.0
      %4748 = vmatprep.mubr.f32.mxu0 0.0
      %4749 = vmatmul.mubr.f32.gmra.mrb[0].mxu0 %v4616
      %v4750 = vpop.f32.mrb[0].mxu0
      %v4751 = vadd.f32 %v4672, %v4750
      %v4752 = vpop.f32.mrb[0].mxu0
      %v4753 = vadd.f32 %v4676, %v4752
      %4754 = vdwg.mxu0
      %4755 = vmatprep.subr.mxu0 0.0
      %4756 = vmatpush1.msra.mxu0 %v4621
      %4757 = vmatprep.subr.mxu0 0.0
      %4758 = vmatpush1.msra.mxu0 %v4624
      %4759 = vmatprep.subr.mxu0 0.0
      %4760 = vmatpush1.msra.mxu0 %v4627
      %4761 = vmatprep.subr.mxu0 0.0
      %4762 = vmatpush1.msra.mxu0 %v4630
      %4763 = vmatprep.subr.mxu0 0.0
      %4764 = vmatpush1.msra.mxu0 %v4633
      %4765 = vmatprep.subr.mxu0 0.0
      %4766 = vmatpush1.msra.mxu0 %v4636
      %4767 = vmatprep.subr.mxu0 0.0
      %4768 = vmatpush1.msra.mxu0 %v4639
      %4769 = vmatprep.subr.mxu0 0.0
      %4770 = vmatpush1.msra.mxu0 %v4642
      %4771 = vmatprep.subr.mxu0 0.0
      %4772 = vmatpush1.msra.mxu0 %v4645
      %4773 = vmatprep.subr.mxu0 0.0
      %4774 = vmatpush1.msra.mxu0 %v4648
      %4775 = vmatprep.subr.mxu0 0.0
      %4776 = vmatpush1.msra.mxu0 %v4651
      %4777 = vmatprep.subr.mxu0 0.0
      %4778 = vmatpush1.msra.mxu0 %v4654
      %4779 = vmatprep.subr.mxu0 0.0
      %4780 = vmatpush1.msra.mxu0 %v4657
      %4781 = vmatprep.subr.mxu0 0.0
      %4782 = vmatpush1.msra.mxu0 %v4660
      %4783 = vmatprep.subr.mxu0 0.0
      %4784 = vmatpush1.msra.mxu0 %v4663
      %4785 = vmatprep.subr.mxu0 0.0
      %4786 = vmatpush1.msra.mxu0 %v4666
      %4787 = vmatprep.subr.mxu0 0.0
      %4788 = vmatpush1.msra.mxu0 0.0
      %4789 = vmatprep.subr.mxu0 0.0
      %4790 = vmatpush1.msra.mxu0 0.0
      %4791 = vmatprep.subr.mxu0 0.0
      %4792 = vmatpush1.msra.mxu0 0.0
      %4793 = vmatprep.subr.mxu0 0.0
      %4794 = vmatpush1.msra.mxu0 0.0
      %4795 = vmatprep.subr.mxu0 0.0
      %4796 = vmatpush1.msra.mxu0 0.0
      %4797 = vmatprep.subr.mxu0 0.0
      %4798 = vmatpush1.msra.mxu0 0.0
      %4799 = vmatprep.subr.mxu0 0.0
      %4800 = vmatpush1.msra.mxu0 0.0
      %4801 = vmatprep.subr.mxu0 0.0
      %4802 = vmatpush1.msra.mxu0 0.0
      %4803 = vmatprep.subr.mxu0 0.0
      %4804 = vmatpush1.msra.mxu0 0.0
      %4805 = vmatprep.subr.mxu0 0.0
      %4806 = vmatpush1.msra.mxu0 0.0
      %4807 = vmatprep.subr.mxu0 0.0
      %4808 = vmatpush1.msra.mxu0 0.0
      %4809 = vmatprep.subr.mxu0 0.0
      %4810 = vmatpush1.msra.mxu0 0.0
      %4811 = vmatprep.subr.mxu0 0.0
      %4812 = vmatpush1.msra.mxu0 0.0
      %4813 = vmatprep.subr.mxu0 0.0
      %4814 = vmatpush1.msra.mxu0 0.0
      %4815 = vmatprep.subr.mxu0 0.0
      %4816 = vmatpush1.msra.mxu0 0.0
      %4817 = vmatprep.subr.mxu0 0.0
      %4818 = vmatpush1.msra.mxu0 0.0
      %4819 = vmatprep.mubr.f32.mxu0 0.0
      %4820 = vmatmul.mubr.f32.gmra.mrb[0].mxu0 %v4616
      %v4821 = vpop.f32.mrb[0].mxu0
      %v4822 = vadd.f32 %v4680, %v4821
      %v4823 = vpop.f32.mrb[0].mxu0
      %4824 = vdwg.mxu0
      %s4825 = scalar_lea.vmem [#allocation3], 384
      %v4826 = vld [vmem:[%s4825] sm:$0xff]
      %v4827 = vld [vmem:[%s4825 + $0x8] sm:$0xff]
      %v4828 = vld [vmem:[%s4825 + $0x10] sm:$0xff]
      %v4829 = vadd.f32 %v4826, %v4751
      %v4830 = vxor.u32 %v4829, 2147483648
      %v4831 = vmul.f32 %v4830, 1.442695
      %v4832 = vpow.pop %v4831
      %v4833 = vadd.f32 %v4832, 1.0
      %v4834 = vrcp.pop %v4833
      %v4835 = vmul.f32 1.0, %v4834
      %v4836 = vadd.f32 %v4827, %v4753
      %v4837 = vxor.u32 %v4836, 2147483648
      %v4838 = vmul.f32 %v4837, 1.442695
      %v4839 = vpow.pop %v4838
      %v4840 = vadd.f32 %v4839, 1.0
      %v4841 = vrcp.pop %v4840
      %v4842 = vmul.f32 1.0, %v4841
      %v4843 = vmul.f32 %v4835, %v4822
      %v4844 = vadd.f32 %v4828, %v4843
      %v4845 = vtanh.pop %v4844
      %v4846 = vsub.f32 %v4616, %v4845
      %v4847 = vmul.f32 %v4842, %v4846
      %v4848 = vadd.f32 %v4845, %v4847
      %s4849 = scalar_lea.vmem %s226, 128
      %4850 = vst [vmem:[%s4849] sm:$0xff] %v4848
      %v4851 = vld [vmem:[%s2] sm:$0xff]
      %v4852 = vld [vmem:[%s2 + $0x8] sm:$0xff]
      %v4853 = vld [vmem:[%s2 + $0x10] sm:$0xff]
      %v4854 = vld [vmem:[%s2 + $0x18] sm:$0xff]
      %v4855 = vld [vmem:[%s2 + $0x20] sm:$0xff]
      %v4856 = vld [vmem:[%s2 + $0x28] sm:$0xff]
      %v4857 = vld [vmem:[%s2 + $0x30] sm:$0xff]
      %v4858 = vld [vmem:[%s2 + $0x38] sm:$0xff]
      %v4859 = vld [vmem:[%s2 + $0x40] sm:$0xff]
      %v4860 = vld [vmem:[%s2 + $0x48] sm:$0xff]
      %v4861 = vld [vmem:[%s2 + $0x50] sm:$0xff]
      %v4862 = vld [vmem:[%s2 + $0x58] sm:$0xff]
      %v4863 = vld [vmem:[%s2 + $0x60] sm:$0xff]
      %v4864 = vld [vmem:[%s2 + $0x68] sm:$0xff]
      %v4865 = vld [vmem:[%s2 + $0x70] sm:$0xff]
      %v4866 = vld [vmem:[%s2 + $0x78] sm:$0xff]
      %v4867 = vld [vmem:[%s2 + $0x80] sm:$0xff]
      %v4868 = vld [vmem:[%s2 + $0x88] sm:$0xff]
      %v4869 = vld [vmem:[%s2 + $0x90] sm:$0xff]
      %v4870 = vld [vmem:[%s2 + $0x98] sm:$0xff]
      %v4871 = vld [vmem:[%s2 + $0xa0] sm:$0xff]
      %v4872 = vld [vmem:[%s2 + $0xa8] sm:$0xff]
      %v4873 = vld [vmem:[%s2 + $0xb0] sm:$0xff]
      %v4874 = vld [vmem:[%s2 + $0xb8] sm:$0xff]
      %v4875 = vld [vmem:[%s2 + $0xc0] sm:$0xff]
      %v4876 = vld [vmem:[%s2 + $0xc8] sm:$0xff]
      %v4877 = vld [vmem:[%s2 + $0xd0] sm:$0xff]
      %v4878 = vld [vmem:[%s2 + $0xd8] sm:$0xff]
      %v4879 = vld [vmem:[%s2 + $0xe0] sm:$0xff]
      %v4880 = vld [vmem:[%s2 + $0xe8] sm:$0xff]
      %v4881 = vld [vmem:[%s2 + $0xf0] sm:$0xff]
      %v4882 = vld [vmem:[%s2 + $0xf8] sm:$0xff]
      %v4883 = vld [vmem:[%s2 + $0x100] sm:$0xff]
      %v4884 = vld [vmem:[%s2 + $0x108] sm:$0xff]
      %v4885 = vld [vmem:[%s2 + $0x110] sm:$0xff]
      %v4886 = vld [vmem:[%s2 + $0x118] sm:$0xff]
      %v4887 = vld [vmem:[%s2 + $0x120] sm:$0xff]
      %v4888 = vld [vmem:[%s2 + $0x128] sm:$0xff]
      %v4889 = vld [vmem:[%s2 + $0x130] sm:$0xff]
      %v4890 = vld [vmem:[%s2 + $0x138] sm:$0xff]
      %v4891 = vld [vmem:[%s2 + $0x140] sm:$0xff]
      %v4892 = vld [vmem:[%s2 + $0x148] sm:$0xff]
      %v4893 = vld [vmem:[%s2 + $0x150] sm:$0xff]
      %v4894 = vld [vmem:[%s2 + $0x158] sm:$0xff]
      %v4895 = vld [vmem:[%s2 + $0x160] sm:$0xff]
      %v4896 = vld [vmem:[%s2 + $0x168] sm:$0xff]
      %v4897 = vld [vmem:[%s2 + $0x170] sm:$0xff]
      %v4898 = vld [vmem:[%s2 + $0x178] sm:$0xff]
      %v4899 = vld [vmem:[%s4] sm:$0x7]
      %v4901 = vlaneseq
      %v4902 = vshrl.u32 %v4901, 7
      %v4903 = vsub.s32 0, %v4902
      %v4904 = vrot.slane %v4899, %v4903
      %v4905 = vlaneseq
      %v4906 = vshrl.u32 %v4905, 7
      %v4907 = vsub.s32 1, %v4906
      %v4908 = vrot.slane %v4899, %v4907
      %v4909 = vlaneseq
      %v4910 = vshrl.u32 %v4909, 7
      %v4911 = vsub.s32 2, %v4910
      %v4912 = vrot.slane %v4899, %v4911
      %4916 = vmatprep.subr.mxu0 %v4852
      %4917 = vmatpush1.msra.mxu0 %v4851
      %4918 = vmatprep.subr.mxu0 %v4855
      %4919 = vmatpush1.msra.mxu0 %v4854
      %4920 = vmatprep.subr.mxu0 %v4858
      %4921 = vmatpush1.msra.mxu0 %v4857
      %4922 = vmatprep.subr.mxu0 %v4861
      %4923 = vmatpush1.msra.mxu0 %v4860
      %4924 = vmatprep.subr.mxu0 %v4864
      %4925 = vmatpush1.msra.mxu0 %v4863
      %4926 = vmatprep.subr.mxu0 %v4867
      %4927 = vmatpush1.msra.mxu0 %v4866
      %4928 = vmatprep.subr.mxu0 %v4870
      %4929 = vmatpush1.msra.mxu0 %v4869
      %4930 = vmatprep.subr.mxu0 %v4873
      %4931 = vmatpush1.msra.mxu0 %v4872
      %4932 = vmatprep.subr.mxu0 %v4876
      %4933 = vmatpush1.msra.mxu0 %v4875
      %4934 = vmatprep.subr.mxu0 %v4879
      %4935 = vmatpush1.msra.mxu0 %v4878
      %4936 = vmatprep.subr.mxu0 %v4882
      %4937 = vmatpush1.msra.mxu0 %v4881
      %4938 = vmatprep.subr.mxu0 %v4885
      %4939 = vmatpush1.msra.mxu0 %v4884
      %4940 = vmatprep.subr.mxu0 %v4888
      %4941 = vmatpush1.msra.mxu0 %v4887
      %4942 = vmatprep.subr.mxu0 %v4891
      %4943 = vmatpush1.msra.mxu0 %v4890
      %4944 = vmatprep.subr.mxu0 %v4894
      %4945 = vmatpush1.msra.mxu0 %v4893
      %4946 = vmatprep.subr.mxu0 %v4897
      %4947 = vmatpush1.msra.mxu0 %v4896
      %4948 = vmatprep.subr.mxu0 0.0
      %4949 = vmatpush1.msra.mxu0 0.0
      %4950 = vmatprep.subr.mxu0 0.0
      %4951 = vmatpush1.msra.mxu0 0.0
      %4952 = vmatprep.subr.mxu0 0.0
      %4953 = vmatpush1.msra.mxu0 0.0
      %4954 = vmatprep.subr.mxu0 0.0
      %4955 = vmatpush1.msra.mxu0 0.0
      %4956 = vmatprep.subr.mxu0 0.0
      %4957 = vmatpush1.msra.mxu0 0.0
      %4958 = vmatprep.subr.mxu0 0.0
      %4959 = vmatpush1.msra.mxu0 0.0
      %4960 = vmatprep.subr.mxu0 0.0
      %4961 = vmatpush1.msra.mxu0 0.0
      %4962 = vmatprep.subr.mxu0 0.0
      %4963 = vmatpush1.msra.mxu0 0.0
      %4964 = vmatprep.subr.mxu0 0.0
      %4965 = vmatpush1.msra.mxu0 0.0
      %4966 = vmatprep.subr.mxu0 0.0
      %4967 = vmatpush1.msra.mxu0 0.0
      %4968 = vmatprep.subr.mxu0 0.0
      %4969 = vmatpush1.msra.mxu0 0.0
      %4970 = vmatprep.subr.mxu0 0.0
      %4971 = vmatpush1.msra.mxu0 0.0
      %4972 = vmatprep.subr.mxu0 0.0
      %4973 = vmatpush1.msra.mxu0 0.0
      %4974 = vmatprep.subr.mxu0 0.0
      %4975 = vmatpush1.msra.mxu0 0.0
      %4976 = vmatprep.subr.mxu0 0.0
      %4977 = vmatpush1.msra.mxu0 0.0
      %4978 = vmatprep.subr.mxu0 0.0
      %4979 = vmatpush1.msra.mxu0 0.0
      %4980 = vmatprep.mubr.f32.mxu0 0.0
      %4981 = vmatmul.mubr.f32.gmra.mrb[0].mxu0 %v4848
      %v4982 = vpop.f32.mrb[0].mxu0
      %v4983 = vadd.f32 %v4904, %v4982
      %v4984 = vpop.f32.mrb[0].mxu0
      %v4985 = vadd.f32 %v4908, %v4984
      %4986 = vdwg.mxu0
      %4987 = vmatprep.subr.mxu0 0.0
      %4988 = vmatpush1.msra.mxu0 %v4853
      %4989 = vmatprep.subr.mxu0 0.0
      %4990 = vmatpush1.msra.mxu0 %v4856
      %4991 = vmatprep.subr.mxu0 0.0
      %4992 = vmatpush1.msra.mxu0 %v4859
      %4993 = vmatprep.subr.mxu0 0.0
      %4994 = vmatpush1.msra.mxu0 %v4862
      %4995 = vmatprep.subr.mxu0 0.0
      %4996 = vmatpush1.msra.mxu0 %v4865
      %4997 = vmatprep.subr.mxu0 0.0
      %4998 = vmatpush1.msra.mxu0 %v4868
      %4999 = vmatprep.subr.mxu0 0.0
      %5000 = vmatpush1.msra.mxu0 %v4871
      %5001 = vmatprep.subr.mxu0 0.0
      %5002 = vmatpush1.msra.mxu0 %v4874
      %5003 = vmatprep.subr.mxu0 0.0
      %5004 = vmatpush1.msra.mxu0 %v4877
      %5005 = vmatprep.subr.mxu0 0.0
      %5006 = vmatpush1.msra.mxu0 %v4880
      %5007 = vmatprep.subr.mxu0 0.0
      %5008 = vmatpush1.msra.mxu0 %v4883
      %5009 = vmatprep.subr.mxu0 0.0
      %5010 = vmatpush1.msra.mxu0 %v4886
      %5011 = vmatprep.subr.mxu0 0.0
      %5012 = vmatpush1.msra.mxu0 %v4889
      %5013 = vmatprep.subr.mxu0 0.0
      %5014 = vmatpush1.msra.mxu0 %v4892
      %5015 = vmatprep.subr.mxu0 0.0
      %5016 = vmatpush1.msra.mxu0 %v4895
      %5017 = vmatprep.subr.mxu0 0.0
      %5018 = vmatpush1.msra.mxu0 %v4898
      %5019 = vmatprep.subr.mxu0 0.0
      %5020 = vmatpush1.msra.mxu0 0.0
      %5021 = vmatprep.subr.mxu0 0.0
      %5022 = vmatpush1.msra.mxu0 0.0
      %5023 = vmatprep.subr.mxu0 0.0
      %5024 = vmatpush1.msra.mxu0 0.0
      %5025 = vmatprep.subr.mxu0 0.0
      %5026 = vmatpush1.msra.mxu0 0.0
      %5027 = vmatprep.subr.mxu0 0.0
      %5028 = vmatpush1.msra.mxu0 0.0
      %5029 = vmatprep.subr.mxu0 0.0
      %5030 = vmatpush1.msra.mxu0 0.0
      %5031 = vmatprep.subr.mxu0 0.0
      %5032 = vmatpush1.msra.mxu0 0.0
      %5033 = vmatprep.subr.mxu0 0.0
      %5034 = vmatpush1.msra.mxu0 0.0
      %5035 = vmatprep.subr.mxu0 0.0
      %5036 = vmatpush1.msra.mxu0 0.0
      %5037 = vmatprep.subr.mxu0 0.0
      %5038 = vmatpush1.msra.mxu0 0.0
      %5039 = vmatprep.subr.mxu0 0.0
      %5040 = vmatpush1.msra.mxu0 0.0
      %5041 = vmatprep.subr.mxu0 0.0
      %5042 = vmatpush1.msra.mxu0 0.0
      %5043 = vmatprep.subr.mxu0 0.0
      %5044 = vmatpush1.msra.mxu0 0.0
      %5045 = vmatprep.subr.mxu0 0.0
      %5046 = vmatpush1.msra.mxu0 0.0
      %5047 = vmatprep.subr.mxu0 0.0
      %5048 = vmatpush1.msra.mxu0 0.0
      %5049 = vmatprep.subr.mxu0 0.0
      %5050 = vmatpush1.msra.mxu0 0.0
      %5051 = vmatprep.mubr.f32.mxu0 0.0
      %5052 = vmatmul.mubr.f32.gmra.mrb[0].mxu0 %v4848
      %v5053 = vpop.f32.mrb[0].mxu0
      %v5054 = vadd.f32 %v4912, %v5053
      %v5055 = vpop.f32.mrb[0].mxu0
      %5056 = vdwg.mxu0
      %s5057 = scalar_lea.vmem [#allocation3], 408
      %v5058 = vld [vmem:[%s5057] sm:$0xff]
      %v5059 = vld [vmem:[%s5057 + $0x8] sm:$0xff]
      %v5060 = vld [vmem:[%s5057 + $0x10] sm:$0xff]
      %v5061 = vadd.f32 %v5058, %v4983
      %v5062 = vxor.u32 %v5061, 2147483648
      %v5063 = vmul.f32 %v5062, 1.442695
      %v5064 = vpow.pop %v5063
      %v5065 = vadd.f32 %v5064, 1.0
      %v5066 = vrcp.pop %v5065
      %v5067 = vmul.f32 1.0, %v5066
      %v5068 = vadd.f32 %v5059, %v4985
      %v5069 = vxor.u32 %v5068, 2147483648
      %v5070 = vmul.f32 %v5069, 1.442695
      %v5071 = vpow.pop %v5070
      %v5072 = vadd.f32 %v5071, 1.0
      %v5073 = vrcp.pop %v5072
      %v5074 = vmul.f32 1.0, %v5073
      %v5075 = vmul.f32 %v5067, %v5054
      %v5076 = vadd.f32 %v5060, %v5075
      %v5077 = vtanh.pop %v5076
      %v5078 = vsub.f32 %v4848, %v5077
      %v5079 = vmul.f32 %v5074, %v5078
      %v5080 = vadd.f32 %v5077, %v5079
      %s5081 = scalar_lea.vmem %s226, 136
      %5082 = vst [vmem:[%s5081] sm:$0xff] %v5080
      %v5083 = vld [vmem:[%s2] sm:$0xff]
      %v5084 = vld [vmem:[%s2 + $0x8] sm:$0xff]
      %v5085 = vld [vmem:[%s2 + $0x10] sm:$0xff]
      %v5086 = vld [vmem:[%s2 + $0x18] sm:$0xff]
      %v5087 = vld [vmem:[%s2 + $0x20] sm:$0xff]
      %v5088 = vld [vmem:[%s2 + $0x28] sm:$0xff]
      %v5089 = vld [vmem:[%s2 + $0x30] sm:$0xff]
      %v5090 = vld [vmem:[%s2 + $0x38] sm:$0xff]
      %v5091 = vld [vmem:[%s2 + $0x40] sm:$0xff]
      %v5092 = vld [vmem:[%s2 + $0x48] sm:$0xff]
      %v5093 = vld [vmem:[%s2 + $0x50] sm:$0xff]
      %v5094 = vld [vmem:[%s2 + $0x58] sm:$0xff]
      %v5095 = vld [vmem:[%s2 + $0x60] sm:$0xff]
      %v5096 = vld [vmem:[%s2 + $0x68] sm:$0xff]
      %v5097 = vld [vmem:[%s2 + $0x70] sm:$0xff]
      %v5098 = vld [vmem:[%s2 + $0x78] sm:$0xff]
      %v5099 = vld [vmem:[%s2 + $0x80] sm:$0xff]
      %v5100 = vld [vmem:[%s2 + $0x88] sm:$0xff]
      %v5101 = vld [vmem:[%s2 + $0x90] sm:$0xff]
      %v5102 = vld [vmem:[%s2 + $0x98] sm:$0xff]
      %v5103 = vld [vmem:[%s2 + $0xa0] sm:$0xff]
      %v5104 = vld [vmem:[%s2 + $0xa8] sm:$0xff]
      %v5105 = vld [vmem:[%s2 + $0xb0] sm:$0xff]
      %v5106 = vld [vmem:[%s2 + $0xb8] sm:$0xff]
      %v5107 = vld [vmem:[%s2 + $0xc0] sm:$0xff]
      %v5108 = vld [vmem:[%s2 + $0xc8] sm:$0xff]
      %v5109 = vld [vmem:[%s2 + $0xd0] sm:$0xff]
      %v5110 = vld [vmem:[%s2 + $0xd8] sm:$0xff]
      %v5111 = vld [vmem:[%s2 + $0xe0] sm:$0xff]
      %v5112 = vld [vmem:[%s2 + $0xe8] sm:$0xff]
      %v5113 = vld [vmem:[%s2 + $0xf0] sm:$0xff]
      %v5114 = vld [vmem:[%s2 + $0xf8] sm:$0xff]
      %v5115 = vld [vmem:[%s2 + $0x100] sm:$0xff]
      %v5116 = vld [vmem:[%s2 + $0x108] sm:$0xff]
      %v5117 = vld [vmem:[%s2 + $0x110] sm:$0xff]
      %v5118 = vld [vmem:[%s2 + $0x118] sm:$0xff]
      %v5119 = vld [vmem:[%s2 + $0x120] sm:$0xff]
      %v5120 = vld [vmem:[%s2 + $0x128] sm:$0xff]
      %v5121 = vld [vmem:[%s2 + $0x130] sm:$0xff]
      %v5122 = vld [vmem:[%s2 + $0x138] sm:$0xff]
      %v5123 = vld [vmem:[%s2 + $0x140] sm:$0xff]
      %v5124 = vld [vmem:[%s2 + $0x148] sm:$0xff]
      %v5125 = vld [vmem:[%s2 + $0x150] sm:$0xff]
      %v5126 = vld [vmem:[%s2 + $0x158] sm:$0xff]
      %v5127 = vld [vmem:[%s2 + $0x160] sm:$0xff]
      %v5128 = vld [vmem:[%s2 + $0x168] sm:$0xff]
      %v5129 = vld [vmem:[%s2 + $0x170] sm:$0xff]
      %v5130 = vld [vmem:[%s2 + $0x178] sm:$0xff]
      %v5131 = vld [vmem:[%s4] sm:$0x7]
      %v5133 = vlaneseq
      %v5134 = vshrl.u32 %v5133, 7
      %v5135 = vsub.s32 0, %v5134
      %v5136 = vrot.slane %v5131, %v5135
      %v5137 = vlaneseq
      %v5138 = vshrl.u32 %v5137, 7
      %v5139 = vsub.s32 1, %v5138
      %v5140 = vrot.slane %v5131, %v5139
      %v5141 = vlaneseq
      %v5142 = vshrl.u32 %v5141, 7
      %v5143 = vsub.s32 2, %v5142
      %v5144 = vrot.slane %v5131, %v5143
      %5148 = vmatprep.subr.mxu0 %v5084
      %5149 = vmatpush1.msra.mxu0 %v5083
      %5150 = vmatprep.subr.mxu0 %v5087
      %5151 = vmatpush1.msra.mxu0 %v5086
      %5152 = vmatprep.subr.mxu0 %v5090
      %5153 = vmatpush1.msra.mxu0 %v5089
      %5154 = vmatprep.subr.mxu0 %v5093
      %5155 = vmatpush1.msra.mxu0 %v5092
      %5156 = vmatprep.subr.mxu0 %v5096
      %5157 = vmatpush1.msra.mxu0 %v5095
      %5158 = vmatprep.subr.mxu0 %v5099
      %5159 = vmatpush1.msra.mxu0 %v5098
      %5160 = vmatprep.subr.mxu0 %v5102
      %5161 = vmatpush1.msra.mxu0 %v5101
      %5162 = vmatprep.subr.mxu0 %v5105
      %5163 = vmatpush1.msra.mxu0 %v5104
      %5164 = vmatprep.subr.mxu0 %v5108
      %5165 = vmatpush1.msra.mxu0 %v5107
      %5166 = vmatprep.subr.mxu0 %v5111
      %5167 = vmatpush1.msra.mxu0 %v5110
      %5168 = vmatprep.subr.mxu0 %v5114
      %5169 = vmatpush1.msra.mxu0 %v5113
      %5170 = vmatprep.subr.mxu0 %v5117
      %5171 = vmatpush1.msra.mxu0 %v5116
      %5172 = vmatprep.subr.mxu0 %v5120
      %5173 = vmatpush1.msra.mxu0 %v5119
      %5174 = vmatprep.subr.mxu0 %v5123
      %5175 = vmatpush1.msra.mxu0 %v5122
      %5176 = vmatprep.subr.mxu0 %v5126
      %5177 = vmatpush1.msra.mxu0 %v5125
      %5178 = vmatprep.subr.mxu0 %v5129
      %5179 = vmatpush1.msra.mxu0 %v5128
      %5180 = vmatprep.subr.mxu0 0.0
      %5181 = vmatpush1.msra.mxu0 0.0
      %5182 = vmatprep.subr.mxu0 0.0
      %5183 = vmatpush1.msra.mxu0 0.0
      %5184 = vmatprep.subr.mxu0 0.0
      %5185 = vmatpush1.msra.mxu0 0.0
      %5186 = vmatprep.subr.mxu0 0.0
      %5187 = vmatpush1.msra.mxu0 0.0
      %5188 = vmatprep.subr.mxu0 0.0
      %5189 = vmatpush1.msra.mxu0 0.0
      %5190 = vmatprep.subr.mxu0 0.0
      %5191 = vmatpush1.msra.mxu0 0.0
      %5192 = vmatprep.subr.mxu0 0.0
      %5193 = vmatpush1.msra.mxu0 0.0
      %5194 = vmatprep.subr.mxu0 0.0
      %5195 = vmatpush1.msra.mxu0 0.0
      %5196 = vmatprep.subr.mxu0 0.0
      %5197 = vmatpush1.msra.mxu0 0.0
      %5198 = vmatprep.subr.mxu0 0.0
      %5199 = vmatpush1.msra.mxu0 0.0
      %5200 = vmatprep.subr.mxu0 0.0
      %5201 = vmatpush1.msra.mxu0 0.0
      %5202 = vmatprep.subr.mxu0 0.0
      %5203 = vmatpush1.msra.mxu0 0.0
      %5204 = vmatprep.subr.mxu0 0.0
      %5205 = vmatpush1.msra.mxu0 0.0
      %5206 = vmatprep.subr.mxu0 0.0
      %5207 = vmatpush1.msra.mxu0 0.0
      %5208 = vmatprep.subr.mxu0 0.0
      %5209 = vmatpush1.msra.mxu0 0.0
      %5210 = vmatprep.subr.mxu0 0.0
      %5211 = vmatpush1.msra.mxu0 0.0
      %5212 = vmatprep.mubr.f32.mxu0 0.0
      %5213 = vmatmul.mubr.f32.gmra.mrb[0].mxu0 %v5080
      %v5214 = vpop.f32.mrb[0].mxu0
      %v5215 = vadd.f32 %v5136, %v5214
      %v5216 = vpop.f32.mrb[0].mxu0
      %v5217 = vadd.f32 %v5140, %v5216
      %5218 = vdwg.mxu0
      %5219 = vmatprep.subr.mxu0 0.0
      %5220 = vmatpush1.msra.mxu0 %v5085
      %5221 = vmatprep.subr.mxu0 0.0
      %5222 = vmatpush1.msra.mxu0 %v5088
      %5223 = vmatprep.subr.mxu0 0.0
      %5224 = vmatpush1.msra.mxu0 %v5091
      %5225 = vmatprep.subr.mxu0 0.0
      %5226 = vmatpush1.msra.mxu0 %v5094
      %5227 = vmatprep.subr.mxu0 0.0
      %5228 = vmatpush1.msra.mxu0 %v5097
      %5229 = vmatprep.subr.mxu0 0.0
      %5230 = vmatpush1.msra.mxu0 %v5100
      %5231 = vmatprep.subr.mxu0 0.0
      %5232 = vmatpush1.msra.mxu0 %v5103
      %5233 = vmatprep.subr.mxu0 0.0
      %5234 = vmatpush1.msra.mxu0 %v5106
      %5235 = vmatprep.subr.mxu0 0.0
      %5236 = vmatpush1.msra.mxu0 %v5109
      %5237 = vmatprep.subr.mxu0 0.0
      %5238 = vmatpush1.msra.mxu0 %v5112
      %5239 = vmatprep.subr.mxu0 0.0
      %5240 = vmatpush1.msra.mxu0 %v5115
      %5241 = vmatprep.subr.mxu0 0.0
      %5242 = vmatpush1.msra.mxu0 %v5118
      %5243 = vmatprep.subr.mxu0 0.0
      %5244 = vmatpush1.msra.mxu0 %v5121
      %5245 = vmatprep.subr.mxu0 0.0
      %5246 = vmatpush1.msra.mxu0 %v5124
      %5247 = vmatprep.subr.mxu0 0.0
      %5248 = vmatpush1.msra.mxu0 %v5127
      %5249 = vmatprep.subr.mxu0 0.0
      %5250 = vmatpush1.msra.mxu0 %v5130
      %5251 = vmatprep.subr.mxu0 0.0
      %5252 = vmatpush1.msra.mxu0 0.0
      %5253 = vmatprep.subr.mxu0 0.0
      %5254 = vmatpush1.msra.mxu0 0.0
      %5255 = vmatprep.subr.mxu0 0.0
      %5256 = vmatpush1.msra.mxu0 0.0
      %5257 = vmatprep.subr.mxu0 0.0
      %5258 = vmatpush1.msra.mxu0 0.0
      %5259 = vmatprep.subr.mxu0 0.0
      %5260 = vmatpush1.msra.mxu0 0.0
      %5261 = vmatprep.subr.mxu0 0.0
      %5262 = vmatpush1.msra.mxu0 0.0
      %5263 = vmatprep.subr.mxu0 0.0
      %5264 = vmatpush1.msra.mxu0 0.0
      %5265 = vmatprep.subr.mxu0 0.0
      %5266 = vmatpush1.msra.mxu0 0.0
      %5267 = vmatprep.subr.mxu0 0.0
      %5268 = vmatpush1.msra.mxu0 0.0
      %5269 = vmatprep.subr.mxu0 0.0
      %5270 = vmatpush1.msra.mxu0 0.0
      %5271 = vmatprep.subr.mxu0 0.0
      %5272 = vmatpush1.msra.mxu0 0.0
      %5273 = vmatprep.subr.mxu0 0.0
      %5274 = vmatpush1.msra.mxu0 0.0
      %5275 = vmatprep.subr.mxu0 0.0
      %5276 = vmatpush1.msra.mxu0 0.0
      %5277 = vmatprep.subr.mxu0 0.0
      %5278 = vmatpush1.msra.mxu0 0.0
      %5279 = vmatprep.subr.mxu0 0.0
      %5280 = vmatpush1.msra.mxu0 0.0
      %5281 = vmatprep.subr.mxu0 0.0
      %5282 = vmatpush1.msra.mxu0 0.0
      %5283 = vmatprep.mubr.f32.mxu0 0.0
      %5284 = vmatmul.mubr.f32.gmra.mrb[0].mxu0 %v5080
      %v5285 = vpop.f32.mrb[0].mxu0
      %v5286 = vadd.f32 %v5144, %v5285
      %v5287 = vpop.f32.mrb[0].mxu0
      %5288 = vdwg.mxu0
      %s5289 = scalar_lea.vmem [#allocation3], 432
      %v5290 = vld [vmem:[%s5289] sm:$0xff]
      %v5291 = vld [vmem:[%s5289 + $0x8] sm:$0xff]
      %v5292 = vld [vmem:[%s5289 + $0x10] sm:$0xff]
      %v5293 = vadd.f32 %v5290, %v5215
      %v5294 = vxor.u32 %v5293, 2147483648
      %v5295 = vmul.f32 %v5294, 1.442695
      %v5296 = vpow.pop %v5295
      %v5297 = vadd.f32 %v5296, 1.0
      %v5298 = vrcp.pop %v5297
      %v5299 = vmul.f32 1.0, %v5298
      %v5300 = vadd.f32 %v5291, %v5217
      %v5301 = vxor.u32 %v5300, 2147483648
      %v5302 = vmul.f32 %v5301, 1.442695
      %v5303 = vpow.pop %v5302
      %v5304 = vadd.f32 %v5303, 1.0
      %v5305 = vrcp.pop %v5304
      %v5306 = vmul.f32 1.0, %v5305
      %v5307 = vmul.f32 %v5299, %v5286
      %v5308 = vadd.f32 %v5292, %v5307
      %v5309 = vtanh.pop %v5308
      %v5310 = vsub.f32 %v5080, %v5309
      %v5311 = vmul.f32 %v5306, %v5310
      %v5312 = vadd.f32 %v5309, %v5311
      %s5313 = scalar_lea.vmem %s226, 144
      %5314 = vst [vmem:[%s5313] sm:$0xff] %v5312
      %v5315 = vld [vmem:[%s2] sm:$0xff]
      %v5316 = vld [vmem:[%s2 + $0x8] sm:$0xff]
      %v5317 = vld [vmem:[%s2 + $0x10] sm:$0xff]
      %v5318 = vld [vmem:[%s2 + $0x18] sm:$0xff]
      %v5319 = vld [vmem:[%s2 + $0x20] sm:$0xff]
      %v5320 = vld [vmem:[%s2 + $0x28] sm:$0xff]
      %v5321 = vld [vmem:[%s2 + $0x30] sm:$0xff]
      %v5322 = vld [vmem:[%s2 + $0x38] sm:$0xff]
      %v5323 = vld [vmem:[%s2 + $0x40] sm:$0xff]
      %v5324 = vld [vmem:[%s2 + $0x48] sm:$0xff]
      %v5325 = vld [vmem:[%s2 + $0x50] sm:$0xff]
      %v5326 = vld [vmem:[%s2 + $0x58] sm:$0xff]
      %v5327 = vld [vmem:[%s2 + $0x60] sm:$0xff]
      %v5328 = vld [vmem:[%s2 + $0x68] sm:$0xff]
      %v5329 = vld [vmem:[%s2 + $0x70] sm:$0xff]
      %v5330 = vld [vmem:[%s2 + $0x78] sm:$0xff]
      %v5331 = vld [vmem:[%s2 + $0x80] sm:$0xff]
      %v5332 = vld [vmem:[%s2 + $0x88] sm:$0xff]
      %v5333 = vld [vmem:[%s2 + $0x90] sm:$0xff]
      %v5334 = vld [vmem:[%s2 + $0x98] sm:$0xff]
      %v5335 = vld [vmem:[%s2 + $0xa0] sm:$0xff]
      %v5336 = vld [vmem:[%s2 + $0xa8] sm:$0xff]
      %v5337 = vld [vmem:[%s2 + $0xb0] sm:$0xff]
      %v5338 = vld [vmem:[%s2 + $0xb8] sm:$0xff]
      %v5339 = vld [vmem:[%s2 + $0xc0] sm:$0xff]
      %v5340 = vld [vmem:[%s2 + $0xc8] sm:$0xff]
      %v5341 = vld [vmem:[%s2 + $0xd0] sm:$0xff]
      %v5342 = vld [vmem:[%s2 + $0xd8] sm:$0xff]
      %v5343 = vld [vmem:[%s2 + $0xe0] sm:$0xff]
      %v5344 = vld [vmem:[%s2 + $0xe8] sm:$0xff]
      %v5345 = vld [vmem:[%s2 + $0xf0] sm:$0xff]
      %v5346 = vld [vmem:[%s2 + $0xf8] sm:$0xff]
      %v5347 = vld [vmem:[%s2 + $0x100] sm:$0xff]
      %v5348 = vld [vmem:[%s2 + $0x108] sm:$0xff]
      %v5349 = vld [vmem:[%s2 + $0x110] sm:$0xff]
      %v5350 = vld [vmem:[%s2 + $0x118] sm:$0xff]
      %v5351 = vld [vmem:[%s2 + $0x120] sm:$0xff]
      %v5352 = vld [vmem:[%s2 + $0x128] sm:$0xff]
      %v5353 = vld [vmem:[%s2 + $0x130] sm:$0xff]
      %v5354 = vld [vmem:[%s2 + $0x138] sm:$0xff]
      %v5355 = vld [vmem:[%s2 + $0x140] sm:$0xff]
      %v5356 = vld [vmem:[%s2 + $0x148] sm:$0xff]
      %v5357 = vld [vmem:[%s2 + $0x150] sm:$0xff]
      %v5358 = vld [vmem:[%s2 + $0x158] sm:$0xff]
      %v5359 = vld [vmem:[%s2 + $0x160] sm:$0xff]
      %v5360 = vld [vmem:[%s2 + $0x168] sm:$0xff]
      %v5361 = vld [vmem:[%s2 + $0x170] sm:$0xff]
      %v5362 = vld [vmem:[%s2 + $0x178] sm:$0xff]
      %v5363 = vld [vmem:[%s4] sm:$0x7]
      %v5365 = vlaneseq
      %v5366 = vshrl.u32 %v5365, 7
      %v5367 = vsub.s32 0, %v5366
      %v5368 = vrot.slane %v5363, %v5367
      %v5369 = vlaneseq
      %v5370 = vshrl.u32 %v5369, 7
      %v5371 = vsub.s32 1, %v5370
      %v5372 = vrot.slane %v5363, %v5371
      %v5373 = vlaneseq
      %v5374 = vshrl.u32 %v5373, 7
      %v5375 = vsub.s32 2, %v5374
      %v5376 = vrot.slane %v5363, %v5375
      %5380 = vmatprep.subr.mxu0 %v5316
      %5381 = vmatpush1.msra.mxu0 %v5315
      %5382 = vmatprep.subr.mxu0 %v5319
      %5383 = vmatpush1.msra.mxu0 %v5318
      %5384 = vmatprep.subr.mxu0 %v5322
      %5385 = vmatpush1.msra.mxu0 %v5321
      %5386 = vmatprep.subr.mxu0 %v5325
      %5387 = vmatpush1.msra.mxu0 %v5324
      %5388 = vmatprep.subr.mxu0 %v5328
      %5389 = vmatpush1.msra.mxu0 %v5327
      %5390 = vmatprep.subr.mxu0 %v5331
      %5391 = vmatpush1.msra.mxu0 %v5330
      %5392 = vmatprep.subr.mxu0 %v5334
      %5393 = vmatpush1.msra.mxu0 %v5333
      %5394 = vmatprep.subr.mxu0 %v5337
      %5395 = vmatpush1.msra.mxu0 %v5336
      %5396 = vmatprep.subr.mxu0 %v5340
      %5397 = vmatpush1.msra.mxu0 %v5339
      %5398 = vmatprep.subr.mxu0 %v5343
      %5399 = vmatpush1.msra.mxu0 %v5342
      %5400 = vmatprep.subr.mxu0 %v5346
      %5401 = vmatpush1.msra.mxu0 %v5345
      %5402 = vmatprep.subr.mxu0 %v5349
      %5403 = vmatpush1.msra.mxu0 %v5348
      %5404 = vmatprep.subr.mxu0 %v5352
      %5405 = vmatpush1.msra.mxu0 %v5351
      %5406 = vmatprep.subr.mxu0 %v5355
      %5407 = vmatpush1.msra.mxu0 %v5354
      %5408 = vmatprep.subr.mxu0 %v5358
      %5409 = vmatpush1.msra.mxu0 %v5357
      %5410 = vmatprep.subr.mxu0 %v5361
      %5411 = vmatpush1.msra.mxu0 %v5360
      %5412 = vmatprep.subr.mxu0 0.0
      %5413 = vmatpush1.msra.mxu0 0.0
      %5414 = vmatprep.subr.mxu0 0.0
      %5415 = vmatpush1.msra.mxu0 0.0
      %5416 = vmatprep.subr.mxu0 0.0
      %5417 = vmatpush1.msra.mxu0 0.0
      %5418 = vmatprep.subr.mxu0 0.0
      %5419 = vmatpush1.msra.mxu0 0.0
      %5420 = vmatprep.subr.mxu0 0.0
      %5421 = vmatpush1.msra.mxu0 0.0
      %5422 = vmatprep.subr.mxu0 0.0
      %5423 = vmatpush1.msra.mxu0 0.0
      %5424 = vmatprep.subr.mxu0 0.0
      %5425 = vmatpush1.msra.mxu0 0.0
      %5426 = vmatprep.subr.mxu0 0.0
      %5427 = vmatpush1.msra.mxu0 0.0
      %5428 = vmatprep.subr.mxu0 0.0
      %5429 = vmatpush1.msra.mxu0 0.0
      %5430 = vmatprep.subr.mxu0 0.0
      %5431 = vmatpush1.msra.mxu0 0.0
      %5432 = vmatprep.subr.mxu0 0.0
      %5433 = vmatpush1.msra.mxu0 0.0
      %5434 = vmatprep.subr.mxu0 0.0
      %5435 = vmatpush1.msra.mxu0 0.0
      %5436 = vmatprep.subr.mxu0 0.0
      %5437 = vmatpush1.msra.mxu0 0.0
      %5438 = vmatprep.subr.mxu0 0.0
      %5439 = vmatpush1.msra.mxu0 0.0
      %5440 = vmatprep.subr.mxu0 0.0
      %5441 = vmatpush1.msra.mxu0 0.0
      %5442 = vmatprep.subr.mxu0 0.0
      %5443 = vmatpush1.msra.mxu0 0.0
      %5444 = vmatprep.mubr.f32.mxu0 0.0
      %5445 = vmatmul.mubr.f32.gmra.mrb[0].mxu0 %v5312
      %v5446 = vpop.f32.mrb[0].mxu0
      %v5447 = vadd.f32 %v5368, %v5446
      %v5448 = vpop.f32.mrb[0].mxu0
      %v5449 = vadd.f32 %v5372, %v5448
      %5450 = vdwg.mxu0
      %5451 = vmatprep.subr.mxu0 0.0
      %5452 = vmatpush1.msra.mxu0 %v5317
      %5453 = vmatprep.subr.mxu0 0.0
      %5454 = vmatpush1.msra.mxu0 %v5320
      %5455 = vmatprep.subr.mxu0 0.0
      %5456 = vmatpush1.msra.mxu0 %v5323
      %5457 = vmatprep.subr.mxu0 0.0
      %5458 = vmatpush1.msra.mxu0 %v5326
      %5459 = vmatprep.subr.mxu0 0.0
      %5460 = vmatpush1.msra.mxu0 %v5329
      %5461 = vmatprep.subr.mxu0 0.0
      %5462 = vmatpush1.msra.mxu0 %v5332
      %5463 = vmatprep.subr.mxu0 0.0
      %5464 = vmatpush1.msra.mxu0 %v5335
      %5465 = vmatprep.subr.mxu0 0.0
      %5466 = vmatpush1.msra.mxu0 %v5338
      %5467 = vmatprep.subr.mxu0 0.0
      %5468 = vmatpush1.msra.mxu0 %v5341
      %5469 = vmatprep.subr.mxu0 0.0
      %5470 = vmatpush1.msra.mxu0 %v5344
      %5471 = vmatprep.subr.mxu0 0.0
      %5472 = vmatpush1.msra.mxu0 %v5347
      %5473 = vmatprep.subr.mxu0 0.0
      %5474 = vmatpush1.msra.mxu0 %v5350
      %5475 = vmatprep.subr.mxu0 0.0
      %5476 = vmatpush1.msra.mxu0 %v5353
      %5477 = vmatprep.subr.mxu0 0.0
      %5478 = vmatpush1.msra.mxu0 %v5356
      %5479 = vmatprep.subr.mxu0 0.0
      %5480 = vmatpush1.msra.mxu0 %v5359
      %5481 = vmatprep.subr.mxu0 0.0
      %5482 = vmatpush1.msra.mxu0 %v5362
      %5483 = vmatprep.subr.mxu0 0.0
      %5484 = vmatpush1.msra.mxu0 0.0
      %5485 = vmatprep.subr.mxu0 0.0
      %5486 = vmatpush1.msra.mxu0 0.0
      %5487 = vmatprep.subr.mxu0 0.0
      %5488 = vmatpush1.msra.mxu0 0.0
      %5489 = vmatprep.subr.mxu0 0.0
      %5490 = vmatpush1.msra.mxu0 0.0
      %5491 = vmatprep.subr.mxu0 0.0
      %5492 = vmatpush1.msra.mxu0 0.0
      %5493 = vmatprep.subr.mxu0 0.0
      %5494 = vmatpush1.msra.mxu0 0.0
      %5495 = vmatprep.subr.mxu0 0.0
      %5496 = vmatpush1.msra.mxu0 0.0
      %5497 = vmatprep.subr.mxu0 0.0
      %5498 = vmatpush1.msra.mxu0 0.0
      %5499 = vmatprep.subr.mxu0 0.0
      %5500 = vmatpush1.msra.mxu0 0.0
      %5501 = vmatprep.subr.mxu0 0.0
      %5502 = vmatpush1.msra.mxu0 0.0
      %5503 = vmatprep.subr.mxu0 0.0
      %5504 = vmatpush1.msra.mxu0 0.0
      %5505 = vmatprep.subr.mxu0 0.0
      %5506 = vmatpush1.msra.mxu0 0.0
      %5507 = vmatprep.subr.mxu0 0.0
      %5508 = vmatpush1.msra.mxu0 0.0
      %5509 = vmatprep.subr.mxu0 0.0
      %5510 = vmatpush1.msra.mxu0 0.0
      %5511 = vmatprep.subr.mxu0 0.0
      %5512 = vmatpush1.msra.mxu0 0.0
      %5513 = vmatprep.subr.mxu0 0.0
      %5514 = vmatpush1.msra.mxu0 0.0
      %5515 = vmatprep.mubr.f32.mxu0 0.0
      %5516 = vmatmul.mubr.f32.gmra.mrb[0].mxu0 %v5312
      %v5517 = vpop.f32.mrb[0].mxu0
      %v5518 = vadd.f32 %v5376, %v5517
      %v5519 = vpop.f32.mrb[0].mxu0
      %5520 = vdwg.mxu0
      %s5521 = scalar_lea.vmem [#allocation3], 456
      %v5522 = vld [vmem:[%s5521] sm:$0xff]
      %v5523 = vld [vmem:[%s5521 + $0x8] sm:$0xff]
      %v5524 = vld [vmem:[%s5521 + $0x10] sm:$0xff]
      %v5525 = vadd.f32 %v5522, %v5447
      %v5526 = vxor.u32 %v5525, 2147483648
      %v5527 = vmul.f32 %v5526, 1.442695
      %v5528 = vpow.pop %v5527
      %v5529 = vadd.f32 %v5528, 1.0
      %v5530 = vrcp.pop %v5529
      %v5531 = vmul.f32 1.0, %v5530
      %v5532 = vadd.f32 %v5523, %v5449
      %v5533 = vxor.u32 %v5532, 2147483648
      %v5534 = vmul.f32 %v5533, 1.442695
      %v5535 = vpow.pop %v5534
      %v5536 = vadd.f32 %v5535, 1.0
      %v5537 = vrcp.pop %v5536
      %v5538 = vmul.f32 1.0, %v5537
      %v5539 = vmul.f32 %v5531, %v5518
      %v5540 = vadd.f32 %v5524, %v5539
      %v5541 = vtanh.pop %v5540
      %v5542 = vsub.f32 %v5312, %v5541
      %v5543 = vmul.f32 %v5538, %v5542
      %v5544 = vadd.f32 %v5541, %v5543
      %s5545 = scalar_lea.vmem %s226, 152
      %5546 = vst [vmem:[%s5545] sm:$0xff] %v5544
      %v5547 = vld [vmem:[%s2] sm:$0xff]
      %v5548 = vld [vmem:[%s2 + $0x8] sm:$0xff]
      %v5549 = vld [vmem:[%s2 + $0x10] sm:$0xff]
      %v5550 = vld [vmem:[%s2 + $0x18] sm:$0xff]
      %v5551 = vld [vmem:[%s2 + $0x20] sm:$0xff]
      %v5552 = vld [vmem:[%s2 + $0x28] sm:$0xff]
      %v5553 = vld [vmem:[%s2 + $0x30] sm:$0xff]
      %v5554 = vld [vmem:[%s2 + $0x38] sm:$0xff]
      %v5555 = vld [vmem:[%s2 + $0x40] sm:$0xff]
      %v5556 = vld [vmem:[%s2 + $0x48] sm:$0xff]
      %v5557 = vld [vmem:[%s2 + $0x50] sm:$0xff]
      %v5558 = vld [vmem:[%s2 + $0x58] sm:$0xff]
      %v5559 = vld [vmem:[%s2 + $0x60] sm:$0xff]
      %v5560 = vld [vmem:[%s2 + $0x68] sm:$0xff]
      %v5561 = vld [vmem:[%s2 + $0x70] sm:$0xff]
      %v5562 = vld [vmem:[%s2 + $0x78] sm:$0xff]
      %v5563 = vld [vmem:[%s2 + $0x80] sm:$0xff]
      %v5564 = vld [vmem:[%s2 + $0x88] sm:$0xff]
      %v5565 = vld [vmem:[%s2 + $0x90] sm:$0xff]
      %v5566 = vld [vmem:[%s2 + $0x98] sm:$0xff]
      %v5567 = vld [vmem:[%s2 + $0xa0] sm:$0xff]
      %v5568 = vld [vmem:[%s2 + $0xa8] sm:$0xff]
      %v5569 = vld [vmem:[%s2 + $0xb0] sm:$0xff]
      %v5570 = vld [vmem:[%s2 + $0xb8] sm:$0xff]
      %v5571 = vld [vmem:[%s2 + $0xc0] sm:$0xff]
      %v5572 = vld [vmem:[%s2 + $0xc8] sm:$0xff]
      %v5573 = vld [vmem:[%s2 + $0xd0] sm:$0xff]
      %v5574 = vld [vmem:[%s2 + $0xd8] sm:$0xff]
      %v5575 = vld [vmem:[%s2 + $0xe0] sm:$0xff]
      %v5576 = vld [vmem:[%s2 + $0xe8] sm:$0xff]
      %v5577 = vld [vmem:[%s2 + $0xf0] sm:$0xff]
      %v5578 = vld [vmem:[%s2 + $0xf8] sm:$0xff]
      %v5579 = vld [vmem:[%s2 + $0x100] sm:$0xff]
      %v5580 = vld [vmem:[%s2 + $0x108] sm:$0xff]
      %v5581 = vld [vmem:[%s2 + $0x110] sm:$0xff]
      %v5582 = vld [vmem:[%s2 + $0x118] sm:$0xff]
      %v5583 = vld [vmem:[%s2 + $0x120] sm:$0xff]
      %v5584 = vld [vmem:[%s2 + $0x128] sm:$0xff]
      %v5585 = vld [vmem:[%s2 + $0x130] sm:$0xff]
      %v5586 = vld [vmem:[%s2 + $0x138] sm:$0xff]
      %v5587 = vld [vmem:[%s2 + $0x140] sm:$0xff]
      %v5588 = vld [vmem:[%s2 + $0x148] sm:$0xff]
      %v5589 = vld [vmem:[%s2 + $0x150] sm:$0xff]
      %v5590 = vld [vmem:[%s2 + $0x158] sm:$0xff]
      %v5591 = vld [vmem:[%s2 + $0x160] sm:$0xff]
      %v5592 = vld [vmem:[%s2 + $0x168] sm:$0xff]
      %v5593 = vld [vmem:[%s2 + $0x170] sm:$0xff]
      %v5594 = vld [vmem:[%s2 + $0x178] sm:$0xff]
      %v5595 = vld [vmem:[%s4] sm:$0x7]
      %v5597 = vlaneseq
      %v5598 = vshrl.u32 %v5597, 7
      %v5599 = vsub.s32 0, %v5598
      %v5600 = vrot.slane %v5595, %v5599
      %v5601 = vlaneseq
      %v5602 = vshrl.u32 %v5601, 7
      %v5603 = vsub.s32 1, %v5602
      %v5604 = vrot.slane %v5595, %v5603
      %v5605 = vlaneseq
      %v5606 = vshrl.u32 %v5605, 7
      %v5607 = vsub.s32 2, %v5606
      %v5608 = vrot.slane %v5595, %v5607
      %5612 = vmatprep.subr.mxu0 %v5548
      %5613 = vmatpush1.msra.mxu0 %v5547
      %5614 = vmatprep.subr.mxu0 %v5551
      %5615 = vmatpush1.msra.mxu0 %v5550
      %5616 = vmatprep.subr.mxu0 %v5554
      %5617 = vmatpush1.msra.mxu0 %v5553
      %5618 = vmatprep.subr.mxu0 %v5557
      %5619 = vmatpush1.msra.mxu0 %v5556
      %5620 = vmatprep.subr.mxu0 %v5560
      %5621 = vmatpush1.msra.mxu0 %v5559
      %5622 = vmatprep.subr.mxu0 %v5563
      %5623 = vmatpush1.msra.mxu0 %v5562
      %5624 = vmatprep.subr.mxu0 %v5566
      %5625 = vmatpush1.msra.mxu0 %v5565
      %5626 = vmatprep.subr.mxu0 %v5569
      %5627 = vmatpush1.msra.mxu0 %v5568
      %5628 = vmatprep.subr.mxu0 %v5572
      %5629 = vmatpush1.msra.mxu0 %v5571
      %5630 = vmatprep.subr.mxu0 %v5575
      %5631 = vmatpush1.msra.mxu0 %v5574
      %5632 = vmatprep.subr.mxu0 %v5578
      %5633 = vmatpush1.msra.mxu0 %v5577
      %5634 = vmatprep.subr.mxu0 %v5581
      %5635 = vmatpush1.msra.mxu0 %v5580
      %5636 = vmatprep.subr.mxu0 %v5584
      %5637 = vmatpush1.msra.mxu0 %v5583
      %5638 = vmatprep.subr.mxu0 %v5587
      %5639 = vmatpush1.msra.mxu0 %v5586
      %5640 = vmatprep.subr.mxu0 %v5590
      %5641 = vmatpush1.msra.mxu0 %v5589
      %5642 = vmatprep.subr.mxu0 %v5593
      %5643 = vmatpush1.msra.mxu0 %v5592
      %5644 = vmatprep.subr.mxu0 0.0
      %5645 = vmatpush1.msra.mxu0 0.0
      %5646 = vmatprep.subr.mxu0 0.0
      %5647 = vmatpush1.msra.mxu0 0.0
      %5648 = vmatprep.subr.mxu0 0.0
      %5649 = vmatpush1.msra.mxu0 0.0
      %5650 = vmatprep.subr.mxu0 0.0
      %5651 = vmatpush1.msra.mxu0 0.0
      %5652 = vmatprep.subr.mxu0 0.0
      %5653 = vmatpush1.msra.mxu0 0.0
      %5654 = vmatprep.subr.mxu0 0.0
      %5655 = vmatpush1.msra.mxu0 0.0
      %5656 = vmatprep.subr.mxu0 0.0
      %5657 = vmatpush1.msra.mxu0 0.0
      %5658 = vmatprep.subr.mxu0 0.0
      %5659 = vmatpush1.msra.mxu0 0.0
      %5660 = vmatprep.subr.mxu0 0.0
      %5661 = vmatpush1.msra.mxu0 0.0
      %5662 = vmatprep.subr.mxu0 0.0
      %5663 = vmatpush1.msra.mxu0 0.0
      %5664 = vmatprep.subr.mxu0 0.0
      %5665 = vmatpush1.msra.mxu0 0.0
      %5666 = vmatprep.subr.mxu0 0.0
      %5667 = vmatpush1.msra.mxu0 0.0
      %5668 = vmatprep.subr.mxu0 0.0
      %5669 = vmatpush1.msra.mxu0 0.0
      %5670 = vmatprep.subr.mxu0 0.0
      %5671 = vmatpush1.msra.mxu0 0.0
      %5672 = vmatprep.subr.mxu0 0.0
      %5673 = vmatpush1.msra.mxu0 0.0
      %5674 = vmatprep.subr.mxu0 0.0
      %5675 = vmatpush1.msra.mxu0 0.0
      %5676 = vmatprep.mubr.f32.mxu0 0.0
      %5677 = vmatmul.mubr.f32.gmra.mrb[0].mxu0 %v5544
      %v5678 = vpop.f32.mrb[0].mxu0
      %v5679 = vadd.f32 %v5600, %v5678
      %v5680 = vpop.f32.mrb[0].mxu0
      %v5681 = vadd.f32 %v5604, %v5680
      %5682 = vdwg.mxu0
      %5683 = vmatprep.subr.mxu0 0.0
      %5684 = vmatpush1.msra.mxu0 %v5549
      %5685 = vmatprep.subr.mxu0 0.0
      %5686 = vmatpush1.msra.mxu0 %v5552
      %5687 = vmatprep.subr.mxu0 0.0
      %5688 = vmatpush1.msra.mxu0 %v5555
      %5689 = vmatprep.subr.mxu0 0.0
      %5690 = vmatpush1.msra.mxu0 %v5558
      %5691 = vmatprep.subr.mxu0 0.0
      %5692 = vmatpush1.msra.mxu0 %v5561
      %5693 = vmatprep.subr.mxu0 0.0
      %5694 = vmatpush1.msra.mxu0 %v5564
      %5695 = vmatprep.subr.mxu0 0.0
      %5696 = vmatpush1.msra.mxu0 %v5567
      %5697 = vmatprep.subr.mxu0 0.0
      %5698 = vmatpush1.msra.mxu0 %v5570
      %5699 = vmatprep.subr.mxu0 0.0
      %5700 = vmatpush1.msra.mxu0 %v5573
      %5701 = vmatprep.subr.mxu0 0.0
      %5702 = vmatpush1.msra.mxu0 %v5576
      %5703 = vmatprep.subr.mxu0 0.0
      %5704 = vmatpush1.msra.mxu0 %v5579
      %5705 = vmatprep.subr.mxu0 0.0
      %5706 = vmatpush1.msra.mxu0 %v5582
      %5707 = vmatprep.subr.mxu0 0.0
      %5708 = vmatpush1.msra.mxu0 %v5585
      %5709 = vmatprep.subr.mxu0 0.0
      %5710 = vmatpush1.msra.mxu0 %v5588
      %5711 = vmatprep.subr.mxu0 0.0
      %5712 = vmatpush1.msra.mxu0 %v5591
      %5713 = vmatprep.subr.mxu0 0.0
      %5714 = vmatpush1.msra.mxu0 %v5594
      %5715 = vmatprep.subr.mxu0 0.0
      %5716 = vmatpush1.msra.mxu0 0.0
      %5717 = vmatprep.subr.mxu0 0.0
      %5718 = vmatpush1.msra.mxu0 0.0
      %5719 = vmatprep.subr.mxu0 0.0
      %5720 = vmatpush1.msra.mxu0 0.0
      %5721 = vmatprep.subr.mxu0 0.0
      %5722 = vmatpush1.msra.mxu0 0.0
      %5723 = vmatprep.subr.mxu0 0.0
      %5724 = vmatpush1.msra.mxu0 0.0
      %5725 = vmatprep.subr.mxu0 0.0
      %5726 = vmatpush1.msra.mxu0 0.0
      %5727 = vmatprep.subr.mxu0 0.0
      %5728 = vmatpush1.msra.mxu0 0.0
      %5729 = vmatprep.subr.mxu0 0.0
      %5730 = vmatpush1.msra.mxu0 0.0
      %5731 = vmatprep.subr.mxu0 0.0
      %5732 = vmatpush1.msra.mxu0 0.0
      %5733 = vmatprep.subr.mxu0 0.0
      %5734 = vmatpush1.msra.mxu0 0.0
      %5735 = vmatprep.subr.mxu0 0.0
      %5736 = vmatpush1.msra.mxu0 0.0
      %5737 = vmatprep.subr.mxu0 0.0
      %5738 = vmatpush1.msra.mxu0 0.0
      %5739 = vmatprep.subr.mxu0 0.0
      %5740 = vmatpush1.msra.mxu0 0.0
      %5741 = vmatprep.subr.mxu0 0.0
      %5742 = vmatpush1.msra.mxu0 0.0
      %5743 = vmatprep.subr.mxu0 0.0
      %5744 = vmatpush1.msra.mxu0 0.0
      %5745 = vmatprep.subr.mxu0 0.0
      %5746 = vmatpush1.msra.mxu0 0.0
      %5747 = vmatprep.mubr.f32.mxu0 0.0
      %5748 = vmatmul.mubr.f32.gmra.mrb[0].mxu0 %v5544
      %v5749 = vpop.f32.mrb[0].mxu0
      %v5750 = vadd.f32 %v5608, %v5749
      %v5751 = vpop.f32.mrb[0].mxu0
      %5752 = vdwg.mxu0
      %s5753 = scalar_lea.vmem [#allocation3], 480
      %v5754 = vld [vmem:[%s5753] sm:$0xff]
      %v5755 = vld [vmem:[%s5753 + $0x8] sm:$0xff]
      %v5756 = vld [vmem:[%s5753 + $0x10] sm:$0xff]
      %v5757 = vadd.f32 %v5754, %v5679
      %v5758 = vxor.u32 %v5757, 2147483648
      %v5759 = vmul.f32 %v5758, 1.442695
      %v5760 = vpow.pop %v5759
      %v5761 = vadd.f32 %v5760, 1.0
      %v5762 = vrcp.pop %v5761
      %v5763 = vmul.f32 1.0, %v5762
      %v5764 = vadd.f32 %v5755, %v5681
      %v5765 = vxor.u32 %v5764, 2147483648
      %v5766 = vmul.f32 %v5765, 1.442695
      %v5767 = vpow.pop %v5766
      %v5768 = vadd.f32 %v5767, 1.0
      %v5769 = vrcp.pop %v5768
      %v5770 = vmul.f32 1.0, %v5769
      %v5771 = vmul.f32 %v5763, %v5750
      %v5772 = vadd.f32 %v5756, %v5771
      %v5773 = vtanh.pop %v5772
      %v5774 = vsub.f32 %v5544, %v5773
      %v5775 = vmul.f32 %v5770, %v5774
      %v5776 = vadd.f32 %v5773, %v5775
      %s5777 = scalar_lea.vmem %s226, 160
      %5778 = vst [vmem:[%s5777] sm:$0xff] %v5776
      %v5779 = vld [vmem:[%s2] sm:$0xff]
      %v5780 = vld [vmem:[%s2 + $0x8] sm:$0xff]
      %v5781 = vld [vmem:[%s2 + $0x10] sm:$0xff]
      %v5782 = vld [vmem:[%s2 + $0x18] sm:$0xff]
      %v5783 = vld [vmem:[%s2 + $0x20] sm:$0xff]
      %v5784 = vld [vmem:[%s2 + $0x28] sm:$0xff]
      %v5785 = vld [vmem:[%s2 + $0x30] sm:$0xff]
      %v5786 = vld [vmem:[%s2 + $0x38] sm:$0xff]
      %v5787 = vld [vmem:[%s2 + $0x40] sm:$0xff]
      %v5788 = vld [vmem:[%s2 + $0x48] sm:$0xff]
      %v5789 = vld [vmem:[%s2 + $0x50] sm:$0xff]
      %v5790 = vld [vmem:[%s2 + $0x58] sm:$0xff]
      %v5791 = vld [vmem:[%s2 + $0x60] sm:$0xff]
      %v5792 = vld [vmem:[%s2 + $0x68] sm:$0xff]
      %v5793 = vld [vmem:[%s2 + $0x70] sm:$0xff]
      %v5794 = vld [vmem:[%s2 + $0x78] sm:$0xff]
      %v5795 = vld [vmem:[%s2 + $0x80] sm:$0xff]
      %v5796 = vld [vmem:[%s2 + $0x88] sm:$0xff]
      %v5797 = vld [vmem:[%s2 + $0x90] sm:$0xff]
      %v5798 = vld [vmem:[%s2 + $0x98] sm:$0xff]
      %v5799 = vld [vmem:[%s2 + $0xa0] sm:$0xff]
      %v5800 = vld [vmem:[%s2 + $0xa8] sm:$0xff]
      %v5801 = vld [vmem:[%s2 + $0xb0] sm:$0xff]
      %v5802 = vld [vmem:[%s2 + $0xb8] sm:$0xff]
      %v5803 = vld [vmem:[%s2 + $0xc0] sm:$0xff]
      %v5804 = vld [vmem:[%s2 + $0xc8] sm:$0xff]
      %v5805 = vld [vmem:[%s2 + $0xd0] sm:$0xff]
      %v5806 = vld [vmem:[%s2 + $0xd8] sm:$0xff]
      %v5807 = vld [vmem:[%s2 + $0xe0] sm:$0xff]
      %v5808 = vld [vmem:[%s2 + $0xe8] sm:$0xff]
      %v5809 = vld [vmem:[%s2 + $0xf0] sm:$0xff]
      %v5810 = vld [vmem:[%s2 + $0xf8] sm:$0xff]
      %v5811 = vld [vmem:[%s2 + $0x100] sm:$0xff]
      %v5812 = vld [vmem:[%s2 + $0x108] sm:$0xff]
      %v5813 = vld [vmem:[%s2 + $0x110] sm:$0xff]
      %v5814 = vld [vmem:[%s2 + $0x118] sm:$0xff]
      %v5815 = vld [vmem:[%s2 + $0x120] sm:$0xff]
      %v5816 = vld [vmem:[%s2 + $0x128] sm:$0xff]
      %v5817 = vld [vmem:[%s2 + $0x130] sm:$0xff]
      %v5818 = vld [vmem:[%s2 + $0x138] sm:$0xff]
      %v5819 = vld [vmem:[%s2 + $0x140] sm:$0xff]
      %v5820 = vld [vmem:[%s2 + $0x148] sm:$0xff]
      %v5821 = vld [vmem:[%s2 + $0x150] sm:$0xff]
      %v5822 = vld [vmem:[%s2 + $0x158] sm:$0xff]
      %v5823 = vld [vmem:[%s2 + $0x160] sm:$0xff]
      %v5824 = vld [vmem:[%s2 + $0x168] sm:$0xff]
      %v5825 = vld [vmem:[%s2 + $0x170] sm:$0xff]
      %v5826 = vld [vmem:[%s2 + $0x178] sm:$0xff]
      %v5827 = vld [vmem:[%s4] sm:$0x7]
      %v5829 = vlaneseq
      %v5830 = vshrl.u32 %v5829, 7
      %v5831 = vsub.s32 0, %v5830
      %v5832 = vrot.slane %v5827, %v5831
      %v5833 = vlaneseq
      %v5834 = vshrl.u32 %v5833, 7
      %v5835 = vsub.s32 1, %v5834
      %v5836 = vrot.slane %v5827, %v5835
      %v5837 = vlaneseq
      %v5838 = vshrl.u32 %v5837, 7
      %v5839 = vsub.s32 2, %v5838
      %v5840 = vrot.slane %v5827, %v5839
      %5844 = vmatprep.subr.mxu0 %v5780
      %5845 = vmatpush1.msra.mxu0 %v5779
      %5846 = vmatprep.subr.mxu0 %v5783
      %5847 = vmatpush1.msra.mxu0 %v5782
      %5848 = vmatprep.subr.mxu0 %v5786
      %5849 = vmatpush1.msra.mxu0 %v5785
      %5850 = vmatprep.subr.mxu0 %v5789
      %5851 = vmatpush1.msra.mxu0 %v5788
      %5852 = vmatprep.subr.mxu0 %v5792
      %5853 = vmatpush1.msra.mxu0 %v5791
      %5854 = vmatprep.subr.mxu0 %v5795
      %5855 = vmatpush1.msra.mxu0 %v5794
      %5856 = vmatprep.subr.mxu0 %v5798
      %5857 = vmatpush1.msra.mxu0 %v5797
      %5858 = vmatprep.subr.mxu0 %v5801
      %5859 = vmatpush1.msra.mxu0 %v5800
      %5860 = vmatprep.subr.mxu0 %v5804
      %5861 = vmatpush1.msra.mxu0 %v5803
      %5862 = vmatprep.subr.mxu0 %v5807
      %5863 = vmatpush1.msra.mxu0 %v5806
      %5864 = vmatprep.subr.mxu0 %v5810
      %5865 = vmatpush1.msra.mxu0 %v5809
      %5866 = vmatprep.subr.mxu0 %v5813
      %5867 = vmatpush1.msra.mxu0 %v5812
      %5868 = vmatprep.subr.mxu0 %v5816
      %5869 = vmatpush1.msra.mxu0 %v5815
      %5870 = vmatprep.subr.mxu0 %v5819
      %5871 = vmatpush1.msra.mxu0 %v5818
      %5872 = vmatprep.subr.mxu0 %v5822
      %5873 = vmatpush1.msra.mxu0 %v5821
      %5874 = vmatprep.subr.mxu0 %v5825
      %5875 = vmatpush1.msra.mxu0 %v5824
      %5876 = vmatprep.subr.mxu0 0.0
      %5877 = vmatpush1.msra.mxu0 0.0
      %5878 = vmatprep.subr.mxu0 0.0
      %5879 = vmatpush1.msra.mxu0 0.0
      %5880 = vmatprep.subr.mxu0 0.0
      %5881 = vmatpush1.msra.mxu0 0.0
      %5882 = vmatprep.subr.mxu0 0.0
      %5883 = vmatpush1.msra.mxu0 0.0
      %5884 = vmatprep.subr.mxu0 0.0
      %5885 = vmatpush1.msra.mxu0 0.0
      %5886 = vmatprep.subr.mxu0 0.0
      %5887 = vmatpush1.msra.mxu0 0.0
      %5888 = vmatprep.subr.mxu0 0.0
      %5889 = vmatpush1.msra.mxu0 0.0
      %5890 = vmatprep.subr.mxu0 0.0
      %5891 = vmatpush1.msra.mxu0 0.0
      %5892 = vmatprep.subr.mxu0 0.0
      %5893 = vmatpush1.msra.mxu0 0.0
      %5894 = vmatprep.subr.mxu0 0.0
      %5895 = vmatpush1.msra.mxu0 0.0
      %5896 = vmatprep.subr.mxu0 0.0
      %5897 = vmatpush1.msra.mxu0 0.0
      %5898 = vmatprep.subr.mxu0 0.0
      %5899 = vmatpush1.msra.mxu0 0.0
      %5900 = vmatprep.subr.mxu0 0.0
      %5901 = vmatpush1.msra.mxu0 0.0
      %5902 = vmatprep.subr.mxu0 0.0
      %5903 = vmatpush1.msra.mxu0 0.0
      %5904 = vmatprep.subr.mxu0 0.0
      %5905 = vmatpush1.msra.mxu0 0.0
      %5906 = vmatprep.subr.mxu0 0.0
      %5907 = vmatpush1.msra.mxu0 0.0
      %5908 = vmatprep.mubr.f32.mxu0 0.0
      %5909 = vmatmul.mubr.f32.gmra.mrb[0].mxu0 %v5776
      %v5910 = vpop.f32.mrb[0].mxu0
      %v5911 = vadd.f32 %v5832, %v5910
      %v5912 = vpop.f32.mrb[0].mxu0
      %v5913 = vadd.f32 %v5836, %v5912
      %5914 = vdwg.mxu0
      %5915 = vmatprep.subr.mxu0 0.0
      %5916 = vmatpush1.msra.mxu0 %v5781
      %5917 = vmatprep.subr.mxu0 0.0
      %5918 = vmatpush1.msra.mxu0 %v5784
      %5919 = vmatprep.subr.mxu0 0.0
      %5920 = vmatpush1.msra.mxu0 %v5787
      %5921 = vmatprep.subr.mxu0 0.0
      %5922 = vmatpush1.msra.mxu0 %v5790
      %5923 = vmatprep.subr.mxu0 0.0
      %5924 = vmatpush1.msra.mxu0 %v5793
      %5925 = vmatprep.subr.mxu0 0.0
      %5926 = vmatpush1.msra.mxu0 %v5796
      %5927 = vmatprep.subr.mxu0 0.0
      %5928 = vmatpush1.msra.mxu0 %v5799
      %5929 = vmatprep.subr.mxu0 0.0
      %5930 = vmatpush1.msra.mxu0 %v5802
      %5931 = vmatprep.subr.mxu0 0.0
      %5932 = vmatpush1.msra.mxu0 %v5805
      %5933 = vmatprep.subr.mxu0 0.0
      %5934 = vmatpush1.msra.mxu0 %v5808
      %5935 = vmatprep.subr.mxu0 0.0
      %5936 = vmatpush1.msra.mxu0 %v5811
      %5937 = vmatprep.subr.mxu0 0.0
      %5938 = vmatpush1.msra.mxu0 %v5814
      %5939 = vmatprep.subr.mxu0 0.0
      %5940 = vmatpush1.msra.mxu0 %v5817
      %5941 = vmatprep.subr.mxu0 0.0
      %5942 = vmatpush1.msra.mxu0 %v5820
      %5943 = vmatprep.subr.mxu0 0.0
      %5944 = vmatpush1.msra.mxu0 %v5823
      %5945 = vmatprep.subr.mxu0 0.0
      %5946 = vmatpush1.msra.mxu0 %v5826
      %5947 = vmatprep.subr.mxu0 0.0
      %5948 = vmatpush1.msra.mxu0 0.0
      %5949 = vmatprep.subr.mxu0 0.0
      %5950 = vmatpush1.msra.mxu0 0.0
      %5951 = vmatprep.subr.mxu0 0.0
      %5952 = vmatpush1.msra.mxu0 0.0
      %5953 = vmatprep.subr.mxu0 0.0
      %5954 = vmatpush1.msra.mxu0 0.0
      %5955 = vmatprep.subr.mxu0 0.0
      %5956 = vmatpush1.msra.mxu0 0.0
      %5957 = vmatprep.subr.mxu0 0.0
      %5958 = vmatpush1.msra.mxu0 0.0
      %5959 = vmatprep.subr.mxu0 0.0
      %5960 = vmatpush1.msra.mxu0 0.0
      %5961 = vmatprep.subr.mxu0 0.0
      %5962 = vmatpush1.msra.mxu0 0.0
      %5963 = vmatprep.subr.mxu0 0.0
      %5964 = vmatpush1.msra.mxu0 0.0
      %5965 = vmatprep.subr.mxu0 0.0
      %5966 = vmatpush1.msra.mxu0 0.0
      %5967 = vmatprep.subr.mxu0 0.0
      %5968 = vmatpush1.msra.mxu0 0.0
      %5969 = vmatprep.subr.mxu0 0.0
      %5970 = vmatpush1.msra.mxu0 0.0
      %5971 = vmatprep.subr.mxu0 0.0
      %5972 = vmatpush1.msra.mxu0 0.0
      %5973 = vmatprep.subr.mxu0 0.0
      %5974 = vmatpush1.msra.mxu0 0.0
      %5975 = vmatprep.subr.mxu0 0.0
      %5976 = vmatpush1.msra.mxu0 0.0
      %5977 = vmatprep.subr.mxu0 0.0
      %5978 = vmatpush1.msra.mxu0 0.0
      %5979 = vmatprep.mubr.f32.mxu0 0.0
      %5980 = vmatmul.mubr.f32.gmra.mrb[0].mxu0 %v5776
      %v5981 = vpop.f32.mrb[0].mxu0
      %v5982 = vadd.f32 %v5840, %v5981
      %v5983 = vpop.f32.mrb[0].mxu0
      %5984 = vdwg.mxu0
      %s5985 = scalar_lea.vmem [#allocation3], 504
      %v5986 = vld [vmem:[%s5985] sm:$0xff]
      %v5987 = vld [vmem:[%s5985 + $0x8] sm:$0xff]
      %v5988 = vld [vmem:[%s5985 + $0x10] sm:$0xff]
      %v5989 = vadd.f32 %v5986, %v5911
      %v5990 = vxor.u32 %v5989, 2147483648
      %v5991 = vmul.f32 %v5990, 1.442695
      %v5992 = vpow.pop %v5991
      %v5993 = vadd.f32 %v5992, 1.0
      %v5994 = vrcp.pop %v5993
      %v5995 = vmul.f32 1.0, %v5994
      %v5996 = vadd.f32 %v5987, %v5913
      %v5997 = vxor.u32 %v5996, 2147483648
      %v5998 = vmul.f32 %v5997, 1.442695
      %v5999 = vpow.pop %v5998
      %v6000 = vadd.f32 %v5999, 1.0
      %v6001 = vrcp.pop %v6000
      %v6002 = vmul.f32 1.0, %v6001
      %v6003 = vmul.f32 %v5995, %v5982
      %v6004 = vadd.f32 %v5988, %v6003
      %v6005 = vtanh.pop %v6004
      %v6006 = vsub.f32 %v5776, %v6005
      %v6007 = vmul.f32 %v6002, %v6006
      %v6008 = vadd.f32 %v6005, %v6007
      %s6009 = scalar_lea.vmem %s226, 168
      %6010 = vst [vmem:[%s6009] sm:$0xff] %v6008
      %v6011 = vld [vmem:[%s2] sm:$0xff]
      %v6012 = vld [vmem:[%s2 + $0x8] sm:$0xff]
      %v6013 = vld [vmem:[%s2 + $0x10] sm:$0xff]
      %v6014 = vld [vmem:[%s2 + $0x18] sm:$0xff]
      %v6015 = vld [vmem:[%s2 + $0x20] sm:$0xff]
      %v6016 = vld [vmem:[%s2 + $0x28] sm:$0xff]
      %v6017 = vld [vmem:[%s2 + $0x30] sm:$0xff]
      %v6018 = vld [vmem:[%s2 + $0x38] sm:$0xff]
      %v6019 = vld [vmem:[%s2 + $0x40] sm:$0xff]
      %v6020 = vld [vmem:[%s2 + $0x48] sm:$0xff]
      %v6021 = vld [vmem:[%s2 + $0x50] sm:$0xff]
      %v6022 = vld [vmem:[%s2 + $0x58] sm:$0xff]
      %v6023 = vld [vmem:[%s2 + $0x60] sm:$0xff]
      %v6024 = vld [vmem:[%s2 + $0x68] sm:$0xff]
      %v6025 = vld [vmem:[%s2 + $0x70] sm:$0xff]
      %v6026 = vld [vmem:[%s2 + $0x78] sm:$0xff]
      %v6027 = vld [vmem:[%s2 + $0x80] sm:$0xff]
      %v6028 = vld [vmem:[%s2 + $0x88] sm:$0xff]
      %v6029 = vld [vmem:[%s2 + $0x90] sm:$0xff]
      %v6030 = vld [vmem:[%s2 + $0x98] sm:$0xff]
      %v6031 = vld [vmem:[%s2 + $0xa0] sm:$0xff]
      %v6032 = vld [vmem:[%s2 + $0xa8] sm:$0xff]
      %v6033 = vld [vmem:[%s2 + $0xb0] sm:$0xff]
      %v6034 = vld [vmem:[%s2 + $0xb8] sm:$0xff]
      %v6035 = vld [vmem:[%s2 + $0xc0] sm:$0xff]
      %v6036 = vld [vmem:[%s2 + $0xc8] sm:$0xff]
      %v6037 = vld [vmem:[%s2 + $0xd0] sm:$0xff]
      %v6038 = vld [vmem:[%s2 + $0xd8] sm:$0xff]
      %v6039 = vld [vmem:[%s2 + $0xe0] sm:$0xff]
      %v6040 = vld [vmem:[%s2 + $0xe8] sm:$0xff]
      %v6041 = vld [vmem:[%s2 + $0xf0] sm:$0xff]
      %v6042 = vld [vmem:[%s2 + $0xf8] sm:$0xff]
      %v6043 = vld [vmem:[%s2 + $0x100] sm:$0xff]
      %v6044 = vld [vmem:[%s2 + $0x108] sm:$0xff]
      %v6045 = vld [vmem:[%s2 + $0x110] sm:$0xff]
      %v6046 = vld [vmem:[%s2 + $0x118] sm:$0xff]
      %v6047 = vld [vmem:[%s2 + $0x120] sm:$0xff]
      %v6048 = vld [vmem:[%s2 + $0x128] sm:$0xff]
      %v6049 = vld [vmem:[%s2 + $0x130] sm:$0xff]
      %v6050 = vld [vmem:[%s2 + $0x138] sm:$0xff]
      %v6051 = vld [vmem:[%s2 + $0x140] sm:$0xff]
      %v6052 = vld [vmem:[%s2 + $0x148] sm:$0xff]
      %v6053 = vld [vmem:[%s2 + $0x150] sm:$0xff]
      %v6054 = vld [vmem:[%s2 + $0x158] sm:$0xff]
      %v6055 = vld [vmem:[%s2 + $0x160] sm:$0xff]
      %v6056 = vld [vmem:[%s2 + $0x168] sm:$0xff]
      %v6057 = vld [vmem:[%s2 + $0x170] sm:$0xff]
      %v6058 = vld [vmem:[%s2 + $0x178] sm:$0xff]
      %v6059 = vld [vmem:[%s4] sm:$0x7]
      %v6061 = vlaneseq
      %v6062 = vshrl.u32 %v6061, 7
      %v6063 = vsub.s32 0, %v6062
      %v6064 = vrot.slane %v6059, %v6063
      %v6065 = vlaneseq
      %v6066 = vshrl.u32 %v6065, 7
      %v6067 = vsub.s32 1, %v6066
      %v6068 = vrot.slane %v6059, %v6067
      %v6069 = vlaneseq
      %v6070 = vshrl.u32 %v6069, 7
      %v6071 = vsub.s32 2, %v6070
      %v6072 = vrot.slane %v6059, %v6071
      %6076 = vmatprep.subr.mxu0 %v6012
      %6077 = vmatpush1.msra.mxu0 %v6011
      %6078 = vmatprep.subr.mxu0 %v6015
      %6079 = vmatpush1.msra.mxu0 %v6014
      %6080 = vmatprep.subr.mxu0 %v6018
      %6081 = vmatpush1.msra.mxu0 %v6017
      %6082 = vmatprep.subr.mxu0 %v6021
      %6083 = vmatpush1.msra.mxu0 %v6020
      %6084 = vmatprep.subr.mxu0 %v6024
      %6085 = vmatpush1.msra.mxu0 %v6023
      %6086 = vmatprep.subr.mxu0 %v6027
      %6087 = vmatpush1.msra.mxu0 %v6026
      %6088 = vmatprep.subr.mxu0 %v6030
      %6089 = vmatpush1.msra.mxu0 %v6029
      %6090 = vmatprep.subr.mxu0 %v6033
      %6091 = vmatpush1.msra.mxu0 %v6032
      %6092 = vmatprep.subr.mxu0 %v6036
      %6093 = vmatpush1.msra.mxu0 %v6035
      %6094 = vmatprep.subr.mxu0 %v6039
      %6095 = vmatpush1.msra.mxu0 %v6038
      %6096 = vmatprep.subr.mxu0 %v6042
      %6097 = vmatpush1.msra.mxu0 %v6041
      %6098 = vmatprep.subr.mxu0 %v6045
      %6099 = vmatpush1.msra.mxu0 %v6044
      %6100 = vmatprep.subr.mxu0 %v6048
      %6101 = vmatpush1.msra.mxu0 %v6047
      %6102 = vmatprep.subr.mxu0 %v6051
      %6103 = vmatpush1.msra.mxu0 %v6050
      %6104 = vmatprep.subr.mxu0 %v6054
      %6105 = vmatpush1.msra.mxu0 %v6053
      %6106 = vmatprep.subr.mxu0 %v6057
      %6107 = vmatpush1.msra.mxu0 %v6056
      %6108 = vmatprep.subr.mxu0 0.0
      %6109 = vmatpush1.msra.mxu0 0.0
      %6110 = vmatprep.subr.mxu0 0.0
      %6111 = vmatpush1.msra.mxu0 0.0
      %6112 = vmatprep.subr.mxu0 0.0
      %6113 = vmatpush1.msra.mxu0 0.0
      %6114 = vmatprep.subr.mxu0 0.0
      %6115 = vmatpush1.msra.mxu0 0.0
      %6116 = vmatprep.subr.mxu0 0.0
      %6117 = vmatpush1.msra.mxu0 0.0
      %6118 = vmatprep.subr.mxu0 0.0
      %6119 = vmatpush1.msra.mxu0 0.0
      %6120 = vmatprep.subr.mxu0 0.0
      %6121 = vmatpush1.msra.mxu0 0.0
      %6122 = vmatprep.subr.mxu0 0.0
      %6123 = vmatpush1.msra.mxu0 0.0
      %6124 = vmatprep.subr.mxu0 0.0
      %6125 = vmatpush1.msra.mxu0 0.0
      %6126 = vmatprep.subr.mxu0 0.0
      %6127 = vmatpush1.msra.mxu0 0.0
      %6128 = vmatprep.subr.mxu0 0.0
      %6129 = vmatpush1.msra.mxu0 0.0
      %6130 = vmatprep.subr.mxu0 0.0
      %6131 = vmatpush1.msra.mxu0 0.0
      %6132 = vmatprep.subr.mxu0 0.0
      %6133 = vmatpush1.msra.mxu0 0.0
      %6134 = vmatprep.subr.mxu0 0.0
      %6135 = vmatpush1.msra.mxu0 0.0
      %6136 = vmatprep.subr.mxu0 0.0
      %6137 = vmatpush1.msra.mxu0 0.0
      %6138 = vmatprep.subr.mxu0 0.0
      %6139 = vmatpush1.msra.mxu0 0.0
      %6140 = vmatprep.mubr.f32.mxu0 0.0
      %6141 = vmatmul.mubr.f32.gmra.mrb[0].mxu0 %v6008
      %v6142 = vpop.f32.mrb[0].mxu0
      %v6143 = vadd.f32 %v6064, %v6142
      %v6144 = vpop.f32.mrb[0].mxu0
      %v6145 = vadd.f32 %v6068, %v6144
      %6146 = vdwg.mxu0
      %6147 = vmatprep.subr.mxu0 0.0
      %6148 = vmatpush1.msra.mxu0 %v6013
      %6149 = vmatprep.subr.mxu0 0.0
      %6150 = vmatpush1.msra.mxu0 %v6016
      %6151 = vmatprep.subr.mxu0 0.0
      %6152 = vmatpush1.msra.mxu0 %v6019
      %6153 = vmatprep.subr.mxu0 0.0
      %6154 = vmatpush1.msra.mxu0 %v6022
      %6155 = vmatprep.subr.mxu0 0.0
      %6156 = vmatpush1.msra.mxu0 %v6025
      %6157 = vmatprep.subr.mxu0 0.0
      %6158 = vmatpush1.msra.mxu0 %v6028
      %6159 = vmatprep.subr.mxu0 0.0
      %6160 = vmatpush1.msra.mxu0 %v6031
      %6161 = vmatprep.subr.mxu0 0.0
      %6162 = vmatpush1.msra.mxu0 %v6034
      %6163 = vmatprep.subr.mxu0 0.0
      %6164 = vmatpush1.msra.mxu0 %v6037
      %6165 = vmatprep.subr.mxu0 0.0
      %6166 = vmatpush1.msra.mxu0 %v6040
      %6167 = vmatprep.subr.mxu0 0.0
      %6168 = vmatpush1.msra.mxu0 %v6043
      %6169 = vmatprep.subr.mxu0 0.0
      %6170 = vmatpush1.msra.mxu0 %v6046
      %6171 = vmatprep.subr.mxu0 0.0
      %6172 = vmatpush1.msra.mxu0 %v6049
      %6173 = vmatprep.subr.mxu0 0.0
      %6174 = vmatpush1.msra.mxu0 %v6052
      %6175 = vmatprep.subr.mxu0 0.0
      %6176 = vmatpush1.msra.mxu0 %v6055
      %6177 = vmatprep.subr.mxu0 0.0
      %6178 = vmatpush1.msra.mxu0 %v6058
      %6179 = vmatprep.subr.mxu0 0.0
      %6180 = vmatpush1.msra.mxu0 0.0
      %6181 = vmatprep.subr.mxu0 0.0
      %6182 = vmatpush1.msra.mxu0 0.0
      %6183 = vmatprep.subr.mxu0 0.0
      %6184 = vmatpush1.msra.mxu0 0.0
      %6185 = vmatprep.subr.mxu0 0.0
      %6186 = vmatpush1.msra.mxu0 0.0
      %6187 = vmatprep.subr.mxu0 0.0
      %6188 = vmatpush1.msra.mxu0 0.0
      %6189 = vmatprep.subr.mxu0 0.0
      %6190 = vmatpush1.msra.mxu0 0.0
      %6191 = vmatprep.subr.mxu0 0.0
      %6192 = vmatpush1.msra.mxu0 0.0
      %6193 = vmatprep.subr.mxu0 0.0
      %6194 = vmatpush1.msra.mxu0 0.0
      %6195 = vmatprep.subr.mxu0 0.0
      %6196 = vmatpush1.msra.mxu0 0.0
      %6197 = vmatprep.subr.mxu0 0.0
      %6198 = vmatpush1.msra.mxu0 0.0
      %6199 = vmatprep.subr.mxu0 0.0
      %6200 = vmatpush1.msra.mxu0 0.0
      %6201 = vmatprep.subr.mxu0 0.0
      %6202 = vmatpush1.msra.mxu0 0.0
      %6203 = vmatprep.subr.mxu0 0.0
      %6204 = vmatpush1.msra.mxu0 0.0
      %6205 = vmatprep.subr.mxu0 0.0
      %6206 = vmatpush1.msra.mxu0 0.0
      %6207 = vmatprep.subr.mxu0 0.0
      %6208 = vmatpush1.msra.mxu0 0.0
      %6209 = vmatprep.subr.mxu0 0.0
      %6210 = vmatpush1.msra.mxu0 0.0
      %6211 = vmatprep.mubr.f32.mxu0 0.0
      %6212 = vmatmul.mubr.f32.gmra.mrb[0].mxu0 %v6008
      %v6213 = vpop.f32.mrb[0].mxu0
      %v6214 = vadd.f32 %v6072, %v6213
      %v6215 = vpop.f32.mrb[0].mxu0
      %6216 = vdwg.mxu0
      %s6217 = scalar_lea.vmem [#allocation3], 528
      %v6218 = vld [vmem:[%s6217] sm:$0xff]
      %v6219 = vld [vmem:[%s6217 + $0x8] sm:$0xff]
      %v6220 = vld [vmem:[%s6217 + $0x10] sm:$0xff]
      %v6221 = vadd.f32 %v6218, %v6143
      %v6222 = vxor.u32 %v6221, 2147483648
      %v6223 = vmul.f32 %v6222, 1.442695
      %v6224 = vpow.pop %v6223
      %v6225 = vadd.f32 %v6224, 1.0
      %v6226 = vrcp.pop %v6225
      %v6227 = vmul.f32 1.0, %v6226
      %v6228 = vadd.f32 %v6219, %v6145
      %v6229 = vxor.u32 %v6228, 2147483648
      %v6230 = vmul.f32 %v6229, 1.442695
      %v6231 = vpow.pop %v6230
      %v6232 = vadd.f32 %v6231, 1.0
      %v6233 = vrcp.pop %v6232
      %v6234 = vmul.f32 1.0, %v6233
      %v6235 = vmul.f32 %v6227, %v6214
      %v6236 = vadd.f32 %v6220, %v6235
      %v6237 = vtanh.pop %v6236
      %v6238 = vsub.f32 %v6008, %v6237
      %v6239 = vmul.f32 %v6234, %v6238
      %v6240 = vadd.f32 %v6237, %v6239
      %s6241 = scalar_lea.vmem %s226, 176
      %6242 = vst [vmem:[%s6241] sm:$0xff] %v6240
      %v6243 = vld [vmem:[%s2] sm:$0xff]
      %v6244 = vld [vmem:[%s2 + $0x8] sm:$0xff]
      %v6245 = vld [vmem:[%s2 + $0x10] sm:$0xff]
      %v6246 = vld [vmem:[%s2 + $0x18] sm:$0xff]
      %v6247 = vld [vmem:[%s2 + $0x20] sm:$0xff]
      %v6248 = vld [vmem:[%s2 + $0x28] sm:$0xff]
      %v6249 = vld [vmem:[%s2 + $0x30] sm:$0xff]
      %v6250 = vld [vmem:[%s2 + $0x38] sm:$0xff]
      %v6251 = vld [vmem:[%s2 + $0x40] sm:$0xff]
      %v6252 = vld [vmem:[%s2 + $0x48] sm:$0xff]
      %v6253 = vld [vmem:[%s2 + $0x50] sm:$0xff]
      %v6254 = vld [vmem:[%s2 + $0x58] sm:$0xff]
      %v6255 = vld [vmem:[%s2 + $0x60] sm:$0xff]
      %v6256 = vld [vmem:[%s2 + $0x68] sm:$0xff]
      %v6257 = vld [vmem:[%s2 + $0x70] sm:$0xff]
      %v6258 = vld [vmem:[%s2 + $0x78] sm:$0xff]
      %v6259 = vld [vmem:[%s2 + $0x80] sm:$0xff]
      %v6260 = vld [vmem:[%s2 + $0x88] sm:$0xff]
      %v6261 = vld [vmem:[%s2 + $0x90] sm:$0xff]
      %v6262 = vld [vmem:[%s2 + $0x98] sm:$0xff]
      %v6263 = vld [vmem:[%s2 + $0xa0] sm:$0xff]
      %v6264 = vld [vmem:[%s2 + $0xa8] sm:$0xff]
      %v6265 = vld [vmem:[%s2 + $0xb0] sm:$0xff]
      %v6266 = vld [vmem:[%s2 + $0xb8] sm:$0xff]
      %v6267 = vld [vmem:[%s2 + $0xc0] sm:$0xff]
      %v6268 = vld [vmem:[%s2 + $0xc8] sm:$0xff]
      %v6269 = vld [vmem:[%s2 + $0xd0] sm:$0xff]
      %v6270 = vld [vmem:[%s2 + $0xd8] sm:$0xff]
      %v6271 = vld [vmem:[%s2 + $0xe0] sm:$0xff]
      %v6272 = vld [vmem:[%s2 + $0xe8] sm:$0xff]
      %v6273 = vld [vmem:[%s2 + $0xf0] sm:$0xff]
      %v6274 = vld [vmem:[%s2 + $0xf8] sm:$0xff]
      %v6275 = vld [vmem:[%s2 + $0x100] sm:$0xff]
      %v6276 = vld [vmem:[%s2 + $0x108] sm:$0xff]
      %v6277 = vld [vmem:[%s2 + $0x110] sm:$0xff]
      %v6278 = vld [vmem:[%s2 + $0x118] sm:$0xff]
      %v6279 = vld [vmem:[%s2 + $0x120] sm:$0xff]
      %v6280 = vld [vmem:[%s2 + $0x128] sm:$0xff]
      %v6281 = vld [vmem:[%s2 + $0x130] sm:$0xff]
      %v6282 = vld [vmem:[%s2 + $0x138] sm:$0xff]
      %v6283 = vld [vmem:[%s2 + $0x140] sm:$0xff]
      %v6284 = vld [vmem:[%s2 + $0x148] sm:$0xff]
      %v6285 = vld [vmem:[%s2 + $0x150] sm:$0xff]
      %v6286 = vld [vmem:[%s2 + $0x158] sm:$0xff]
      %v6287 = vld [vmem:[%s2 + $0x160] sm:$0xff]
      %v6288 = vld [vmem:[%s2 + $0x168] sm:$0xff]
      %v6289 = vld [vmem:[%s2 + $0x170] sm:$0xff]
      %v6290 = vld [vmem:[%s2 + $0x178] sm:$0xff]
      %v6291 = vld [vmem:[%s4] sm:$0x7]
      %v6293 = vlaneseq
      %v6294 = vshrl.u32 %v6293, 7
      %v6295 = vsub.s32 0, %v6294
      %v6296 = vrot.slane %v6291, %v6295
      %v6297 = vlaneseq
      %v6298 = vshrl.u32 %v6297, 7
      %v6299 = vsub.s32 1, %v6298
      %v6300 = vrot.slane %v6291, %v6299
      %v6301 = vlaneseq
      %v6302 = vshrl.u32 %v6301, 7
      %v6303 = vsub.s32 2, %v6302
      %v6304 = vrot.slane %v6291, %v6303
      %6308 = vmatprep.subr.mxu0 %v6244
      %6309 = vmatpush1.msra.mxu0 %v6243
      %6310 = vmatprep.subr.mxu0 %v6247
      %6311 = vmatpush1.msra.mxu0 %v6246
      %6312 = vmatprep.subr.mxu0 %v6250
      %6313 = vmatpush1.msra.mxu0 %v6249
      %6314 = vmatprep.subr.mxu0 %v6253
      %6315 = vmatpush1.msra.mxu0 %v6252
      %6316 = vmatprep.subr.mxu0 %v6256
      %6317 = vmatpush1.msra.mxu0 %v6255
      %6318 = vmatprep.subr.mxu0 %v6259
      %6319 = vmatpush1.msra.mxu0 %v6258
      %6320 = vmatprep.subr.mxu0 %v6262
      %6321 = vmatpush1.msra.mxu0 %v6261
      %6322 = vmatprep.subr.mxu0 %v6265
      %6323 = vmatpush1.msra.mxu0 %v6264
      %6324 = vmatprep.subr.mxu0 %v6268
      %6325 = vmatpush1.msra.mxu0 %v6267
      %6326 = vmatprep.subr.mxu0 %v6271
      %6327 = vmatpush1.msra.mxu0 %v6270
      %6328 = vmatprep.subr.mxu0 %v6274
      %6329 = vmatpush1.msra.mxu0 %v6273
      %6330 = vmatprep.subr.mxu0 %v6277
      %6331 = vmatpush1.msra.mxu0 %v6276
      %6332 = vmatprep.subr.mxu0 %v6280
      %6333 = vmatpush1.msra.mxu0 %v6279
      %6334 = vmatprep.subr.mxu0 %v6283
      %6335 = vmatpush1.msra.mxu0 %v6282
      %6336 = vmatprep.subr.mxu0 %v6286
      %6337 = vmatpush1.msra.mxu0 %v6285
      %6338 = vmatprep.subr.mxu0 %v6289
      %6339 = vmatpush1.msra.mxu0 %v6288
      %6340 = vmatprep.subr.mxu0 0.0
      %6341 = vmatpush1.msra.mxu0 0.0
      %6342 = vmatprep.subr.mxu0 0.0
      %6343 = vmatpush1.msra.mxu0 0.0
      %6344 = vmatprep.subr.mxu0 0.0
      %6345 = vmatpush1.msra.mxu0 0.0
      %6346 = vmatprep.subr.mxu0 0.0
      %6347 = vmatpush1.msra.mxu0 0.0
      %6348 = vmatprep.subr.mxu0 0.0
      %6349 = vmatpush1.msra.mxu0 0.0
      %6350 = vmatprep.subr.mxu0 0.0
      %6351 = vmatpush1.msra.mxu0 0.0
      %6352 = vmatprep.subr.mxu0 0.0
      %6353 = vmatpush1.msra.mxu0 0.0
      %6354 = vmatprep.subr.mxu0 0.0
      %6355 = vmatpush1.msra.mxu0 0.0
      %6356 = vmatprep.subr.mxu0 0.0
      %6357 = vmatpush1.msra.mxu0 0.0
      %6358 = vmatprep.subr.mxu0 0.0
      %6359 = vmatpush1.msra.mxu0 0.0
      %6360 = vmatprep.subr.mxu0 0.0
      %6361 = vmatpush1.msra.mxu0 0.0
      %6362 = vmatprep.subr.mxu0 0.0
      %6363 = vmatpush1.msra.mxu0 0.0
      %6364 = vmatprep.subr.mxu0 0.0
      %6365 = vmatpush1.msra.mxu0 0.0
      %6366 = vmatprep.subr.mxu0 0.0
      %6367 = vmatpush1.msra.mxu0 0.0
      %6368 = vmatprep.subr.mxu0 0.0
      %6369 = vmatpush1.msra.mxu0 0.0
      %6370 = vmatprep.subr.mxu0 0.0
      %6371 = vmatpush1.msra.mxu0 0.0
      %6372 = vmatprep.mubr.f32.mxu0 0.0
      %6373 = vmatmul.mubr.f32.gmra.mrb[0].mxu0 %v6240
      %v6374 = vpop.f32.mrb[0].mxu0
      %v6375 = vadd.f32 %v6296, %v6374
      %v6376 = vpop.f32.mrb[0].mxu0
      %v6377 = vadd.f32 %v6300, %v6376
      %6378 = vdwg.mxu0
      %6379 = vmatprep.subr.mxu0 0.0
      %6380 = vmatpush1.msra.mxu0 %v6245
      %6381 = vmatprep.subr.mxu0 0.0
      %6382 = vmatpush1.msra.mxu0 %v6248
      %6383 = vmatprep.subr.mxu0 0.0
      %6384 = vmatpush1.msra.mxu0 %v6251
      %6385 = vmatprep.subr.mxu0 0.0
      %6386 = vmatpush1.msra.mxu0 %v6254
      %6387 = vmatprep.subr.mxu0 0.0
      %6388 = vmatpush1.msra.mxu0 %v6257
      %6389 = vmatprep.subr.mxu0 0.0
      %6390 = vmatpush1.msra.mxu0 %v6260
      %6391 = vmatprep.subr.mxu0 0.0
      %6392 = vmatpush1.msra.mxu0 %v6263
      %6393 = vmatprep.subr.mxu0 0.0
      %6394 = vmatpush1.msra.mxu0 %v6266
      %6395 = vmatprep.subr.mxu0 0.0
      %6396 = vmatpush1.msra.mxu0 %v6269
      %6397 = vmatprep.subr.mxu0 0.0
      %6398 = vmatpush1.msra.mxu0 %v6272
      %6399 = vmatprep.subr.mxu0 0.0
      %6400 = vmatpush1.msra.mxu0 %v6275
      %6401 = vmatprep.subr.mxu0 0.0
      %6402 = vmatpush1.msra.mxu0 %v6278
      %6403 = vmatprep.subr.mxu0 0.0
      %6404 = vmatpush1.msra.mxu0 %v6281
      %6405 = vmatprep.subr.mxu0 0.0
      %6406 = vmatpush1.msra.mxu0 %v6284
      %6407 = vmatprep.subr.mxu0 0.0
      %6408 = vmatpush1.msra.mxu0 %v6287
      %6409 = vmatprep.subr.mxu0 0.0
      %6410 = vmatpush1.msra.mxu0 %v6290
      %6411 = vmatprep.subr.mxu0 0.0
      %6412 = vmatpush1.msra.mxu0 0.0
      %6413 = vmatprep.subr.mxu0 0.0
      %6414 = vmatpush1.msra.mxu0 0.0
      %6415 = vmatprep.subr.mxu0 0.0
      %6416 = vmatpush1.msra.mxu0 0.0
      %6417 = vmatprep.subr.mxu0 0.0
      %6418 = vmatpush1.msra.mxu0 0.0
      %6419 = vmatprep.subr.mxu0 0.0
      %6420 = vmatpush1.msra.mxu0 0.0
      %6421 = vmatprep.subr.mxu0 0.0
      %6422 = vmatpush1.msra.mxu0 0.0
      %6423 = vmatprep.subr.mxu0 0.0
      %6424 = vmatpush1.msra.mxu0 0.0
      %6425 = vmatprep.subr.mxu0 0.0
      %6426 = vmatpush1.msra.mxu0 0.0
      %6427 = vmatprep.subr.mxu0 0.0
      %6428 = vmatpush1.msra.mxu0 0.0
      %6429 = vmatprep.subr.mxu0 0.0
      %6430 = vmatpush1.msra.mxu0 0.0
      %6431 = vmatprep.subr.mxu0 0.0
      %6432 = vmatpush1.msra.mxu0 0.0
      %6433 = vmatprep.subr.mxu0 0.0
      %6434 = vmatpush1.msra.mxu0 0.0
      %6435 = vmatprep.subr.mxu0 0.0
      %6436 = vmatpush1.msra.mxu0 0.0
      %6437 = vmatprep.subr.mxu0 0.0
      %6438 = vmatpush1.msra.mxu0 0.0
      %6439 = vmatprep.subr.mxu0 0.0
      %6440 = vmatpush1.msra.mxu0 0.0
      %6441 = vmatprep.subr.mxu0 0.0
      %6442 = vmatpush1.msra.mxu0 0.0
      %6443 = vmatprep.mubr.f32.mxu0 0.0
      %6444 = vmatmul.mubr.f32.gmra.mrb[0].mxu0 %v6240
      %v6445 = vpop.f32.mrb[0].mxu0
      %v6446 = vadd.f32 %v6304, %v6445
      %v6447 = vpop.f32.mrb[0].mxu0
      %6448 = vdwg.mxu0
      %s6449 = scalar_lea.vmem [#allocation3], 552
      %v6450 = vld [vmem:[%s6449] sm:$0xff]
      %v6451 = vld [vmem:[%s6449 + $0x8] sm:$0xff]
      %v6452 = vld [vmem:[%s6449 + $0x10] sm:$0xff]
      %v6453 = vadd.f32 %v6450, %v6375
      %v6454 = vxor.u32 %v6453, 2147483648
      %v6455 = vmul.f32 %v6454, 1.442695
      %v6456 = vpow.pop %v6455
      %v6457 = vadd.f32 %v6456, 1.0
      %v6458 = vrcp.pop %v6457
      %v6459 = vmul.f32 1.0, %v6458
      %v6460 = vadd.f32 %v6451, %v6377
      %v6461 = vxor.u32 %v6460, 2147483648
      %v6462 = vmul.f32 %v6461, 1.442695
      %v6463 = vpow.pop %v6462
      %v6464 = vadd.f32 %v6463, 1.0
      %v6465 = vrcp.pop %v6464
      %v6466 = vmul.f32 1.0, %v6465
      %v6467 = vmul.f32 %v6459, %v6446
      %v6468 = vadd.f32 %v6452, %v6467
      %v6469 = vtanh.pop %v6468
      %v6470 = vsub.f32 %v6240, %v6469
      %v6471 = vmul.f32 %v6466, %v6470
      %v6472 = vadd.f32 %v6469, %v6471
      %s6473 = scalar_lea.vmem %s226, 184
      %6474 = vst [vmem:[%s6473] sm:$0xff] %v6472
      %v6475 = vld [vmem:[%s2] sm:$0xff]
      %v6476 = vld [vmem:[%s2 + $0x8] sm:$0xff]
      %v6477 = vld [vmem:[%s2 + $0x10] sm:$0xff]
      %v6478 = vld [vmem:[%s2 + $0x18] sm:$0xff]
      %v6479 = vld [vmem:[%s2 + $0x20] sm:$0xff]
      %v6480 = vld [vmem:[%s2 + $0x28] sm:$0xff]
      %v6481 = vld [vmem:[%s2 + $0x30] sm:$0xff]
      %v6482 = vld [vmem:[%s2 + $0x38] sm:$0xff]
      %v6483 = vld [vmem:[%s2 + $0x40] sm:$0xff]
      %v6484 = vld [vmem:[%s2 + $0x48] sm:$0xff]
      %v6485 = vld [vmem:[%s2 + $0x50] sm:$0xff]
      %v6486 = vld [vmem:[%s2 + $0x58] sm:$0xff]
      %v6487 = vld [vmem:[%s2 + $0x60] sm:$0xff]
      %v6488 = vld [vmem:[%s2 + $0x68] sm:$0xff]
      %v6489 = vld [vmem:[%s2 + $0x70] sm:$0xff]
      %v6490 = vld [vmem:[%s2 + $0x78] sm:$0xff]
      %v6491 = vld [vmem:[%s2 + $0x80] sm:$0xff]
      %v6492 = vld [vmem:[%s2 + $0x88] sm:$0xff]
      %v6493 = vld [vmem:[%s2 + $0x90] sm:$0xff]
      %v6494 = vld [vmem:[%s2 + $0x98] sm:$0xff]
      %v6495 = vld [vmem:[%s2 + $0xa0] sm:$0xff]
      %v6496 = vld [vmem:[%s2 + $0xa8] sm:$0xff]
      %v6497 = vld [vmem:[%s2 + $0xb0] sm:$0xff]
      %v6498 = vld [vmem:[%s2 + $0xb8] sm:$0xff]
      %v6499 = vld [vmem:[%s2 + $0xc0] sm:$0xff]
      %v6500 = vld [vmem:[%s2 + $0xc8] sm:$0xff]
      %v6501 = vld [vmem:[%s2 + $0xd0] sm:$0xff]
      %v6502 = vld [vmem:[%s2 + $0xd8] sm:$0xff]
      %v6503 = vld [vmem:[%s2 + $0xe0] sm:$0xff]
      %v6504 = vld [vmem:[%s2 + $0xe8] sm:$0xff]
      %v6505 = vld [vmem:[%s2 + $0xf0] sm:$0xff]
      %v6506 = vld [vmem:[%s2 + $0xf8] sm:$0xff]
      %v6507 = vld [vmem:[%s2 + $0x100] sm:$0xff]
      %v6508 = vld [vmem:[%s2 + $0x108] sm:$0xff]
      %v6509 = vld [vmem:[%s2 + $0x110] sm:$0xff]
      %v6510 = vld [vmem:[%s2 + $0x118] sm:$0xff]
      %v6511 = vld [vmem:[%s2 + $0x120] sm:$0xff]
      %v6512 = vld [vmem:[%s2 + $0x128] sm:$0xff]
      %v6513 = vld [vmem:[%s2 + $0x130] sm:$0xff]
      %v6514 = vld [vmem:[%s2 + $0x138] sm:$0xff]
      %v6515 = vld [vmem:[%s2 + $0x140] sm:$0xff]
      %v6516 = vld [vmem:[%s2 + $0x148] sm:$0xff]
      %v6517 = vld [vmem:[%s2 + $0x150] sm:$0xff]
      %v6518 = vld [vmem:[%s2 + $0x158] sm:$0xff]
      %v6519 = vld [vmem:[%s2 + $0x160] sm:$0xff]
      %v6520 = vld [vmem:[%s2 + $0x168] sm:$0xff]
      %v6521 = vld [vmem:[%s2 + $0x170] sm:$0xff]
      %v6522 = vld [vmem:[%s2 + $0x178] sm:$0xff]
      %v6523 = vld [vmem:[%s4] sm:$0x7]
      %v6525 = vlaneseq
      %v6526 = vshrl.u32 %v6525, 7
      %v6527 = vsub.s32 0, %v6526
      %v6528 = vrot.slane %v6523, %v6527
      %v6529 = vlaneseq
      %v6530 = vshrl.u32 %v6529, 7
      %v6531 = vsub.s32 1, %v6530
      %v6532 = vrot.slane %v6523, %v6531
      %v6533 = vlaneseq
      %v6534 = vshrl.u32 %v6533, 7
      %v6535 = vsub.s32 2, %v6534
      %v6536 = vrot.slane %v6523, %v6535
      %6540 = vmatprep.subr.mxu0 %v6476
      %6541 = vmatpush1.msra.mxu0 %v6475
      %6542 = vmatprep.subr.mxu0 %v6479
      %6543 = vmatpush1.msra.mxu0 %v6478
      %6544 = vmatprep.subr.mxu0 %v6482
      %6545 = vmatpush1.msra.mxu0 %v6481
      %6546 = vmatprep.subr.mxu0 %v6485
      %6547 = vmatpush1.msra.mxu0 %v6484
      %6548 = vmatprep.subr.mxu0 %v6488
      %6549 = vmatpush1.msra.mxu0 %v6487
      %6550 = vmatprep.subr.mxu0 %v6491
      %6551 = vmatpush1.msra.mxu0 %v6490
      %6552 = vmatprep.subr.mxu0 %v6494
      %6553 = vmatpush1.msra.mxu0 %v6493
      %6554 = vmatprep.subr.mxu0 %v6497
      %6555 = vmatpush1.msra.mxu0 %v6496
      %6556 = vmatprep.subr.mxu0 %v6500
      %6557 = vmatpush1.msra.mxu0 %v6499
      %6558 = vmatprep.subr.mxu0 %v6503
      %6559 = vmatpush1.msra.mxu0 %v6502
      %6560 = vmatprep.subr.mxu0 %v6506
      %6561 = vmatpush1.msra.mxu0 %v6505
      %6562 = vmatprep.subr.mxu0 %v6509
      %6563 = vmatpush1.msra.mxu0 %v6508
      %6564 = vmatprep.subr.mxu0 %v6512
      %6565 = vmatpush1.msra.mxu0 %v6511
      %6566 = vmatprep.subr.mxu0 %v6515
      %6567 = vmatpush1.msra.mxu0 %v6514
      %6568 = vmatprep.subr.mxu0 %v6518
      %6569 = vmatpush1.msra.mxu0 %v6517
      %6570 = vmatprep.subr.mxu0 %v6521
      %6571 = vmatpush1.msra.mxu0 %v6520
      %6572 = vmatprep.subr.mxu0 0.0
      %6573 = vmatpush1.msra.mxu0 0.0
      %6574 = vmatprep.subr.mxu0 0.0
      %6575 = vmatpush1.msra.mxu0 0.0
      %6576 = vmatprep.subr.mxu0 0.0
      %6577 = vmatpush1.msra.mxu0 0.0
      %6578 = vmatprep.subr.mxu0 0.0
      %6579 = vmatpush1.msra.mxu0 0.0
      %6580 = vmatprep.subr.mxu0 0.0
      %6581 = vmatpush1.msra.mxu0 0.0
      %6582 = vmatprep.subr.mxu0 0.0
      %6583 = vmatpush1.msra.mxu0 0.0
      %6584 = vmatprep.subr.mxu0 0.0
      %6585 = vmatpush1.msra.mxu0 0.0
      %6586 = vmatprep.subr.mxu0 0.0
      %6587 = vmatpush1.msra.mxu0 0.0
      %6588 = vmatprep.subr.mxu0 0.0
      %6589 = vmatpush1.msra.mxu0 0.0
      %6590 = vmatprep.subr.mxu0 0.0
      %6591 = vmatpush1.msra.mxu0 0.0
      %6592 = vmatprep.subr.mxu0 0.0
      %6593 = vmatpush1.msra.mxu0 0.0
      %6594 = vmatprep.subr.mxu0 0.0
      %6595 = vmatpush1.msra.mxu0 0.0
      %6596 = vmatprep.subr.mxu0 0.0
      %6597 = vmatpush1.msra.mxu0 0.0
      %6598 = vmatprep.subr.mxu0 0.0
      %6599 = vmatpush1.msra.mxu0 0.0
      %6600 = vmatprep.subr.mxu0 0.0
      %6601 = vmatpush1.msra.mxu0 0.0
      %6602 = vmatprep.subr.mxu0 0.0
      %6603 = vmatpush1.msra.mxu0 0.0
      %6604 = vmatprep.mubr.f32.mxu0 0.0
      %6605 = vmatmul.mubr.f32.gmra.mrb[0].mxu0 %v6472
      %v6606 = vpop.f32.mrb[0].mxu0
      %v6607 = vadd.f32 %v6528, %v6606
      %v6608 = vpop.f32.mrb[0].mxu0
      %v6609 = vadd.f32 %v6532, %v6608
      %6610 = vdwg.mxu0
      %6611 = vmatprep.subr.mxu0 0.0
      %6612 = vmatpush1.msra.mxu0 %v6477
      %6613 = vmatprep.subr.mxu0 0.0
      %6614 = vmatpush1.msra.mxu0 %v6480
      %6615 = vmatprep.subr.mxu0 0.0
      %6616 = vmatpush1.msra.mxu0 %v6483
      %6617 = vmatprep.subr.mxu0 0.0
      %6618 = vmatpush1.msra.mxu0 %v6486
      %6619 = vmatprep.subr.mxu0 0.0
      %6620 = vmatpush1.msra.mxu0 %v6489
      %6621 = vmatprep.subr.mxu0 0.0
      %6622 = vmatpush1.msra.mxu0 %v6492
      %6623 = vmatprep.subr.mxu0 0.0
      %6624 = vmatpush1.msra.mxu0 %v6495
      %6625 = vmatprep.subr.mxu0 0.0
      %6626 = vmatpush1.msra.mxu0 %v6498
      %6627 = vmatprep.subr.mxu0 0.0
      %6628 = vmatpush1.msra.mxu0 %v6501
      %6629 = vmatprep.subr.mxu0 0.0
      %6630 = vmatpush1.msra.mxu0 %v6504
      %6631 = vmatprep.subr.mxu0 0.0
      %6632 = vmatpush1.msra.mxu0 %v6507
      %6633 = vmatprep.subr.mxu0 0.0
      %6634 = vmatpush1.msra.mxu0 %v6510
      %6635 = vmatprep.subr.mxu0 0.0
      %6636 = vmatpush1.msra.mxu0 %v6513
      %6637 = vmatprep.subr.mxu0 0.0
      %6638 = vmatpush1.msra.mxu0 %v6516
      %6639 = vmatprep.subr.mxu0 0.0
      %6640 = vmatpush1.msra.mxu0 %v6519
      %6641 = vmatprep.subr.mxu0 0.0
      %6642 = vmatpush1.msra.mxu0 %v6522
      %6643 = vmatprep.subr.mxu0 0.0
      %6644 = vmatpush1.msra.mxu0 0.0
      %6645 = vmatprep.subr.mxu0 0.0
      %6646 = vmatpush1.msra.mxu0 0.0
      %6647 = vmatprep.subr.mxu0 0.0
      %6648 = vmatpush1.msra.mxu0 0.0
      %6649 = vmatprep.subr.mxu0 0.0
      %6650 = vmatpush1.msra.mxu0 0.0
      %6651 = vmatprep.subr.mxu0 0.0
      %6652 = vmatpush1.msra.mxu0 0.0
      %6653 = vmatprep.subr.mxu0 0.0
      %6654 = vmatpush1.msra.mxu0 0.0
      %6655 = vmatprep.subr.mxu0 0.0
      %6656 = vmatpush1.msra.mxu0 0.0
      %6657 = vmatprep.subr.mxu0 0.0
      %6658 = vmatpush1.msra.mxu0 0.0
      %6659 = vmatprep.subr.mxu0 0.0
      %6660 = vmatpush1.msra.mxu0 0.0
      %6661 = vmatprep.subr.mxu0 0.0
      %6662 = vmatpush1.msra.mxu0 0.0
      %6663 = vmatprep.subr.mxu0 0.0
      %6664 = vmatpush1.msra.mxu0 0.0
      %6665 = vmatprep.subr.mxu0 0.0
      %6666 = vmatpush1.msra.mxu0 0.0
      %6667 = vmatprep.subr.mxu0 0.0
      %6668 = vmatpush1.msra.mxu0 0.0
      %6669 = vmatprep.subr.mxu0 0.0
      %6670 = vmatpush1.msra.mxu0 0.0
      %6671 = vmatprep.subr.mxu0 0.0
      %6672 = vmatpush1.msra.mxu0 0.0
      %6673 = vmatprep.subr.mxu0 0.0
      %6674 = vmatpush1.msra.mxu0 0.0
      %6675 = vmatprep.mubr.f32.mxu0 0.0
      %6676 = vmatmul.mubr.f32.gmra.mrb[0].mxu0 %v6472
      %v6677 = vpop.f32.mrb[0].mxu0
      %v6678 = vadd.f32 %v6536, %v6677
      %v6679 = vpop.f32.mrb[0].mxu0
      %6680 = vdwg.mxu0
      %s6681 = scalar_lea.vmem [#allocation3], 576
      %v6682 = vld [vmem:[%s6681] sm:$0xff]
      %v6683 = vld [vmem:[%s6681 + $0x8] sm:$0xff]
      %v6684 = vld [vmem:[%s6681 + $0x10] sm:$0xff]
      %v6685 = vadd.f32 %v6682, %v6607
      %v6686 = vxor.u32 %v6685, 2147483648
      %v6687 = vmul.f32 %v6686, 1.442695
      %v6688 = vpow.pop %v6687
      %v6689 = vadd.f32 %v6688, 1.0
      %v6690 = vrcp.pop %v6689
      %v6691 = vmul.f32 1.0, %v6690
      %v6692 = vadd.f32 %v6683, %v6609
      %v6693 = vxor.u32 %v6692, 2147483648
      %v6694 = vmul.f32 %v6693, 1.442695
      %v6695 = vpow.pop %v6694
      %v6696 = vadd.f32 %v6695, 1.0
      %v6697 = vrcp.pop %v6696
      %v6698 = vmul.f32 1.0, %v6697
      %v6699 = vmul.f32 %v6691, %v6678
      %v6700 = vadd.f32 %v6684, %v6699
      %v6701 = vtanh.pop %v6700
      %v6702 = vsub.f32 %v6472, %v6701
      %v6703 = vmul.f32 %v6698, %v6702
      %v6704 = vadd.f32 %v6701, %v6703
      %s6705 = scalar_lea.vmem %s226, 192
      %6706 = vst [vmem:[%s6705] sm:$0xff] %v6704
      %v6707 = vld [vmem:[%s2] sm:$0xff]
      %v6708 = vld [vmem:[%s2 + $0x8] sm:$0xff]
      %v6709 = vld [vmem:[%s2 + $0x10] sm:$0xff]
      %v6710 = vld [vmem:[%s2 + $0x18] sm:$0xff]
      %v6711 = vld [vmem:[%s2 + $0x20] sm:$0xff]
      %v6712 = vld [vmem:[%s2 + $0x28] sm:$0xff]
      %v6713 = vld [vmem:[%s2 + $0x30] sm:$0xff]
      %v6714 = vld [vmem:[%s2 + $0x38] sm:$0xff]
      %v6715 = vld [vmem:[%s2 + $0x40] sm:$0xff]
      %v6716 = vld [vmem:[%s2 + $0x48] sm:$0xff]
      %v6717 = vld [vmem:[%s2 + $0x50] sm:$0xff]
      %v6718 = vld [vmem:[%s2 + $0x58] sm:$0xff]
      %v6719 = vld [vmem:[%s2 + $0x60] sm:$0xff]
      %v6720 = vld [vmem:[%s2 + $0x68] sm:$0xff]
      %v6721 = vld [vmem:[%s2 + $0x70] sm:$0xff]
      %v6722 = vld [vmem:[%s2 + $0x78] sm:$0xff]
      %v6723 = vld [vmem:[%s2 + $0x80] sm:$0xff]
      %v6724 = vld [vmem:[%s2 + $0x88] sm:$0xff]
      %v6725 = vld [vmem:[%s2 + $0x90] sm:$0xff]
      %v6726 = vld [vmem:[%s2 + $0x98] sm:$0xff]
      %v6727 = vld [vmem:[%s2 + $0xa0] sm:$0xff]
      %v6728 = vld [vmem:[%s2 + $0xa8] sm:$0xff]
      %v6729 = vld [vmem:[%s2 + $0xb0] sm:$0xff]
      %v6730 = vld [vmem:[%s2 + $0xb8] sm:$0xff]
      %v6731 = vld [vmem:[%s2 + $0xc0] sm:$0xff]
      %v6732 = vld [vmem:[%s2 + $0xc8] sm:$0xff]
      %v6733 = vld [vmem:[%s2 + $0xd0] sm:$0xff]
      %v6734 = vld [vmem:[%s2 + $0xd8] sm:$0xff]
      %v6735 = vld [vmem:[%s2 + $0xe0] sm:$0xff]
      %v6736 = vld [vmem:[%s2 + $0xe8] sm:$0xff]
      %v6737 = vld [vmem:[%s2 + $0xf0] sm:$0xff]
      %v6738 = vld [vmem:[%s2 + $0xf8] sm:$0xff]
      %v6739 = vld [vmem:[%s2 + $0x100] sm:$0xff]
      %v6740 = vld [vmem:[%s2 + $0x108] sm:$0xff]
      %v6741 = vld [vmem:[%s2 + $0x110] sm:$0xff]
      %v6742 = vld [vmem:[%s2 + $0x118] sm:$0xff]
      %v6743 = vld [vmem:[%s2 + $0x120] sm:$0xff]
      %v6744 = vld [vmem:[%s2 + $0x128] sm:$0xff]
      %v6745 = vld [vmem:[%s2 + $0x130] sm:$0xff]
      %v6746 = vld [vmem:[%s2 + $0x138] sm:$0xff]
      %v6747 = vld [vmem:[%s2 + $0x140] sm:$0xff]
      %v6748 = vld [vmem:[%s2 + $0x148] sm:$0xff]
      %v6749 = vld [vmem:[%s2 + $0x150] sm:$0xff]
      %v6750 = vld [vmem:[%s2 + $0x158] sm:$0xff]
      %v6751 = vld [vmem:[%s2 + $0x160] sm:$0xff]
      %v6752 = vld [vmem:[%s2 + $0x168] sm:$0xff]
      %v6753 = vld [vmem:[%s2 + $0x170] sm:$0xff]
      %v6754 = vld [vmem:[%s2 + $0x178] sm:$0xff]
      %v6755 = vld [vmem:[%s4] sm:$0x7]
      %v6757 = vlaneseq
      %v6758 = vshrl.u32 %v6757, 7
      %v6759 = vsub.s32 0, %v6758
      %v6760 = vrot.slane %v6755, %v6759
      %v6761 = vlaneseq
      %v6762 = vshrl.u32 %v6761, 7
      %v6763 = vsub.s32 1, %v6762
      %v6764 = vrot.slane %v6755, %v6763
      %v6765 = vlaneseq
      %v6766 = vshrl.u32 %v6765, 7
      %v6767 = vsub.s32 2, %v6766
      %v6768 = vrot.slane %v6755, %v6767
      %6772 = vmatprep.subr.mxu0 %v6708
      %6773 = vmatpush1.msra.mxu0 %v6707
      %6774 = vmatprep.subr.mxu0 %v6711
      %6775 = vmatpush1.msra.mxu0 %v6710
      %6776 = vmatprep.subr.mxu0 %v6714
      %6777 = vmatpush1.msra.mxu0 %v6713
      %6778 = vmatprep.subr.mxu0 %v6717
      %6779 = vmatpush1.msra.mxu0 %v6716
      %6780 = vmatprep.subr.mxu0 %v6720
      %6781 = vmatpush1.msra.mxu0 %v6719
      %6782 = vmatprep.subr.mxu0 %v6723
      %6783 = vmatpush1.msra.mxu0 %v6722
      %6784 = vmatprep.subr.mxu0 %v6726
      %6785 = vmatpush1.msra.mxu0 %v6725
      %6786 = vmatprep.subr.mxu0 %v6729
      %6787 = vmatpush1.msra.mxu0 %v6728
      %6788 = vmatprep.subr.mxu0 %v6732
      %6789 = vmatpush1.msra.mxu0 %v6731
      %6790 = vmatprep.subr.mxu0 %v6735
      %6791 = vmatpush1.msra.mxu0 %v6734
      %6792 = vmatprep.subr.mxu0 %v6738
      %6793 = vmatpush1.msra.mxu0 %v6737
      %6794 = vmatprep.subr.mxu0 %v6741
      %6795 = vmatpush1.msra.mxu0 %v6740
      %6796 = vmatprep.subr.mxu0 %v6744
      %6797 = vmatpush1.msra.mxu0 %v6743
      %6798 = vmatprep.subr.mxu0 %v6747
      %6799 = vmatpush1.msra.mxu0 %v6746
      %6800 = vmatprep.subr.mxu0 %v6750
      %6801 = vmatpush1.msra.mxu0 %v6749
      %6802 = vmatprep.subr.mxu0 %v6753
      %6803 = vmatpush1.msra.mxu0 %v6752
      %6804 = vmatprep.subr.mxu0 0.0
      %6805 = vmatpush1.msra.mxu0 0.0
      %6806 = vmatprep.subr.mxu0 0.0
      %6807 = vmatpush1.msra.mxu0 0.0
      %6808 = vmatprep.subr.mxu0 0.0
      %6809 = vmatpush1.msra.mxu0 0.0
      %6810 = vmatprep.subr.mxu0 0.0
      %6811 = vmatpush1.msra.mxu0 0.0
      %6812 = vmatprep.subr.mxu0 0.0
      %6813 = vmatpush1.msra.mxu0 0.0
      %6814 = vmatprep.subr.mxu0 0.0
      %6815 = vmatpush1.msra.mxu0 0.0
      %6816 = vmatprep.subr.mxu0 0.0
      %6817 = vmatpush1.msra.mxu0 0.0
      %6818 = vmatprep.subr.mxu0 0.0
      %6819 = vmatpush1.msra.mxu0 0.0
      %6820 = vmatprep.subr.mxu0 0.0
      %6821 = vmatpush1.msra.mxu0 0.0
      %6822 = vmatprep.subr.mxu0 0.0
      %6823 = vmatpush1.msra.mxu0 0.0
      %6824 = vmatprep.subr.mxu0 0.0
      %6825 = vmatpush1.msra.mxu0 0.0
      %6826 = vmatprep.subr.mxu0 0.0
      %6827 = vmatpush1.msra.mxu0 0.0
      %6828 = vmatprep.subr.mxu0 0.0
      %6829 = vmatpush1.msra.mxu0 0.0
      %6830 = vmatprep.subr.mxu0 0.0
      %6831 = vmatpush1.msra.mxu0 0.0
      %6832 = vmatprep.subr.mxu0 0.0
      %6833 = vmatpush1.msra.mxu0 0.0
      %6834 = vmatprep.subr.mxu0 0.0
      %6835 = vmatpush1.msra.mxu0 0.0
      %6836 = vmatprep.mubr.f32.mxu0 0.0
      %6837 = vmatmul.mubr.f32.gmra.mrb[0].mxu0 %v6704
      %v6838 = vpop.f32.mrb[0].mxu0
      %v6839 = vadd.f32 %v6760, %v6838
      %v6840 = vpop.f32.mrb[0].mxu0
      %v6841 = vadd.f32 %v6764, %v6840
      %6842 = vdwg.mxu0
      %6843 = vmatprep.subr.mxu0 0.0
      %6844 = vmatpush1.msra.mxu0 %v6709
      %6845 = vmatprep.subr.mxu0 0.0
      %6846 = vmatpush1.msra.mxu0 %v6712
      %6847 = vmatprep.subr.mxu0 0.0
      %6848 = vmatpush1.msra.mxu0 %v6715
      %6849 = vmatprep.subr.mxu0 0.0
      %6850 = vmatpush1.msra.mxu0 %v6718
      %6851 = vmatprep.subr.mxu0 0.0
      %6852 = vmatpush1.msra.mxu0 %v6721
      %6853 = vmatprep.subr.mxu0 0.0
      %6854 = vmatpush1.msra.mxu0 %v6724
      %6855 = vmatprep.subr.mxu0 0.0
      %6856 = vmatpush1.msra.mxu0 %v6727
      %6857 = vmatprep.subr.mxu0 0.0
      %6858 = vmatpush1.msra.mxu0 %v6730
      %6859 = vmatprep.subr.mxu0 0.0
      %6860 = vmatpush1.msra.mxu0 %v6733
      %6861 = vmatprep.subr.mxu0 0.0
      %6862 = vmatpush1.msra.mxu0 %v6736
      %6863 = vmatprep.subr.mxu0 0.0
      %6864 = vmatpush1.msra.mxu0 %v6739
      %6865 = vmatprep.subr.mxu0 0.0
      %6866 = vmatpush1.msra.mxu0 %v6742
      %6867 = vmatprep.subr.mxu0 0.0
      %6868 = vmatpush1.msra.mxu0 %v6745
      %6869 = vmatprep.subr.mxu0 0.0
      %6870 = vmatpush1.msra.mxu0 %v6748
      %6871 = vmatprep.subr.mxu0 0.0
      %6872 = vmatpush1.msra.mxu0 %v6751
      %6873 = vmatprep.subr.mxu0 0.0
      %6874 = vmatpush1.msra.mxu0 %v6754
      %6875 = vmatprep.subr.mxu0 0.0
      %6876 = vmatpush1.msra.mxu0 0.0
      %6877 = vmatprep.subr.mxu0 0.0
      %6878 = vmatpush1.msra.mxu0 0.0
      %6879 = vmatprep.subr.mxu0 0.0
      %6880 = vmatpush1.msra.mxu0 0.0
      %6881 = vmatprep.subr.mxu0 0.0
      %6882 = vmatpush1.msra.mxu0 0.0
      %6883 = vmatprep.subr.mxu0 0.0
      %6884 = vmatpush1.msra.mxu0 0.0
      %6885 = vmatprep.subr.mxu0 0.0
      %6886 = vmatpush1.msra.mxu0 0.0
      %6887 = vmatprep.subr.mxu0 0.0
      %6888 = vmatpush1.msra.mxu0 0.0
      %6889 = vmatprep.subr.mxu0 0.0
      %6890 = vmatpush1.msra.mxu0 0.0
      %6891 = vmatprep.subr.mxu0 0.0
      %6892 = vmatpush1.msra.mxu0 0.0
      %6893 = vmatprep.subr.mxu0 0.0
      %6894 = vmatpush1.msra.mxu0 0.0
      %6895 = vmatprep.subr.mxu0 0.0
      %6896 = vmatpush1.msra.mxu0 0.0
      %6897 = vmatprep.subr.mxu0 0.0
      %6898 = vmatpush1.msra.mxu0 0.0
      %6899 = vmatprep.subr.mxu0 0.0
      %6900 = vmatpush1.msra.mxu0 0.0
      %6901 = vmatprep.subr.mxu0 0.0
      %6902 = vmatpush1.msra.mxu0 0.0
      %6903 = vmatprep.subr.mxu0 0.0
      %6904 = vmatpush1.msra.mxu0 0.0
      %6905 = vmatprep.subr.mxu0 0.0
      %6906 = vmatpush1.msra.mxu0 0.0
      %6907 = vmatprep.mubr.f32.mxu0 0.0
      %6908 = vmatmul.mubr.f32.gmra.mrb[0].mxu0 %v6704
      %v6909 = vpop.f32.mrb[0].mxu0
      %v6910 = vadd.f32 %v6768, %v6909
      %v6911 = vpop.f32.mrb[0].mxu0
      %6912 = vdwg.mxu0
      %s6913 = scalar_lea.vmem [#allocation3], 600
      %v6914 = vld [vmem:[%s6913] sm:$0xff]
      %v6915 = vld [vmem:[%s6913 + $0x8] sm:$0xff]
      %v6916 = vld [vmem:[%s6913 + $0x10] sm:$0xff]
      %v6917 = vadd.f32 %v6914, %v6839
      %v6918 = vxor.u32 %v6917, 2147483648
      %v6919 = vmul.f32 %v6918, 1.442695
      %v6920 = vpow.pop %v6919
      %v6921 = vadd.f32 %v6920, 1.0
      %v6922 = vrcp.pop %v6921
      %v6923 = vmul.f32 1.0, %v6922
      %v6924 = vadd.f32 %v6915, %v6841
      %v6925 = vxor.u32 %v6924, 2147483648
      %v6926 = vmul.f32 %v6925, 1.442695
      %v6927 = vpow.pop %v6926
      %v6928 = vadd.f32 %v6927, 1.0
      %v6929 = vrcp.pop %v6928
      %v6930 = vmul.f32 1.0, %v6929
      %v6931 = vmul.f32 %v6923, %v6910
      %v6932 = vadd.f32 %v6916, %v6931
      %v6933 = vtanh.pop %v6932
      %v6934 = vsub.f32 %v6704, %v6933
      %v6935 = vmul.f32 %v6930, %v6934
      %v6936 = vadd.f32 %v6933, %v6935
      %s6937 = scalar_lea.vmem %s226, 200
      %6938 = vst [vmem:[%s6937] sm:$0xff] %v6936
      %v6939 = vld [vmem:[%s2] sm:$0xff]
      %v6940 = vld [vmem:[%s2 + $0x8] sm:$0xff]
      %v6941 = vld [vmem:[%s2 + $0x10] sm:$0xff]
      %v6942 = vld [vmem:[%s2 + $0x18] sm:$0xff]
      %v6943 = vld [vmem:[%s2 + $0x20] sm:$0xff]
      %v6944 = vld [vmem:[%s2 + $0x28] sm:$0xff]
      %v6945 = vld [vmem:[%s2 + $0x30] sm:$0xff]
      %v6946 = vld [vmem:[%s2 + $0x38] sm:$0xff]
      %v6947 = vld [vmem:[%s2 + $0x40] sm:$0xff]
      %v6948 = vld [vmem:[%s2 + $0x48] sm:$0xff]
      %v6949 = vld [vmem:[%s2 + $0x50] sm:$0xff]
      %v6950 = vld [vmem:[%s2 + $0x58] sm:$0xff]
      %v6951 = vld [vmem:[%s2 + $0x60] sm:$0xff]
      %v6952 = vld [vmem:[%s2 + $0x68] sm:$0xff]
      %v6953 = vld [vmem:[%s2 + $0x70] sm:$0xff]
      %v6954 = vld [vmem:[%s2 + $0x78] sm:$0xff]
      %v6955 = vld [vmem:[%s2 + $0x80] sm:$0xff]
      %v6956 = vld [vmem:[%s2 + $0x88] sm:$0xff]
      %v6957 = vld [vmem:[%s2 + $0x90] sm:$0xff]
      %v6958 = vld [vmem:[%s2 + $0x98] sm:$0xff]
      %v6959 = vld [vmem:[%s2 + $0xa0] sm:$0xff]
      %v6960 = vld [vmem:[%s2 + $0xa8] sm:$0xff]
      %v6961 = vld [vmem:[%s2 + $0xb0] sm:$0xff]
      %v6962 = vld [vmem:[%s2 + $0xb8] sm:$0xff]
      %v6963 = vld [vmem:[%s2 + $0xc0] sm:$0xff]
      %v6964 = vld [vmem:[%s2 + $0xc8] sm:$0xff]
      %v6965 = vld [vmem:[%s2 + $0xd0] sm:$0xff]
      %v6966 = vld [vmem:[%s2 + $0xd8] sm:$0xff]
      %v6967 = vld [vmem:[%s2 + $0xe0] sm:$0xff]
      %v6968 = vld [vmem:[%s2 + $0xe8] sm:$0xff]
      %v6969 = vld [vmem:[%s2 + $0xf0] sm:$0xff]
      %v6970 = vld [vmem:[%s2 + $0xf8] sm:$0xff]
      %v6971 = vld [vmem:[%s2 + $0x100] sm:$0xff]
      %v6972 = vld [vmem:[%s2 + $0x108] sm:$0xff]
      %v6973 = vld [vmem:[%s2 + $0x110] sm:$0xff]
      %v6974 = vld [vmem:[%s2 + $0x118] sm:$0xff]
      %v6975 = vld [vmem:[%s2 + $0x120] sm:$0xff]
      %v6976 = vld [vmem:[%s2 + $0x128] sm:$0xff]
      %v6977 = vld [vmem:[%s2 + $0x130] sm:$0xff]
      %v6978 = vld [vmem:[%s2 + $0x138] sm:$0xff]
      %v6979 = vld [vmem:[%s2 + $0x140] sm:$0xff]
      %v6980 = vld [vmem:[%s2 + $0x148] sm:$0xff]
      %v6981 = vld [vmem:[%s2 + $0x150] sm:$0xff]
      %v6982 = vld [vmem:[%s2 + $0x158] sm:$0xff]
      %v6983 = vld [vmem:[%s2 + $0x160] sm:$0xff]
      %v6984 = vld [vmem:[%s2 + $0x168] sm:$0xff]
      %v6985 = vld [vmem:[%s2 + $0x170] sm:$0xff]
      %v6986 = vld [vmem:[%s2 + $0x178] sm:$0xff]
      %v6987 = vld [vmem:[%s4] sm:$0x7]
      %v6989 = vlaneseq
      %v6990 = vshrl.u32 %v6989, 7
      %v6991 = vsub.s32 0, %v6990
      %v6992 = vrot.slane %v6987, %v6991
      %v6993 = vlaneseq
      %v6994 = vshrl.u32 %v6993, 7
      %v6995 = vsub.s32 1, %v6994
      %v6996 = vrot.slane %v6987, %v6995
      %v6997 = vlaneseq
      %v6998 = vshrl.u32 %v6997, 7
      %v6999 = vsub.s32 2, %v6998
      %v7000 = vrot.slane %v6987, %v6999
      %7004 = vmatprep.subr.mxu0 %v6940
      %7005 = vmatpush1.msra.mxu0 %v6939
      %7006 = vmatprep.subr.mxu0 %v6943
      %7007 = vmatpush1.msra.mxu0 %v6942
      %7008 = vmatprep.subr.mxu0 %v6946
      %7009 = vmatpush1.msra.mxu0 %v6945
      %7010 = vmatprep.subr.mxu0 %v6949
      %7011 = vmatpush1.msra.mxu0 %v6948
      %7012 = vmatprep.subr.mxu0 %v6952
      %7013 = vmatpush1.msra.mxu0 %v6951
      %7014 = vmatprep.subr.mxu0 %v6955
      %7015 = vmatpush1.msra.mxu0 %v6954
      %7016 = vmatprep.subr.mxu0 %v6958
      %7017 = vmatpush1.msra.mxu0 %v6957
      %7018 = vmatprep.subr.mxu0 %v6961
      %7019 = vmatpush1.msra.mxu0 %v6960
      %7020 = vmatprep.subr.mxu0 %v6964
      %7021 = vmatpush1.msra.mxu0 %v6963
      %7022 = vmatprep.subr.mxu0 %v6967
      %7023 = vmatpush1.msra.mxu0 %v6966
      %7024 = vmatprep.subr.mxu0 %v6970
      %7025 = vmatpush1.msra.mxu0 %v6969
      %7026 = vmatprep.subr.mxu0 %v6973
      %7027 = vmatpush1.msra.mxu0 %v6972
      %7028 = vmatprep.subr.mxu0 %v6976
      %7029 = vmatpush1.msra.mxu0 %v6975
      %7030 = vmatprep.subr.mxu0 %v6979
      %7031 = vmatpush1.msra.mxu0 %v6978
      %7032 = vmatprep.subr.mxu0 %v6982
      %7033 = vmatpush1.msra.mxu0 %v6981
      %7034 = vmatprep.subr.mxu0 %v6985
      %7035 = vmatpush1.msra.mxu0 %v6984
      %7036 = vmatprep.subr.mxu0 0.0
      %7037 = vmatpush1.msra.mxu0 0.0
      %7038 = vmatprep.subr.mxu0 0.0
      %7039 = vmatpush1.msra.mxu0 0.0
      %7040 = vmatprep.subr.mxu0 0.0
      %7041 = vmatpush1.msra.mxu0 0.0
      %7042 = vmatprep.subr.mxu0 0.0
      %7043 = vmatpush1.msra.mxu0 0.0
      %7044 = vmatprep.subr.mxu0 0.0
      %7045 = vmatpush1.msra.mxu0 0.0
      %7046 = vmatprep.subr.mxu0 0.0
      %7047 = vmatpush1.msra.mxu0 0.0
      %7048 = vmatprep.subr.mxu0 0.0
      %7049 = vmatpush1.msra.mxu0 0.0
      %7050 = vmatprep.subr.mxu0 0.0
      %7051 = vmatpush1.msra.mxu0 0.0
      %7052 = vmatprep.subr.mxu0 0.0
      %7053 = vmatpush1.msra.mxu0 0.0
      %7054 = vmatprep.subr.mxu0 0.0
      %7055 = vmatpush1.msra.mxu0 0.0
      %7056 = vmatprep.subr.mxu0 0.0
      %7057 = vmatpush1.msra.mxu0 0.0
      %7058 = vmatprep.subr.mxu0 0.0
      %7059 = vmatpush1.msra.mxu0 0.0
      %7060 = vmatprep.subr.mxu0 0.0
      %7061 = vmatpush1.msra.mxu0 0.0
      %7062 = vmatprep.subr.mxu0 0.0
      %7063 = vmatpush1.msra.mxu0 0.0
      %7064 = vmatprep.subr.mxu0 0.0
      %7065 = vmatpush1.msra.mxu0 0.0
      %7066 = vmatprep.subr.mxu0 0.0
      %7067 = vmatpush1.msra.mxu0 0.0
      %7068 = vmatprep.mubr.f32.mxu0 0.0
      %7069 = vmatmul.mubr.f32.gmra.mrb[0].mxu0 %v6936
      %v7070 = vpop.f32.mrb[0].mxu0
      %v7071 = vadd.f32 %v6992, %v7070
      %v7072 = vpop.f32.mrb[0].mxu0
      %v7073 = vadd.f32 %v6996, %v7072
      %7074 = vdwg.mxu0
      %7075 = vmatprep.subr.mxu0 0.0
      %7076 = vmatpush1.msra.mxu0 %v6941
      %7077 = vmatprep.subr.mxu0 0.0
      %7078 = vmatpush1.msra.mxu0 %v6944
      %7079 = vmatprep.subr.mxu0 0.0
      %7080 = vmatpush1.msra.mxu0 %v6947
      %7081 = vmatprep.subr.mxu0 0.0
      %7082 = vmatpush1.msra.mxu0 %v6950
      %7083 = vmatprep.subr.mxu0 0.0
      %7084 = vmatpush1.msra.mxu0 %v6953
      %7085 = vmatprep.subr.mxu0 0.0
      %7086 = vmatpush1.msra.mxu0 %v6956
      %7087 = vmatprep.subr.mxu0 0.0
      %7088 = vmatpush1.msra.mxu0 %v6959
      %7089 = vmatprep.subr.mxu0 0.0
      %7090 = vmatpush1.msra.mxu0 %v6962
      %7091 = vmatprep.subr.mxu0 0.0
      %7092 = vmatpush1.msra.mxu0 %v6965
      %7093 = vmatprep.subr.mxu0 0.0
      %7094 = vmatpush1.msra.mxu0 %v6968
      %7095 = vmatprep.subr.mxu0 0.0
      %7096 = vmatpush1.msra.mxu0 %v6971
      %7097 = vmatprep.subr.mxu0 0.0
      %7098 = vmatpush1.msra.mxu0 %v6974
      %7099 = vmatprep.subr.mxu0 0.0
      %7100 = vmatpush1.msra.mxu0 %v6977
      %7101 = vmatprep.subr.mxu0 0.0
      %7102 = vmatpush1.msra.mxu0 %v6980
      %7103 = vmatprep.subr.mxu0 0.0
      %7104 = vmatpush1.msra.mxu0 %v6983
      %7105 = vmatprep.subr.mxu0 0.0
      %7106 = vmatpush1.msra.mxu0 %v6986
      %7107 = vmatprep.subr.mxu0 0.0
      %7108 = vmatpush1.msra.mxu0 0.0
      %7109 = vmatprep.subr.mxu0 0.0
      %7110 = vmatpush1.msra.mxu0 0.0
      %7111 = vmatprep.subr.mxu0 0.0
      %7112 = vmatpush1.msra.mxu0 0.0
      %7113 = vmatprep.subr.mxu0 0.0
      %7114 = vmatpush1.msra.mxu0 0.0
      %7115 = vmatprep.subr.mxu0 0.0
      %7116 = vmatpush1.msra.mxu0 0.0
      %7117 = vmatprep.subr.mxu0 0.0
      %7118 = vmatpush1.msra.mxu0 0.0
      %7119 = vmatprep.subr.mxu0 0.0
      %7120 = vmatpush1.msra.mxu0 0.0
      %7121 = vmatprep.subr.mxu0 0.0
      %7122 = vmatpush1.msra.mxu0 0.0
      %7123 = vmatprep.subr.mxu0 0.0
      %7124 = vmatpush1.msra.mxu0 0.0
      %7125 = vmatprep.subr.mxu0 0.0
      %7126 = vmatpush1.msra.mxu0 0.0
      %7127 = vmatprep.subr.mxu0 0.0
      %7128 = vmatpush1.msra.mxu0 0.0
      %7129 = vmatprep.subr.mxu0 0.0
      %7130 = vmatpush1.msra.mxu0 0.0
      %7131 = vmatprep.subr.mxu0 0.0
      %7132 = vmatpush1.msra.mxu0 0.0
      %7133 = vmatprep.subr.mxu0 0.0
      %7134 = vmatpush1.msra.mxu0 0.0
      %7135 = vmatprep.subr.mxu0 0.0
      %7136 = vmatpush1.msra.mxu0 0.0
      %7137 = vmatprep.subr.mxu0 0.0
      %7138 = vmatpush1.msra.mxu0 0.0
      %7139 = vmatprep.mubr.f32.mxu0 0.0
      %7140 = vmatmul.mubr.f32.gmra.mrb[0].mxu0 %v6936
      %v7141 = vpop.f32.mrb[0].mxu0
      %v7142 = vadd.f32 %v7000, %v7141
      %v7143 = vpop.f32.mrb[0].mxu0
      %7144 = vdwg.mxu0
      %s7145 = scalar_lea.vmem [#allocation3], 624
      %v7146 = vld [vmem:[%s7145] sm:$0xff]
      %v7147 = vld [vmem:[%s7145 + $0x8] sm:$0xff]
      %v7148 = vld [vmem:[%s7145 + $0x10] sm:$0xff]
      %v7149 = vadd.f32 %v7146, %v7071
      %v7150 = vxor.u32 %v7149, 2147483648
      %v7151 = vmul.f32 %v7150, 1.442695
      %v7152 = vpow.pop %v7151
      %v7153 = vadd.f32 %v7152, 1.0
      %v7154 = vrcp.pop %v7153
      %v7155 = vmul.f32 1.0, %v7154
      %v7156 = vadd.f32 %v7147, %v7073
      %v7157 = vxor.u32 %v7156, 2147483648
      %v7158 = vmul.f32 %v7157, 1.442695
      %v7159 = vpow.pop %v7158
      %v7160 = vadd.f32 %v7159, 1.0
      %v7161 = vrcp.pop %v7160
      %v7162 = vmul.f32 1.0, %v7161
      %v7163 = vmul.f32 %v7155, %v7142
      %v7164 = vadd.f32 %v7148, %v7163
      %v7165 = vtanh.pop %v7164
      %v7166 = vsub.f32 %v6936, %v7165
      %v7167 = vmul.f32 %v7162, %v7166
      %v7168 = vadd.f32 %v7165, %v7167
      %s7169 = scalar_lea.vmem %s226, 208
      %7170 = vst [vmem:[%s7169] sm:$0xff] %v7168
      %v7171 = vld [vmem:[%s2] sm:$0xff]
      %v7172 = vld [vmem:[%s2 + $0x8] sm:$0xff]
      %v7173 = vld [vmem:[%s2 + $0x10] sm:$0xff]
      %v7174 = vld [vmem:[%s2 + $0x18] sm:$0xff]
      %v7175 = vld [vmem:[%s2 + $0x20] sm:$0xff]
      %v7176 = vld [vmem:[%s2 + $0x28] sm:$0xff]
      %v7177 = vld [vmem:[%s2 + $0x30] sm:$0xff]
      %v7178 = vld [vmem:[%s2 + $0x38] sm:$0xff]
      %v7179 = vld [vmem:[%s2 + $0x40] sm:$0xff]
      %v7180 = vld [vmem:[%s2 + $0x48] sm:$0xff]
      %v7181 = vld [vmem:[%s2 + $0x50] sm:$0xff]
      %v7182 = vld [vmem:[%s2 + $0x58] sm:$0xff]
      %v7183 = vld [vmem:[%s2 + $0x60] sm:$0xff]
      %v7184 = vld [vmem:[%s2 + $0x68] sm:$0xff]
      %v7185 = vld [vmem:[%s2 + $0x70] sm:$0xff]
      %v7186 = vld [vmem:[%s2 + $0x78] sm:$0xff]
      %v7187 = vld [vmem:[%s2 + $0x80] sm:$0xff]
      %v7188 = vld [vmem:[%s2 + $0x88] sm:$0xff]
      %v7189 = vld [vmem:[%s2 + $0x90] sm:$0xff]
      %v7190 = vld [vmem:[%s2 + $0x98] sm:$0xff]
      %v7191 = vld [vmem:[%s2 + $0xa0] sm:$0xff]
      %v7192 = vld [vmem:[%s2 + $0xa8] sm:$0xff]
      %v7193 = vld [vmem:[%s2 + $0xb0] sm:$0xff]
      %v7194 = vld [vmem:[%s2 + $0xb8] sm:$0xff]
      %v7195 = vld [vmem:[%s2 + $0xc0] sm:$0xff]
      %v7196 = vld [vmem:[%s2 + $0xc8] sm:$0xff]
      %v7197 = vld [vmem:[%s2 + $0xd0] sm:$0xff]
      %v7198 = vld [vmem:[%s2 + $0xd8] sm:$0xff]
      %v7199 = vld [vmem:[%s2 + $0xe0] sm:$0xff]
      %v7200 = vld [vmem:[%s2 + $0xe8] sm:$0xff]
      %v7201 = vld [vmem:[%s2 + $0xf0] sm:$0xff]
      %v7202 = vld [vmem:[%s2 + $0xf8] sm:$0xff]
      %v7203 = vld [vmem:[%s2 + $0x100] sm:$0xff]
      %v7204 = vld [vmem:[%s2 + $0x108] sm:$0xff]
      %v7205 = vld [vmem:[%s2 + $0x110] sm:$0xff]
      %v7206 = vld [vmem:[%s2 + $0x118] sm:$0xff]
      %v7207 = vld [vmem:[%s2 + $0x120] sm:$0xff]
      %v7208 = vld [vmem:[%s2 + $0x128] sm:$0xff]
      %v7209 = vld [vmem:[%s2 + $0x130] sm:$0xff]
      %v7210 = vld [vmem:[%s2 + $0x138] sm:$0xff]
      %v7211 = vld [vmem:[%s2 + $0x140] sm:$0xff]
      %v7212 = vld [vmem:[%s2 + $0x148] sm:$0xff]
      %v7213 = vld [vmem:[%s2 + $0x150] sm:$0xff]
      %v7214 = vld [vmem:[%s2 + $0x158] sm:$0xff]
      %v7215 = vld [vmem:[%s2 + $0x160] sm:$0xff]
      %v7216 = vld [vmem:[%s2 + $0x168] sm:$0xff]
      %v7217 = vld [vmem:[%s2 + $0x170] sm:$0xff]
      %v7218 = vld [vmem:[%s2 + $0x178] sm:$0xff]
      %v7219 = vld [vmem:[%s4] sm:$0x7]
      %v7221 = vlaneseq
      %v7222 = vshrl.u32 %v7221, 7
      %v7223 = vsub.s32 0, %v7222
      %v7224 = vrot.slane %v7219, %v7223
      %v7225 = vlaneseq
      %v7226 = vshrl.u32 %v7225, 7
      %v7227 = vsub.s32 1, %v7226
      %v7228 = vrot.slane %v7219, %v7227
      %v7229 = vlaneseq
      %v7230 = vshrl.u32 %v7229, 7
      %v7231 = vsub.s32 2, %v7230
      %v7232 = vrot.slane %v7219, %v7231
      %7236 = vmatprep.subr.mxu0 %v7172
      %7237 = vmatpush1.msra.mxu0 %v7171
      %7238 = vmatprep.subr.mxu0 %v7175
      %7239 = vmatpush1.msra.mxu0 %v7174
      %7240 = vmatprep.subr.mxu0 %v7178
      %7241 = vmatpush1.msra.mxu0 %v7177
      %7242 = vmatprep.subr.mxu0 %v7181
      %7243 = vmatpush1.msra.mxu0 %v7180
      %7244 = vmatprep.subr.mxu0 %v7184
      %7245 = vmatpush1.msra.mxu0 %v7183
      %7246 = vmatprep.subr.mxu0 %v7187
      %7247 = vmatpush1.msra.mxu0 %v7186
      %7248 = vmatprep.subr.mxu0 %v7190
      %7249 = vmatpush1.msra.mxu0 %v7189
      %7250 = vmatprep.subr.mxu0 %v7193
      %7251 = vmatpush1.msra.mxu0 %v7192
      %7252 = vmatprep.subr.mxu0 %v7196
      %7253 = vmatpush1.msra.mxu0 %v7195
      %7254 = vmatprep.subr.mxu0 %v7199
      %7255 = vmatpush1.msra.mxu0 %v7198
      %7256 = vmatprep.subr.mxu0 %v7202
      %7257 = vmatpush1.msra.mxu0 %v7201
      %7258 = vmatprep.subr.mxu0 %v7205
      %7259 = vmatpush1.msra.mxu0 %v7204
      %7260 = vmatprep.subr.mxu0 %v7208
      %7261 = vmatpush1.msra.mxu0 %v7207
      %7262 = vmatprep.subr.mxu0 %v7211
      %7263 = vmatpush1.msra.mxu0 %v7210
      %7264 = vmatprep.subr.mxu0 %v7214
      %7265 = vmatpush1.msra.mxu0 %v7213
      %7266 = vmatprep.subr.mxu0 %v7217
      %7267 = vmatpush1.msra.mxu0 %v7216
      %7268 = vmatprep.subr.mxu0 0.0
      %7269 = vmatpush1.msra.mxu0 0.0
      %7270 = vmatprep.subr.mxu0 0.0
      %7271 = vmatpush1.msra.mxu0 0.0
      %7272 = vmatprep.subr.mxu0 0.0
      %7273 = vmatpush1.msra.mxu0 0.0
      %7274 = vmatprep.subr.mxu0 0.0
      %7275 = vmatpush1.msra.mxu0 0.0
      %7276 = vmatprep.subr.mxu0 0.0
      %7277 = vmatpush1.msra.mxu0 0.0
      %7278 = vmatprep.subr.mxu0 0.0
      %7279 = vmatpush1.msra.mxu0 0.0
      %7280 = vmatprep.subr.mxu0 0.0
      %7281 = vmatpush1.msra.mxu0 0.0
      %7282 = vmatprep.subr.mxu0 0.0
      %7283 = vmatpush1.msra.mxu0 0.0
      %7284 = vmatprep.subr.mxu0 0.0
      %7285 = vmatpush1.msra.mxu0 0.0
      %7286 = vmatprep.subr.mxu0 0.0
      %7287 = vmatpush1.msra.mxu0 0.0
      %7288 = vmatprep.subr.mxu0 0.0
      %7289 = vmatpush1.msra.mxu0 0.0
      %7290 = vmatprep.subr.mxu0 0.0
      %7291 = vmatpush1.msra.mxu0 0.0
      %7292 = vmatprep.subr.mxu0 0.0
      %7293 = vmatpush1.msra.mxu0 0.0
      %7294 = vmatprep.subr.mxu0 0.0
      %7295 = vmatpush1.msra.mxu0 0.0
      %7296 = vmatprep.subr.mxu0 0.0
      %7297 = vmatpush1.msra.mxu0 0.0
      %7298 = vmatprep.subr.mxu0 0.0
      %7299 = vmatpush1.msra.mxu0 0.0
      %7300 = vmatprep.mubr.f32.mxu0 0.0
      %7301 = vmatmul.mubr.f32.gmra.mrb[0].mxu0 %v7168
      %v7302 = vpop.f32.mrb[0].mxu0
      %v7303 = vadd.f32 %v7224, %v7302
      %v7304 = vpop.f32.mrb[0].mxu0
      %v7305 = vadd.f32 %v7228, %v7304
      %7306 = vdwg.mxu0
      %7307 = vmatprep.subr.mxu0 0.0
      %7308 = vmatpush1.msra.mxu0 %v7173
      %7309 = vmatprep.subr.mxu0 0.0
      %7310 = vmatpush1.msra.mxu0 %v7176
      %7311 = vmatprep.subr.mxu0 0.0
      %7312 = vmatpush1.msra.mxu0 %v7179
      %7313 = vmatprep.subr.mxu0 0.0
      %7314 = vmatpush1.msra.mxu0 %v7182
      %7315 = vmatprep.subr.mxu0 0.0
      %7316 = vmatpush1.msra.mxu0 %v7185
      %7317 = vmatprep.subr.mxu0 0.0
      %7318 = vmatpush1.msra.mxu0 %v7188
      %7319 = vmatprep.subr.mxu0 0.0
      %7320 = vmatpush1.msra.mxu0 %v7191
      %7321 = vmatprep.subr.mxu0 0.0
      %7322 = vmatpush1.msra.mxu0 %v7194
      %7323 = vmatprep.subr.mxu0 0.0
      %7324 = vmatpush1.msra.mxu0 %v7197
      %7325 = vmatprep.subr.mxu0 0.0
      %7326 = vmatpush1.msra.mxu0 %v7200
      %7327 = vmatprep.subr.mxu0 0.0
      %7328 = vmatpush1.msra.mxu0 %v7203
      %7329 = vmatprep.subr.mxu0 0.0
      %7330 = vmatpush1.msra.mxu0 %v7206
      %7331 = vmatprep.subr.mxu0 0.0
      %7332 = vmatpush1.msra.mxu0 %v7209
      %7333 = vmatprep.subr.mxu0 0.0
      %7334 = vmatpush1.msra.mxu0 %v7212
      %7335 = vmatprep.subr.mxu0 0.0
      %7336 = vmatpush1.msra.mxu0 %v7215
      %7337 = vmatprep.subr.mxu0 0.0
      %7338 = vmatpush1.msra.mxu0 %v7218
      %7339 = vmatprep.subr.mxu0 0.0
      %7340 = vmatpush1.msra.mxu0 0.0
      %7341 = vmatprep.subr.mxu0 0.0
      %7342 = vmatpush1.msra.mxu0 0.0
      %7343 = vmatprep.subr.mxu0 0.0
      %7344 = vmatpush1.msra.mxu0 0.0
      %7345 = vmatprep.subr.mxu0 0.0
      %7346 = vmatpush1.msra.mxu0 0.0
      %7347 = vmatprep.subr.mxu0 0.0
      %7348 = vmatpush1.msra.mxu0 0.0
      %7349 = vmatprep.subr.mxu0 0.0
      %7350 = vmatpush1.msra.mxu0 0.0
      %7351 = vmatprep.subr.mxu0 0.0
      %7352 = vmatpush1.msra.mxu0 0.0
      %7353 = vmatprep.subr.mxu0 0.0
      %7354 = vmatpush1.msra.mxu0 0.0
      %7355 = vmatprep.subr.mxu0 0.0
      %7356 = vmatpush1.msra.mxu0 0.0
      %7357 = vmatprep.subr.mxu0 0.0
      %7358 = vmatpush1.msra.mxu0 0.0
      %7359 = vmatprep.subr.mxu0 0.0
      %7360 = vmatpush1.msra.mxu0 0.0
      %7361 = vmatprep.subr.mxu0 0.0
      %7362 = vmatpush1.msra.mxu0 0.0
      %7363 = vmatprep.subr.mxu0 0.0
      %7364 = vmatpush1.msra.mxu0 0.0
      %7365 = vmatprep.subr.mxu0 0.0
      %7366 = vmatpush1.msra.mxu0 0.0
      %7367 = vmatprep.subr.mxu0 0.0
      %7368 = vmatpush1.msra.mxu0 0.0
      %7369 = vmatprep.subr.mxu0 0.0
      %7370 = vmatpush1.msra.mxu0 0.0
      %7371 = vmatprep.mubr.f32.mxu0 0.0
      %7372 = vmatmul.mubr.f32.gmra.mrb[0].mxu0 %v7168
      %v7373 = vpop.f32.mrb[0].mxu0
      %v7374 = vadd.f32 %v7232, %v7373
      %v7375 = vpop.f32.mrb[0].mxu0
      %7376 = vdwg.mxu0
      %s7377 = scalar_lea.vmem [#allocation3], 648
      %v7378 = vld [vmem:[%s7377] sm:$0xff]
      %v7379 = vld [vmem:[%s7377 + $0x8] sm:$0xff]
      %v7380 = vld [vmem:[%s7377 + $0x10] sm:$0xff]
      %v7381 = vadd.f32 %v7378, %v7303
      %v7382 = vxor.u32 %v7381, 2147483648
      %v7383 = vmul.f32 %v7382, 1.442695
      %v7384 = vpow.pop %v7383
      %v7385 = vadd.f32 %v7384, 1.0
      %v7386 = vrcp.pop %v7385
      %v7387 = vmul.f32 1.0, %v7386
      %v7388 = vadd.f32 %v7379, %v7305
      %v7389 = vxor.u32 %v7388, 2147483648
      %v7390 = vmul.f32 %v7389, 1.442695
      %v7391 = vpow.pop %v7390
      %v7392 = vadd.f32 %v7391, 1.0
      %v7393 = vrcp.pop %v7392
      %v7394 = vmul.f32 1.0, %v7393
      %v7395 = vmul.f32 %v7387, %v7374
      %v7396 = vadd.f32 %v7380, %v7395
      %v7397 = vtanh.pop %v7396
      %v7398 = vsub.f32 %v7168, %v7397
      %v7399 = vmul.f32 %v7394, %v7398
      %v7400 = vadd.f32 %v7397, %v7399
      %s7401 = scalar_lea.vmem %s226, 216
      %7402 = vst [vmem:[%s7401] sm:$0xff] %v7400
      %v7403 = vld [vmem:[%s2] sm:$0xff]
      %v7404 = vld [vmem:[%s2 + $0x8] sm:$0xff]
      %v7405 = vld [vmem:[%s2 + $0x10] sm:$0xff]
      %v7406 = vld [vmem:[%s2 + $0x18] sm:$0xff]
      %v7407 = vld [vmem:[%s2 + $0x20] sm:$0xff]
      %v7408 = vld [vmem:[%s2 + $0x28] sm:$0xff]
      %v7409 = vld [vmem:[%s2 + $0x30] sm:$0xff]
      %v7410 = vld [vmem:[%s2 + $0x38] sm:$0xff]
      %v7411 = vld [vmem:[%s2 + $0x40] sm:$0xff]
      %v7412 = vld [vmem:[%s2 + $0x48] sm:$0xff]
      %v7413 = vld [vmem:[%s2 + $0x50] sm:$0xff]
      %v7414 = vld [vmem:[%s2 + $0x58] sm:$0xff]
      %v7415 = vld [vmem:[%s2 + $0x60] sm:$0xff]
      %v7416 = vld [vmem:[%s2 + $0x68] sm:$0xff]
      %v7417 = vld [vmem:[%s2 + $0x70] sm:$0xff]
      %v7418 = vld [vmem:[%s2 + $0x78] sm:$0xff]
      %v7419 = vld [vmem:[%s2 + $0x80] sm:$0xff]
      %v7420 = vld [vmem:[%s2 + $0x88] sm:$0xff]
      %v7421 = vld [vmem:[%s2 + $0x90] sm:$0xff]
      %v7422 = vld [vmem:[%s2 + $0x98] sm:$0xff]
      %v7423 = vld [vmem:[%s2 + $0xa0] sm:$0xff]
      %v7424 = vld [vmem:[%s2 + $0xa8] sm:$0xff]
      %v7425 = vld [vmem:[%s2 + $0xb0] sm:$0xff]
      %v7426 = vld [vmem:[%s2 + $0xb8] sm:$0xff]
      %v7427 = vld [vmem:[%s2 + $0xc0] sm:$0xff]
      %v7428 = vld [vmem:[%s2 + $0xc8] sm:$0xff]
      %v7429 = vld [vmem:[%s2 + $0xd0] sm:$0xff]
      %v7430 = vld [vmem:[%s2 + $0xd8] sm:$0xff]
      %v7431 = vld [vmem:[%s2 + $0xe0] sm:$0xff]
      %v7432 = vld [vmem:[%s2 + $0xe8] sm:$0xff]
      %v7433 = vld [vmem:[%s2 + $0xf0] sm:$0xff]
      %v7434 = vld [vmem:[%s2 + $0xf8] sm:$0xff]
      %v7435 = vld [vmem:[%s2 + $0x100] sm:$0xff]
      %v7436 = vld [vmem:[%s2 + $0x108] sm:$0xff]
      %v7437 = vld [vmem:[%s2 + $0x110] sm:$0xff]
      %v7438 = vld [vmem:[%s2 + $0x118] sm:$0xff]
      %v7439 = vld [vmem:[%s2 + $0x120] sm:$0xff]
      %v7440 = vld [vmem:[%s2 + $0x128] sm:$0xff]
      %v7441 = vld [vmem:[%s2 + $0x130] sm:$0xff]
      %v7442 = vld [vmem:[%s2 + $0x138] sm:$0xff]
      %v7443 = vld [vmem:[%s2 + $0x140] sm:$0xff]
      %v7444 = vld [vmem:[%s2 + $0x148] sm:$0xff]
      %v7445 = vld [vmem:[%s2 + $0x150] sm:$0xff]
      %v7446 = vld [vmem:[%s2 + $0x158] sm:$0xff]
      %v7447 = vld [vmem:[%s2 + $0x160] sm:$0xff]
      %v7448 = vld [vmem:[%s2 + $0x168] sm:$0xff]
      %v7449 = vld [vmem:[%s2 + $0x170] sm:$0xff]
      %v7450 = vld [vmem:[%s2 + $0x178] sm:$0xff]
      %v7451 = vld [vmem:[%s4] sm:$0x7]
      %v7453 = vlaneseq
      %v7454 = vshrl.u32 %v7453, 7
      %v7455 = vsub.s32 0, %v7454
      %v7456 = vrot.slane %v7451, %v7455
      %v7457 = vlaneseq
      %v7458 = vshrl.u32 %v7457, 7
      %v7459 = vsub.s32 1, %v7458
      %v7460 = vrot.slane %v7451, %v7459
      %v7461 = vlaneseq
      %v7462 = vshrl.u32 %v7461, 7
      %v7463 = vsub.s32 2, %v7462
      %v7464 = vrot.slane %v7451, %v7463
      %7468 = vmatprep.subr.mxu0 %v7404
      %7469 = vmatpush1.msra.mxu0 %v7403
      %7470 = vmatprep.subr.mxu0 %v7407
      %7471 = vmatpush1.msra.mxu0 %v7406
      %7472 = vmatprep.subr.mxu0 %v7410
      %7473 = vmatpush1.msra.mxu0 %v7409
      %7474 = vmatprep.subr.mxu0 %v7413
      %7475 = vmatpush1.msra.mxu0 %v7412
      %7476 = vmatprep.subr.mxu0 %v7416
      %7477 = vmatpush1.msra.mxu0 %v7415
      %7478 = vmatprep.subr.mxu0 %v7419
      %7479 = vmatpush1.msra.mxu0 %v7418
      %7480 = vmatprep.subr.mxu0 %v7422
      %7481 = vmatpush1.msra.mxu0 %v7421
      %7482 = vmatprep.subr.mxu0 %v7425
      %7483 = vmatpush1.msra.mxu0 %v7424
      %7484 = vmatprep.subr.mxu0 %v7428
      %7485 = vmatpush1.msra.mxu0 %v7427
      %7486 = vmatprep.subr.mxu0 %v7431
      %7487 = vmatpush1.msra.mxu0 %v7430
      %7488 = vmatprep.subr.mxu0 %v7434
      %7489 = vmatpush1.msra.mxu0 %v7433
      %7490 = vmatprep.subr.mxu0 %v7437
      %7491 = vmatpush1.msra.mxu0 %v7436
      %7492 = vmatprep.subr.mxu0 %v7440
      %7493 = vmatpush1.msra.mxu0 %v7439
      %7494 = vmatprep.subr.mxu0 %v7443
      %7495 = vmatpush1.msra.mxu0 %v7442
      %7496 = vmatprep.subr.mxu0 %v7446
      %7497 = vmatpush1.msra.mxu0 %v7445
      %7498 = vmatprep.subr.mxu0 %v7449
      %7499 = vmatpush1.msra.mxu0 %v7448
      %7500 = vmatprep.subr.mxu0 0.0
      %7501 = vmatpush1.msra.mxu0 0.0
      %7502 = vmatprep.subr.mxu0 0.0
      %7503 = vmatpush1.msra.mxu0 0.0
      %7504 = vmatprep.subr.mxu0 0.0
      %7505 = vmatpush1.msra.mxu0 0.0
      %7506 = vmatprep.subr.mxu0 0.0
      %7507 = vmatpush1.msra.mxu0 0.0
      %7508 = vmatprep.subr.mxu0 0.0
      %7509 = vmatpush1.msra.mxu0 0.0
      %7510 = vmatprep.subr.mxu0 0.0
      %7511 = vmatpush1.msra.mxu0 0.0
      %7512 = vmatprep.subr.mxu0 0.0
      %7513 = vmatpush1.msra.mxu0 0.0
      %7514 = vmatprep.subr.mxu0 0.0
      %7515 = vmatpush1.msra.mxu0 0.0
      %7516 = vmatprep.subr.mxu0 0.0
      %7517 = vmatpush1.msra.mxu0 0.0
      %7518 = vmatprep.subr.mxu0 0.0
      %7519 = vmatpush1.msra.mxu0 0.0
      %7520 = vmatprep.subr.mxu0 0.0
      %7521 = vmatpush1.msra.mxu0 0.0
      %7522 = vmatprep.subr.mxu0 0.0
      %7523 = vmatpush1.msra.mxu0 0.0
      %7524 = vmatprep.subr.mxu0 0.0
      %7525 = vmatpush1.msra.mxu0 0.0
      %7526 = vmatprep.subr.mxu0 0.0
      %7527 = vmatpush1.msra.mxu0 0.0
      %7528 = vmatprep.subr.mxu0 0.0
      %7529 = vmatpush1.msra.mxu0 0.0
      %7530 = vmatprep.subr.mxu0 0.0
      %7531 = vmatpush1.msra.mxu0 0.0
      %7532 = vmatprep.mubr.f32.mxu0 0.0
      %7533 = vmatmul.mubr.f32.gmra.mrb[0].mxu0 %v7400
      %v7534 = vpop.f32.mrb[0].mxu0
      %v7535 = vadd.f32 %v7456, %v7534
      %v7536 = vpop.f32.mrb[0].mxu0
      %v7537 = vadd.f32 %v7460, %v7536
      %7538 = vdwg.mxu0
      %7539 = vmatprep.subr.mxu0 0.0
      %7540 = vmatpush1.msra.mxu0 %v7405
      %7541 = vmatprep.subr.mxu0 0.0
      %7542 = vmatpush1.msra.mxu0 %v7408
      %7543 = vmatprep.subr.mxu0 0.0
      %7544 = vmatpush1.msra.mxu0 %v7411
      %7545 = vmatprep.subr.mxu0 0.0
      %7546 = vmatpush1.msra.mxu0 %v7414
      %7547 = vmatprep.subr.mxu0 0.0
      %7548 = vmatpush1.msra.mxu0 %v7417
      %7549 = vmatprep.subr.mxu0 0.0
      %7550 = vmatpush1.msra.mxu0 %v7420
      %7551 = vmatprep.subr.mxu0 0.0
      %7552 = vmatpush1.msra.mxu0 %v7423
      %7553 = vmatprep.subr.mxu0 0.0
      %7554 = vmatpush1.msra.mxu0 %v7426
      %7555 = vmatprep.subr.mxu0 0.0
      %7556 = vmatpush1.msra.mxu0 %v7429
      %7557 = vmatprep.subr.mxu0 0.0
      %7558 = vmatpush1.msra.mxu0 %v7432
      %7559 = vmatprep.subr.mxu0 0.0
      %7560 = vmatpush1.msra.mxu0 %v7435
      %7561 = vmatprep.subr.mxu0 0.0
      %7562 = vmatpush1.msra.mxu0 %v7438
      %7563 = vmatprep.subr.mxu0 0.0
      %7564 = vmatpush1.msra.mxu0 %v7441
      %7565 = vmatprep.subr.mxu0 0.0
      %7566 = vmatpush1.msra.mxu0 %v7444
      %7567 = vmatprep.subr.mxu0 0.0
      %7568 = vmatpush1.msra.mxu0 %v7447
      %7569 = vmatprep.subr.mxu0 0.0
      %7570 = vmatpush1.msra.mxu0 %v7450
      %7571 = vmatprep.subr.mxu0 0.0
      %7572 = vmatpush1.msra.mxu0 0.0
      %7573 = vmatprep.subr.mxu0 0.0
      %7574 = vmatpush1.msra.mxu0 0.0
      %7575 = vmatprep.subr.mxu0 0.0
      %7576 = vmatpush1.msra.mxu0 0.0
      %7577 = vmatprep.subr.mxu0 0.0
      %7578 = vmatpush1.msra.mxu0 0.0
      %7579 = vmatprep.subr.mxu0 0.0
      %7580 = vmatpush1.msra.mxu0 0.0
      %7581 = vmatprep.subr.mxu0 0.0
      %7582 = vmatpush1.msra.mxu0 0.0
      %7583 = vmatprep.subr.mxu0 0.0
      %7584 = vmatpush1.msra.mxu0 0.0
      %7585 = vmatprep.subr.mxu0 0.0
      %7586 = vmatpush1.msra.mxu0 0.0
      %7587 = vmatprep.subr.mxu0 0.0
      %7588 = vmatpush1.msra.mxu0 0.0
      %7589 = vmatprep.subr.mxu0 0.0
      %7590 = vmatpush1.msra.mxu0 0.0
      %7591 = vmatprep.subr.mxu0 0.0
      %7592 = vmatpush1.msra.mxu0 0.0
      %7593 = vmatprep.subr.mxu0 0.0
      %7594 = vmatpush1.msra.mxu0 0.0
      %7595 = vmatprep.subr.mxu0 0.0
      %7596 = vmatpush1.msra.mxu0 0.0
      %7597 = vmatprep.subr.mxu0 0.0
      %7598 = vmatpush1.msra.mxu0 0.0
      %7599 = vmatprep.subr.mxu0 0.0
      %7600 = vmatpush1.msra.mxu0 0.0
      %7601 = vmatprep.subr.mxu0 0.0
      %7602 = vmatpush1.msra.mxu0 0.0
      %7603 = vmatprep.mubr.f32.mxu0 0.0
      %7604 = vmatmul.mubr.f32.gmra.mrb[0].mxu0 %v7400
      %v7605 = vpop.f32.mrb[0].mxu0
      %v7606 = vadd.f32 %v7464, %v7605
      %v7607 = vpop.f32.mrb[0].mxu0
      %7608 = vdwg.mxu0
      %s7609 = scalar_lea.vmem [#allocation3], 672
      %v7610 = vld [vmem:[%s7609] sm:$0xff]
      %v7611 = vld [vmem:[%s7609 + $0x8] sm:$0xff]
      %v7612 = vld [vmem:[%s7609 + $0x10] sm:$0xff]
      %v7613 = vadd.f32 %v7610, %v7535
      %v7614 = vxor.u32 %v7613, 2147483648
      %v7615 = vmul.f32 %v7614, 1.442695
      %v7616 = vpow.pop %v7615
      %v7617 = vadd.f32 %v7616, 1.0
      %v7618 = vrcp.pop %v7617
      %v7619 = vmul.f32 1.0, %v7618
      %v7620 = vadd.f32 %v7611, %v7537
      %v7621 = vxor.u32 %v7620, 2147483648
      %v7622 = vmul.f32 %v7621, 1.442695
      %v7623 = vpow.pop %v7622
      %v7624 = vadd.f32 %v7623, 1.0
      %v7625 = vrcp.pop %v7624
      %v7626 = vmul.f32 1.0, %v7625
      %v7627 = vmul.f32 %v7619, %v7606
      %v7628 = vadd.f32 %v7612, %v7627
      %v7629 = vtanh.pop %v7628
      %v7630 = vsub.f32 %v7400, %v7629
      %v7631 = vmul.f32 %v7626, %v7630
      %v7632 = vadd.f32 %v7629, %v7631
      %s7633 = scalar_lea.vmem %s226, 224
      %7634 = vst [vmem:[%s7633] sm:$0xff] %v7632
      %v7635 = vld [vmem:[%s2] sm:$0xff]
      %v7636 = vld [vmem:[%s2 + $0x8] sm:$0xff]
      %v7637 = vld [vmem:[%s2 + $0x10] sm:$0xff]
      %v7638 = vld [vmem:[%s2 + $0x18] sm:$0xff]
      %v7639 = vld [vmem:[%s2 + $0x20] sm:$0xff]
      %v7640 = vld [vmem:[%s2 + $0x28] sm:$0xff]
      %v7641 = vld [vmem:[%s2 + $0x30] sm:$0xff]
      %v7642 = vld [vmem:[%s2 + $0x38] sm:$0xff]
      %v7643 = vld [vmem:[%s2 + $0x40] sm:$0xff]
      %v7644 = vld [vmem:[%s2 + $0x48] sm:$0xff]
      %v7645 = vld [vmem:[%s2 + $0x50] sm:$0xff]
      %v7646 = vld [vmem:[%s2 + $0x58] sm:$0xff]
      %v7647 = vld [vmem:[%s2 + $0x60] sm:$0xff]
      %v7648 = vld [vmem:[%s2 + $0x68] sm:$0xff]
      %v7649 = vld [vmem:[%s2 + $0x70] sm:$0xff]
      %v7650 = vld [vmem:[%s2 + $0x78] sm:$0xff]
      %v7651 = vld [vmem:[%s2 + $0x80] sm:$0xff]
      %v7652 = vld [vmem:[%s2 + $0x88] sm:$0xff]
      %v7653 = vld [vmem:[%s2 + $0x90] sm:$0xff]
      %v7654 = vld [vmem:[%s2 + $0x98] sm:$0xff]
      %v7655 = vld [vmem:[%s2 + $0xa0] sm:$0xff]
      %v7656 = vld [vmem:[%s2 + $0xa8] sm:$0xff]
      %v7657 = vld [vmem:[%s2 + $0xb0] sm:$0xff]
      %v7658 = vld [vmem:[%s2 + $0xb8] sm:$0xff]
      %v7659 = vld [vmem:[%s2 + $0xc0] sm:$0xff]
      %v7660 = vld [vmem:[%s2 + $0xc8] sm:$0xff]
      %v7661 = vld [vmem:[%s2 + $0xd0] sm:$0xff]
      %v7662 = vld [vmem:[%s2 + $0xd8] sm:$0xff]
      %v7663 = vld [vmem:[%s2 + $0xe0] sm:$0xff]
      %v7664 = vld [vmem:[%s2 + $0xe8] sm:$0xff]
      %v7665 = vld [vmem:[%s2 + $0xf0] sm:$0xff]
      %v7666 = vld [vmem:[%s2 + $0xf8] sm:$0xff]
      %v7667 = vld [vmem:[%s2 + $0x100] sm:$0xff]
      %v7668 = vld [vmem:[%s2 + $0x108] sm:$0xff]
      %v7669 = vld [vmem:[%s2 + $0x110] sm:$0xff]
      %v7670 = vld [vmem:[%s2 + $0x118] sm:$0xff]
      %v7671 = vld [vmem:[%s2 + $0x120] sm:$0xff]
      %v7672 = vld [vmem:[%s2 + $0x128] sm:$0xff]
      %v7673 = vld [vmem:[%s2 + $0x130] sm:$0xff]
      %v7674 = vld [vmem:[%s2 + $0x138] sm:$0xff]
      %v7675 = vld [vmem:[%s2 + $0x140] sm:$0xff]
      %v7676 = vld [vmem:[%s2 + $0x148] sm:$0xff]
      %v7677 = vld [vmem:[%s2 + $0x150] sm:$0xff]
      %v7678 = vld [vmem:[%s2 + $0x158] sm:$0xff]
      %v7679 = vld [vmem:[%s2 + $0x160] sm:$0xff]
      %v7680 = vld [vmem:[%s2 + $0x168] sm:$0xff]
      %v7681 = vld [vmem:[%s2 + $0x170] sm:$0xff]
      %v7682 = vld [vmem:[%s2 + $0x178] sm:$0xff]
      %v7683 = vld [vmem:[%s4] sm:$0x7]
      %v7685 = vlaneseq
      %v7686 = vshrl.u32 %v7685, 7
      %v7687 = vsub.s32 0, %v7686
      %v7688 = vrot.slane %v7683, %v7687
      %v7689 = vlaneseq
      %v7690 = vshrl.u32 %v7689, 7
      %v7691 = vsub.s32 1, %v7690
      %v7692 = vrot.slane %v7683, %v7691
      %v7693 = vlaneseq
      %v7694 = vshrl.u32 %v7693, 7
      %v7695 = vsub.s32 2, %v7694
      %v7696 = vrot.slane %v7683, %v7695
      %7700 = vmatprep.subr.mxu0 %v7636
      %7701 = vmatpush1.msra.mxu0 %v7635
      %7702 = vmatprep.subr.mxu0 %v7639
      %7703 = vmatpush1.msra.mxu0 %v7638
      %7704 = vmatprep.subr.mxu0 %v7642
      %7705 = vmatpush1.msra.mxu0 %v7641
      %7706 = vmatprep.subr.mxu0 %v7645
      %7707 = vmatpush1.msra.mxu0 %v7644
      %7708 = vmatprep.subr.mxu0 %v7648
      %7709 = vmatpush1.msra.mxu0 %v7647
      %7710 = vmatprep.subr.mxu0 %v7651
      %7711 = vmatpush1.msra.mxu0 %v7650
      %7712 = vmatprep.subr.mxu0 %v7654
      %7713 = vmatpush1.msra.mxu0 %v7653
      %7714 = vmatprep.subr.mxu0 %v7657
      %7715 = vmatpush1.msra.mxu0 %v7656
      %7716 = vmatprep.subr.mxu0 %v7660
      %7717 = vmatpush1.msra.mxu0 %v7659
      %7718 = vmatprep.subr.mxu0 %v7663
      %7719 = vmatpush1.msra.mxu0 %v7662
      %7720 = vmatprep.subr.mxu0 %v7666
      %7721 = vmatpush1.msra.mxu0 %v7665
      %7722 = vmatprep.subr.mxu0 %v7669
      %7723 = vmatpush1.msra.mxu0 %v7668
      %7724 = vmatprep.subr.mxu0 %v7672
      %7725 = vmatpush1.msra.mxu0 %v7671
      %7726 = vmatprep.subr.mxu0 %v7675
      %7727 = vmatpush1.msra.mxu0 %v7674
      %7728 = vmatprep.subr.mxu0 %v7678
      %7729 = vmatpush1.msra.mxu0 %v7677
      %7730 = vmatprep.subr.mxu0 %v7681
      %7731 = vmatpush1.msra.mxu0 %v7680
      %7732 = vmatprep.subr.mxu0 0.0
      %7733 = vmatpush1.msra.mxu0 0.0
      %7734 = vmatprep.subr.mxu0 0.0
      %7735 = vmatpush1.msra.mxu0 0.0
      %7736 = vmatprep.subr.mxu0 0.0
      %7737 = vmatpush1.msra.mxu0 0.0
      %7738 = vmatprep.subr.mxu0 0.0
      %7739 = vmatpush1.msra.mxu0 0.0
      %7740 = vmatprep.subr.mxu0 0.0
      %7741 = vmatpush1.msra.mxu0 0.0
      %7742 = vmatprep.subr.mxu0 0.0
      %7743 = vmatpush1.msra.mxu0 0.0
      %7744 = vmatprep.subr.mxu0 0.0
      %7745 = vmatpush1.msra.mxu0 0.0
      %7746 = vmatprep.subr.mxu0 0.0
      %7747 = vmatpush1.msra.mxu0 0.0
      %7748 = vmatprep.subr.mxu0 0.0
      %7749 = vmatpush1.msra.mxu0 0.0
      %7750 = vmatprep.subr.mxu0 0.0
      %7751 = vmatpush1.msra.mxu0 0.0
      %7752 = vmatprep.subr.mxu0 0.0
      %7753 = vmatpush1.msra.mxu0 0.0
      %7754 = vmatprep.subr.mxu0 0.0
      %7755 = vmatpush1.msra.mxu0 0.0
      %7756 = vmatprep.subr.mxu0 0.0
      %7757 = vmatpush1.msra.mxu0 0.0
      %7758 = vmatprep.subr.mxu0 0.0
      %7759 = vmatpush1.msra.mxu0 0.0
      %7760 = vmatprep.subr.mxu0 0.0
      %7761 = vmatpush1.msra.mxu0 0.0
      %7762 = vmatprep.subr.mxu0 0.0
      %7763 = vmatpush1.msra.mxu0 0.0
      %7764 = vmatprep.mubr.f32.mxu0 0.0
      %7765 = vmatmul.mubr.f32.gmra.mrb[0].mxu0 %v7632
      %v7766 = vpop.f32.mrb[0].mxu0
      %v7767 = vadd.f32 %v7688, %v7766
      %v7768 = vpop.f32.mrb[0].mxu0
      %v7769 = vadd.f32 %v7692, %v7768
      %7770 = vdwg.mxu0
      %7771 = vmatprep.subr.mxu0 0.0
      %7772 = vmatpush1.msra.mxu0 %v7637
      %7773 = vmatprep.subr.mxu0 0.0
      %7774 = vmatpush1.msra.mxu0 %v7640
      %7775 = vmatprep.subr.mxu0 0.0
      %7776 = vmatpush1.msra.mxu0 %v7643
      %7777 = vmatprep.subr.mxu0 0.0
      %7778 = vmatpush1.msra.mxu0 %v7646
      %7779 = vmatprep.subr.mxu0 0.0
      %7780 = vmatpush1.msra.mxu0 %v7649
      %7781 = vmatprep.subr.mxu0 0.0
      %7782 = vmatpush1.msra.mxu0 %v7652
      %7783 = vmatprep.subr.mxu0 0.0
      %7784 = vmatpush1.msra.mxu0 %v7655
      %7785 = vmatprep.subr.mxu0 0.0
      %7786 = vmatpush1.msra.mxu0 %v7658
      %7787 = vmatprep.subr.mxu0 0.0
      %7788 = vmatpush1.msra.mxu0 %v7661
      %7789 = vmatprep.subr.mxu0 0.0
      %7790 = vmatpush1.msra.mxu0 %v7664
      %7791 = vmatprep.subr.mxu0 0.0
      %7792 = vmatpush1.msra.mxu0 %v7667
      %7793 = vmatprep.subr.mxu0 0.0
      %7794 = vmatpush1.msra.mxu0 %v7670
      %7795 = vmatprep.subr.mxu0 0.0
      %7796 = vmatpush1.msra.mxu0 %v7673
      %7797 = vmatprep.subr.mxu0 0.0
      %7798 = vmatpush1.msra.mxu0 %v7676
      %7799 = vmatprep.subr.mxu0 0.0
      %7800 = vmatpush1.msra.mxu0 %v7679
      %7801 = vmatprep.subr.mxu0 0.0
      %7802 = vmatpush1.msra.mxu0 %v7682
      %7803 = vmatprep.subr.mxu0 0.0
      %7804 = vmatpush1.msra.mxu0 0.0
      %7805 = vmatprep.subr.mxu0 0.0
      %7806 = vmatpush1.msra.mxu0 0.0
      %7807 = vmatprep.subr.mxu0 0.0
      %7808 = vmatpush1.msra.mxu0 0.0
      %7809 = vmatprep.subr.mxu0 0.0
      %7810 = vmatpush1.msra.mxu0 0.0
      %7811 = vmatprep.subr.mxu0 0.0
      %7812 = vmatpush1.msra.mxu0 0.0
      %7813 = vmatprep.subr.mxu0 0.0
      %7814 = vmatpush1.msra.mxu0 0.0
      %7815 = vmatprep.subr.mxu0 0.0
      %7816 = vmatpush1.msra.mxu0 0.0
      %7817 = vmatprep.subr.mxu0 0.0
      %7818 = vmatpush1.msra.mxu0 0.0
      %7819 = vmatprep.subr.mxu0 0.0
      %7820 = vmatpush1.msra.mxu0 0.0
      %7821 = vmatprep.subr.mxu0 0.0
      %7822 = vmatpush1.msra.mxu0 0.0
      %7823 = vmatprep.subr.mxu0 0.0
      %7824 = vmatpush1.msra.mxu0 0.0
      %7825 = vmatprep.subr.mxu0 0.0
      %7826 = vmatpush1.msra.mxu0 0.0
      %7827 = vmatprep.subr.mxu0 0.0
      %7828 = vmatpush1.msra.mxu0 0.0
      %7829 = vmatprep.subr.mxu0 0.0
      %7830 = vmatpush1.msra.mxu0 0.0
      %7831 = vmatprep.subr.mxu0 0.0
      %7832 = vmatpush1.msra.mxu0 0.0
      %7833 = vmatprep.subr.mxu0 0.0
      %7834 = vmatpush1.msra.mxu0 0.0
      %7835 = vmatprep.mubr.f32.mxu0 0.0
      %7836 = vmatmul.mubr.f32.gmra.mrb[0].mxu0 %v7632
      %v7837 = vpop.f32.mrb[0].mxu0
      %v7838 = vadd.f32 %v7696, %v7837
      %v7839 = vpop.f32.mrb[0].mxu0
      %7840 = vdwg.mxu0
      %s7841 = scalar_lea.vmem [#allocation3], 696
      %v7842 = vld [vmem:[%s7841] sm:$0xff]
      %v7843 = vld [vmem:[%s7841 + $0x8] sm:$0xff]
      %v7844 = vld [vmem:[%s7841 + $0x10] sm:$0xff]
      %v7845 = vadd.f32 %v7842, %v7767
      %v7846 = vxor.u32 %v7845, 2147483648
      %v7847 = vmul.f32 %v7846, 1.442695
      %v7848 = vpow.pop %v7847
      %v7849 = vadd.f32 %v7848, 1.0
      %v7850 = vrcp.pop %v7849
      %v7851 = vmul.f32 1.0, %v7850
      %v7852 = vadd.f32 %v7843, %v7769
      %v7853 = vxor.u32 %v7852, 2147483648
      %v7854 = vmul.f32 %v7853, 1.442695
      %v7855 = vpow.pop %v7854
      %v7856 = vadd.f32 %v7855, 1.0
      %v7857 = vrcp.pop %v7856
      %v7858 = vmul.f32 1.0, %v7857
      %v7859 = vmul.f32 %v7851, %v7838
      %v7860 = vadd.f32 %v7844, %v7859
      %v7861 = vtanh.pop %v7860
      %v7862 = vsub.f32 %v7632, %v7861
      %v7863 = vmul.f32 %v7858, %v7862
      %v7864 = vadd.f32 %v7861, %v7863
      %s7865 = scalar_lea.vmem %s226, 232
      %7866 = vst [vmem:[%s7865] sm:$0xff] %v7864
      %v7867 = vld [vmem:[%s2] sm:$0xff]
      %v7868 = vld [vmem:[%s2 + $0x8] sm:$0xff]
      %v7869 = vld [vmem:[%s2 + $0x10] sm:$0xff]
      %v7870 = vld [vmem:[%s2 + $0x18] sm:$0xff]
      %v7871 = vld [vmem:[%s2 + $0x20] sm:$0xff]
      %v7872 = vld [vmem:[%s2 + $0x28] sm:$0xff]
      %v7873 = vld [vmem:[%s2 + $0x30] sm:$0xff]
      %v7874 = vld [vmem:[%s2 + $0x38] sm:$0xff]
      %v7875 = vld [vmem:[%s2 + $0x40] sm:$0xff]
      %v7876 = vld [vmem:[%s2 + $0x48] sm:$0xff]
      %v7877 = vld [vmem:[%s2 + $0x50] sm:$0xff]
      %v7878 = vld [vmem:[%s2 + $0x58] sm:$0xff]
      %v7879 = vld [vmem:[%s2 + $0x60] sm:$0xff]
      %v7880 = vld [vmem:[%s2 + $0x68] sm:$0xff]
      %v7881 = vld [vmem:[%s2 + $0x70] sm:$0xff]
      %v7882 = vld [vmem:[%s2 + $0x78] sm:$0xff]
      %v7883 = vld [vmem:[%s2 + $0x80] sm:$0xff]
      %v7884 = vld [vmem:[%s2 + $0x88] sm:$0xff]
      %v7885 = vld [vmem:[%s2 + $0x90] sm:$0xff]
      %v7886 = vld [vmem:[%s2 + $0x98] sm:$0xff]
      %v7887 = vld [vmem:[%s2 + $0xa0] sm:$0xff]
      %v7888 = vld [vmem:[%s2 + $0xa8] sm:$0xff]
      %v7889 = vld [vmem:[%s2 + $0xb0] sm:$0xff]
      %v7890 = vld [vmem:[%s2 + $0xb8] sm:$0xff]
      %v7891 = vld [vmem:[%s2 + $0xc0] sm:$0xff]
      %v7892 = vld [vmem:[%s2 + $0xc8] sm:$0xff]
      %v7893 = vld [vmem:[%s2 + $0xd0] sm:$0xff]
      %v7894 = vld [vmem:[%s2 + $0xd8] sm:$0xff]
      %v7895 = vld [vmem:[%s2 + $0xe0] sm:$0xff]
      %v7896 = vld [vmem:[%s2 + $0xe8] sm:$0xff]
      %v7897 = vld [vmem:[%s2 + $0xf0] sm:$0xff]
      %v7898 = vld [vmem:[%s2 + $0xf8] sm:$0xff]
      %v7899 = vld [vmem:[%s2 + $0x100] sm:$0xff]
      %v7900 = vld [vmem:[%s2 + $0x108] sm:$0xff]
      %v7901 = vld [vmem:[%s2 + $0x110] sm:$0xff]
      %v7902 = vld [vmem:[%s2 + $0x118] sm:$0xff]
      %v7903 = vld [vmem:[%s2 + $0x120] sm:$0xff]
      %v7904 = vld [vmem:[%s2 + $0x128] sm:$0xff]
      %v7905 = vld [vmem:[%s2 + $0x130] sm:$0xff]
      %v7906 = vld [vmem:[%s2 + $0x138] sm:$0xff]
      %v7907 = vld [vmem:[%s2 + $0x140] sm:$0xff]
      %v7908 = vld [vmem:[%s2 + $0x148] sm:$0xff]
      %v7909 = vld [vmem:[%s2 + $0x150] sm:$0xff]
      %v7910 = vld [vmem:[%s2 + $0x158] sm:$0xff]
      %v7911 = vld [vmem:[%s2 + $0x160] sm:$0xff]
      %v7912 = vld [vmem:[%s2 + $0x168] sm:$0xff]
      %v7913 = vld [vmem:[%s2 + $0x170] sm:$0xff]
      %v7914 = vld [vmem:[%s2 + $0x178] sm:$0xff]
      %v7915 = vld [vmem:[%s4] sm:$0x7]
      %v7917 = vlaneseq
      %v7918 = vshrl.u32 %v7917, 7
      %v7919 = vsub.s32 0, %v7918
      %v7920 = vrot.slane %v7915, %v7919
      %v7921 = vlaneseq
      %v7922 = vshrl.u32 %v7921, 7
      %v7923 = vsub.s32 1, %v7922
      %v7924 = vrot.slane %v7915, %v7923
      %v7925 = vlaneseq
      %v7926 = vshrl.u32 %v7925, 7
      %v7927 = vsub.s32 2, %v7926
      %v7928 = vrot.slane %v7915, %v7927
      %7932 = vmatprep.subr.mxu0 %v7868
      %7933 = vmatpush1.msra.mxu0 %v7867
      %7934 = vmatprep.subr.mxu0 %v7871
      %7935 = vmatpush1.msra.mxu0 %v7870
      %7936 = vmatprep.subr.mxu0 %v7874
      %7937 = vmatpush1.msra.mxu0 %v7873
      %7938 = vmatprep.subr.mxu0 %v7877
      %7939 = vmatpush1.msra.mxu0 %v7876
      %7940 = vmatprep.subr.mxu0 %v7880
      %7941 = vmatpush1.msra.mxu0 %v7879
      %7942 = vmatprep.subr.mxu0 %v7883
      %7943 = vmatpush1.msra.mxu0 %v7882
      %7944 = vmatprep.subr.mxu0 %v7886
      %7945 = vmatpush1.msra.mxu0 %v7885
      %7946 = vmatprep.subr.mxu0 %v7889
      %7947 = vmatpush1.msra.mxu0 %v7888
      %7948 = vmatprep.subr.mxu0 %v7892
      %7949 = vmatpush1.msra.mxu0 %v7891
      %7950 = vmatprep.subr.mxu0 %v7895
      %7951 = vmatpush1.msra.mxu0 %v7894
      %7952 = vmatprep.subr.mxu0 %v7898
      %7953 = vmatpush1.msra.mxu0 %v7897
      %7954 = vmatprep.subr.mxu0 %v7901
      %7955 = vmatpush1.msra.mxu0 %v7900
      %7956 = vmatprep.subr.mxu0 %v7904
      %7957 = vmatpush1.msra.mxu0 %v7903
      %7958 = vmatprep.subr.mxu0 %v7907
      %7959 = vmatpush1.msra.mxu0 %v7906
      %7960 = vmatprep.subr.mxu0 %v7910
      %7961 = vmatpush1.msra.mxu0 %v7909
      %7962 = vmatprep.subr.mxu0 %v7913
      %7963 = vmatpush1.msra.mxu0 %v7912
      %7964 = vmatprep.subr.mxu0 0.0
      %7965 = vmatpush1.msra.mxu0 0.0
      %7966 = vmatprep.subr.mxu0 0.0
      %7967 = vmatpush1.msra.mxu0 0.0
      %7968 = vmatprep.subr.mxu0 0.0
      %7969 = vmatpush1.msra.mxu0 0.0
      %7970 = vmatprep.subr.mxu0 0.0
      %7971 = vmatpush1.msra.mxu0 0.0
      %7972 = vmatprep.subr.mxu0 0.0
      %7973 = vmatpush1.msra.mxu0 0.0
      %7974 = vmatprep.subr.mxu0 0.0
      %7975 = vmatpush1.msra.mxu0 0.0
      %7976 = vmatprep.subr.mxu0 0.0
      %7977 = vmatpush1.msra.mxu0 0.0
      %7978 = vmatprep.subr.mxu0 0.0
      %7979 = vmatpush1.msra.mxu0 0.0
      %7980 = vmatprep.subr.mxu0 0.0
      %7981 = vmatpush1.msra.mxu0 0.0
      %7982 = vmatprep.subr.mxu0 0.0
      %7983 = vmatpush1.msra.mxu0 0.0
      %7984 = vmatprep.subr.mxu0 0.0
      %7985 = vmatpush1.msra.mxu0 0.0
      %7986 = vmatprep.subr.mxu0 0.0
      %7987 = vmatpush1.msra.mxu0 0.0
      %7988 = vmatprep.subr.mxu0 0.0
      %7989 = vmatpush1.msra.mxu0 0.0
      %7990 = vmatprep.subr.mxu0 0.0
      %7991 = vmatpush1.msra.mxu0 0.0
      %7992 = vmatprep.subr.mxu0 0.0
      %7993 = vmatpush1.msra.mxu0 0.0
      %7994 = vmatprep.subr.mxu0 0.0
      %7995 = vmatpush1.msra.mxu0 0.0
      %7996 = vmatprep.mubr.f32.mxu0 0.0
      %7997 = vmatmul.mubr.f32.gmra.mrb[0].mxu0 %v7864
      %v7998 = vpop.f32.mrb[0].mxu0
      %v7999 = vadd.f32 %v7920, %v7998
      %v8000 = vpop.f32.mrb[0].mxu0
      %v8001 = vadd.f32 %v7924, %v8000
      %8002 = vdwg.mxu0
      %8003 = vmatprep.subr.mxu0 0.0
      %8004 = vmatpush1.msra.mxu0 %v7869
      %8005 = vmatprep.subr.mxu0 0.0
      %8006 = vmatpush1.msra.mxu0 %v7872
      %8007 = vmatprep.subr.mxu0 0.0
      %8008 = vmatpush1.msra.mxu0 %v7875
      %8009 = vmatprep.subr.mxu0 0.0
      %8010 = vmatpush1.msra.mxu0 %v7878
      %8011 = vmatprep.subr.mxu0 0.0
      %8012 = vmatpush1.msra.mxu0 %v7881
      %8013 = vmatprep.subr.mxu0 0.0
      %8014 = vmatpush1.msra.mxu0 %v7884
      %8015 = vmatprep.subr.mxu0 0.0
      %8016 = vmatpush1.msra.mxu0 %v7887
      %8017 = vmatprep.subr.mxu0 0.0
      %8018 = vmatpush1.msra.mxu0 %v7890
      %8019 = vmatprep.subr.mxu0 0.0
      %8020 = vmatpush1.msra.mxu0 %v7893
      %8021 = vmatprep.subr.mxu0 0.0
      %8022 = vmatpush1.msra.mxu0 %v7896
      %8023 = vmatprep.subr.mxu0 0.0
      %8024 = vmatpush1.msra.mxu0 %v7899
      %8025 = vmatprep.subr.mxu0 0.0
      %8026 = vmatpush1.msra.mxu0 %v7902
      %8027 = vmatprep.subr.mxu0 0.0
      %8028 = vmatpush1.msra.mxu0 %v7905
      %8029 = vmatprep.subr.mxu0 0.0
      %8030 = vmatpush1.msra.mxu0 %v7908
      %8031 = vmatprep.subr.mxu0 0.0
      %8032 = vmatpush1.msra.mxu0 %v7911
      %8033 = vmatprep.subr.mxu0 0.0
      %8034 = vmatpush1.msra.mxu0 %v7914
      %8035 = vmatprep.subr.mxu0 0.0
      %8036 = vmatpush1.msra.mxu0 0.0
      %8037 = vmatprep.subr.mxu0 0.0
      %8038 = vmatpush1.msra.mxu0 0.0
      %8039 = vmatprep.subr.mxu0 0.0
      %8040 = vmatpush1.msra.mxu0 0.0
      %8041 = vmatprep.subr.mxu0 0.0
      %8042 = vmatpush1.msra.mxu0 0.0
      %8043 = vmatprep.subr.mxu0 0.0
      %8044 = vmatpush1.msra.mxu0 0.0
      %8045 = vmatprep.subr.mxu0 0.0
      %8046 = vmatpush1.msra.mxu0 0.0
      %8047 = vmatprep.subr.mxu0 0.0
      %8048 = vmatpush1.msra.mxu0 0.0
      %8049 = vmatprep.subr.mxu0 0.0
      %8050 = vmatpush1.msra.mxu0 0.0
      %8051 = vmatprep.subr.mxu0 0.0
      %8052 = vmatpush1.msra.mxu0 0.0
      %8053 = vmatprep.subr.mxu0 0.0
      %8054 = vmatpush1.msra.mxu0 0.0
      %8055 = vmatprep.subr.mxu0 0.0
      %8056 = vmatpush1.msra.mxu0 0.0
      %8057 = vmatprep.subr.mxu0 0.0
      %8058 = vmatpush1.msra.mxu0 0.0
      %8059 = vmatprep.subr.mxu0 0.0
      %8060 = vmatpush1.msra.mxu0 0.0
      %8061 = vmatprep.subr.mxu0 0.0
      %8062 = vmatpush1.msra.mxu0 0.0
      %8063 = vmatprep.subr.mxu0 0.0
      %8064 = vmatpush1.msra.mxu0 0.0
      %8065 = vmatprep.subr.mxu0 0.0
      %8066 = vmatpush1.msra.mxu0 0.0
      %8067 = vmatprep.mubr.f32.mxu0 0.0
      %8068 = vmatmul.mubr.f32.gmra.mrb[0].mxu0 %v7864
      %v8069 = vpop.f32.mrb[0].mxu0
      %v8070 = vadd.f32 %v7928, %v8069
      %v8071 = vpop.f32.mrb[0].mxu0
      %8072 = vdwg.mxu0
      %s8073 = scalar_lea.vmem [#allocation3], 720
      %v8074 = vld [vmem:[%s8073] sm:$0xff]
      %v8075 = vld [vmem:[%s8073 + $0x8] sm:$0xff]
      %v8076 = vld [vmem:[%s8073 + $0x10] sm:$0xff]
      %v8077 = vadd.f32 %v8074, %v7999
      %v8078 = vxor.u32 %v8077, 2147483648
      %v8079 = vmul.f32 %v8078, 1.442695
      %v8080 = vpow.pop %v8079
      %v8081 = vadd.f32 %v8080, 1.0
      %v8082 = vrcp.pop %v8081
      %v8083 = vmul.f32 1.0, %v8082
      %v8084 = vadd.f32 %v8075, %v8001
      %v8085 = vxor.u32 %v8084, 2147483648
      %v8086 = vmul.f32 %v8085, 1.442695
      %v8087 = vpow.pop %v8086
      %v8088 = vadd.f32 %v8087, 1.0
      %v8089 = vrcp.pop %v8088
      %v8090 = vmul.f32 1.0, %v8089
      %v8091 = vmul.f32 %v8083, %v8070
      %v8092 = vadd.f32 %v8076, %v8091
      %v8093 = vtanh.pop %v8092
      %v8094 = vsub.f32 %v7864, %v8093
      %v8095 = vmul.f32 %v8090, %v8094
      %v8096 = vadd.f32 %v8093, %v8095
      %s8097 = scalar_lea.vmem %s226, 240
      %8098 = vst [vmem:[%s8097] sm:$0xff] %v8096
      %v8099 = vld [vmem:[%s2] sm:$0xff]
      %v8100 = vld [vmem:[%s2 + $0x8] sm:$0xff]
      %v8101 = vld [vmem:[%s2 + $0x10] sm:$0xff]
      %v8102 = vld [vmem:[%s2 + $0x18] sm:$0xff]
      %v8103 = vld [vmem:[%s2 + $0x20] sm:$0xff]
      %v8104 = vld [vmem:[%s2 + $0x28] sm:$0xff]
      %v8105 = vld [vmem:[%s2 + $0x30] sm:$0xff]
      %v8106 = vld [vmem:[%s2 + $0x38] sm:$0xff]
      %v8107 = vld [vmem:[%s2 + $0x40] sm:$0xff]
      %v8108 = vld [vmem:[%s2 + $0x48] sm:$0xff]
      %v8109 = vld [vmem:[%s2 + $0x50] sm:$0xff]
      %v8110 = vld [vmem:[%s2 + $0x58] sm:$0xff]
      %v8111 = vld [vmem:[%s2 + $0x60] sm:$0xff]
      %v8112 = vld [vmem:[%s2 + $0x68] sm:$0xff]
      %v8113 = vld [vmem:[%s2 + $0x70] sm:$0xff]
      %v8114 = vld [vmem:[%s2 + $0x78] sm:$0xff]
      %v8115 = vld [vmem:[%s2 + $0x80] sm:$0xff]
      %v8116 = vld [vmem:[%s2 + $0x88] sm:$0xff]
      %v8117 = vld [vmem:[%s2 + $0x90] sm:$0xff]
      %v8118 = vld [vmem:[%s2 + $0x98] sm:$0xff]
      %v8119 = vld [vmem:[%s2 + $0xa0] sm:$0xff]
      %v8120 = vld [vmem:[%s2 + $0xa8] sm:$0xff]
      %v8121 = vld [vmem:[%s2 + $0xb0] sm:$0xff]
      %v8122 = vld [vmem:[%s2 + $0xb8] sm:$0xff]
      %v8123 = vld [vmem:[%s2 + $0xc0] sm:$0xff]
      %v8124 = vld [vmem:[%s2 + $0xc8] sm:$0xff]
      %v8125 = vld [vmem:[%s2 + $0xd0] sm:$0xff]
      %v8126 = vld [vmem:[%s2 + $0xd8] sm:$0xff]
      %v8127 = vld [vmem:[%s2 + $0xe0] sm:$0xff]
      %v8128 = vld [vmem:[%s2 + $0xe8] sm:$0xff]
      %v8129 = vld [vmem:[%s2 + $0xf0] sm:$0xff]
      %v8130 = vld [vmem:[%s2 + $0xf8] sm:$0xff]
      %v8131 = vld [vmem:[%s2 + $0x100] sm:$0xff]
      %v8132 = vld [vmem:[%s2 + $0x108] sm:$0xff]
      %v8133 = vld [vmem:[%s2 + $0x110] sm:$0xff]
      %v8134 = vld [vmem:[%s2 + $0x118] sm:$0xff]
      %v8135 = vld [vmem:[%s2 + $0x120] sm:$0xff]
      %v8136 = vld [vmem:[%s2 + $0x128] sm:$0xff]
      %v8137 = vld [vmem:[%s2 + $0x130] sm:$0xff]
      %v8138 = vld [vmem:[%s2 + $0x138] sm:$0xff]
      %v8139 = vld [vmem:[%s2 + $0x140] sm:$0xff]
      %v8140 = vld [vmem:[%s2 + $0x148] sm:$0xff]
      %v8141 = vld [vmem:[%s2 + $0x150] sm:$0xff]
      %v8142 = vld [vmem:[%s2 + $0x158] sm:$0xff]
      %v8143 = vld [vmem:[%s2 + $0x160] sm:$0xff]
      %v8144 = vld [vmem:[%s2 + $0x168] sm:$0xff]
      %v8145 = vld [vmem:[%s2 + $0x170] sm:$0xff]
      %v8146 = vld [vmem:[%s2 + $0x178] sm:$0xff]
      %v8147 = vld [vmem:[%s4] sm:$0x7]
      %v8149 = vlaneseq
      %v8150 = vshrl.u32 %v8149, 7
      %v8151 = vsub.s32 0, %v8150
      %v8152 = vrot.slane %v8147, %v8151
      %v8153 = vlaneseq
      %v8154 = vshrl.u32 %v8153, 7
      %v8155 = vsub.s32 1, %v8154
      %v8156 = vrot.slane %v8147, %v8155
      %v8157 = vlaneseq
      %v8158 = vshrl.u32 %v8157, 7
      %v8159 = vsub.s32 2, %v8158
      %v8160 = vrot.slane %v8147, %v8159
      %8164 = vmatprep.subr.mxu0 %v8100
      %8165 = vmatpush1.msra.mxu0 %v8099
      %8166 = vmatprep.subr.mxu0 %v8103
      %8167 = vmatpush1.msra.mxu0 %v8102
      %8168 = vmatprep.subr.mxu0 %v8106
      %8169 = vmatpush1.msra.mxu0 %v8105
      %8170 = vmatprep.subr.mxu0 %v8109
      %8171 = vmatpush1.msra.mxu0 %v8108
      %8172 = vmatprep.subr.mxu0 %v8112
      %8173 = vmatpush1.msra.mxu0 %v8111
      %8174 = vmatprep.subr.mxu0 %v8115
      %8175 = vmatpush1.msra.mxu0 %v8114
      %8176 = vmatprep.subr.mxu0 %v8118
      %8177 = vmatpush1.msra.mxu0 %v8117
      %8178 = vmatprep.subr.mxu0 %v8121
      %8179 = vmatpush1.msra.mxu0 %v8120
      %8180 = vmatprep.subr.mxu0 %v8124
      %8181 = vmatpush1.msra.mxu0 %v8123
      %8182 = vmatprep.subr.mxu0 %v8127
      %8183 = vmatpush1.msra.mxu0 %v8126
      %8184 = vmatprep.subr.mxu0 %v8130
      %8185 = vmatpush1.msra.mxu0 %v8129
      %8186 = vmatprep.subr.mxu0 %v8133
      %8187 = vmatpush1.msra.mxu0 %v8132
      %8188 = vmatprep.subr.mxu0 %v8136
      %8189 = vmatpush1.msra.mxu0 %v8135
      %8190 = vmatprep.subr.mxu0 %v8139
      %8191 = vmatpush1.msra.mxu0 %v8138
      %8192 = vmatprep.subr.mxu0 %v8142
      %8193 = vmatpush1.msra.mxu0 %v8141
      %8194 = vmatprep.subr.mxu0 %v8145
      %8195 = vmatpush1.msra.mxu0 %v8144
      %8196 = vmatprep.subr.mxu0 0.0
      %8197 = vmatpush1.msra.mxu0 0.0
      %8198 = vmatprep.subr.mxu0 0.0
      %8199 = vmatpush1.msra.mxu0 0.0
      %8200 = vmatprep.subr.mxu0 0.0
      %8201 = vmatpush1.msra.mxu0 0.0
      %8202 = vmatprep.subr.mxu0 0.0
      %8203 = vmatpush1.msra.mxu0 0.0
      %8204 = vmatprep.subr.mxu0 0.0
      %8205 = vmatpush1.msra.mxu0 0.0
      %8206 = vmatprep.subr.mxu0 0.0
      %8207 = vmatpush1.msra.mxu0 0.0
      %8208 = vmatprep.subr.mxu0 0.0
      %8209 = vmatpush1.msra.mxu0 0.0
      %8210 = vmatprep.subr.mxu0 0.0
      %8211 = vmatpush1.msra.mxu0 0.0
      %8212 = vmatprep.subr.mxu0 0.0
      %8213 = vmatpush1.msra.mxu0 0.0
      %8214 = vmatprep.subr.mxu0 0.0
      %8215 = vmatpush1.msra.mxu0 0.0
      %8216 = vmatprep.subr.mxu0 0.0
      %8217 = vmatpush1.msra.mxu0 0.0
      %8218 = vmatprep.subr.mxu0 0.0
      %8219 = vmatpush1.msra.mxu0 0.0
      %8220 = vmatprep.subr.mxu0 0.0
      %8221 = vmatpush1.msra.mxu0 0.0
      %8222 = vmatprep.subr.mxu0 0.0
      %8223 = vmatpush1.msra.mxu0 0.0
      %8224 = vmatprep.subr.mxu0 0.0
      %8225 = vmatpush1.msra.mxu0 0.0
      %8226 = vmatprep.subr.mxu0 0.0
      %8227 = vmatpush1.msra.mxu0 0.0
      %8228 = vmatprep.mubr.f32.mxu0 0.0
      %8229 = vmatmul.mubr.f32.gmra.mrb[0].mxu0 %v8096
      %v8230 = vpop.f32.mrb[0].mxu0
      %v8231 = vadd.f32 %v8152, %v8230
      %v8232 = vpop.f32.mrb[0].mxu0
      %v8233 = vadd.f32 %v8156, %v8232
      %8234 = vdwg.mxu0
      %8235 = vmatprep.subr.mxu0 0.0
      %8236 = vmatpush1.msra.mxu0 %v8101
      %8237 = vmatprep.subr.mxu0 0.0
      %8238 = vmatpush1.msra.mxu0 %v8104
      %8239 = vmatprep.subr.mxu0 0.0
      %8240 = vmatpush1.msra.mxu0 %v8107
      %8241 = vmatprep.subr.mxu0 0.0
      %8242 = vmatpush1.msra.mxu0 %v8110
      %8243 = vmatprep.subr.mxu0 0.0
      %8244 = vmatpush1.msra.mxu0 %v8113
      %8245 = vmatprep.subr.mxu0 0.0
      %8246 = vmatpush1.msra.mxu0 %v8116
      %8247 = vmatprep.subr.mxu0 0.0
      %8248 = vmatpush1.msra.mxu0 %v8119
      %8249 = vmatprep.subr.mxu0 0.0
      %8250 = vmatpush1.msra.mxu0 %v8122
      %8251 = vmatprep.subr.mxu0 0.0
      %8252 = vmatpush1.msra.mxu0 %v8125
      %8253 = vmatprep.subr.mxu0 0.0
      %8254 = vmatpush1.msra.mxu0 %v8128
      %8255 = vmatprep.subr.mxu0 0.0
      %8256 = vmatpush1.msra.mxu0 %v8131
      %8257 = vmatprep.subr.mxu0 0.0
      %8258 = vmatpush1.msra.mxu0 %v8134
      %8259 = vmatprep.subr.mxu0 0.0
      %8260 = vmatpush1.msra.mxu0 %v8137
      %8261 = vmatprep.subr.mxu0 0.0
      %8262 = vmatpush1.msra.mxu0 %v8140
      %8263 = vmatprep.subr.mxu0 0.0
      %8264 = vmatpush1.msra.mxu0 %v8143
      %8265 = vmatprep.subr.mxu0 0.0
      %8266 = vmatpush1.msra.mxu0 %v8146
      %8267 = vmatprep.subr.mxu0 0.0
      %8268 = vmatpush1.msra.mxu0 0.0
      %8269 = vmatprep.subr.mxu0 0.0
      %8270 = vmatpush1.msra.mxu0 0.0
      %8271 = vmatprep.subr.mxu0 0.0
      %8272 = vmatpush1.msra.mxu0 0.0
      %8273 = vmatprep.subr.mxu0 0.0
      %8274 = vmatpush1.msra.mxu0 0.0
      %8275 = vmatprep.subr.mxu0 0.0
      %8276 = vmatpush1.msra.mxu0 0.0
      %8277 = vmatprep.subr.mxu0 0.0
      %8278 = vmatpush1.msra.mxu0 0.0
      %8279 = vmatprep.subr.mxu0 0.0
      %8280 = vmatpush1.msra.mxu0 0.0
      %8281 = vmatprep.subr.mxu0 0.0
      %8282 = vmatpush1.msra.mxu0 0.0
      %8283 = vmatprep.subr.mxu0 0.0
      %8284 = vmatpush1.msra.mxu0 0.0
      %8285 = vmatprep.subr.mxu0 0.0
      %8286 = vmatpush1.msra.mxu0 0.0
      %8287 = vmatprep.subr.mxu0 0.0
      %8288 = vmatpush1.msra.mxu0 0.0
      %8289 = vmatprep.subr.mxu0 0.0
      %8290 = vmatpush1.msra.mxu0 0.0
      %8291 = vmatprep.subr.mxu0 0.0
      %8292 = vmatpush1.msra.mxu0 0.0
      %8293 = vmatprep.subr.mxu0 0.0
      %8294 = vmatpush1.msra.mxu0 0.0
      %8295 = vmatprep.subr.mxu0 0.0
      %8296 = vmatpush1.msra.mxu0 0.0
      %8297 = vmatprep.subr.mxu0 0.0
      %8298 = vmatpush1.msra.mxu0 0.0
      %8299 = vmatprep.mubr.f32.mxu0 0.0
      %8300 = vmatmul.mubr.f32.gmra.mrb[0].mxu0 %v8096
      %v8301 = vpop.f32.mrb[0].mxu0
      %v8302 = vadd.f32 %v8160, %v8301
      %v8303 = vpop.f32.mrb[0].mxu0
      %8304 = vdwg.mxu0
      %s8305 = scalar_lea.vmem [#allocation3], 744
      %v8306 = vld [vmem:[%s8305] sm:$0xff]
      %v8307 = vld [vmem:[%s8305 + $0x8] sm:$0xff]
      %v8308 = vld [vmem:[%s8305 + $0x10] sm:$0xff]
      %v8309 = vadd.f32 %v8306, %v8231
      %v8310 = vxor.u32 %v8309, 2147483648
      %v8311 = vmul.f32 %v8310, 1.442695
      %v8312 = vpow.pop %v8311
      %v8313 = vadd.f32 %v8312, 1.0
      %v8314 = vrcp.pop %v8313
      %v8315 = vmul.f32 1.0, %v8314
      %v8316 = vadd.f32 %v8307, %v8233
      %v8317 = vxor.u32 %v8316, 2147483648
      %v8318 = vmul.f32 %v8317, 1.442695
      %v8319 = vpow.pop %v8318
      %v8320 = vadd.f32 %v8319, 1.0
      %v8321 = vrcp.pop %v8320
      %v8322 = vmul.f32 1.0, %v8321
      %v8323 = vmul.f32 %v8315, %v8302
      %v8324 = vadd.f32 %v8308, %v8323
      %v8325 = vtanh.pop %v8324
      %v8326 = vsub.f32 %v8096, %v8325
      %v8327 = vmul.f32 %v8322, %v8326
      %v8328 = vadd.f32 %v8325, %v8327
      %s8329 = scalar_lea.vmem %s226, 248
      %8330 = vst [vmem:[%s8329] sm:$0xff] %v8328
      %8331 = vst [vmem:[#allocation2] sm:$0xff] %v8328
      %s8332 = smul.u32 32, %s16
      %p8333 = scmp.lt.s32.totalorder %s8332, 63
      %s8334 = scalar_select %p8333, %s8332, 63
      %s8335 = smul.addr %s8334, 8
      %s8336 = scalar_lea.vmem %s5, %s8335
      // Predicated region
      $region45: #{deep_rnn_net_pallas.2} parent=39 // pred_check
        %p8337 = pneg %p144
      $region46: #{deep_rnn_net_pallas.2} parent=39 // pred_check_branch
        %8339 = sbr.rel (%p8337) target = $region48
      $region47: #{deep_rnn_net_pallas.2} parent=39 // pred_region
        %s8340 = smul.u32 32, %s16
      $region48: #{deep_rnn_net_pallas.2} parent=39 // pred_fallthru
        _
    $region40: #{deep_rnn_net_pallas.2} parent=5 // pred_fallthru
      _
    %p8341 = scmp.le.s32.totalorder 2, %s11
    // Predicated region
    $region49: #{deep_rnn_net_pallas.2} parent=5 // pred_check
      %p8342 = pneg %p8341
    $region50: #{deep_rnn_net_pallas.2} parent=5 // pred_check_branch
      %8344 = sbr.rel (%p8342) target = $region52
    $region51: #{deep_rnn_net_pallas.2} parent=5 // pred_region
      %s8345 = ssub.s32 %s11, 2
      // Predicated region
      $region53: #{deep_rnn_net_pallas.2} parent=51 // pred_check
        %p8346 = pneg %p150
      $region54: #{deep_rnn_net_pallas.2} parent=51 // pred_check_branch
        %8348 = sbr.rel (%p8346) target = $region56
      $region55: #{deep_rnn_net_pallas.2} parent=51 // pred_region
        %s8349 = smul.u32 32, %s17
        %p8350 = scmp.lt.s32.totalorder %s8349, 63
        %s8351 = scalar_select %p8350, %s8349, 63
        %s8352 = smul.addr %s8351, 8
        %s8353 = scalar_lea.vmem %s5, %s8352
      $region56: #{deep_rnn_net_pallas.2} parent=51 // pred_fallthru
        _
    $region52: #{deep_rnn_net_pallas.2} parent=5 // pred_fallthru
      _
  $region6: #{deep_rnn_net_pallas.2} parent=0 // loop_footer
    %s15 = sadd.s32 1, %s11
  $region7: #{deep_rnn_net_pallas.2} parent=0 // loop_footer_branch
    %10 = sbr.rel target = $region3
  $region8: #{deep_rnn_net_pallas.2} parent=0 // loop_exit
    _

</llo_original>
